<compile_context>
chip_gen: v7x
topology: tpu7x:2x2x1
jax: 0.10.0
libtpu: 0.0.40
codegen_flags: <defaults>
</compile_context>

<pallas_src>
import jax
import jax.numpy as jnp
from jax import lax
from jax.experimental import pallas as pl

# ---- hyper-parameters of AutoEncoder(P, L, size, patch, dim) -----------------------------
P, L, SIZE, PATCH, DIM = 4, 8, 16, 4, 16
VIT_DIM = DIM * P                       # 64  transformer width (= num_classes)
ENC_OUT = VIT_DIM // PATCH ** 2         # 4   encoder output channels (ViT input channels)
NUM_PATCHES = (SIZE // PATCH) ** 2      # 16
PATCH_DIM = ENC_OUT * PATCH ** 2        # 64
HEADS, DIM_HEAD, MLP_DIM, DEPTH = 8, 64, 12, 2
HEAD_PAD = 128                          # dim_head zero-padded to a full lane tile
INNER_PAD = HEADS * HEAD_PAD            # 1024
MLP_PAD = 128                           # mlp_dim zero-padded to a full lane tile
HW = SIZE * SIZE                        # 256
N_TOK = NUM_PATCHES + 1                 # 17
TAPS = 9                                # 3x3 smooth-conv taps
TAIL_K = TAPS * VIT_DIM                 # 576  contraction dim of the fused tail matmul
OUT_ROWS = 16                           # 4 abu + 8 reconstruction + 4 pad rows
EPS_LN = 1e-5
NEG_SLOPE = 0.01                        # nn.LeakyReLU default
ATT_SCALE = DIM_HEAD ** -0.5


def _layer_norm(x, g, b):
    mu = jnp.mean(x, axis=-1, keepdims=True)
    var = jnp.mean((x - mu) ** 2, axis=-1, keepdims=True)
    return (x - mu) * lax.rsqrt(var + EPS_LN) * g + b


# ----------------------------------- single fused kernel ----------------------------------
def fused_forward_kernel(
        # encoder input (channel-major raster pixels) + BN-folded 1x1-conv weights
        x_ref, w1_ref, t1_ref, w2_ref, t2_ref, w3t_ref, t3t_ref,
        # patch-embed rearrangement constants + embedding weights / token bias
        pmask_ref, gather_ref, pew_ref, tokb_ref,
        # transformer weights (stacked on a leading DEPTH axis)
        ln1g_ref, ln1b_ref, wq_ref, wv_ref, wkt_ref, wout_ref, bout_ref,
        ln2g_ref, ln2b_ref, wf1_ref, bf1_ref, wf2_ref, bf2_ref,
        # mlp head
        hg_ref, hb_ref, hw_ref, hbias_ref,
        # fused upscale+smooth tail constants and combined output mixer
        smc_ref, wstack_ref, bsm_ref, outw_ref,
        # output: (16, 256) slab -> rows 0..3 abu, rows 4..11 reconstruction, 12..15 pad
        out_ref):
    f32, bf16 = jnp.float32, jnp.bfloat16

    # -------- encoder: 1x1 convs (eval BN folded in), LeakyReLU; Dropout = identity -------
    # Input is channel-major (L, HW); transposed-LHS dot replaces the old host-side permute.
    h = lax.dot_general(x_ref[...], w1_ref[...], (((0,), (0,)), ((), ())),
                        preferred_element_type=f32) + t1_ref[...]              # (256, 128)
    h = jnp.where(h > 0, h, NEG_SLOPE * h)
    h = jnp.dot(h.astype(bf16), w2_ref[...], preferred_element_type=f32) + t2_ref[...]
    h = jnp.where(h > 0, h, NEG_SLOPE * h)                                      # (256, 64)
    # conv3+BN lane-tiled 16x; mask scatters each pixel's 4 channels into its patch slot.
    x1 = (jnp.dot(h.astype(bf16), w3t_ref[...], preferred_element_type=f32)
          + t3t_ref[...]) * pmask_ref[...]                                      # (256, 64)

    # -------- patch embedding + cls token + positional embedding (all matmul) -------------
    pat17 = jnp.dot(gather_ref[...], x1.astype(bf16), preferred_element_type=f32)  # (17,64)
    tokens = jnp.dot(pat17.astype(bf16), pew_ref[...],
                     preferred_element_type=f32) + tokb_ref[...]                 # (17, 64)

    # -------- transformer: DEPTH x (PreNorm attention + PreNorm MLP) ----------------------
    for lyr in range(DEPTH):                                        # static unroll
        x = tokens
        xn_b = _layer_norm(x, ln1g_ref[lyr], ln1b_ref[lyr]).astype(bf16)
        # q / v head-major, each head zero-padded 64 -> 128 lanes (all slices vreg-aligned)
        q = jnp.dot(xn_b, wq_ref[lyr], preferred_element_type=f32).astype(bf16)  # (17,1024)
        v = jnp.dot(xn_b, wv_ref[lyr], preferred_element_type=f32).astype(bf16)  # (17,1024)
        # k^T for all heads in one matmul: a single small transpose (of xn) per layer
        kt = lax.dot_general(wkt_ref[lyr], xn_b, (((1,), (1,)), ((), ())),
                             preferred_element_type=f32).astype(bf16)            # (1024,17)
        wo = wout_ref[lyr]                                                        # (1024,64)
        attn = jnp.broadcast_to(bout_ref[lyr], (N_TOK, VIT_DIM))
        for hh in range(HEADS):                                     # static unroll
            c0 = hh * HEAD_PAD
            s = jnp.dot(q[:, c0:c0 + HEAD_PAD], kt[c0:c0 + HEAD_PAD, :],
                        preferred_element_type=f32) * ATT_SCALE                  # (17, 17)
            e = jnp.exp(s)                       # logits tiny -> max-shift not needed
            pr = (e / jnp.sum(e, axis=-1, keepdims=True)).astype(bf16)
            o_h = jnp.dot(pr, v[:, c0:c0 + HEAD_PAD], preferred_element_type=f32)
            # accumulate directly into the output projection (no 8-way concat)
            attn = attn + jnp.dot(o_h.astype(bf16), wo[c0:c0 + HEAD_PAD, :],
                                  preferred_element_type=f32)                    # (17, 64)
        x = x + attn
        xn2 = _layer_norm(x, ln2g_ref[lyr], ln2b_ref[lyr])
        h1 = jnp.dot(xn2.astype(bf16), wf1_ref[lyr],
                     preferred_element_type=f32) + bf1_ref[lyr]                  # (17, 128)
        # TODO(synk): torch nn.GELU is exact (erf); tanh approximation used for robust lowering.
        h1 = jax.nn.gelu(h1, approximate=True)
        tokens = x + jnp.dot(h1.astype(bf16), wf2_ref[lyr],
                             preferred_element_type=f32) + bf2_ref[lyr]

    # -------- mlp head (pool = 'cls'): LayerNorm + Linear(dim, dim*P) ---------------------
    cls_emb = (jnp.dot(_layer_norm(tokens[0:1, :], hg_ref[...], hb_ref[...]).astype(bf16),
                       hw_ref[...], preferred_element_type=f32) + hbias_ref[...])  # (1, 64)

    # -------- fused tail: view(P,DIM) + upscale Linear + 3x3 smooth conv as ONE matmul ----
    # sm = ((cls tiled 9x over taps) * smC) @ W_stack + bias_sm; the reshape, up_w, the 9
    # lane rolls, boundary masks and per-tap conv weights are all folded into the constants.
    cls9 = jnp.concatenate([cls_emb] * TAPS, axis=1)                             # (1, 576)
    lhs = (jnp.broadcast_to(cls9, (P, TAIL_K)) * smc_ref[...]).astype(bf16)      # (4, 576)
    sm = jnp.dot(lhs, wstack_ref[...], preferred_element_type=f32) + bsm_ref[...]  # (4,256)
    # channel softmax (over the P sublanes)
    sm = sm - jnp.max(sm, axis=0, keepdims=True)
    es = jnp.exp(sm)
    abu = es / jnp.sum(es, axis=0, keepdims=True)                                # (4, 256)

    # -------- decoder 1x1 conv + ReLU fused with the abu pass-through into one slab -------
    # rows 0..3 = abu (softmax >= 0 so ReLU is identity there), 4..11 = ReLU(dec_w @ abu),
    # 12..15 = 0.  Single lane-dense (16, 256) unmasked store.
    out_ref[...] = jnp.maximum(
        jnp.dot(outw_ref[...], abu, preferred_element_type=f32), 0.0)


# ----------------------------------- wrapper / glue ---------------------------------------
@jax.jit
def autoencoder_forward(x_nchw, p):
    x_cm = x_nchw.reshape(L, HW)        # free reshape: channel-major, raster pixel order
    out = pl.pallas_call(
        fused_forward_kernel,
        out_shape=jax.ShapeDtypeStruct((OUT_ROWS, HW), jnp.float32),
    )(x_cm,
      p["enc_w1"], p["enc_t1"], p["enc_w2"], p["enc_t2"], p["enc_w3t"], p["enc_t3t"],
      p["patch_mask"], p["gather17"], p["pe_w"], p["tok_bias"],
      p["ln1g"], p["ln1b"], p["wq"], p["wv"], p["wkT"], p["wout"], p["bout"],
      p["ln2g"], p["ln2b"], p["wf1"], p["bf1"], p["wf2"], p["bf2"],
      p["head_g"], p["head_b"], p["head_w"], p["head_bias"],
      p["smc"], p["w_stack"], p["bias_sm"], p["out_w"])
    abu_est = out[0:P].reshape(1, P, SIZE, SIZE)
    re_result = out[P:P + L].reshape(1, L, SIZE, SIZE)
    return abu_est, re_result


# ----------------------------------- parameter init ---------------------------------------
def init_params(key):
    ks = iter(jax.random.split(key, 96))
    f32, bf16 = jnp.float32, jnp.bfloat16

    def nrm(shape, std=0.05):
        return std * jax.random.normal(next(ks), shape, f32)

    def bn_fold(c, conv_bias):
        # eval-mode BatchNorm folded into a per-channel scale / shift (incl. conv bias)
        gamma = 1.0 + 0.1 * jax.random.normal(next(ks), (c,), f32)
        beta = 0.1 * jax.random.normal(next(ks), (c,), f32)
        mean = 0.1 * jax.random.normal(next(ks), (c,), f32)
        var = jax.random.uniform(next(ks), (c,), f32, minval=0.5, maxval=1.5)
        scale = gamma / jnp.sqrt(var + 1e-5)
        shift = beta - mean * scale + scale * conv_bias
        return scale, shift

    p = {}
    # ---- encoder: 1x1 convs stored (C_in, C_out); BN scales folded into the weights ------
    w1 = nrm((L, 128)); s1, t1 = bn_fold(128, nrm((128,)))
    p["enc_w1"] = w1 * s1                       # f32 (used in the transposed-LHS first dot)
    p["enc_t1"] = t1.reshape(1, 128)
    w2 = nrm((128, 64)); s2, t2 = bn_fold(64, nrm((64,)))
    p["enc_w2"] = (w2 * s2).astype(bf16)
    p["enc_t2"] = t2.reshape(1, 64)
    w3 = nrm((64, ENC_OUT)); s3, t3 = bn_fold(ENC_OUT, nrm((ENC_OUT,)))
    p["enc_w3t"] = jnp.tile(w3 * s3, (1, PATCH * PATCH)).astype(bf16)          # (64, 64)
    p["enc_t3t"] = jnp.tile(t3.reshape(1, ENC_OUT), (1, PATCH * PATCH))        # (1, 64)

    # ---- raster-order patch-rearrangement constants ---------------------------------------
    r = jnp.arange(HW)
    ys, xs = r // SIZE, r % SIZE
    slot = (ys % PATCH) * PATCH + (xs % PATCH)          # within-patch position (p1 p2)
    pid = (ys // PATCH) * PATCH + (xs // PATCH)         # patch index (h w)
    p["patch_mask"] = (jnp.arange(VIT_DIM)[None, :] // ENC_OUT
                       == slot[:, None]).astype(f32)                            # (256, 64)
    g = (pid[None, :] == jnp.arange(NUM_PATCHES)[:, None]).astype(f32)          # (16, 256)
    p["gather17"] = jnp.concatenate([jnp.zeros((1, HW), f32), g], 0).astype(bf16)

    # ---- ViT: patch embedding + cls token + positional embedding folded into a bias ------
    p["pe_w"] = nrm((PATCH_DIM, VIT_DIM)).astype(bf16)
    pe_b = nrm((1, VIT_DIM)); cls = nrm((1, VIT_DIM)); pos = nrm((N_TOK, VIT_DIM))
    p["tok_bias"] = jnp.concatenate([cls + pos[0:1], pe_b + pos[1:]], axis=0)   # (17, 64)

    # ---- transformer layers: head-major, dim_head zero-padded 64 -> 128 -------------------
    def pad_heads_cols(w):      # (64, 512) -> (64, 1024): column hh*128+j = w[:, hh*64+j]
        return jnp.pad(w.reshape(VIT_DIM, HEADS, DIM_HEAD),
                       ((0, 0), (0, 0), (0, HEAD_PAD - DIM_HEAD))).reshape(VIT_DIM, INNER_PAD)

    def pad_heads_rows(w):      # (512, 64) -> (1024, 64): row hh*128+j = w[hh*64+j, :]
        return jnp.pad(w.reshape(HEADS, DIM_HEAD, VIT_DIM),
                       ((0, 0), (0, HEAD_PAD - DIM_HEAD), (0, 0))).reshape(INNER_PAD, VIT_DIM)

    stk = {k: [] for k in ("ln1g", "ln1b", "wq", "wv", "wkT", "wout", "bout",
                           "ln2g", "ln2b", "wf1", "bf1", "wf2", "bf2")}
    for _ in range(DEPTH):
        stk["ln1g"].append(1.0 + nrm((1, VIT_DIM)))
        stk["ln1b"].append(nrm((1, VIT_DIM)))
        wq = nrm((VIT_DIM, HEADS * DIM_HEAD))
        wk = nrm((VIT_DIM, HEADS * DIM_HEAD))
        wv = nrm((VIT_DIM, HEADS * DIM_HEAD))
        stk["wq"].append(pad_heads_cols(wq))
        stk["wv"].append(pad_heads_cols(wv))
        stk["wkT"].append(pad_heads_rows(wk.T))             # pre-transposed K weight
        stk["wout"].append(pad_heads_rows(nrm((HEADS * DIM_HEAD, VIT_DIM))))
        stk["bout"].append(nrm((1, VIT_DIM)))
        stk["ln2g"].append(1.0 + nrm((1, VIT_DIM)))
        stk["ln2b"].append(nrm((1, VIT_DIM)))
        stk["wf1"].append(jnp.pad(nrm((VIT_DIM, MLP_DIM)), ((0, 0), (0, MLP_PAD - MLP_DIM))))
        stk["bf1"].append(jnp.pad(nrm((1, MLP_DIM)), ((0, 0), (0, MLP_PAD - MLP_DIM))))
        stk["wf2"].append(jnp.pad(nrm((MLP_DIM, VIT_DIM)), ((0, MLP_PAD - MLP_DIM), (0, 0))))
        stk["bf2"].append(nrm((1, VIT_DIM)))
    for k, v in stk.items():
        arr = jnp.stack(v, axis=0)
        if k in ("wq", "wv", "wkT", "wout", "wf1", "wf2"):
            arr = arr.astype(bf16)
        p[k] = arr

    # ---- mlp head: LayerNorm + Linear(dim, dim*P) -----------------------------------------
    p["head_g"] = 1.0 + nrm((1, VIT_DIM))
    p["head_b"] = nrm((1, VIT_DIM))
    p["head_w"] = nrm((VIT_DIM, VIT_DIM)).astype(bf16)
    p["head_bias"] = nrm((1, VIT_DIM))

    # ---- fused tail: view(P,DIM) + upscale + 3x3 smooth conv folded offline ---------------
    up_w = nrm((DIM, HW))                       # Linear(dim, size^2) weight, stored (16,256)
    up_b = nrm((HW,))
    w_sm = nrm((P, P, 3, 3))                    # torch conv weight (out, in, ky, kx)
    sm_b = nrm((P,))
    blocks, smc_cols = [], []
    bias_sm = jnp.broadcast_to(sm_b[:, None], (P, HW))
    for ky in range(3):
        for kx in range(3):
            dy, dx = ky - 1, kx - 1
            s = dy * SIZE + dx
            mask = ((ys + dy >= 0) & (ys + dy < SIZE)
                    & (xs + dx >= 0) & (xs + dx < SIZE)).astype(f32)            # (256,)
            wp = jnp.roll(up_w, -s, axis=1) * mask[None, :]                     # (16, 256)
            bp = jnp.roll(up_b, -s) * mask                                      # (256,)
            blocks.append(jnp.tile(wp, (P, 1)))                                 # (64, 256)
            bias_sm = bias_sm + w_sm[:, :, ky, kx].sum(axis=1)[:, None] * bp[None, :]
            smc_cols.append(jnp.repeat(w_sm[:, :, ky, kx], DIM, axis=1))        # (P, 64)
    p["w_stack"] = jnp.concatenate(blocks, axis=0).astype(bf16)                 # (576, 256)
    p["smc"] = jnp.concatenate(smc_cols, axis=1)                                # (P, 576)
    p["bias_sm"] = bias_sm                                                      # (P, 256)

    # ---- decoder 1x1 conv (no bias) fused with abu pass-through into one mixing matrix ----
    dec_w = nrm((L, P))                                                         # torch (L, P)
    p["out_w"] = jnp.concatenate(
        [jnp.eye(P, dtype=f32), dec_w, jnp.zeros((OUT_ROWS - P - L, P), f32)], axis=0)
    return p


if __name__ == "__main__":
    x = jax.random.normal(jax.random.PRNGKey(0), (1, L, SIZE, SIZE), jnp.float32)
    params = init_params(jax.random.PRNGKey(1))
    abu_est, re_result = autoencoder_forward(x, params)
    jax.block_until_ready((abu_est, re_result))
    assert abu_est.shape == (1, P, SIZE, SIZE)
    assert re_result.shape == (1, L, SIZE, SIZE)
    assert bool(jnp.isfinite(abu_est).all()) and bool(jnp.isfinite(re_result).all())
    # the smoothed abundances are a channel softmax -> must sum to 1 per pixel
    assert float(jnp.max(jnp.abs(abu_est.sum(axis=1) - 1.0))) < 1e-3
    print("KERNEL_OK")
</pallas_src>

<mosaic_0001>
module attributes {stable_mosaic.version = 11 : i64} {
  func.func @fused_forward_kernel(%arg0: memref<8x256xf32, #tpu.memory_space<vmem>>, %arg1: memref<8x128xf32, #tpu.memory_space<vmem>>, %arg2: memref<1x128xf32, #tpu.memory_space<vmem>>, %arg3: memref<128x64xbf16, #tpu.memory_space<vmem>>, %arg4: memref<1x64xf32, #tpu.memory_space<vmem>>, %arg5: memref<64x64xbf16, #tpu.memory_space<vmem>>, %arg6: memref<1x64xf32, #tpu.memory_space<vmem>>, %arg7: memref<256x64xf32, #tpu.memory_space<vmem>>, %arg8: memref<17x256xbf16, #tpu.memory_space<vmem>>, %arg9: memref<64x64xbf16, #tpu.memory_space<vmem>>, %arg10: memref<17x64xf32, #tpu.memory_space<vmem>>, %arg11: memref<2x1x64xf32, #tpu.memory_space<vmem>>, %arg12: memref<2x1x64xf32, #tpu.memory_space<vmem>>, %arg13: memref<2x64x1024xbf16, #tpu.memory_space<vmem>>, %arg14: memref<2x64x1024xbf16, #tpu.memory_space<vmem>>, %arg15: memref<2x1024x64xbf16, #tpu.memory_space<vmem>>, %arg16: memref<2x1024x64xbf16, #tpu.memory_space<vmem>>, %arg17: memref<2x1x64xf32, #tpu.memory_space<vmem>>, %arg18: memref<2x1x64xf32, #tpu.memory_space<vmem>>, %arg19: memref<2x1x64xf32, #tpu.memory_space<vmem>>, %arg20: memref<2x64x128xbf16, #tpu.memory_space<vmem>>, %arg21: memref<2x1x128xf32, #tpu.memory_space<vmem>>, %arg22: memref<2x128x64xbf16, #tpu.memory_space<vmem>>, %arg23: memref<2x1x64xf32, #tpu.memory_space<vmem>>, %arg24: memref<1x64xf32, #tpu.memory_space<vmem>>, %arg25: memref<1x64xf32, #tpu.memory_space<vmem>>, %arg26: memref<64x64xbf16, #tpu.memory_space<vmem>>, %arg27: memref<1x64xf32, #tpu.memory_space<vmem>>, %arg28: memref<4x576xf32, #tpu.memory_space<vmem>>, %arg29: memref<576x256xbf16, #tpu.memory_space<vmem>>, %arg30: memref<4x256xf32, #tpu.memory_space<vmem>>, %arg31: memref<16x4xf32, #tpu.memory_space<vmem>>, %arg32: memref<16x256xf32, #tpu.memory_space<vmem>>) attributes {dimension_semantics = [], scalar_prefetch = 0 : i64, scratch_operands = 0 : i64, tpu.core_type = #tpu.core_type<tc>} {
    %c0 = arith.constant 0 : index
    %c0_0 = arith.constant 0 : index
    %0 = vector.load %arg0[%c0, %c0_0] : memref<8x256xf32, #tpu.memory_space<vmem>>, vector<8x256xf32>
    %c0_1 = arith.constant 0 : index
    %c0_2 = arith.constant 0 : index
    %1 = vector.load %arg1[%c0_1, %c0_2] : memref<8x128xf32, #tpu.memory_space<vmem>>, vector<8x128xf32>
    %cst = arith.constant dense<0.000000e+00> : vector<256x128xf32>
    %2 = tpu.matmul %0, %1, %cst {dimension_numbers = #tpu.dot_dimension_numbers<[0], [0], [1], [1], [0, 1, 1, 1], [], []>} : vector<8x256xf32>, vector<8x128xf32>, vector<256x128xf32> -> vector<256x128xf32>
    %c0_3 = arith.constant 0 : index
    %c0_4 = arith.constant 0 : index
    %3 = vector.load %arg2[%c0_3, %c0_4] : memref<1x128xf32, #tpu.memory_space<vmem>>, vector<1x128xf32>
    %4 = vector.broadcast %3 : vector<1x128xf32> to vector<256x128xf32>
    %5 = arith.addf %2, %4 : vector<256x128xf32>
    %cst_5 = arith.constant 0.000000e+00 : f32
    %6 = vector.broadcast %cst_5 : f32 to vector<256x128xf32>
    %7 = arith.cmpf ogt, %5, %6 : vector<256x128xf32>
    %cst_6 = arith.constant 0.00999999977 : f32
    %8 = vector.broadcast %cst_6 : f32 to vector<256x128xf32>
    %9 = arith.mulf %8, %5 : vector<256x128xf32>
    %10 = arith.select %7, %5, %9 : vector<256x128xi1>, vector<256x128xf32>
    %11 = arith.truncf %10 : vector<256x128xf32> to vector<256x128xbf16>
    %c0_7 = arith.constant 0 : index
    %c0_8 = arith.constant 0 : index
    %12 = vector.load %arg3[%c0_7, %c0_8] : memref<128x64xbf16, #tpu.memory_space<vmem>>, vector<128x64xbf16>
    %cst_9 = arith.constant dense<0.000000e+00> : vector<256x64xf32>
    %13 = tpu.matmul %11, %12, %cst_9 {dimension_numbers = #tpu.dot_dimension_numbers<[1], [0], [0], [1], [0, 0, 1, 1], [], []>} : vector<256x128xbf16>, vector<128x64xbf16>, vector<256x64xf32> -> vector<256x64xf32>
    %c0_10 = arith.constant 0 : index
    %c0_11 = arith.constant 0 : index
    %14 = vector.load %arg4[%c0_10, %c0_11] : memref<1x64xf32, #tpu.memory_space<vmem>>, vector<1x64xf32>
    %15 = vector.broadcast %14 : vector<1x64xf32> to vector<256x64xf32>
    %16 = arith.addf %13, %15 : vector<256x64xf32>
    %cst_12 = arith.constant 0.000000e+00 : f32
    %17 = vector.broadcast %cst_12 : f32 to vector<256x64xf32>
    %18 = arith.cmpf ogt, %16, %17 : vector<256x64xf32>
    %cst_13 = arith.constant 0.00999999977 : f32
    %19 = vector.broadcast %cst_13 : f32 to vector<256x64xf32>
    %20 = arith.mulf %19, %16 : vector<256x64xf32>
    %21 = arith.select %18, %16, %20 : vector<256x64xi1>, vector<256x64xf32>
    %22 = arith.truncf %21 : vector<256x64xf32> to vector<256x64xbf16>
    %c0_14 = arith.constant 0 : index
    %c0_15 = arith.constant 0 : index
    %23 = vector.load %arg5[%c0_14, %c0_15] : memref<64x64xbf16, #tpu.memory_space<vmem>>, vector<64x64xbf16>
    %cst_16 = arith.constant dense<0.000000e+00> : vector<256x64xf32>
    %24 = tpu.matmul %22, %23, %cst_16 {dimension_numbers = #tpu.dot_dimension_numbers<[1], [0], [0], [1], [0, 0, 1, 1], [], []>} : vector<256x64xbf16>, vector<64x64xbf16>, vector<256x64xf32> -> vector<256x64xf32>
    %c0_17 = arith.constant 0 : index
    %c0_18 = arith.constant 0 : index
    %25 = vector.load %arg6[%c0_17, %c0_18] : memref<1x64xf32, #tpu.memory_space<vmem>>, vector<1x64xf32>
    %26 = vector.broadcast %25 : vector<1x64xf32> to vector<256x64xf32>
    %27 = arith.addf %24, %26 : vector<256x64xf32>
    %c0_19 = arith.constant 0 : index
    %c0_20 = arith.constant 0 : index
    %28 = vector.load %arg7[%c0_19, %c0_20] : memref<256x64xf32, #tpu.memory_space<vmem>>, vector<256x64xf32>
    %29 = arith.mulf %27, %28 : vector<256x64xf32>
    %c0_21 = arith.constant 0 : index
    %c0_22 = arith.constant 0 : index
    %30 = vector.load %arg8[%c0_21, %c0_22] : memref<17x256xbf16, #tpu.memory_space<vmem>>, vector<17x256xbf16>
    %31 = arith.truncf %29 : vector<256x64xf32> to vector<256x64xbf16>
    %cst_23 = arith.constant dense<0.000000e+00> : vector<17x64xf32>
    %32 = tpu.matmul %30, %31, %cst_23 {dimension_numbers = #tpu.dot_dimension_numbers<[1], [0], [0], [1], [0, 0, 1, 1], [], []>} : vector<17x256xbf16>, vector<256x64xbf16>, vector<17x64xf32> -> vector<17x64xf32>
    %33 = arith.truncf %32 : vector<17x64xf32> to vector<17x64xbf16>
    %c0_24 = arith.constant 0 : index
    %c0_25 = arith.constant 0 : index
    %34 = vector.load %arg9[%c0_24, %c0_25] : memref<64x64xbf16, #tpu.memory_space<vmem>>, vector<64x64xbf16>
    %cst_26 = arith.constant dense<0.000000e+00> : vector<17x64xf32>
    %35 = tpu.matmul %33, %34, %cst_26 {dimension_numbers = #tpu.dot_dimension_numbers<[1], [0], [0], [1], [0, 0, 1, 1], [], []>} : vector<17x64xbf16>, vector<64x64xbf16>, vector<17x64xf32> -> vector<17x64xf32>
    %c0_27 = arith.constant 0 : index
    %c0_28 = arith.constant 0 : index
    %36 = vector.load %arg10[%c0_27, %c0_28] : memref<17x64xf32, #tpu.memory_space<vmem>>, vector<17x64xf32>
    %37 = arith.addf %35, %36 : vector<17x64xf32>
    %c0_29 = arith.constant 0 : index
    %c0_30 = arith.constant 0 : index
    %c0_31 = arith.constant 0 : index
    %38 = vector.load %arg11[%c0_29, %c0_30, %c0_31] : memref<2x1x64xf32, #tpu.memory_space<vmem>>, vector<1x1x64xf32>
    %39 = vector.shape_cast %38 : vector<1x1x64xf32> to vector<1x64xf32>
    %c0_32 = arith.constant 0 : index
    %c0_33 = arith.constant 0 : index
    %c0_34 = arith.constant 0 : index
    %40 = vector.load %arg12[%c0_32, %c0_33, %c0_34] : memref<2x1x64xf32, #tpu.memory_space<vmem>>, vector<1x1x64xf32>
    %41 = vector.shape_cast %40 : vector<1x1x64xf32> to vector<1x64xf32>
    %cst_35 = arith.constant dense<0.000000e+00> : vector<17xf32>
    %42 = vector.multi_reduction <add>, %37, %cst_35 [1] : vector<17x64xf32> to vector<17xf32>
    %43 = vector.shape_cast %42 : vector<17xf32> to vector<17x1xf32>
    %cst_36 = arith.constant 6.400000e+01 : f32
    %44 = vector.broadcast %cst_36 : f32 to vector<17x1xf32>
    %45 = arith.divf %43, %44 : vector<17x1xf32>
    %46 = vector.broadcast %45 : vector<17x1xf32> to vector<17x64xf32>
    %47 = arith.subf %37, %46 : vector<17x64xf32>
    %48 = arith.mulf %47, %47 : vector<17x64xf32>
    %cst_37 = arith.constant dense<0.000000e+00> : vector<17xf32>
    %49 = vector.multi_reduction <add>, %48, %cst_37 [1] : vector<17x64xf32> to vector<17xf32>
    %50 = vector.shape_cast %49 : vector<17xf32> to vector<17x1xf32>
    %cst_38 = arith.constant 6.400000e+01 : f32
    %51 = vector.broadcast %cst_38 : f32 to vector<17x1xf32>
    %52 = arith.divf %50, %51 : vector<17x1xf32>
    %53 = vector.broadcast %45 : vector<17x1xf32> to vector<17x64xf32>
    %54 = arith.subf %37, %53 : vector<17x64xf32>
    %cst_39 = arith.constant 9.99999974E-6 : f32
    %55 = vector.broadcast %cst_39 : f32 to vector<17x1xf32>
    %56 = arith.addf %52, %55 : vector<17x1xf32>
    %57 = math.rsqrt %56 : vector<17x1xf32>
    %58 = vector.broadcast %57 : vector<17x1xf32> to vector<17x64xf32>
    %59 = arith.mulf %54, %58 : vector<17x64xf32>
    %60 = vector.broadcast %39 : vector<1x64xf32> to vector<17x64xf32>
    %61 = arith.mulf %59, %60 : vector<17x64xf32>
    %62 = vector.broadcast %41 : vector<1x64xf32> to vector<17x64xf32>
    %63 = arith.addf %61, %62 : vector<17x64xf32>
    %64 = arith.truncf %63 : vector<17x64xf32> to vector<17x64xbf16>
    %c0_40 = arith.constant 0 : index
    %c0_41 = arith.constant 0 : index
    %c0_42 = arith.constant 0 : index
    %65 = vector.load %arg13[%c0_40, %c0_41, %c0_42] : memref<2x64x1024xbf16, #tpu.memory_space<vmem>>, vector<1x64x1024xbf16>
    %66 = vector.shape_cast %65 : vector<1x64x1024xbf16> to vector<64x1024xbf16>
    %cst_43 = arith.constant dense<0.000000e+00> : vector<17x1024xf32>
    %67 = tpu.matmul %64, %66, %cst_43 {dimension_numbers = #tpu.dot_dimension_numbers<[1], [0], [0], [1], [0, 0, 1, 1], [], []>} : vector<17x64xbf16>, vector<64x1024xbf16>, vector<17x1024xf32> -> vector<17x1024xf32>
    %68 = arith.truncf %67 : vector<17x1024xf32> to vector<17x1024xbf16>
    %c0_44 = arith.constant 0 : index
    %c0_45 = arith.constant 0 : index
    %c0_46 = arith.constant 0 : index
    %69 = vector.load %arg14[%c0_44, %c0_45, %c0_46] : memref<2x64x1024xbf16, #tpu.memory_space<vmem>>, vector<1x64x1024xbf16>
    %70 = vector.shape_cast %69 : vector<1x64x1024xbf16> to vector<64x1024xbf16>
    %cst_47 = arith.constant dense<0.000000e+00> : vector<17x1024xf32>
    %71 = tpu.matmul %64, %70, %cst_47 {dimension_numbers = #tpu.dot_dimension_numbers<[1], [0], [0], [1], [0, 0, 1, 1], [], []>} : vector<17x64xbf16>, vector<64x1024xbf16>, vector<17x1024xf32> -> vector<17x1024xf32>
    %72 = arith.truncf %71 : vector<17x1024xf32> to vector<17x1024xbf16>
    %c0_48 = arith.constant 0 : index
    %c0_49 = arith.constant 0 : index
    %c0_50 = arith.constant 0 : index
    %73 = vector.load %arg15[%c0_48, %c0_49, %c0_50] : memref<2x1024x64xbf16, #tpu.memory_space<vmem>>, vector<1x1024x64xbf16>
    %74 = vector.shape_cast %73 : vector<1x1024x64xbf16> to vector<1024x64xbf16>
    %cst_51 = arith.constant dense<0.000000e+00> : vector<1024x17xf32>
    %75 = tpu.matmul %74, %64, %cst_51 {dimension_numbers = #tpu.dot_dimension_numbers<[1], [1], [0], [0], [0, 0, 1, 0], [], []>} : vector<1024x64xbf16>, vector<17x64xbf16>, vector<1024x17xf32> -> vector<1024x17xf32>
    %76 = arith.truncf %75 : vector<1024x17xf32> to vector<1024x17xbf16>
    %c0_52 = arith.constant 0 : index
    %c0_53 = arith.constant 0 : index
    %c0_54 = arith.constant 0 : index
    %77 = vector.load %arg16[%c0_52, %c0_53, %c0_54] : memref<2x1024x64xbf16, #tpu.memory_space<vmem>>, vector<1x1024x64xbf16>
    %78 = vector.shape_cast %77 : vector<1x1024x64xbf16> to vector<1024x64xbf16>
    %c0_55 = arith.constant 0 : index
    %c0_56 = arith.constant 0 : index
    %c0_57 = arith.constant 0 : index
    %79 = vector.load %arg17[%c0_55, %c0_56, %c0_57] : memref<2x1x64xf32, #tpu.memory_space<vmem>>, vector<1x1x64xf32>
    %80 = vector.shape_cast %79 : vector<1x1x64xf32> to vector<1x64xf32>
    %81 = vector.shape_cast %80 : vector<1x64xf32> to vector<1x64xf32>
    %82 = vector.broadcast %81 : vector<1x64xf32> to vector<17x64xf32>
    %83 = vector.extract_strided_slice %68 {offsets = [0, 0], sizes = [17, 128], strides = [1, 1]} : vector<17x1024xbf16> to vector<17x128xbf16>
    %84 = vector.extract_strided_slice %76 {offsets = [0, 0], sizes = [128, 17], strides = [1, 1]} : vector<1024x17xbf16> to vector<128x17xbf16>
    %cst_58 = arith.constant dense<0.000000e+00> : vector<17x17xf32>
    %85 = tpu.matmul %83, %84, %cst_58 {dimension_numbers = #tpu.dot_dimension_numbers<[1], [0], [0], [1], [0, 0, 1, 1], [], []>} : vector<17x128xbf16>, vector<128x17xbf16>, vector<17x17xf32> -> vector<17x17xf32>
    %cst_59 = arith.constant 1.250000e-01 : f32
    %86 = vector.broadcast %cst_59 : f32 to vector<17x17xf32>
    %87 = arith.mulf %85, %86 : vector<17x17xf32>
    %88 = math.exp %87 : vector<17x17xf32>
    %cst_60 = arith.constant dense<0.000000e+00> : vector<17xf32>
    %89 = vector.multi_reduction <add>, %88, %cst_60 [1] : vector<17x17xf32> to vector<17xf32>
    %90 = vector.shape_cast %89 : vector<17xf32> to vector<17x1xf32>
    %91 = vector.broadcast %90 : vector<17x1xf32> to vector<17x17xf32>
    %92 = arith.divf %88, %91 : vector<17x17xf32>
    %93 = arith.truncf %92 : vector<17x17xf32> to vector<17x17xbf16>
    %94 = vector.extract_strided_slice %72 {offsets = [0, 0], sizes = [17, 128], strides = [1, 1]} : vector<17x1024xbf16> to vector<17x128xbf16>
    %cst_61 = arith.constant dense<0.000000e+00> : vector<17x128xf32>
    %95 = tpu.matmul %93, %94, %cst_61 {dimension_numbers = #tpu.dot_dimension_numbers<[1], [0], [0], [1], [0, 0, 1, 1], [], []>} : vector<17x17xbf16>, vector<17x128xbf16>, vector<17x128xf32> -> vector<17x128xf32>
    %96 = arith.truncf %95 : vector<17x128xf32> to vector<17x128xbf16>
    %97 = vector.extract_strided_slice %78 {offsets = [0, 0], sizes = [128, 64], strides = [1, 1]} : vector<1024x64xbf16> to vector<128x64xbf16>
    %cst_62 = arith.constant dense<0.000000e+00> : vector<17x64xf32>
    %98 = tpu.matmul %96, %97, %cst_62 {dimension_numbers = #tpu.dot_dimension_numbers<[1], [0], [0], [1], [0, 0, 1, 1], [], []>} : vector<17x128xbf16>, vector<128x64xbf16>, vector<17x64xf32> -> vector<17x64xf32>
    %99 = arith.addf %82, %98 : vector<17x64xf32>
    %100 = vector.extract_strided_slice %68 {offsets = [0, 128], sizes = [17, 128], strides = [1, 1]} : vector<17x1024xbf16> to vector<17x128xbf16>
    %101 = vector.extract_strided_slice %76 {offsets = [128, 0], sizes = [128, 17], strides = [1, 1]} : vector<1024x17xbf16> to vector<128x17xbf16>
    %cst_63 = arith.constant dense<0.000000e+00> : vector<17x17xf32>
    %102 = tpu.matmul %100, %101, %cst_63 {dimension_numbers = #tpu.dot_dimension_numbers<[1], [0], [0], [1], [0, 0, 1, 1], [], []>} : vector<17x128xbf16>, vector<128x17xbf16>, vector<17x17xf32> -> vector<17x17xf32>
    %cst_64 = arith.constant 1.250000e-01 : f32
    %103 = vector.broadcast %cst_64 : f32 to vector<17x17xf32>
    %104 = arith.mulf %102, %103 : vector<17x17xf32>
    %105 = math.exp %104 : vector<17x17xf32>
    %cst_65 = arith.constant dense<0.000000e+00> : vector<17xf32>
    %106 = vector.multi_reduction <add>, %105, %cst_65 [1] : vector<17x17xf32> to vector<17xf32>
    %107 = vector.shape_cast %106 : vector<17xf32> to vector<17x1xf32>
    %108 = vector.broadcast %107 : vector<17x1xf32> to vector<17x17xf32>
    %109 = arith.divf %105, %108 : vector<17x17xf32>
    %110 = arith.truncf %109 : vector<17x17xf32> to vector<17x17xbf16>
    %111 = vector.extract_strided_slice %72 {offsets = [0, 128], sizes = [17, 128], strides = [1, 1]} : vector<17x1024xbf16> to vector<17x128xbf16>
    %cst_66 = arith.constant dense<0.000000e+00> : vector<17x128xf32>
    %112 = tpu.matmul %110, %111, %cst_66 {dimension_numbers = #tpu.dot_dimension_numbers<[1], [0], [0], [1], [0, 0, 1, 1], [], []>} : vector<17x17xbf16>, vector<17x128xbf16>, vector<17x128xf32> -> vector<17x128xf32>
    %113 = arith.truncf %112 : vector<17x128xf32> to vector<17x128xbf16>
    %114 = vector.extract_strided_slice %78 {offsets = [128, 0], sizes = [128, 64], strides = [1, 1]} : vector<1024x64xbf16> to vector<128x64xbf16>
    %cst_67 = arith.constant dense<0.000000e+00> : vector<17x64xf32>
    %115 = tpu.matmul %113, %114, %cst_67 {dimension_numbers = #tpu.dot_dimension_numbers<[1], [0], [0], [1], [0, 0, 1, 1], [], []>} : vector<17x128xbf16>, vector<128x64xbf16>, vector<17x64xf32> -> vector<17x64xf32>
    %116 = arith.addf %99, %115 : vector<17x64xf32>
    %117 = vector.extract_strided_slice %68 {offsets = [0, 256], sizes = [17, 128], strides = [1, 1]} : vector<17x1024xbf16> to vector<17x128xbf16>
    %118 = vector.extract_strided_slice %76 {offsets = [256, 0], sizes = [128, 17], strides = [1, 1]} : vector<1024x17xbf16> to vector<128x17xbf16>
    %cst_68 = arith.constant dense<0.000000e+00> : vector<17x17xf32>
    %119 = tpu.matmul %117, %118, %cst_68 {dimension_numbers = #tpu.dot_dimension_numbers<[1], [0], [0], [1], [0, 0, 1, 1], [], []>} : vector<17x128xbf16>, vector<128x17xbf16>, vector<17x17xf32> -> vector<17x17xf32>
    %cst_69 = arith.constant 1.250000e-01 : f32
    %120 = vector.broadcast %cst_69 : f32 to vector<17x17xf32>
    %121 = arith.mulf %119, %120 : vector<17x17xf32>
    %122 = math.exp %121 : vector<17x17xf32>
    %cst_70 = arith.constant dense<0.000000e+00> : vector<17xf32>
    %123 = vector.multi_reduction <add>, %122, %cst_70 [1] : vector<17x17xf32> to vector<17xf32>
    %124 = vector.shape_cast %123 : vector<17xf32> to vector<17x1xf32>
    %125 = vector.broadcast %124 : vector<17x1xf32> to vector<17x17xf32>
    %126 = arith.divf %122, %125 : vector<17x17xf32>
    %127 = arith.truncf %126 : vector<17x17xf32> to vector<17x17xbf16>
    %128 = vector.extract_strided_slice %72 {offsets = [0, 256], sizes = [17, 128], strides = [1, 1]} : vector<17x1024xbf16> to vector<17x128xbf16>
    %cst_71 = arith.constant dense<0.000000e+00> : vector<17x128xf32>
    %129 = tpu.matmul %127, %128, %cst_71 {dimension_numbers = #tpu.dot_dimension_numbers<[1], [0], [0], [1], [0, 0, 1, 1], [], []>} : vector<17x17xbf16>, vector<17x128xbf16>, vector<17x128xf32> -> vector<17x128xf32>
    %130 = arith.truncf %129 : vector<17x128xf32> to vector<17x128xbf16>
    %131 = vector.extract_strided_slice %78 {offsets = [256, 0], sizes = [128, 64], strides = [1, 1]} : vector<1024x64xbf16> to vector<128x64xbf16>
    %cst_72 = arith.constant dense<0.000000e+00> : vector<17x64xf32>
    %132 = tpu.matmul %130, %131, %cst_72 {dimension_numbers = #tpu.dot_dimension_numbers<[1], [0], [0], [1], [0, 0, 1, 1], [], []>} : vector<17x128xbf16>, vector<128x64xbf16>, vector<17x64xf32> -> vector<17x64xf32>
    %133 = arith.addf %116, %132 : vector<17x64xf32>
    %134 = vector.extract_strided_slice %68 {offsets = [0, 384], sizes = [17, 128], strides = [1, 1]} : vector<17x1024xbf16> to vector<17x128xbf16>
    %135 = vector.extract_strided_slice %76 {offsets = [384, 0], sizes = [128, 17], strides = [1, 1]} : vector<1024x17xbf16> to vector<128x17xbf16>
    %cst_73 = arith.constant dense<0.000000e+00> : vector<17x17xf32>
    %136 = tpu.matmul %134, %135, %cst_73 {dimension_numbers = #tpu.dot_dimension_numbers<[1], [0], [0], [1], [0, 0, 1, 1], [], []>} : vector<17x128xbf16>, vector<128x17xbf16>, vector<17x17xf32> -> vector<17x17xf32>
    %cst_74 = arith.constant 1.250000e-01 : f32
    %137 = vector.broadcast %cst_74 : f32 to vector<17x17xf32>
    %138 = arith.mulf %136, %137 : vector<17x17xf32>
    %139 = math.exp %138 : vector<17x17xf32>
    %cst_75 = arith.constant dense<0.000000e+00> : vector<17xf32>
    %140 = vector.multi_reduction <add>, %139, %cst_75 [1] : vector<17x17xf32> to vector<17xf32>
    %141 = vector.shape_cast %140 : vector<17xf32> to vector<17x1xf32>
    %142 = vector.broadcast %141 : vector<17x1xf32> to vector<17x17xf32>
    %143 = arith.divf %139, %142 : vector<17x17xf32>
    %144 = arith.truncf %143 : vector<17x17xf32> to vector<17x17xbf16>
    %145 = vector.extract_strided_slice %72 {offsets = [0, 384], sizes = [17, 128], strides = [1, 1]} : vector<17x1024xbf16> to vector<17x128xbf16>
    %cst_76 = arith.constant dense<0.000000e+00> : vector<17x128xf32>
    %146 = tpu.matmul %144, %145, %cst_76 {dimension_numbers = #tpu.dot_dimension_numbers<[1], [0], [0], [1], [0, 0, 1, 1], [], []>} : vector<17x17xbf16>, vector<17x128xbf16>, vector<17x128xf32> -> vector<17x128xf32>
    %147 = arith.truncf %146 : vector<17x128xf32> to vector<17x128xbf16>
    %148 = vector.extract_strided_slice %78 {offsets = [384, 0], sizes = [128, 64], strides = [1, 1]} : vector<1024x64xbf16> to vector<128x64xbf16>
    %cst_77 = arith.constant dense<0.000000e+00> : vector<17x64xf32>
    %149 = tpu.matmul %147, %148, %cst_77 {dimension_numbers = #tpu.dot_dimension_numbers<[1], [0], [0], [1], [0, 0, 1, 1], [], []>} : vector<17x128xbf16>, vector<128x64xbf16>, vector<17x64xf32> -> vector<17x64xf32>
    %150 = arith.addf %133, %149 : vector<17x64xf32>
    %151 = vector.extract_strided_slice %68 {offsets = [0, 512], sizes = [17, 128], strides = [1, 1]} : vector<17x1024xbf16> to vector<17x128xbf16>
    %152 = vector.extract_strided_slice %76 {offsets = [512, 0], sizes = [128, 17], strides = [1, 1]} : vector<1024x17xbf16> to vector<128x17xbf16>
    %cst_78 = arith.constant dense<0.000000e+00> : vector<17x17xf32>
    %153 = tpu.matmul %151, %152, %cst_78 {dimension_numbers = #tpu.dot_dimension_numbers<[1], [0], [0], [1], [0, 0, 1, 1], [], []>} : vector<17x128xbf16>, vector<128x17xbf16>, vector<17x17xf32> -> vector<17x17xf32>
    %cst_79 = arith.constant 1.250000e-01 : f32
    %154 = vector.broadcast %cst_79 : f32 to vector<17x17xf32>
    %155 = arith.mulf %153, %154 : vector<17x17xf32>
    %156 = math.exp %155 : vector<17x17xf32>
    %cst_80 = arith.constant dense<0.000000e+00> : vector<17xf32>
    %157 = vector.multi_reduction <add>, %156, %cst_80 [1] : vector<17x17xf32> to vector<17xf32>
    %158 = vector.shape_cast %157 : vector<17xf32> to vector<17x1xf32>
    %159 = vector.broadcast %158 : vector<17x1xf32> to vector<17x17xf32>
    %160 = arith.divf %156, %159 : vector<17x17xf32>
    %161 = arith.truncf %160 : vector<17x17xf32> to vector<17x17xbf16>
    %162 = vector.extract_strided_slice %72 {offsets = [0, 512], sizes = [17, 128], strides = [1, 1]} : vector<17x1024xbf16> to vector<17x128xbf16>
    %cst_81 = arith.constant dense<0.000000e+00> : vector<17x128xf32>
    %163 = tpu.matmul %161, %162, %cst_81 {dimension_numbers = #tpu.dot_dimension_numbers<[1], [0], [0], [1], [0, 0, 1, 1], [], []>} : vector<17x17xbf16>, vector<17x128xbf16>, vector<17x128xf32> -> vector<17x128xf32>
    %164 = arith.truncf %163 : vector<17x128xf32> to vector<17x128xbf16>
    %165 = vector.extract_strided_slice %78 {offsets = [512, 0], sizes = [128, 64], strides = [1, 1]} : vector<1024x64xbf16> to vector<128x64xbf16>
    %cst_82 = arith.constant dense<0.000000e+00> : vector<17x64xf32>
    %166 = tpu.matmul %164, %165, %cst_82 {dimension_numbers = #tpu.dot_dimension_numbers<[1], [0], [0], [1], [0, 0, 1, 1], [], []>} : vector<17x128xbf16>, vector<128x64xbf16>, vector<17x64xf32> -> vector<17x64xf32>
    %167 = arith.addf %150, %166 : vector<17x64xf32>
    %168 = vector.extract_strided_slice %68 {offsets = [0, 640], sizes = [17, 128], strides = [1, 1]} : vector<17x1024xbf16> to vector<17x128xbf16>
    %169 = vector.extract_strided_slice %76 {offsets = [640, 0], sizes = [128, 17], strides = [1, 1]} : vector<1024x17xbf16> to vector<128x17xbf16>
    %cst_83 = arith.constant dense<0.000000e+00> : vector<17x17xf32>
    %170 = tpu.matmul %168, %169, %cst_83 {dimension_numbers = #tpu.dot_dimension_numbers<[1], [0], [0], [1], [0, 0, 1, 1], [], []>} : vector<17x128xbf16>, vector<128x17xbf16>, vector<17x17xf32> -> vector<17x17xf32>
    %cst_84 = arith.constant 1.250000e-01 : f32
    %171 = vector.broadcast %cst_84 : f32 to vector<17x17xf32>
    %172 = arith.mulf %170, %171 : vector<17x17xf32>
    %173 = math.exp %172 : vector<17x17xf32>
    %cst_85 = arith.constant dense<0.000000e+00> : vector<17xf32>
    %174 = vector.multi_reduction <add>, %173, %cst_85 [1] : vector<17x17xf32> to vector<17xf32>
    %175 = vector.shape_cast %174 : vector<17xf32> to vector<17x1xf32>
    %176 = vector.broadcast %175 : vector<17x1xf32> to vector<17x17xf32>
    %177 = arith.divf %173, %176 : vector<17x17xf32>
    %178 = arith.truncf %177 : vector<17x17xf32> to vector<17x17xbf16>
    %179 = vector.extract_strided_slice %72 {offsets = [0, 640], sizes = [17, 128], strides = [1, 1]} : vector<17x1024xbf16> to vector<17x128xbf16>
    %cst_86 = arith.constant dense<0.000000e+00> : vector<17x128xf32>
    %180 = tpu.matmul %178, %179, %cst_86 {dimension_numbers = #tpu.dot_dimension_numbers<[1], [0], [0], [1], [0, 0, 1, 1], [], []>} : vector<17x17xbf16>, vector<17x128xbf16>, vector<17x128xf32> -> vector<17x128xf32>
    %181 = arith.truncf %180 : vector<17x128xf32> to vector<17x128xbf16>
    %182 = vector.extract_strided_slice %78 {offsets = [640, 0], sizes = [128, 64], strides = [1, 1]} : vector<1024x64xbf16> to vector<128x64xbf16>
    %cst_87 = arith.constant dense<0.000000e+00> : vector<17x64xf32>
    %183 = tpu.matmul %181, %182, %cst_87 {dimension_numbers = #tpu.dot_dimension_numbers<[1], [0], [0], [1], [0, 0, 1, 1], [], []>} : vector<17x128xbf16>, vector<128x64xbf16>, vector<17x64xf32> -> vector<17x64xf32>
    %184 = arith.addf %167, %183 : vector<17x64xf32>
    %185 = vector.extract_strided_slice %68 {offsets = [0, 768], sizes = [17, 128], strides = [1, 1]} : vector<17x1024xbf16> to vector<17x128xbf16>
    %186 = vector.extract_strided_slice %76 {offsets = [768, 0], sizes = [128, 17], strides = [1, 1]} : vector<1024x17xbf16> to vector<128x17xbf16>
    %cst_88 = arith.constant dense<0.000000e+00> : vector<17x17xf32>
    %187 = tpu.matmul %185, %186, %cst_88 {dimension_numbers = #tpu.dot_dimension_numbers<[1], [0], [0], [1], [0, 0, 1, 1], [], []>} : vector<17x128xbf16>, vector<128x17xbf16>, vector<17x17xf32> -> vector<17x17xf32>
    %cst_89 = arith.constant 1.250000e-01 : f32
    %188 = vector.broadcast %cst_89 : f32 to vector<17x17xf32>
    %189 = arith.mulf %187, %188 : vector<17x17xf32>
    %190 = math.exp %189 : vector<17x17xf32>
    %cst_90 = arith.constant dense<0.000000e+00> : vector<17xf32>
    %191 = vector.multi_reduction <add>, %190, %cst_90 [1] : vector<17x17xf32> to vector<17xf32>
    %192 = vector.shape_cast %191 : vector<17xf32> to vector<17x1xf32>
    %193 = vector.broadcast %192 : vector<17x1xf32> to vector<17x17xf32>
    %194 = arith.divf %190, %193 : vector<17x17xf32>
    %195 = arith.truncf %194 : vector<17x17xf32> to vector<17x17xbf16>
    %196 = vector.extract_strided_slice %72 {offsets = [0, 768], sizes = [17, 128], strides = [1, 1]} : vector<17x1024xbf16> to vector<17x128xbf16>
    %cst_91 = arith.constant dense<0.000000e+00> : vector<17x128xf32>
    %197 = tpu.matmul %195, %196, %cst_91 {dimension_numbers = #tpu.dot_dimension_numbers<[1], [0], [0], [1], [0, 0, 1, 1], [], []>} : vector<17x17xbf16>, vector<17x128xbf16>, vector<17x128xf32> -> vector<17x128xf32>
    %198 = arith.truncf %197 : vector<17x128xf32> to vector<17x128xbf16>
    %199 = vector.extract_strided_slice %78 {offsets = [768, 0], sizes = [128, 64], strides = [1, 1]} : vector<1024x64xbf16> to vector<128x64xbf16>
    %cst_92 = arith.constant dense<0.000000e+00> : vector<17x64xf32>
    %200 = tpu.matmul %198, %199, %cst_92 {dimension_numbers = #tpu.dot_dimension_numbers<[1], [0], [0], [1], [0, 0, 1, 1], [], []>} : vector<17x128xbf16>, vector<128x64xbf16>, vector<17x64xf32> -> vector<17x64xf32>
    %201 = arith.addf %184, %200 : vector<17x64xf32>
    %202 = vector.extract_strided_slice %68 {offsets = [0, 896], sizes = [17, 128], strides = [1, 1]} : vector<17x1024xbf16> to vector<17x128xbf16>
    %203 = vector.extract_strided_slice %76 {offsets = [896, 0], sizes = [128, 17], strides = [1, 1]} : vector<1024x17xbf16> to vector<128x17xbf16>
    %cst_93 = arith.constant dense<0.000000e+00> : vector<17x17xf32>
    %204 = tpu.matmul %202, %203, %cst_93 {dimension_numbers = #tpu.dot_dimension_numbers<[1], [0], [0], [1], [0, 0, 1, 1], [], []>} : vector<17x128xbf16>, vector<128x17xbf16>, vector<17x17xf32> -> vector<17x17xf32>
    %cst_94 = arith.constant 1.250000e-01 : f32
    %205 = vector.broadcast %cst_94 : f32 to vector<17x17xf32>
    %206 = arith.mulf %204, %205 : vector<17x17xf32>
    %207 = math.exp %206 : vector<17x17xf32>
    %cst_95 = arith.constant dense<0.000000e+00> : vector<17xf32>
    %208 = vector.multi_reduction <add>, %207, %cst_95 [1] : vector<17x17xf32> to vector<17xf32>
    %209 = vector.shape_cast %208 : vector<17xf32> to vector<17x1xf32>
    %210 = vector.broadcast %209 : vector<17x1xf32> to vector<17x17xf32>
    %211 = arith.divf %207, %210 : vector<17x17xf32>
    %212 = arith.truncf %211 : vector<17x17xf32> to vector<17x17xbf16>
    %213 = vector.extract_strided_slice %72 {offsets = [0, 896], sizes = [17, 128], strides = [1, 1]} : vector<17x1024xbf16> to vector<17x128xbf16>
    %cst_96 = arith.constant dense<0.000000e+00> : vector<17x128xf32>
    %214 = tpu.matmul %212, %213, %cst_96 {dimension_numbers = #tpu.dot_dimension_numbers<[1], [0], [0], [1], [0, 0, 1, 1], [], []>} : vector<17x17xbf16>, vector<17x128xbf16>, vector<17x128xf32> -> vector<17x128xf32>
    %215 = arith.truncf %214 : vector<17x128xf32> to vector<17x128xbf16>
    %216 = vector.extract_strided_slice %78 {offsets = [896, 0], sizes = [128, 64], strides = [1, 1]} : vector<1024x64xbf16> to vector<128x64xbf16>
    %cst_97 = arith.constant dense<0.000000e+00> : vector<17x64xf32>
    %217 = tpu.matmul %215, %216, %cst_97 {dimension_numbers = #tpu.dot_dimension_numbers<[1], [0], [0], [1], [0, 0, 1, 1], [], []>} : vector<17x128xbf16>, vector<128x64xbf16>, vector<17x64xf32> -> vector<17x64xf32>
    %218 = arith.addf %201, %217 : vector<17x64xf32>
    %219 = arith.addf %37, %218 : vector<17x64xf32>
    %c0_98 = arith.constant 0 : index
    %c0_99 = arith.constant 0 : index
    %c0_100 = arith.constant 0 : index
    %220 = vector.load %arg18[%c0_98, %c0_99, %c0_100] : memref<2x1x64xf32, #tpu.memory_space<vmem>>, vector<1x1x64xf32>
    %221 = vector.shape_cast %220 : vector<1x1x64xf32> to vector<1x64xf32>
    %c0_101 = arith.constant 0 : index
    %c0_102 = arith.constant 0 : index
    %c0_103 = arith.constant 0 : index
    %222 = vector.load %arg19[%c0_101, %c0_102, %c0_103] : memref<2x1x64xf32, #tpu.memory_space<vmem>>, vector<1x1x64xf32>
    %223 = vector.shape_cast %222 : vector<1x1x64xf32> to vector<1x64xf32>
    %cst_104 = arith.constant dense<0.000000e+00> : vector<17xf32>
    %224 = vector.multi_reduction <add>, %219, %cst_104 [1] : vector<17x64xf32> to vector<17xf32>
    %225 = vector.shape_cast %224 : vector<17xf32> to vector<17x1xf32>
    %cst_105 = arith.constant 6.400000e+01 : f32
    %226 = vector.broadcast %cst_105 : f32 to vector<17x1xf32>
    %227 = arith.divf %225, %226 : vector<17x1xf32>
    %228 = vector.broadcast %227 : vector<17x1xf32> to vector<17x64xf32>
    %229 = arith.subf %219, %228 : vector<17x64xf32>
    %230 = arith.mulf %229, %229 : vector<17x64xf32>
    %cst_106 = arith.constant dense<0.000000e+00> : vector<17xf32>
    %231 = vector.multi_reduction <add>, %230, %cst_106 [1] : vector<17x64xf32> to vector<17xf32>
    %232 = vector.shape_cast %231 : vector<17xf32> to vector<17x1xf32>
    %cst_107 = arith.constant 6.400000e+01 : f32
    %233 = vector.broadcast %cst_107 : f32 to vector<17x1xf32>
    %234 = arith.divf %232, %233 : vector<17x1xf32>
    %235 = vector.broadcast %227 : vector<17x1xf32> to vector<17x64xf32>
    %236 = arith.subf %219, %235 : vector<17x64xf32>
    %cst_108 = arith.constant 9.99999974E-6 : f32
    %237 = vector.broadcast %cst_108 : f32 to vector<17x1xf32>
    %238 = arith.addf %234, %237 : vector<17x1xf32>
    %239 = math.rsqrt %238 : vector<17x1xf32>
    %240 = vector.broadcast %239 : vector<17x1xf32> to vector<17x64xf32>
    %241 = arith.mulf %236, %240 : vector<17x64xf32>
    %242 = vector.broadcast %221 : vector<1x64xf32> to vector<17x64xf32>
    %243 = arith.mulf %241, %242 : vector<17x64xf32>
    %244 = vector.broadcast %223 : vector<1x64xf32> to vector<17x64xf32>
    %245 = arith.addf %243, %244 : vector<17x64xf32>
    %246 = arith.truncf %245 : vector<17x64xf32> to vector<17x64xbf16>
    %c0_109 = arith.constant 0 : index
    %c0_110 = arith.constant 0 : index
    %c0_111 = arith.constant 0 : index
    %247 = vector.load %arg20[%c0_109, %c0_110, %c0_111] : memref<2x64x128xbf16, #tpu.memory_space<vmem>>, vector<1x64x128xbf16>
    %248 = vector.shape_cast %247 : vector<1x64x128xbf16> to vector<64x128xbf16>
    %cst_112 = arith.constant dense<0.000000e+00> : vector<17x128xf32>
    %249 = tpu.matmul %246, %248, %cst_112 {dimension_numbers = #tpu.dot_dimension_numbers<[1], [0], [0], [1], [0, 0, 1, 1], [], []>} : vector<17x64xbf16>, vector<64x128xbf16>, vector<17x128xf32> -> vector<17x128xf32>
    %c0_113 = arith.constant 0 : index
    %c0_114 = arith.constant 0 : index
    %c0_115 = arith.constant 0 : index
    %250 = vector.load %arg21[%c0_113, %c0_114, %c0_115] : memref<2x1x128xf32, #tpu.memory_space<vmem>>, vector<1x1x128xf32>
    %251 = vector.shape_cast %250 : vector<1x1x128xf32> to vector<1x128xf32>
    %252 = vector.broadcast %251 : vector<1x128xf32> to vector<17x128xf32>
    %253 = arith.addf %249, %252 : vector<17x128xf32>
    %254 = arith.mulf %253, %253 : vector<17x128xf32>
    %255 = arith.mulf %253, %254 : vector<17x128xf32>
    %cst_116 = arith.constant 4.471500e-02 : f32
    %256 = vector.broadcast %cst_116 : f32 to vector<17x128xf32>
    %257 = arith.mulf %256, %255 : vector<17x128xf32>
    %258 = arith.addf %253, %257 : vector<17x128xf32>
    %cst_117 = arith.constant 0.797884583 : f32
    %259 = vector.broadcast %cst_117 : f32 to vector<17x128xf32>
    %260 = arith.mulf %259, %258 : vector<17x128xf32>
    %261 = math.tanh %260 : vector<17x128xf32>
    %cst_118 = arith.constant 1.000000e+00 : f32
    %262 = vector.broadcast %cst_118 : f32 to vector<17x128xf32>
    %263 = arith.addf %262, %261 : vector<17x128xf32>
    %cst_119 = arith.constant 5.000000e-01 : f32
    %264 = vector.broadcast %cst_119 : f32 to vector<17x128xf32>
    %265 = arith.mulf %264, %263 : vector<17x128xf32>
    %266 = arith.mulf %253, %265 : vector<17x128xf32>
    %267 = arith.truncf %266 : vector<17x128xf32> to vector<17x128xbf16>
    %c0_120 = arith.constant 0 : index
    %c0_121 = arith.constant 0 : index
    %c0_122 = arith.constant 0 : index
    %268 = vector.load %arg22[%c0_120, %c0_121, %c0_122] : memref<2x128x64xbf16, #tpu.memory_space<vmem>>, vector<1x128x64xbf16>
    %269 = vector.shape_cast %268 : vector<1x128x64xbf16> to vector<128x64xbf16>
    %cst_123 = arith.constant dense<0.000000e+00> : vector<17x64xf32>
    %270 = tpu.matmul %267, %269, %cst_123 {dimension_numbers = #tpu.dot_dimension_numbers<[1], [0], [0], [1], [0, 0, 1, 1], [], []>} : vector<17x128xbf16>, vector<128x64xbf16>, vector<17x64xf32> -> vector<17x64xf32>
    %271 = arith.addf %219, %270 : vector<17x64xf32>
    %c0_124 = arith.constant 0 : index
    %c0_125 = arith.constant 0 : index
    %c0_126 = arith.constant 0 : index
    %272 = vector.load %arg23[%c0_124, %c0_125, %c0_126] : memref<2x1x64xf32, #tpu.memory_space<vmem>>, vector<1x1x64xf32>
    %273 = vector.shape_cast %272 : vector<1x1x64xf32> to vector<1x64xf32>
    %274 = vector.broadcast %273 : vector<1x64xf32> to vector<17x64xf32>
    %275 = arith.addf %271, %274 : vector<17x64xf32>
    %c1 = arith.constant 1 : index
    %c0_127 = arith.constant 0 : index
    %c0_128 = arith.constant 0 : index
    %276 = vector.load %arg11[%c1, %c0_127, %c0_128] : memref<2x1x64xf32, #tpu.memory_space<vmem>>, vector<1x1x64xf32>
    %277 = vector.shape_cast %276 : vector<1x1x64xf32> to vector<1x64xf32>
    %c1_129 = arith.constant 1 : index
    %c0_130 = arith.constant 0 : index
    %c0_131 = arith.constant 0 : index
    %278 = vector.load %arg12[%c1_129, %c0_130, %c0_131] : memref<2x1x64xf32, #tpu.memory_space<vmem>>, vector<1x1x64xf32>
    %279 = vector.shape_cast %278 : vector<1x1x64xf32> to vector<1x64xf32>
    %cst_132 = arith.constant dense<0.000000e+00> : vector<17xf32>
    %280 = vector.multi_reduction <add>, %275, %cst_132 [1] : vector<17x64xf32> to vector<17xf32>
    %281 = vector.shape_cast %280 : vector<17xf32> to vector<17x1xf32>
    %cst_133 = arith.constant 6.400000e+01 : f32
    %282 = vector.broadcast %cst_133 : f32 to vector<17x1xf32>
    %283 = arith.divf %281, %282 : vector<17x1xf32>
    %284 = vector.broadcast %283 : vector<17x1xf32> to vector<17x64xf32>
    %285 = arith.subf %275, %284 : vector<17x64xf32>
    %286 = arith.mulf %285, %285 : vector<17x64xf32>
    %cst_134 = arith.constant dense<0.000000e+00> : vector<17xf32>
    %287 = vector.multi_reduction <add>, %286, %cst_134 [1] : vector<17x64xf32> to vector<17xf32>
    %288 = vector.shape_cast %287 : vector<17xf32> to vector<17x1xf32>
    %cst_135 = arith.constant 6.400000e+01 : f32
    %289 = vector.broadcast %cst_135 : f32 to vector<17x1xf32>
    %290 = arith.divf %288, %289 : vector<17x1xf32>
    %291 = vector.broadcast %283 : vector<17x1xf32> to vector<17x64xf32>
    %292 = arith.subf %275, %291 : vector<17x64xf32>
    %cst_136 = arith.constant 9.99999974E-6 : f32
    %293 = vector.broadcast %cst_136 : f32 to vector<17x1xf32>
    %294 = arith.addf %290, %293 : vector<17x1xf32>
    %295 = math.rsqrt %294 : vector<17x1xf32>
    %296 = vector.broadcast %295 : vector<17x1xf32> to vector<17x64xf32>
    %297 = arith.mulf %292, %296 : vector<17x64xf32>
    %298 = vector.broadcast %277 : vector<1x64xf32> to vector<17x64xf32>
    %299 = arith.mulf %297, %298 : vector<17x64xf32>
    %300 = vector.broadcast %279 : vector<1x64xf32> to vector<17x64xf32>
    %301 = arith.addf %299, %300 : vector<17x64xf32>
    %302 = arith.truncf %301 : vector<17x64xf32> to vector<17x64xbf16>
    %c1_137 = arith.constant 1 : index
    %c0_138 = arith.constant 0 : index
    %c0_139 = arith.constant 0 : index
    %303 = vector.load %arg13[%c1_137, %c0_138, %c0_139] : memref<2x64x1024xbf16, #tpu.memory_space<vmem>>, vector<1x64x1024xbf16>
    %304 = vector.shape_cast %303 : vector<1x64x1024xbf16> to vector<64x1024xbf16>
    %cst_140 = arith.constant dense<0.000000e+00> : vector<17x1024xf32>
    %305 = tpu.matmul %302, %304, %cst_140 {dimension_numbers = #tpu.dot_dimension_numbers<[1], [0], [0], [1], [0, 0, 1, 1], [], []>} : vector<17x64xbf16>, vector<64x1024xbf16>, vector<17x1024xf32> -> vector<17x1024xf32>
    %306 = arith.truncf %305 : vector<17x1024xf32> to vector<17x1024xbf16>
    %c1_141 = arith.constant 1 : index
    %c0_142 = arith.constant 0 : index
    %c0_143 = arith.constant 0 : index
    %307 = vector.load %arg14[%c1_141, %c0_142, %c0_143] : memref<2x64x1024xbf16, #tpu.memory_space<vmem>>, vector<1x64x1024xbf16>
    %308 = vector.shape_cast %307 : vector<1x64x1024xbf16> to vector<64x1024xbf16>
    %cst_144 = arith.constant dense<0.000000e+00> : vector<17x1024xf32>
    %309 = tpu.matmul %302, %308, %cst_144 {dimension_numbers = #tpu.dot_dimension_numbers<[1], [0], [0], [1], [0, 0, 1, 1], [], []>} : vector<17x64xbf16>, vector<64x1024xbf16>, vector<17x1024xf32> -> vector<17x1024xf32>
    %310 = arith.truncf %309 : vector<17x1024xf32> to vector<17x1024xbf16>
    %c1_145 = arith.constant 1 : index
    %c0_146 = arith.constant 0 : index
    %c0_147 = arith.constant 0 : index
    %311 = vector.load %arg15[%c1_145, %c0_146, %c0_147] : memref<2x1024x64xbf16, #tpu.memory_space<vmem>>, vector<1x1024x64xbf16>
    %312 = vector.shape_cast %311 : vector<1x1024x64xbf16> to vector<1024x64xbf16>
    %cst_148 = arith.constant dense<0.000000e+00> : vector<1024x17xf32>
    %313 = tpu.matmul %312, %302, %cst_148 {dimension_numbers = #tpu.dot_dimension_numbers<[1], [1], [0], [0], [0, 0, 1, 0], [], []>} : vector<1024x64xbf16>, vector<17x64xbf16>, vector<1024x17xf32> -> vector<1024x17xf32>
    %314 = arith.truncf %313 : vector<1024x17xf32> to vector<1024x17xbf16>
    %c1_149 = arith.constant 1 : index
    %c0_150 = arith.constant 0 : index
    %c0_151 = arith.constant 0 : index
    %315 = vector.load %arg16[%c1_149, %c0_150, %c0_151] : memref<2x1024x64xbf16, #tpu.memory_space<vmem>>, vector<1x1024x64xbf16>
    %316 = vector.shape_cast %315 : vector<1x1024x64xbf16> to vector<1024x64xbf16>
    %c1_152 = arith.constant 1 : index
    %c0_153 = arith.constant 0 : index
    %c0_154 = arith.constant 0 : index
    %317 = vector.load %arg17[%c1_152, %c0_153, %c0_154] : memref<2x1x64xf32, #tpu.memory_space<vmem>>, vector<1x1x64xf32>
    %318 = vector.shape_cast %317 : vector<1x1x64xf32> to vector<1x64xf32>
    %319 = vector.shape_cast %318 : vector<1x64xf32> to vector<1x64xf32>
    %320 = vector.broadcast %319 : vector<1x64xf32> to vector<17x64xf32>
    %321 = vector.extract_strided_slice %306 {offsets = [0, 0], sizes = [17, 128], strides = [1, 1]} : vector<17x1024xbf16> to vector<17x128xbf16>
    %322 = vector.extract_strided_slice %314 {offsets = [0, 0], sizes = [128, 17], strides = [1, 1]} : vector<1024x17xbf16> to vector<128x17xbf16>
    %cst_155 = arith.constant dense<0.000000e+00> : vector<17x17xf32>
    %323 = tpu.matmul %321, %322, %cst_155 {dimension_numbers = #tpu.dot_dimension_numbers<[1], [0], [0], [1], [0, 0, 1, 1], [], []>} : vector<17x128xbf16>, vector<128x17xbf16>, vector<17x17xf32> -> vector<17x17xf32>
    %cst_156 = arith.constant 1.250000e-01 : f32
    %324 = vector.broadcast %cst_156 : f32 to vector<17x17xf32>
    %325 = arith.mulf %323, %324 : vector<17x17xf32>
    %326 = math.exp %325 : vector<17x17xf32>
    %cst_157 = arith.constant dense<0.000000e+00> : vector<17xf32>
    %327 = vector.multi_reduction <add>, %326, %cst_157 [1] : vector<17x17xf32> to vector<17xf32>
    %328 = vector.shape_cast %327 : vector<17xf32> to vector<17x1xf32>
    %329 = vector.broadcast %328 : vector<17x1xf32> to vector<17x17xf32>
    %330 = arith.divf %326, %329 : vector<17x17xf32>
    %331 = arith.truncf %330 : vector<17x17xf32> to vector<17x17xbf16>
    %332 = vector.extract_strided_slice %310 {offsets = [0, 0], sizes = [17, 128], strides = [1, 1]} : vector<17x1024xbf16> to vector<17x128xbf16>
    %cst_158 = arith.constant dense<0.000000e+00> : vector<17x128xf32>
    %333 = tpu.matmul %331, %332, %cst_158 {dimension_numbers = #tpu.dot_dimension_numbers<[1], [0], [0], [1], [0, 0, 1, 1], [], []>} : vector<17x17xbf16>, vector<17x128xbf16>, vector<17x128xf32> -> vector<17x128xf32>
    %334 = arith.truncf %333 : vector<17x128xf32> to vector<17x128xbf16>
    %335 = vector.extract_strided_slice %316 {offsets = [0, 0], sizes = [128, 64], strides = [1, 1]} : vector<1024x64xbf16> to vector<128x64xbf16>
    %cst_159 = arith.constant dense<0.000000e+00> : vector<17x64xf32>
    %336 = tpu.matmul %334, %335, %cst_159 {dimension_numbers = #tpu.dot_dimension_numbers<[1], [0], [0], [1], [0, 0, 1, 1], [], []>} : vector<17x128xbf16>, vector<128x64xbf16>, vector<17x64xf32> -> vector<17x64xf32>
    %337 = arith.addf %320, %336 : vector<17x64xf32>
    %338 = vector.extract_strided_slice %306 {offsets = [0, 128], sizes = [17, 128], strides = [1, 1]} : vector<17x1024xbf16> to vector<17x128xbf16>
    %339 = vector.extract_strided_slice %314 {offsets = [128, 0], sizes = [128, 17], strides = [1, 1]} : vector<1024x17xbf16> to vector<128x17xbf16>
    %cst_160 = arith.constant dense<0.000000e+00> : vector<17x17xf32>
    %340 = tpu.matmul %338, %339, %cst_160 {dimension_numbers = #tpu.dot_dimension_numbers<[1], [0], [0], [1], [0, 0, 1, 1], [], []>} : vector<17x128xbf16>, vector<128x17xbf16>, vector<17x17xf32> -> vector<17x17xf32>
    %cst_161 = arith.constant 1.250000e-01 : f32
    %341 = vector.broadcast %cst_161 : f32 to vector<17x17xf32>
    %342 = arith.mulf %340, %341 : vector<17x17xf32>
    %343 = math.exp %342 : vector<17x17xf32>
    %cst_162 = arith.constant dense<0.000000e+00> : vector<17xf32>
    %344 = vector.multi_reduction <add>, %343, %cst_162 [1] : vector<17x17xf32> to vector<17xf32>
    %345 = vector.shape_cast %344 : vector<17xf32> to vector<17x1xf32>
    %346 = vector.broadcast %345 : vector<17x1xf32> to vector<17x17xf32>
    %347 = arith.divf %343, %346 : vector<17x17xf32>
    %348 = arith.truncf %347 : vector<17x17xf32> to vector<17x17xbf16>
    %349 = vector.extract_strided_slice %310 {offsets = [0, 128], sizes = [17, 128], strides = [1, 1]} : vector<17x1024xbf16> to vector<17x128xbf16>
    %cst_163 = arith.constant dense<0.000000e+00> : vector<17x128xf32>
    %350 = tpu.matmul %348, %349, %cst_163 {dimension_numbers = #tpu.dot_dimension_numbers<[1], [0], [0], [1], [0, 0, 1, 1], [], []>} : vector<17x17xbf16>, vector<17x128xbf16>, vector<17x128xf32> -> vector<17x128xf32>
    %351 = arith.truncf %350 : vector<17x128xf32> to vector<17x128xbf16>
    %352 = vector.extract_strided_slice %316 {offsets = [128, 0], sizes = [128, 64], strides = [1, 1]} : vector<1024x64xbf16> to vector<128x64xbf16>
    %cst_164 = arith.constant dense<0.000000e+00> : vector<17x64xf32>
    %353 = tpu.matmul %351, %352, %cst_164 {dimension_numbers = #tpu.dot_dimension_numbers<[1], [0], [0], [1], [0, 0, 1, 1], [], []>} : vector<17x128xbf16>, vector<128x64xbf16>, vector<17x64xf32> -> vector<17x64xf32>
    %354 = arith.addf %337, %353 : vector<17x64xf32>
    %355 = vector.extract_strided_slice %306 {offsets = [0, 256], sizes = [17, 128], strides = [1, 1]} : vector<17x1024xbf16> to vector<17x128xbf16>
    %356 = vector.extract_strided_slice %314 {offsets = [256, 0], sizes = [128, 17], strides = [1, 1]} : vector<1024x17xbf16> to vector<128x17xbf16>
    %cst_165 = arith.constant dense<0.000000e+00> : vector<17x17xf32>
    %357 = tpu.matmul %355, %356, %cst_165 {dimension_numbers = #tpu.dot_dimension_numbers<[1], [0], [0], [1], [0, 0, 1, 1], [], []>} : vector<17x128xbf16>, vector<128x17xbf16>, vector<17x17xf32> -> vector<17x17xf32>
    %cst_166 = arith.constant 1.250000e-01 : f32
    %358 = vector.broadcast %cst_166 : f32 to vector<17x17xf32>
    %359 = arith.mulf %357, %358 : vector<17x17xf32>
    %360 = math.exp %359 : vector<17x17xf32>
    %cst_167 = arith.constant dense<0.000000e+00> : vector<17xf32>
    %361 = vector.multi_reduction <add>, %360, %cst_167 [1] : vector<17x17xf32> to vector<17xf32>
    %362 = vector.shape_cast %361 : vector<17xf32> to vector<17x1xf32>
    %363 = vector.broadcast %362 : vector<17x1xf32> to vector<17x17xf32>
    %364 = arith.divf %360, %363 : vector<17x17xf32>
    %365 = arith.truncf %364 : vector<17x17xf32> to vector<17x17xbf16>
    %366 = vector.extract_strided_slice %310 {offsets = [0, 256], sizes = [17, 128], strides = [1, 1]} : vector<17x1024xbf16> to vector<17x128xbf16>
    %cst_168 = arith.constant dense<0.000000e+00> : vector<17x128xf32>
    %367 = tpu.matmul %365, %366, %cst_168 {dimension_numbers = #tpu.dot_dimension_numbers<[1], [0], [0], [1], [0, 0, 1, 1], [], []>} : vector<17x17xbf16>, vector<17x128xbf16>, vector<17x128xf32> -> vector<17x128xf32>
    %368 = arith.truncf %367 : vector<17x128xf32> to vector<17x128xbf16>
    %369 = vector.extract_strided_slice %316 {offsets = [256, 0], sizes = [128, 64], strides = [1, 1]} : vector<1024x64xbf16> to vector<128x64xbf16>
    %cst_169 = arith.constant dense<0.000000e+00> : vector<17x64xf32>
    %370 = tpu.matmul %368, %369, %cst_169 {dimension_numbers = #tpu.dot_dimension_numbers<[1], [0], [0], [1], [0, 0, 1, 1], [], []>} : vector<17x128xbf16>, vector<128x64xbf16>, vector<17x64xf32> -> vector<17x64xf32>
    %371 = arith.addf %354, %370 : vector<17x64xf32>
    %372 = vector.extract_strided_slice %306 {offsets = [0, 384], sizes = [17, 128], strides = [1, 1]} : vector<17x1024xbf16> to vector<17x128xbf16>
    %373 = vector.extract_strided_slice %314 {offsets = [384, 0], sizes = [128, 17], strides = [1, 1]} : vector<1024x17xbf16> to vector<128x17xbf16>
    %cst_170 = arith.constant dense<0.000000e+00> : vector<17x17xf32>
    %374 = tpu.matmul %372, %373, %cst_170 {dimension_numbers = #tpu.dot_dimension_numbers<[1], [0], [0], [1], [0, 0, 1, 1], [], []>} : vector<17x128xbf16>, vector<128x17xbf16>, vector<17x17xf32> -> vector<17x17xf32>
    %cst_171 = arith.constant 1.250000e-01 : f32
    %375 = vector.broadcast %cst_171 : f32 to vector<17x17xf32>
    %376 = arith.mulf %374, %375 : vector<17x17xf32>
    %377 = math.exp %376 : vector<17x17xf32>
    %cst_172 = arith.constant dense<0.000000e+00> : vector<17xf32>
    %378 = vector.multi_reduction <add>, %377, %cst_172 [1] : vector<17x17xf32> to vector<17xf32>
    %379 = vector.shape_cast %378 : vector<17xf32> to vector<17x1xf32>
    %380 = vector.broadcast %379 : vector<17x1xf32> to vector<17x17xf32>
    %381 = arith.divf %377, %380 : vector<17x17xf32>
    %382 = arith.truncf %381 : vector<17x17xf32> to vector<17x17xbf16>
    %383 = vector.extract_strided_slice %310 {offsets = [0, 384], sizes = [17, 128], strides = [1, 1]} : vector<17x1024xbf16> to vector<17x128xbf16>
    %cst_173 = arith.constant dense<0.000000e+00> : vector<17x128xf32>
    %384 = tpu.matmul %382, %383, %cst_173 {dimension_numbers = #tpu.dot_dimension_numbers<[1], [0], [0], [1], [0, 0, 1, 1], [], []>} : vector<17x17xbf16>, vector<17x128xbf16>, vector<17x128xf32> -> vector<17x128xf32>
    %385 = arith.truncf %384 : vector<17x128xf32> to vector<17x128xbf16>
    %386 = vector.extract_strided_slice %316 {offsets = [384, 0], sizes = [128, 64], strides = [1, 1]} : vector<1024x64xbf16> to vector<128x64xbf16>
    %cst_174 = arith.constant dense<0.000000e+00> : vector<17x64xf32>
    %387 = tpu.matmul %385, %386, %cst_174 {dimension_numbers = #tpu.dot_dimension_numbers<[1], [0], [0], [1], [0, 0, 1, 1], [], []>} : vector<17x128xbf16>, vector<128x64xbf16>, vector<17x64xf32> -> vector<17x64xf32>
    %388 = arith.addf %371, %387 : vector<17x64xf32>
    %389 = vector.extract_strided_slice %306 {offsets = [0, 512], sizes = [17, 128], strides = [1, 1]} : vector<17x1024xbf16> to vector<17x128xbf16>
    %390 = vector.extract_strided_slice %314 {offsets = [512, 0], sizes = [128, 17], strides = [1, 1]} : vector<1024x17xbf16> to vector<128x17xbf16>
    %cst_175 = arith.constant dense<0.000000e+00> : vector<17x17xf32>
    %391 = tpu.matmul %389, %390, %cst_175 {dimension_numbers = #tpu.dot_dimension_numbers<[1], [0], [0], [1], [0, 0, 1, 1], [], []>} : vector<17x128xbf16>, vector<128x17xbf16>, vector<17x17xf32> -> vector<17x17xf32>
    %cst_176 = arith.constant 1.250000e-01 : f32
    %392 = vector.broadcast %cst_176 : f32 to vector<17x17xf32>
    %393 = arith.mulf %391, %392 : vector<17x17xf32>
    %394 = math.exp %393 : vector<17x17xf32>
    %cst_177 = arith.constant dense<0.000000e+00> : vector<17xf32>
    %395 = vector.multi_reduction <add>, %394, %cst_177 [1] : vector<17x17xf32> to vector<17xf32>
    %396 = vector.shape_cast %395 : vector<17xf32> to vector<17x1xf32>
    %397 = vector.broadcast %396 : vector<17x1xf32> to vector<17x17xf32>
    %398 = arith.divf %394, %397 : vector<17x17xf32>
    %399 = arith.truncf %398 : vector<17x17xf32> to vector<17x17xbf16>
    %400 = vector.extract_strided_slice %310 {offsets = [0, 512], sizes = [17, 128], strides = [1, 1]} : vector<17x1024xbf16> to vector<17x128xbf16>
    %cst_178 = arith.constant dense<0.000000e+00> : vector<17x128xf32>
    %401 = tpu.matmul %399, %400, %cst_178 {dimension_numbers = #tpu.dot_dimension_numbers<[1], [0], [0], [1], [0, 0, 1, 1], [], []>} : vector<17x17xbf16>, vector<17x128xbf16>, vector<17x128xf32> -> vector<17x128xf32>
    %402 = arith.truncf %401 : vector<17x128xf32> to vector<17x128xbf16>
    %403 = vector.extract_strided_slice %316 {offsets = [512, 0], sizes = [128, 64], strides = [1, 1]} : vector<1024x64xbf16> to vector<128x64xbf16>
    %cst_179 = arith.constant dense<0.000000e+00> : vector<17x64xf32>
    %404 = tpu.matmul %402, %403, %cst_179 {dimension_numbers = #tpu.dot_dimension_numbers<[1], [0], [0], [1], [0, 0, 1, 1], [], []>} : vector<17x128xbf16>, vector<128x64xbf16>, vector<17x64xf32> -> vector<17x64xf32>
    %405 = arith.addf %388, %404 : vector<17x64xf32>
    %406 = vector.extract_strided_slice %306 {offsets = [0, 640], sizes = [17, 128], strides = [1, 1]} : vector<17x1024xbf16> to vector<17x128xbf16>
    %407 = vector.extract_strided_slice %314 {offsets = [640, 0], sizes = [128, 17], strides = [1, 1]} : vector<1024x17xbf16> to vector<128x17xbf16>
    %cst_180 = arith.constant dense<0.000000e+00> : vector<17x17xf32>
    %408 = tpu.matmul %406, %407, %cst_180 {dimension_numbers = #tpu.dot_dimension_numbers<[1], [0], [0], [1], [0, 0, 1, 1], [], []>} : vector<17x128xbf16>, vector<128x17xbf16>, vector<17x17xf32> -> vector<17x17xf32>
    %cst_181 = arith.constant 1.250000e-01 : f32
    %409 = vector.broadcast %cst_181 : f32 to vector<17x17xf32>
    %410 = arith.mulf %408, %409 : vector<17x17xf32>
    %411 = math.exp %410 : vector<17x17xf32>
    %cst_182 = arith.constant dense<0.000000e+00> : vector<17xf32>
    %412 = vector.multi_reduction <add>, %411, %cst_182 [1] : vector<17x17xf32> to vector<17xf32>
    %413 = vector.shape_cast %412 : vector<17xf32> to vector<17x1xf32>
    %414 = vector.broadcast %413 : vector<17x1xf32> to vector<17x17xf32>
    %415 = arith.divf %411, %414 : vector<17x17xf32>
    %416 = arith.truncf %415 : vector<17x17xf32> to vector<17x17xbf16>
    %417 = vector.extract_strided_slice %310 {offsets = [0, 640], sizes = [17, 128], strides = [1, 1]} : vector<17x1024xbf16> to vector<17x128xbf16>
    %cst_183 = arith.constant dense<0.000000e+00> : vector<17x128xf32>
    %418 = tpu.matmul %416, %417, %cst_183 {dimension_numbers = #tpu.dot_dimension_numbers<[1], [0], [0], [1], [0, 0, 1, 1], [], []>} : vector<17x17xbf16>, vector<17x128xbf16>, vector<17x128xf32> -> vector<17x128xf32>
    %419 = arith.truncf %418 : vector<17x128xf32> to vector<17x128xbf16>
    %420 = vector.extract_strided_slice %316 {offsets = [640, 0], sizes = [128, 64], strides = [1, 1]} : vector<1024x64xbf16> to vector<128x64xbf16>
    %cst_184 = arith.constant dense<0.000000e+00> : vector<17x64xf32>
    %421 = tpu.matmul %419, %420, %cst_184 {dimension_numbers = #tpu.dot_dimension_numbers<[1], [0], [0], [1], [0, 0, 1, 1], [], []>} : vector<17x128xbf16>, vector<128x64xbf16>, vector<17x64xf32> -> vector<17x64xf32>
    %422 = arith.addf %405, %421 : vector<17x64xf32>
    %423 = vector.extract_strided_slice %306 {offsets = [0, 768], sizes = [17, 128], strides = [1, 1]} : vector<17x1024xbf16> to vector<17x128xbf16>
    %424 = vector.extract_strided_slice %314 {offsets = [768, 0], sizes = [128, 17], strides = [1, 1]} : vector<1024x17xbf16> to vector<128x17xbf16>
    %cst_185 = arith.constant dense<0.000000e+00> : vector<17x17xf32>
    %425 = tpu.matmul %423, %424, %cst_185 {dimension_numbers = #tpu.dot_dimension_numbers<[1], [0], [0], [1], [0, 0, 1, 1], [], []>} : vector<17x128xbf16>, vector<128x17xbf16>, vector<17x17xf32> -> vector<17x17xf32>
    %cst_186 = arith.constant 1.250000e-01 : f32
    %426 = vector.broadcast %cst_186 : f32 to vector<17x17xf32>
    %427 = arith.mulf %425, %426 : vector<17x17xf32>
    %428 = math.exp %427 : vector<17x17xf32>
    %cst_187 = arith.constant dense<0.000000e+00> : vector<17xf32>
    %429 = vector.multi_reduction <add>, %428, %cst_187 [1] : vector<17x17xf32> to vector<17xf32>
    %430 = vector.shape_cast %429 : vector<17xf32> to vector<17x1xf32>
    %431 = vector.broadcast %430 : vector<17x1xf32> to vector<17x17xf32>
    %432 = arith.divf %428, %431 : vector<17x17xf32>
    %433 = arith.truncf %432 : vector<17x17xf32> to vector<17x17xbf16>
    %434 = vector.extract_strided_slice %310 {offsets = [0, 768], sizes = [17, 128], strides = [1, 1]} : vector<17x1024xbf16> to vector<17x128xbf16>
    %cst_188 = arith.constant dense<0.000000e+00> : vector<17x128xf32>
    %435 = tpu.matmul %433, %434, %cst_188 {dimension_numbers = #tpu.dot_dimension_numbers<[1], [0], [0], [1], [0, 0, 1, 1], [], []>} : vector<17x17xbf16>, vector<17x128xbf16>, vector<17x128xf32> -> vector<17x128xf32>
    %436 = arith.truncf %435 : vector<17x128xf32> to vector<17x128xbf16>
    %437 = vector.extract_strided_slice %316 {offsets = [768, 0], sizes = [128, 64], strides = [1, 1]} : vector<1024x64xbf16> to vector<128x64xbf16>
    %cst_189 = arith.constant dense<0.000000e+00> : vector<17x64xf32>
    %438 = tpu.matmul %436, %437, %cst_189 {dimension_numbers = #tpu.dot_dimension_numbers<[1], [0], [0], [1], [0, 0, 1, 1], [], []>} : vector<17x128xbf16>, vector<128x64xbf16>, vector<17x64xf32> -> vector<17x64xf32>
    %439 = arith.addf %422, %438 : vector<17x64xf32>
    %440 = vector.extract_strided_slice %306 {offsets = [0, 896], sizes = [17, 128], strides = [1, 1]} : vector<17x1024xbf16> to vector<17x128xbf16>
    %441 = vector.extract_strided_slice %314 {offsets = [896, 0], sizes = [128, 17], strides = [1, 1]} : vector<1024x17xbf16> to vector<128x17xbf16>
    %cst_190 = arith.constant dense<0.000000e+00> : vector<17x17xf32>
    %442 = tpu.matmul %440, %441, %cst_190 {dimension_numbers = #tpu.dot_dimension_numbers<[1], [0], [0], [1], [0, 0, 1, 1], [], []>} : vector<17x128xbf16>, vector<128x17xbf16>, vector<17x17xf32> -> vector<17x17xf32>
    %cst_191 = arith.constant 1.250000e-01 : f32
    %443 = vector.broadcast %cst_191 : f32 to vector<17x17xf32>
    %444 = arith.mulf %442, %443 : vector<17x17xf32>
    %445 = math.exp %444 : vector<17x17xf32>
    %cst_192 = arith.constant dense<0.000000e+00> : vector<17xf32>
    %446 = vector.multi_reduction <add>, %445, %cst_192 [1] : vector<17x17xf32> to vector<17xf32>
    %447 = vector.shape_cast %446 : vector<17xf32> to vector<17x1xf32>
    %448 = vector.broadcast %447 : vector<17x1xf32> to vector<17x17xf32>
    %449 = arith.divf %445, %448 : vector<17x17xf32>
    %450 = arith.truncf %449 : vector<17x17xf32> to vector<17x17xbf16>
    %451 = vector.extract_strided_slice %310 {offsets = [0, 896], sizes = [17, 128], strides = [1, 1]} : vector<17x1024xbf16> to vector<17x128xbf16>
    %cst_193 = arith.constant dense<0.000000e+00> : vector<17x128xf32>
    %452 = tpu.matmul %450, %451, %cst_193 {dimension_numbers = #tpu.dot_dimension_numbers<[1], [0], [0], [1], [0, 0, 1, 1], [], []>} : vector<17x17xbf16>, vector<17x128xbf16>, vector<17x128xf32> -> vector<17x128xf32>
    %453 = arith.truncf %452 : vector<17x128xf32> to vector<17x128xbf16>
    %454 = vector.extract_strided_slice %316 {offsets = [896, 0], sizes = [128, 64], strides = [1, 1]} : vector<1024x64xbf16> to vector<128x64xbf16>
    %cst_194 = arith.constant dense<0.000000e+00> : vector<17x64xf32>
    %455 = tpu.matmul %453, %454, %cst_194 {dimension_numbers = #tpu.dot_dimension_numbers<[1], [0], [0], [1], [0, 0, 1, 1], [], []>} : vector<17x128xbf16>, vector<128x64xbf16>, vector<17x64xf32> -> vector<17x64xf32>
    %456 = arith.addf %439, %455 : vector<17x64xf32>
    %457 = arith.addf %275, %456 : vector<17x64xf32>
    %c1_195 = arith.constant 1 : index
    %c0_196 = arith.constant 0 : index
    %c0_197 = arith.constant 0 : index
    %458 = vector.load %arg18[%c1_195, %c0_196, %c0_197] : memref<2x1x64xf32, #tpu.memory_space<vmem>>, vector<1x1x64xf32>
    %459 = vector.shape_cast %458 : vector<1x1x64xf32> to vector<1x64xf32>
    %c1_198 = arith.constant 1 : index
    %c0_199 = arith.constant 0 : index
    %c0_200 = arith.constant 0 : index
    %460 = vector.load %arg19[%c1_198, %c0_199, %c0_200] : memref<2x1x64xf32, #tpu.memory_space<vmem>>, vector<1x1x64xf32>
    %461 = vector.shape_cast %460 : vector<1x1x64xf32> to vector<1x64xf32>
    %cst_201 = arith.constant dense<0.000000e+00> : vector<17xf32>
    %462 = vector.multi_reduction <add>, %457, %cst_201 [1] : vector<17x64xf32> to vector<17xf32>
    %463 = vector.shape_cast %462 : vector<17xf32> to vector<17x1xf32>
    %cst_202 = arith.constant 6.400000e+01 : f32
    %464 = vector.broadcast %cst_202 : f32 to vector<17x1xf32>
    %465 = arith.divf %463, %464 : vector<17x1xf32>
    %466 = vector.broadcast %465 : vector<17x1xf32> to vector<17x64xf32>
    %467 = arith.subf %457, %466 : vector<17x64xf32>
    %468 = arith.mulf %467, %467 : vector<17x64xf32>
    %cst_203 = arith.constant dense<0.000000e+00> : vector<17xf32>
    %469 = vector.multi_reduction <add>, %468, %cst_203 [1] : vector<17x64xf32> to vector<17xf32>
    %470 = vector.shape_cast %469 : vector<17xf32> to vector<17x1xf32>
    %cst_204 = arith.constant 6.400000e+01 : f32
    %471 = vector.broadcast %cst_204 : f32 to vector<17x1xf32>
    %472 = arith.divf %470, %471 : vector<17x1xf32>
    %473 = vector.broadcast %465 : vector<17x1xf32> to vector<17x64xf32>
    %474 = arith.subf %457, %473 : vector<17x64xf32>
    %cst_205 = arith.constant 9.99999974E-6 : f32
    %475 = vector.broadcast %cst_205 : f32 to vector<17x1xf32>
    %476 = arith.addf %472, %475 : vector<17x1xf32>
    %477 = math.rsqrt %476 : vector<17x1xf32>
    %478 = vector.broadcast %477 : vector<17x1xf32> to vector<17x64xf32>
    %479 = arith.mulf %474, %478 : vector<17x64xf32>
    %480 = vector.broadcast %459 : vector<1x64xf32> to vector<17x64xf32>
    %481 = arith.mulf %479, %480 : vector<17x64xf32>
    %482 = vector.broadcast %461 : vector<1x64xf32> to vector<17x64xf32>
    %483 = arith.addf %481, %482 : vector<17x64xf32>
    %484 = arith.truncf %483 : vector<17x64xf32> to vector<17x64xbf16>
    %c1_206 = arith.constant 1 : index
    %c0_207 = arith.constant 0 : index
    %c0_208 = arith.constant 0 : index
    %485 = vector.load %arg20[%c1_206, %c0_207, %c0_208] : memref<2x64x128xbf16, #tpu.memory_space<vmem>>, vector<1x64x128xbf16>
    %486 = vector.shape_cast %485 : vector<1x64x128xbf16> to vector<64x128xbf16>
    %cst_209 = arith.constant dense<0.000000e+00> : vector<17x128xf32>
    %487 = tpu.matmul %484, %486, %cst_209 {dimension_numbers = #tpu.dot_dimension_numbers<[1], [0], [0], [1], [0, 0, 1, 1], [], []>} : vector<17x64xbf16>, vector<64x128xbf16>, vector<17x128xf32> -> vector<17x128xf32>
    %c1_210 = arith.constant 1 : index
    %c0_211 = arith.constant 0 : index
    %c0_212 = arith.constant 0 : index
    %488 = vector.load %arg21[%c1_210, %c0_211, %c0_212] : memref<2x1x128xf32, #tpu.memory_space<vmem>>, vector<1x1x128xf32>
    %489 = vector.shape_cast %488 : vector<1x1x128xf32> to vector<1x128xf32>
    %490 = vector.broadcast %489 : vector<1x128xf32> to vector<17x128xf32>
    %491 = arith.addf %487, %490 : vector<17x128xf32>
    %492 = arith.mulf %491, %491 : vector<17x128xf32>
    %493 = arith.mulf %491, %492 : vector<17x128xf32>
    %cst_213 = arith.constant 4.471500e-02 : f32
    %494 = vector.broadcast %cst_213 : f32 to vector<17x128xf32>
    %495 = arith.mulf %494, %493 : vector<17x128xf32>
    %496 = arith.addf %491, %495 : vector<17x128xf32>
    %cst_214 = arith.constant 0.797884583 : f32
    %497 = vector.broadcast %cst_214 : f32 to vector<17x128xf32>
    %498 = arith.mulf %497, %496 : vector<17x128xf32>
    %499 = math.tanh %498 : vector<17x128xf32>
    %cst_215 = arith.constant 1.000000e+00 : f32
    %500 = vector.broadcast %cst_215 : f32 to vector<17x128xf32>
    %501 = arith.addf %500, %499 : vector<17x128xf32>
    %cst_216 = arith.constant 5.000000e-01 : f32
    %502 = vector.broadcast %cst_216 : f32 to vector<17x128xf32>
    %503 = arith.mulf %502, %501 : vector<17x128xf32>
    %504 = arith.mulf %491, %503 : vector<17x128xf32>
    %505 = arith.truncf %504 : vector<17x128xf32> to vector<17x128xbf16>
    %c1_217 = arith.constant 1 : index
    %c0_218 = arith.constant 0 : index
    %c0_219 = arith.constant 0 : index
    %506 = vector.load %arg22[%c1_217, %c0_218, %c0_219] : memref<2x128x64xbf16, #tpu.memory_space<vmem>>, vector<1x128x64xbf16>
    %507 = vector.shape_cast %506 : vector<1x128x64xbf16> to vector<128x64xbf16>
    %cst_220 = arith.constant dense<0.000000e+00> : vector<17x64xf32>
    %508 = tpu.matmul %505, %507, %cst_220 {dimension_numbers = #tpu.dot_dimension_numbers<[1], [0], [0], [1], [0, 0, 1, 1], [], []>} : vector<17x128xbf16>, vector<128x64xbf16>, vector<17x64xf32> -> vector<17x64xf32>
    %509 = arith.addf %457, %508 : vector<17x64xf32>
    %c1_221 = arith.constant 1 : index
    %c0_222 = arith.constant 0 : index
    %c0_223 = arith.constant 0 : index
    %510 = vector.load %arg23[%c1_221, %c0_222, %c0_223] : memref<2x1x64xf32, #tpu.memory_space<vmem>>, vector<1x1x64xf32>
    %511 = vector.shape_cast %510 : vector<1x1x64xf32> to vector<1x64xf32>
    %512 = vector.broadcast %511 : vector<1x64xf32> to vector<17x64xf32>
    %513 = arith.addf %509, %512 : vector<17x64xf32>
    %514 = vector.extract_strided_slice %513 {offsets = [0, 0], sizes = [1, 64], strides = [1, 1]} : vector<17x64xf32> to vector<1x64xf32>
    %c0_224 = arith.constant 0 : index
    %c0_225 = arith.constant 0 : index
    %515 = vector.load %arg24[%c0_224, %c0_225] : memref<1x64xf32, #tpu.memory_space<vmem>>, vector<1x64xf32>
    %c0_226 = arith.constant 0 : index
    %c0_227 = arith.constant 0 : index
    %516 = vector.load %arg25[%c0_226, %c0_227] : memref<1x64xf32, #tpu.memory_space<vmem>>, vector<1x64xf32>
    %cst_228 = arith.constant dense<0.000000e+00> : vector<1xf32>
    %517 = vector.multi_reduction <add>, %514, %cst_228 [1] : vector<1x64xf32> to vector<1xf32>
    %518 = vector.shape_cast %517 : vector<1xf32> to vector<1x1xf32>
    %cst_229 = arith.constant 6.400000e+01 : f32
    %519 = vector.broadcast %cst_229 : f32 to vector<1x1xf32>
    %520 = arith.divf %518, %519 : vector<1x1xf32>
    %521 = vector.broadcast %520 : vector<1x1xf32> to vector<1x64xf32>
    %522 = arith.subf %514, %521 : vector<1x64xf32>
    %523 = arith.mulf %522, %522 : vector<1x64xf32>
    %cst_230 = arith.constant dense<0.000000e+00> : vector<1xf32>
    %524 = vector.multi_reduction <add>, %523, %cst_230 [1] : vector<1x64xf32> to vector<1xf32>
    %525 = vector.shape_cast %524 : vector<1xf32> to vector<1x1xf32>
    %cst_231 = arith.constant 6.400000e+01 : f32
    %526 = vector.broadcast %cst_231 : f32 to vector<1x1xf32>
    %527 = arith.divf %525, %526 : vector<1x1xf32>
    %528 = vector.broadcast %520 : vector<1x1xf32> to vector<1x64xf32>
    %529 = arith.subf %514, %528 : vector<1x64xf32>
    %cst_232 = arith.constant 9.99999974E-6 : f32
    %530 = vector.broadcast %cst_232 : f32 to vector<1x1xf32>
    %531 = arith.addf %527, %530 : vector<1x1xf32>
    %532 = math.rsqrt %531 : vector<1x1xf32>
    %533 = vector.broadcast %532 : vector<1x1xf32> to vector<1x64xf32>
    %534 = arith.mulf %529, %533 : vector<1x64xf32>
    %535 = arith.mulf %534, %515 : vector<1x64xf32>
    %536 = arith.addf %535, %516 : vector<1x64xf32>
    %537 = arith.truncf %536 : vector<1x64xf32> to vector<1x64xbf16>
    %c0_233 = arith.constant 0 : index
    %c0_234 = arith.constant 0 : index
    %538 = vector.load %arg26[%c0_233, %c0_234] : memref<64x64xbf16, #tpu.memory_space<vmem>>, vector<64x64xbf16>
    %cst_235 = arith.constant dense<0.000000e+00> : vector<1x64xf32>
    %539 = tpu.matmul %537, %538, %cst_235 {dimension_numbers = #tpu.dot_dimension_numbers<[1], [0], [0], [1], [0, 0, 1, 1], [], []>} : vector<1x64xbf16>, vector<64x64xbf16>, vector<1x64xf32> -> vector<1x64xf32>
    %c0_236 = arith.constant 0 : index
    %c0_237 = arith.constant 0 : index
    %540 = vector.load %arg27[%c0_236, %c0_237] : memref<1x64xf32, #tpu.memory_space<vmem>>, vector<1x64xf32>
    %541 = arith.addf %539, %540 : vector<1x64xf32>
    %542 = tpu.concatenate %541, %541, %541, %541, %541, %541, %541, %541, %541 in 1 : vector<1x64xf32>, vector<1x64xf32>, vector<1x64xf32>, vector<1x64xf32>, vector<1x64xf32>, vector<1x64xf32>, vector<1x64xf32>, vector<1x64xf32>, vector<1x64xf32> -> vector<1x576xf32>
    %543 = vector.shape_cast %542 : vector<1x576xf32> to vector<1x576xf32>
    %544 = vector.broadcast %543 : vector<1x576xf32> to vector<4x576xf32>
    %c0_238 = arith.constant 0 : index
    %c0_239 = arith.constant 0 : index
    %545 = vector.load %arg28[%c0_238, %c0_239] : memref<4x576xf32, #tpu.memory_space<vmem>>, vector<4x576xf32>
    %546 = arith.mulf %544, %545 : vector<4x576xf32>
    %547 = arith.truncf %546 : vector<4x576xf32> to vector<4x576xbf16>
    %c0_240 = arith.constant 0 : index
    %c0_241 = arith.constant 0 : index
    %548 = vector.load %arg29[%c0_240, %c0_241] : memref<576x256xbf16, #tpu.memory_space<vmem>>, vector<576x256xbf16>
    %cst_242 = arith.constant dense<0.000000e+00> : vector<4x256xf32>
    %549 = tpu.matmul %547, %548, %cst_242 {dimension_numbers = #tpu.dot_dimension_numbers<[1], [0], [0], [1], [0, 0, 1, 1], [], []>} : vector<4x576xbf16>, vector<576x256xbf16>, vector<4x256xf32> -> vector<4x256xf32>
    %c0_243 = arith.constant 0 : index
    %c0_244 = arith.constant 0 : index
    %550 = vector.load %arg30[%c0_243, %c0_244] : memref<4x256xf32, #tpu.memory_space<vmem>>, vector<4x256xf32>
    %551 = arith.addf %549, %550 : vector<4x256xf32>
    %cst_245 = arith.constant dense<0xFF800000> : vector<256xf32>
    %552 = vector.multi_reduction <maximumf>, %551, %cst_245 [0] : vector<4x256xf32> to vector<256xf32>
    %553 = vector.shape_cast %552 : vector<256xf32> to vector<1x256xf32>
    %554 = vector.broadcast %553 : vector<1x256xf32> to vector<4x256xf32>
    %555 = arith.subf %551, %554 : vector<4x256xf32>
    %556 = math.exp %555 : vector<4x256xf32>
    %cst_246 = arith.constant dense<0.000000e+00> : vector<256xf32>
    %557 = vector.multi_reduction <add>, %556, %cst_246 [0] : vector<4x256xf32> to vector<256xf32>
    %558 = vector.shape_cast %557 : vector<256xf32> to vector<1x256xf32>
    %559 = vector.broadcast %558 : vector<1x256xf32> to vector<4x256xf32>
    %560 = arith.divf %556, %559 : vector<4x256xf32>
    %c0_247 = arith.constant 0 : index
    %c0_248 = arith.constant 0 : index
    %561 = vector.load %arg31[%c0_247, %c0_248] : memref<16x4xf32, #tpu.memory_space<vmem>>, vector<16x4xf32>
    %cst_249 = arith.constant dense<0.000000e+00> : vector<16x256xf32>
    %562 = tpu.matmul %561, %560, %cst_249 {dimension_numbers = #tpu.dot_dimension_numbers<[1], [0], [0], [1], [0, 0, 1, 1], [], []>} : vector<16x4xf32>, vector<4x256xf32>, vector<16x256xf32> -> vector<16x256xf32>
    %cst_250 = arith.constant 0.000000e+00 : f32
    %563 = vector.broadcast %cst_250 : f32 to vector<16x256xf32>
    %564 = arith.maximumf %562, %563 : vector<16x256xf32>
    %c0_251 = arith.constant 0 : index
    %c0_252 = arith.constant 0 : index
    %565 = vector.load %arg32[%c0_251, %c0_252] : memref<16x256xf32, #tpu.memory_space<vmem>>, vector<16x256xf32>
    tpu.vector_store %arg32[%c0_251, %c0_252], %564 {strides = array<i32>} : memref<16x256xf32, #tpu.memory_space<vmem>>, vector<16x256xf32>,
    return
  }
}

</mosaic_0001>

<llo_original>
// kernel: autoencoder_forward.1
$region0: #{autoencoder_forward.1}
  #allocation0 [shape = 'u32[]', space=smem, size = 0x4, offset = 0x4, fixed_abs, tag = 'smem constant byte address 0x4 - core index']
  #allocation1 [shape = 'u32[144,128]{1,0:T(1,128)}', space=vmem, size = 0x12000, scoped, tag = 'internal scratch']
  %s0 = inlined_call_operand.smem [shape: u32[33], index: -1, kind: input, shape index: {}]
  %s1 = sld [smem:[%s0]]
  %s2 = scalar_lea.smem %s0, 1
  %s3 = sld [smem:[%s2]]
  %s4 = scalar_lea.smem %s0, 2
  %s5 = sld [smem:[%s4]]
  %s6 = scalar_lea.smem %s0, 3
  %s7 = sld [smem:[%s6]]
  %s8 = scalar_lea.smem %s0, 4
  %s9 = sld [smem:[%s8]]
  %s10 = scalar_lea.smem %s0, 5
  %s11 = sld [smem:[%s10]]
  %s12 = scalar_lea.smem %s0, 6
  %s13 = sld [smem:[%s12]]
  %s14 = scalar_lea.smem %s0, 7
  %s15 = sld [smem:[%s14]]
  %s16 = scalar_lea.smem %s0, 8
  %s17 = sld [smem:[%s16]]
  %s18 = scalar_lea.smem %s0, 9
  %s19 = sld [smem:[%s18]]
  %s20 = scalar_lea.smem %s0, 10
  %s21 = sld [smem:[%s20]]
  %s22 = scalar_lea.smem %s0, 11
  %s23 = sld [smem:[%s22]]
  %s24 = scalar_lea.smem %s0, 12
  %s25 = sld [smem:[%s24]]
  %s26 = scalar_lea.smem %s0, 13
  %s27 = sld [smem:[%s26]]
  %s28 = scalar_lea.smem %s0, 14
  %s29 = sld [smem:[%s28]]
  %s30 = scalar_lea.smem %s0, 15
  %s31 = sld [smem:[%s30]]
  %s32 = scalar_lea.smem %s0, 16
  %s33 = sld [smem:[%s32]]
  %s34 = scalar_lea.smem %s0, 17
  %s35 = sld [smem:[%s34]]
  %s36 = scalar_lea.smem %s0, 18
  %s37 = sld [smem:[%s36]]
  %s38 = scalar_lea.smem %s0, 19
  %s39 = sld [smem:[%s38]]
  %s40 = scalar_lea.smem %s0, 20
  %s41 = sld [smem:[%s40]]
  %s42 = scalar_lea.smem %s0, 21
  %s43 = sld [smem:[%s42]]
  %s44 = scalar_lea.smem %s0, 22
  %s45 = sld [smem:[%s44]]
  %s46 = scalar_lea.smem %s0, 23
  %s47 = sld [smem:[%s46]]
  %s48 = scalar_lea.smem %s0, 24
  %s49 = sld [smem:[%s48]]
  %s50 = scalar_lea.smem %s0, 25
  %s51 = sld [smem:[%s50]]
  %s52 = scalar_lea.smem %s0, 26
  %s53 = sld [smem:[%s52]]
  %s54 = scalar_lea.smem %s0, 27
  %s55 = sld [smem:[%s54]]
  %s56 = scalar_lea.smem %s0, 28
  %s57 = sld [smem:[%s56]]
  %s58 = scalar_lea.smem %s0, 29
  %s59 = sld [smem:[%s58]]
  %s60 = scalar_lea.smem %s0, 30
  %s61 = sld [smem:[%s60]]
  %s62 = scalar_lea.smem %s0, 31
  %s63 = sld [smem:[%s62]]
  %s64 = scalar_lea.smem %s0, 32
  %s65 = sld [smem:[%s64]]
  %s66 = sld [smem:[#allocation0]]
  $region138: #{autoencoder_forward.1} parent=0
    _
  %s68 = ssub.s32 1, %s66
  %s69 = scalar_select 0, %s68, %s66
  // Predicated region
  $region2: #{autoencoder_forward.1} parent=0 // pred_check
    _
  $region3: #{autoencoder_forward.1} parent=0 // pred_check_branch
    %71 = sbr.rel (0) target = $region5
  $region4: #{autoencoder_forward.1} parent=0 // pred_region
    _
  $region5: #{autoencoder_forward.1} parent=0 // pred_fallthru
    _
  // Predicated region
  $region6: #{autoencoder_forward.1} parent=0 // pred_check
    _
  $region7: #{autoencoder_forward.1} parent=0 // pred_check_branch
    %73 = sbr.rel (0) target = $region9
  $region8: #{autoencoder_forward.1} parent=0 // pred_region
    _
  $region9: #{autoencoder_forward.1} parent=0 // pred_fallthru
    _
  // Predicated region
  $region10: #{autoencoder_forward.1} parent=0 // pred_check
    _
  $region11: #{autoencoder_forward.1} parent=0 // pred_check_branch
    %75 = sbr.rel (0) target = $region13
  $region12: #{autoencoder_forward.1} parent=0 // pred_region
    _
  $region13: #{autoencoder_forward.1} parent=0 // pred_fallthru
    _
  // Predicated region
  $region14: #{autoencoder_forward.1} parent=0 // pred_check
    _
  $region15: #{autoencoder_forward.1} parent=0 // pred_check_branch
    %77 = sbr.rel (0) target = $region17
  $region16: #{autoencoder_forward.1} parent=0 // pred_region
    _
  $region17: #{autoencoder_forward.1} parent=0 // pred_fallthru
    _
  // Predicated region
  $region18: #{autoencoder_forward.1} parent=0 // pred_check
    _
  $region19: #{autoencoder_forward.1} parent=0 // pred_check_branch
    %79 = sbr.rel (0) target = $region21
  $region20: #{autoencoder_forward.1} parent=0 // pred_region
    _
  $region21: #{autoencoder_forward.1} parent=0 // pred_fallthru
    _
  // Predicated region
  $region22: #{autoencoder_forward.1} parent=0 // pred_check
    _
  $region23: #{autoencoder_forward.1} parent=0 // pred_check_branch
    %81 = sbr.rel (0) target = $region25
  $region24: #{autoencoder_forward.1} parent=0 // pred_region
    _
  $region25: #{autoencoder_forward.1} parent=0 // pred_fallthru
    _
  // Predicated region
  $region26: #{autoencoder_forward.1} parent=0 // pred_check
    _
  $region27: #{autoencoder_forward.1} parent=0 // pred_check_branch
    %83 = sbr.rel (0) target = $region29
  $region28: #{autoencoder_forward.1} parent=0 // pred_region
    _
  $region29: #{autoencoder_forward.1} parent=0 // pred_fallthru
    _
  // Predicated region
  $region30: #{autoencoder_forward.1} parent=0 // pred_check
    _
  $region31: #{autoencoder_forward.1} parent=0 // pred_check_branch
    %85 = sbr.rel (0) target = $region33
  $region32: #{autoencoder_forward.1} parent=0 // pred_region
    _
  $region33: #{autoencoder_forward.1} parent=0 // pred_fallthru
    _
  // Predicated region
  $region34: #{autoencoder_forward.1} parent=0 // pred_check
    _
  $region35: #{autoencoder_forward.1} parent=0 // pred_check_branch
    %87 = sbr.rel (0) target = $region37
  $region36: #{autoencoder_forward.1} parent=0 // pred_region
    _
  $region37: #{autoencoder_forward.1} parent=0 // pred_fallthru
    _
  // Predicated region
  $region38: #{autoencoder_forward.1} parent=0 // pred_check
    _
  $region39: #{autoencoder_forward.1} parent=0 // pred_check_branch
    %89 = sbr.rel (0) target = $region41
  $region40: #{autoencoder_forward.1} parent=0 // pred_region
    _
  $region41: #{autoencoder_forward.1} parent=0 // pred_fallthru
    _
  // Predicated region
  $region42: #{autoencoder_forward.1} parent=0 // pred_check
    _
  $region43: #{autoencoder_forward.1} parent=0 // pred_check_branch
    %91 = sbr.rel (0) target = $region45
  $region44: #{autoencoder_forward.1} parent=0 // pred_region
    _
  $region45: #{autoencoder_forward.1} parent=0 // pred_fallthru
    _
  // Predicated region
  $region46: #{autoencoder_forward.1} parent=0 // pred_check
    _
  $region47: #{autoencoder_forward.1} parent=0 // pred_check_branch
    %93 = sbr.rel (0) target = $region49
  $region48: #{autoencoder_forward.1} parent=0 // pred_region
    _
  $region49: #{autoencoder_forward.1} parent=0 // pred_fallthru
    _
  // Predicated region
  $region50: #{autoencoder_forward.1} parent=0 // pred_check
    _
  $region51: #{autoencoder_forward.1} parent=0 // pred_check_branch
    %95 = sbr.rel (0) target = $region53
  $region52: #{autoencoder_forward.1} parent=0 // pred_region
    _
  $region53: #{autoencoder_forward.1} parent=0 // pred_fallthru
    _
  // Predicated region
  $region54: #{autoencoder_forward.1} parent=0 // pred_check
    _
  $region55: #{autoencoder_forward.1} parent=0 // pred_check_branch
    %97 = sbr.rel (0) target = $region57
  $region56: #{autoencoder_forward.1} parent=0 // pred_region
    _
  $region57: #{autoencoder_forward.1} parent=0 // pred_fallthru
    _
  // Predicated region
  $region58: #{autoencoder_forward.1} parent=0 // pred_check
    _
  $region59: #{autoencoder_forward.1} parent=0 // pred_check_branch
    %99 = sbr.rel (0) target = $region61
  $region60: #{autoencoder_forward.1} parent=0 // pred_region
    _
  $region61: #{autoencoder_forward.1} parent=0 // pred_fallthru
    _
  // Predicated region
  $region62: #{autoencoder_forward.1} parent=0 // pred_check
    _
  $region63: #{autoencoder_forward.1} parent=0 // pred_check_branch
    %101 = sbr.rel (0) target = $region65
  $region64: #{autoencoder_forward.1} parent=0 // pred_region
    _
  $region65: #{autoencoder_forward.1} parent=0 // pred_fallthru
    _
  // Predicated region
  $region66: #{autoencoder_forward.1} parent=0 // pred_check
    _
  $region67: #{autoencoder_forward.1} parent=0 // pred_check_branch
    %103 = sbr.rel (0) target = $region69
  $region68: #{autoencoder_forward.1} parent=0 // pred_region
    _
  $region69: #{autoencoder_forward.1} parent=0 // pred_fallthru
    _
  // Predicated region
  $region70: #{autoencoder_forward.1} parent=0 // pred_check
    _
  $region71: #{autoencoder_forward.1} parent=0 // pred_check_branch
    %105 = sbr.rel (0) target = $region73
  $region72: #{autoencoder_forward.1} parent=0 // pred_region
    _
  $region73: #{autoencoder_forward.1} parent=0 // pred_fallthru
    _
  // Predicated region
  $region74: #{autoencoder_forward.1} parent=0 // pred_check
    _
  $region75: #{autoencoder_forward.1} parent=0 // pred_check_branch
    %107 = sbr.rel (0) target = $region77
  $region76: #{autoencoder_forward.1} parent=0 // pred_region
    _
  $region77: #{autoencoder_forward.1} parent=0 // pred_fallthru
    _
  // Predicated region
  $region78: #{autoencoder_forward.1} parent=0 // pred_check
    _
  $region79: #{autoencoder_forward.1} parent=0 // pred_check_branch
    %109 = sbr.rel (0) target = $region81
  $region80: #{autoencoder_forward.1} parent=0 // pred_region
    _
  $region81: #{autoencoder_forward.1} parent=0 // pred_fallthru
    _
  // Predicated region
  $region82: #{autoencoder_forward.1} parent=0 // pred_check
    _
  $region83: #{autoencoder_forward.1} parent=0 // pred_check_branch
    %111 = sbr.rel (0) target = $region85
  $region84: #{autoencoder_forward.1} parent=0 // pred_region
    _
  $region85: #{autoencoder_forward.1} parent=0 // pred_fallthru
    _
  // Predicated region
  $region86: #{autoencoder_forward.1} parent=0 // pred_check
    _
  $region87: #{autoencoder_forward.1} parent=0 // pred_check_branch
    %113 = sbr.rel (0) target = $region89
  $region88: #{autoencoder_forward.1} parent=0 // pred_region
    _
  $region89: #{autoencoder_forward.1} parent=0 // pred_fallthru
    _
  // Predicated region
  $region90: #{autoencoder_forward.1} parent=0 // pred_check
    _
  $region91: #{autoencoder_forward.1} parent=0 // pred_check_branch
    %115 = sbr.rel (0) target = $region93
  $region92: #{autoencoder_forward.1} parent=0 // pred_region
    _
  $region93: #{autoencoder_forward.1} parent=0 // pred_fallthru
    _
  // Predicated region
  $region94: #{autoencoder_forward.1} parent=0 // pred_check
    _
  $region95: #{autoencoder_forward.1} parent=0 // pred_check_branch
    %117 = sbr.rel (0) target = $region97
  $region96: #{autoencoder_forward.1} parent=0 // pred_region
    _
  $region97: #{autoencoder_forward.1} parent=0 // pred_fallthru
    _
  // Predicated region
  $region98: #{autoencoder_forward.1} parent=0 // pred_check
    _
  $region99: #{autoencoder_forward.1} parent=0 // pred_check_branch
    %119 = sbr.rel (0) target = $region101
  $region100: #{autoencoder_forward.1} parent=0 // pred_region
    _
  $region101: #{autoencoder_forward.1} parent=0 // pred_fallthru
    _
  // Predicated region
  $region102: #{autoencoder_forward.1} parent=0 // pred_check
    _
  $region103: #{autoencoder_forward.1} parent=0 // pred_check_branch
    %121 = sbr.rel (0) target = $region105
  $region104: #{autoencoder_forward.1} parent=0 // pred_region
    _
  $region105: #{autoencoder_forward.1} parent=0 // pred_fallthru
    _
  // Predicated region
  $region106: #{autoencoder_forward.1} parent=0 // pred_check
    _
  $region107: #{autoencoder_forward.1} parent=0 // pred_check_branch
    %123 = sbr.rel (0) target = $region109
  $region108: #{autoencoder_forward.1} parent=0 // pred_region
    _
  $region109: #{autoencoder_forward.1} parent=0 // pred_fallthru
    _
  // Predicated region
  $region110: #{autoencoder_forward.1} parent=0 // pred_check
    _
  $region111: #{autoencoder_forward.1} parent=0 // pred_check_branch
    %125 = sbr.rel (0) target = $region113
  $region112: #{autoencoder_forward.1} parent=0 // pred_region
    _
  $region113: #{autoencoder_forward.1} parent=0 // pred_fallthru
    _
  // Predicated region
  $region114: #{autoencoder_forward.1} parent=0 // pred_check
    _
  $region115: #{autoencoder_forward.1} parent=0 // pred_check_branch
    %127 = sbr.rel (0) target = $region117
  $region116: #{autoencoder_forward.1} parent=0 // pred_region
    _
  $region117: #{autoencoder_forward.1} parent=0 // pred_fallthru
    _
  // Predicated region
  $region118: #{autoencoder_forward.1} parent=0 // pred_check
    _
  $region119: #{autoencoder_forward.1} parent=0 // pred_check_branch
    %129 = sbr.rel (0) target = $region121
  $region120: #{autoencoder_forward.1} parent=0 // pred_region
    _
  $region121: #{autoencoder_forward.1} parent=0 // pred_fallthru
    _
  // Predicated region
  $region122: #{autoencoder_forward.1} parent=0 // pred_check
    _
  $region123: #{autoencoder_forward.1} parent=0 // pred_check_branch
    %131 = sbr.rel (0) target = $region125
  $region124: #{autoencoder_forward.1} parent=0 // pred_region
    _
  $region125: #{autoencoder_forward.1} parent=0 // pred_fallthru
    _
  // Predicated region
  $region126: #{autoencoder_forward.1} parent=0 // pred_check
    _
  $region127: #{autoencoder_forward.1} parent=0 // pred_check_branch
    %133 = sbr.rel (0) target = $region129
  $region128: #{autoencoder_forward.1} parent=0 // pred_region
    _
  $region129: #{autoencoder_forward.1} parent=0 // pred_fallthru
    _
  %v135 = vld [vmem:[%s1] sm:$0xff]
  %v136 = vld [vmem:[%s1 + $0x8] sm:$0xff]
  %v137 = vld [vmem:[%s3] sm:$0xff]
  %v138 = vld [vmem:[%s5] sm:$0x1]
  %v140 = vlaneseq
  %v141 = vshrl.u32 %v140, 7
  %v142 = vsub.s32 0, %v141
  %v143 = vrot.slane %v138, %v142
  %145 = vxpose.xlu0.b32.start [1/16] %v135, 128
  %146 = vxpose.xlu0.b32.cont [2/16] 0.0, 128
  %147 = vxpose.xlu0.b32.cont [3/16] 0.0, 128
  %148 = vxpose.xlu0.b32.cont [4/16] 0.0, 128
  %149 = vxpose.xlu0.b32.cont [5/16] 0.0, 128
  %150 = vxpose.xlu0.b32.cont [6/16] 0.0, 128
  %151 = vxpose.xlu0.b32.cont [7/16] 0.0, 128
  %152 = vxpose.xlu0.b32.cont [8/16] 0.0, 128
  %153 = vxpose.xlu0.b32.cont [9/16] 0.0, 128
  %154 = vxpose.xlu0.b32.cont [10/16] 0.0, 128
  %155 = vxpose.xlu0.b32.cont [11/16] 0.0, 128
  %156 = vxpose.xlu0.b32.cont [12/16] 0.0, 128
  %157 = vxpose.xlu0.b32.cont [13/16] 0.0, 128
  %158 = vxpose.xlu0.b32.cont [14/16] 0.0, 128
  %159 = vxpose.xlu0.b32.cont [15/16] 0.0, 128
  %160 = vxpose.xlu0.b32.end [16/16] 0.0, 128
  %v161 = vpop.trf.xlu0
  %v162 = vpop.trf.xlu0
  %v163 = vpop.trf.xlu0
  %v164 = vpop.trf.xlu0
  %v165 = vpop.trf.xlu0
  %v166 = vpop.trf.xlu0
  %v167 = vpop.trf.xlu0
  %v168 = vpop.trf.xlu0
  %v169 = vpop.trf.xlu0
  %v170 = vpop.trf.xlu0
  %v171 = vpop.trf.xlu0
  %v172 = vpop.trf.xlu0
  %v173 = vpop.trf.xlu0
  %v174 = vpop.trf.xlu0
  %v175 = vpop.trf.xlu0
  %v176 = vpop.trf.xlu0
  %177 = vxpose.xlu0.b32.start [1/16] %v136, 128
  %178 = vxpose.xlu0.b32.cont [2/16] 0.0, 128
  %179 = vxpose.xlu0.b32.cont [3/16] 0.0, 128
  %180 = vxpose.xlu0.b32.cont [4/16] 0.0, 128
  %181 = vxpose.xlu0.b32.cont [5/16] 0.0, 128
  %182 = vxpose.xlu0.b32.cont [6/16] 0.0, 128
  %183 = vxpose.xlu0.b32.cont [7/16] 0.0, 128
  %184 = vxpose.xlu0.b32.cont [8/16] 0.0, 128
  %185 = vxpose.xlu0.b32.cont [9/16] 0.0, 128
  %186 = vxpose.xlu0.b32.cont [10/16] 0.0, 128
  %187 = vxpose.xlu0.b32.cont [11/16] 0.0, 128
  %188 = vxpose.xlu0.b32.cont [12/16] 0.0, 128
  %189 = vxpose.xlu0.b32.cont [13/16] 0.0, 128
  %190 = vxpose.xlu0.b32.cont [14/16] 0.0, 128
  %191 = vxpose.xlu0.b32.cont [15/16] 0.0, 128
  %192 = vxpose.xlu0.b32.end [16/16] 0.0, 128
  %v193 = vpop.trf.xlu0
  %v194 = vpop.trf.xlu0
  %v195 = vpop.trf.xlu0
  %v196 = vpop.trf.xlu0
  %v197 = vpop.trf.xlu0
  %v198 = vpop.trf.xlu0
  %v199 = vpop.trf.xlu0
  %v200 = vpop.trf.xlu0
  %v201 = vpop.trf.xlu0
  %v202 = vpop.trf.xlu0
  %v203 = vpop.trf.xlu0
  %v204 = vpop.trf.xlu0
  %v205 = vpop.trf.xlu0
  %v206 = vpop.trf.xlu0
  %v207 = vpop.trf.xlu0
  %v208 = vpop.trf.xlu0
  %vm209 = vcmask 64512
  %v211 = vsel %vm209, %v161, 0
  %v214 = vsel %vm209, %v162, 0
  %v217 = vsel %vm209, %v163, 0
  %v220 = vsel %vm209, %v164, 0
  %v223 = vsel %vm209, %v165, 0
  %v226 = vsel %vm209, %v166, 0
  %v229 = vsel %vm209, %v167, 0
  %v232 = vsel %vm209, %v168, 0
  %v235 = vsel %vm209, %v169, 0
  %v238 = vsel %vm209, %v170, 0
  %v241 = vsel %vm209, %v171, 0
  %v244 = vsel %vm209, %v172, 0
  %v247 = vsel %vm209, %v173, 0
  %v250 = vsel %vm209, %v174, 0
  %v253 = vsel %vm209, %v175, 0
  %v256 = vsel %vm209, %v176, 0
  %v259 = vsel %vm209, %v193, 0
  %v262 = vsel %vm209, %v194, 0
  %v265 = vsel %vm209, %v195, 0
  %v268 = vsel %vm209, %v196, 0
  %v271 = vsel %vm209, %v197, 0
  %v274 = vsel %vm209, %v198, 0
  %v277 = vsel %vm209, %v199, 0
  %v280 = vsel %vm209, %v200, 0
  %v283 = vsel %vm209, %v201, 0
  %v286 = vsel %vm209, %v202, 0
  %v289 = vsel %vm209, %v203, 0
  %v292 = vsel %vm209, %v204, 0
  %v295 = vsel %vm209, %v205, 0
  %v298 = vsel %vm209, %v206, 0
  %v301 = vsel %vm209, %v207, 0
  %v304 = vsel %vm209, %v208, 0
  %306 = vmatprep.subr.mxu0 0.0
  %307 = vmatpush1.msra.mxu0 %v137
  %308 = vmatprep.subr.mxu0 0.0
  %309 = vmatpush1.msra.mxu0 0.0
  %310 = vmatprep.subr.mxu0 0.0
  %311 = vmatpush1.msra.mxu0 0.0
  %312 = vmatprep.subr.mxu0 0.0
  %313 = vmatpush1.msra.mxu0 0.0
  %314 = vmatprep.subr.mxu0 0.0
  %315 = vmatpush1.msra.mxu0 0.0
  %316 = vmatprep.subr.mxu0 0.0
  %317 = vmatpush1.msra.mxu0 0.0
  %318 = vmatprep.subr.mxu0 0.0
  %319 = vmatpush1.msra.mxu0 0.0
  %320 = vmatprep.subr.mxu0 0.0
  %321 = vmatpush1.msra.mxu0 0.0
  %322 = vmatprep.subr.mxu0 0.0
  %323 = vmatpush1.msra.mxu0 0.0
  %324 = vmatprep.subr.mxu0 0.0
  %325 = vmatpush1.msra.mxu0 0.0
  %326 = vmatprep.subr.mxu0 0.0
  %327 = vmatpush1.msra.mxu0 0.0
  %328 = vmatprep.subr.mxu0 0.0
  %329 = vmatpush1.msra.mxu0 0.0
  %330 = vmatprep.subr.mxu0 0.0
  %331 = vmatpush1.msra.mxu0 0.0
  %332 = vmatprep.subr.mxu0 0.0
  %333 = vmatpush1.msra.mxu0 0.0
  %334 = vmatprep.subr.mxu0 0.0
  %335 = vmatpush1.msra.mxu0 0.0
  %336 = vmatprep.subr.mxu0 0.0
  %337 = vmatpush1.msra.mxu0 0.0
  %338 = vmatprep.subr.mxu0 0.0
  %339 = vmatpush1.msra.mxu0 0.0
  %340 = vmatprep.subr.mxu0 0.0
  %341 = vmatpush1.msra.mxu0 0.0
  %342 = vmatprep.subr.mxu0 0.0
  %343 = vmatpush1.msra.mxu0 0.0
  %344 = vmatprep.subr.mxu0 0.0
  %345 = vmatpush1.msra.mxu0 0.0
  %346 = vmatprep.subr.mxu0 0.0
  %347 = vmatpush1.msra.mxu0 0.0
  %348 = vmatprep.subr.mxu0 0.0
  %349 = vmatpush1.msra.mxu0 0.0
  %350 = vmatprep.subr.mxu0 0.0
  %351 = vmatpush1.msra.mxu0 0.0
  %352 = vmatprep.subr.mxu0 0.0
  %353 = vmatpush1.msra.mxu0 0.0
  %354 = vmatprep.subr.mxu0 0.0
  %355 = vmatpush1.msra.mxu0 0.0
  %356 = vmatprep.subr.mxu0 0.0
  %357 = vmatpush1.msra.mxu0 0.0
  %358 = vmatprep.subr.mxu0 0.0
  %359 = vmatpush1.msra.mxu0 0.0
  %360 = vmatprep.subr.mxu0 0.0
  %361 = vmatpush1.msra.mxu0 0.0
  %362 = vmatprep.subr.mxu0 0.0
  %363 = vmatpush1.msra.mxu0 0.0
  %364 = vmatprep.subr.mxu0 0.0
  %365 = vmatpush1.msra.mxu0 0.0
  %366 = vmatprep.subr.mxu0 0.0
  %367 = vmatpush1.msra.mxu0 0.0
  %368 = vmatprep.subr.mxu0 0.0
  %369 = vmatpush1.msra.mxu0 0.0
  %370 = vmatprep.mubr.f32.mxu0 0.0
  %371 = vmatmul.mubr.f32.gmra.mrb[0].mxu0 %v211
  %v372 = vpop.f32.mrb[0].mxu0
  %v373 = vadd.f32 %v143, %v372
  %v374 = vpop.f32.mrb[0].mxu0
  %375 = vmatprep.mubr.f32.mxu0 0.0
  %376 = vmatmul.mubr.f32.gmra.mrb[0].mxu0 %v214
  %v377 = vpop.f32.mrb[0].mxu0
  %v378 = vadd.f32 %v143, %v377
  %v379 = vpop.f32.mrb[0].mxu0
  %380 = vmatprep.mubr.f32.mxu0 0.0
  %381 = vmatmul.mubr.f32.gmra.mrb[0].mxu0 %v217
  %v382 = vpop.f32.mrb[0].mxu0
  %v383 = vadd.f32 %v143, %v382
  %v384 = vpop.f32.mrb[0].mxu0
  %385 = vmatprep.mubr.f32.mxu0 0.0
  %386 = vmatmul.mubr.f32.gmra.mrb[0].mxu0 %v220
  %v387 = vpop.f32.mrb[0].mxu0
  %v388 = vadd.f32 %v143, %v387
  %v389 = vpop.f32.mrb[0].mxu0
  %390 = vmatprep.mubr.f32.mxu0 0.0
  %391 = vmatmul.mubr.f32.gmra.mrb[0].mxu0 %v223
  %v392 = vpop.f32.mrb[0].mxu0
  %v393 = vadd.f32 %v143, %v392
  %v394 = vpop.f32.mrb[0].mxu0
  %395 = vmatprep.mubr.f32.mxu0 0.0
  %396 = vmatmul.mubr.f32.gmra.mrb[0].mxu0 %v226
  %v397 = vpop.f32.mrb[0].mxu0
  %v398 = vadd.f32 %v143, %v397
  %v399 = vpop.f32.mrb[0].mxu0
  %400 = vmatprep.mubr.f32.mxu0 0.0
  %401 = vmatmul.mubr.f32.gmra.mrb[0].mxu0 %v229
  %v402 = vpop.f32.mrb[0].mxu0
  %v403 = vadd.f32 %v143, %v402
  %v404 = vpop.f32.mrb[0].mxu0
  %405 = vmatprep.mubr.f32.mxu0 0.0
  %406 = vmatmul.mubr.f32.gmra.mrb[0].mxu0 %v232
  %v407 = vpop.f32.mrb[0].mxu0
  %v408 = vadd.f32 %v143, %v407
  %v409 = vpop.f32.mrb[0].mxu0
  %410 = vmatprep.mubr.f32.mxu0 0.0
  %411 = vmatmul.mubr.f32.gmra.mrb[0].mxu0 %v235
  %v412 = vpop.f32.mrb[0].mxu0
  %v413 = vadd.f32 %v143, %v412
  %v414 = vpop.f32.mrb[0].mxu0
  %415 = vmatprep.mubr.f32.mxu0 0.0
  %416 = vmatmul.mubr.f32.gmra.mrb[0].mxu0 %v238
  %v417 = vpop.f32.mrb[0].mxu0
  %v418 = vadd.f32 %v143, %v417
  %v419 = vpop.f32.mrb[0].mxu0
  %420 = vmatprep.mubr.f32.mxu0 0.0
  %421 = vmatmul.mubr.f32.gmra.mrb[0].mxu0 %v241
  %v422 = vpop.f32.mrb[0].mxu0
  %v423 = vadd.f32 %v143, %v422
  %v424 = vpop.f32.mrb[0].mxu0
  %425 = vmatprep.mubr.f32.mxu0 0.0
  %426 = vmatmul.mubr.f32.gmra.mrb[0].mxu0 %v244
  %v427 = vpop.f32.mrb[0].mxu0
  %v428 = vadd.f32 %v143, %v427
  %v429 = vpop.f32.mrb[0].mxu0
  %430 = vmatprep.mubr.f32.mxu0 0.0
  %431 = vmatmul.mubr.f32.gmra.mrb[0].mxu0 %v247
  %v432 = vpop.f32.mrb[0].mxu0
  %v433 = vadd.f32 %v143, %v432
  %v434 = vpop.f32.mrb[0].mxu0
  %435 = vmatprep.mubr.f32.mxu0 0.0
  %436 = vmatmul.mubr.f32.gmra.mrb[0].mxu0 %v250
  %v437 = vpop.f32.mrb[0].mxu0
  %v438 = vadd.f32 %v143, %v437
  %v439 = vpop.f32.mrb[0].mxu0
  %440 = vmatprep.mubr.f32.mxu0 0.0
  %441 = vmatmul.mubr.f32.gmra.mrb[0].mxu0 %v253
  %v442 = vpop.f32.mrb[0].mxu0
  %v443 = vadd.f32 %v143, %v442
  %v444 = vpop.f32.mrb[0].mxu0
  %445 = vmatprep.mubr.f32.mxu0 0.0
  %446 = vmatmul.mubr.f32.gmra.mrb[0].mxu0 %v256
  %v447 = vpop.f32.mrb[0].mxu0
  %v448 = vadd.f32 %v143, %v447
  %v449 = vpop.f32.mrb[0].mxu0
  %450 = vmatprep.mubr.f32.mxu0 0.0
  %451 = vmatmul.mubr.f32.gmra.mrb[0].mxu0 %v259
  %v452 = vpop.f32.mrb[0].mxu0
  %v453 = vadd.f32 %v143, %v452
  %v454 = vpop.f32.mrb[0].mxu0
  %455 = vmatprep.mubr.f32.mxu0 0.0
  %456 = vmatmul.mubr.f32.gmra.mrb[0].mxu0 %v262
  %v457 = vpop.f32.mrb[0].mxu0
  %v458 = vadd.f32 %v143, %v457
  %v459 = vpop.f32.mrb[0].mxu0
  %460 = vmatprep.mubr.f32.mxu0 0.0
  %461 = vmatmul.mubr.f32.gmra.mrb[0].mxu0 %v265
  %v462 = vpop.f32.mrb[0].mxu0
  %v463 = vadd.f32 %v143, %v462
  %v464 = vpop.f32.mrb[0].mxu0
  %465 = vmatprep.mubr.f32.mxu0 0.0
  %466 = vmatmul.mubr.f32.gmra.mrb[0].mxu0 %v268
  %v467 = vpop.f32.mrb[0].mxu0
  %v468 = vadd.f32 %v143, %v467
  %v469 = vpop.f32.mrb[0].mxu0
  %470 = vmatprep.mubr.f32.mxu0 0.0
  %471 = vmatmul.mubr.f32.gmra.mrb[0].mxu0 %v271
  %v472 = vpop.f32.mrb[0].mxu0
  %v473 = vadd.f32 %v143, %v472
  %v474 = vpop.f32.mrb[0].mxu0
  %475 = vmatprep.mubr.f32.mxu0 0.0
  %476 = vmatmul.mubr.f32.gmra.mrb[0].mxu0 %v274
  %v477 = vpop.f32.mrb[0].mxu0
  %v478 = vadd.f32 %v143, %v477
  %v479 = vpop.f32.mrb[0].mxu0
  %480 = vmatprep.mubr.f32.mxu0 0.0
  %481 = vmatmul.mubr.f32.gmra.mrb[0].mxu0 %v277
  %v482 = vpop.f32.mrb[0].mxu0
  %v483 = vadd.f32 %v143, %v482
  %v484 = vpop.f32.mrb[0].mxu0
  %485 = vmatprep.mubr.f32.mxu0 0.0
  %486 = vmatmul.mubr.f32.gmra.mrb[0].mxu0 %v280
  %v487 = vpop.f32.mrb[0].mxu0
  %v488 = vadd.f32 %v143, %v487
  %v489 = vpop.f32.mrb[0].mxu0
  %490 = vmatprep.mubr.f32.mxu0 0.0
  %491 = vmatmul.mubr.f32.gmra.mrb[0].mxu0 %v283
  %v492 = vpop.f32.mrb[0].mxu0
  %v493 = vadd.f32 %v143, %v492
  %v494 = vpop.f32.mrb[0].mxu0
  %495 = vmatprep.mubr.f32.mxu0 0.0
  %496 = vmatmul.mubr.f32.gmra.mrb[0].mxu0 %v286
  %v497 = vpop.f32.mrb[0].mxu0
  %v498 = vadd.f32 %v143, %v497
  %v499 = vpop.f32.mrb[0].mxu0
  %500 = vmatprep.mubr.f32.mxu0 0.0
  %501 = vmatmul.mubr.f32.gmra.mrb[0].mxu0 %v289
  %v502 = vpop.f32.mrb[0].mxu0
  %v503 = vadd.f32 %v143, %v502
  %v504 = vpop.f32.mrb[0].mxu0
  %505 = vmatprep.mubr.f32.mxu0 0.0
  %506 = vmatmul.mubr.f32.gmra.mrb[0].mxu0 %v292
  %v507 = vpop.f32.mrb[0].mxu0
  %v508 = vadd.f32 %v143, %v507
  %v509 = vpop.f32.mrb[0].mxu0
  %510 = vmatprep.mubr.f32.mxu0 0.0
  %511 = vmatmul.mubr.f32.gmra.mrb[0].mxu0 %v295
  %v512 = vpop.f32.mrb[0].mxu0
  %v513 = vadd.f32 %v143, %v512
  %v514 = vpop.f32.mrb[0].mxu0
  %515 = vmatprep.mubr.f32.mxu0 0.0
  %516 = vmatmul.mubr.f32.gmra.mrb[0].mxu0 %v298
  %v517 = vpop.f32.mrb[0].mxu0
  %v518 = vadd.f32 %v143, %v517
  %v519 = vpop.f32.mrb[0].mxu0
  %520 = vmatprep.mubr.f32.mxu0 0.0
  %521 = vmatmul.mubr.f32.gmra.mrb[0].mxu0 %v301
  %v522 = vpop.f32.mrb[0].mxu0
  %v523 = vadd.f32 %v143, %v522
  %v524 = vpop.f32.mrb[0].mxu0
  %525 = vmatprep.mubr.f32.mxu0 0.0
  %526 = vmatmul.mubr.f32.gmra.mrb[0].mxu0 %v304
  %v527 = vpop.f32.mrb[0].mxu0
  %v528 = vadd.f32 %v143, %v527
  %v529 = vpop.f32.mrb[0].mxu0
  %530 = vdwg.mxu0
  %vm531 = vcmp.gt.f32.partialorder %v373, 0.0
  %vm532 = vcmp.gt.f32.partialorder %v378, 0.0
  %vm533 = vcmp.gt.f32.partialorder %v383, 0.0
  %vm534 = vcmp.gt.f32.partialorder %v388, 0.0
  %vm535 = vcmp.gt.f32.partialorder %v393, 0.0
  %vm536 = vcmp.gt.f32.partialorder %v398, 0.0
  %vm537 = vcmp.gt.f32.partialorder %v403, 0.0
  %vm538 = vcmp.gt.f32.partialorder %v408, 0.0
  %vm539 = vcmp.gt.f32.partialorder %v413, 0.0
  %vm540 = vcmp.gt.f32.partialorder %v418, 0.0
  %vm541 = vcmp.gt.f32.partialorder %v423, 0.0
  %vm542 = vcmp.gt.f32.partialorder %v428, 0.0
  %vm543 = vcmp.gt.f32.partialorder %v433, 0.0
  %vm544 = vcmp.gt.f32.partialorder %v438, 0.0
  %vm545 = vcmp.gt.f32.partialorder %v443, 0.0
  %vm546 = vcmp.gt.f32.partialorder %v448, 0.0
  %vm547 = vcmp.gt.f32.partialorder %v453, 0.0
  %vm548 = vcmp.gt.f32.partialorder %v458, 0.0
  %vm549 = vcmp.gt.f32.partialorder %v463, 0.0
  %vm550 = vcmp.gt.f32.partialorder %v468, 0.0
  %vm551 = vcmp.gt.f32.partialorder %v473, 0.0
  %vm552 = vcmp.gt.f32.partialorder %v478, 0.0
  %vm553 = vcmp.gt.f32.partialorder %v483, 0.0
  %vm554 = vcmp.gt.f32.partialorder %v488, 0.0
  %vm555 = vcmp.gt.f32.partialorder %v493, 0.0
  %vm556 = vcmp.gt.f32.partialorder %v498, 0.0
  %vm557 = vcmp.gt.f32.partialorder %v503, 0.0
  %vm558 = vcmp.gt.f32.partialorder %v508, 0.0
  %vm559 = vcmp.gt.f32.partialorder %v513, 0.0
  %vm560 = vcmp.gt.f32.partialorder %v518, 0.0
  %vm561 = vcmp.gt.f32.partialorder %v523, 0.0
  %vm562 = vcmp.gt.f32.partialorder %v528, 0.0
  %v563 = vmul.f32 %v373, 0.01
  %v564 = vmul.f32 %v378, 0.01
  %v565 = vmul.f32 %v383, 0.01
  %v566 = vmul.f32 %v388, 0.01
  %v567 = vmul.f32 %v393, 0.01
  %v568 = vmul.f32 %v398, 0.01
  %v569 = vmul.f32 %v403, 0.01
  %v570 = vmul.f32 %v408, 0.01
  %v571 = vmul.f32 %v413, 0.01
  %v572 = vmul.f32 %v418, 0.01
  %v573 = vmul.f32 %v423, 0.01
  %v574 = vmul.f32 %v428, 0.01
  %v575 = vmul.f32 %v433, 0.01
  %v576 = vmul.f32 %v438, 0.01
  %v577 = vmul.f32 %v443, 0.01
  %v578 = vmul.f32 %v448, 0.01
  %v579 = vmul.f32 %v453, 0.01
  %v580 = vmul.f32 %v458, 0.01
  %v581 = vmul.f32 %v463, 0.01
  %v582 = vmul.f32 %v468, 0.01
  %v583 = vmul.f32 %v473, 0.01
  %v584 = vmul.f32 %v478, 0.01
  %v585 = vmul.f32 %v483, 0.01
  %v586 = vmul.f32 %v488, 0.01
  %v587 = vmul.f32 %v493, 0.01
  %v588 = vmul.f32 %v498, 0.01
  %v589 = vmul.f32 %v503, 0.01
  %v590 = vmul.f32 %v508, 0.01
  %v591 = vmul.f32 %v513, 0.01
  %v592 = vmul.f32 %v518, 0.01
  %v593 = vmul.f32 %v523, 0.01
  %v594 = vmul.f32 %v528, 0.01
  %v595 = vsel %vm531, %v373, %v563
  %v596 = vsel %vm532, %v378, %v564
  %v597 = vsel %vm533, %v383, %v565
  %v598 = vsel %vm534, %v388, %v566
  %v599 = vsel %vm535, %v393, %v567
  %v600 = vsel %vm536, %v398, %v568
  %v601 = vsel %vm537, %v403, %v569
  %v602 = vsel %vm538, %v408, %v570
  %v603 = vsel %vm539, %v413, %v571
  %v604 = vsel %vm540, %v418, %v572
  %v605 = vsel %vm541, %v423, %v573
  %v606 = vsel %vm542, %v428, %v574
  %v607 = vsel %vm543, %v433, %v575
  %v608 = vsel %vm544, %v438, %v576
  %v609 = vsel %vm545, %v443, %v577
  %v610 = vsel %vm546, %v448, %v578
  %v611 = vsel %vm547, %v453, %v579
  %v612 = vsel %vm548, %v458, %v580
  %v613 = vsel %vm549, %v463, %v581
  %v614 = vsel %vm550, %v468, %v582
  %v615 = vsel %vm551, %v473, %v583
  %v616 = vsel %vm552, %v478, %v584
  %v617 = vsel %vm553, %v483, %v585
  %v618 = vsel %vm554, %v488, %v586
  %v619 = vsel %vm555, %v493, %v587
  %v620 = vsel %vm556, %v498, %v588
  %v621 = vsel %vm557, %v503, %v589
  %v622 = vsel %vm558, %v508, %v590
  %v623 = vsel %vm559, %v513, %v591
  %v624 = vsel %vm560, %v518, %v592
  %v625 = vsel %vm561, %v523, %v593
  %v626 = vsel %vm562, %v528, %v594
  %v627 = vpack.c.bf16 %v596, %v595
  %v628 = vpack.c.bf16 %v598, %v597
  %v629 = vpack.c.bf16 %v600, %v599
  %v630 = vpack.c.bf16 %v602, %v601
  %v631 = vpack.c.bf16 %v604, %v603
  %v632 = vpack.c.bf16 %v606, %v605
  %v633 = vpack.c.bf16 %v608, %v607
  %v634 = vpack.c.bf16 %v610, %v609
  %v635 = vpack.c.bf16 %v612, %v611
  %v636 = vpack.c.bf16 %v614, %v613
  %v637 = vpack.c.bf16 %v616, %v615
  %v638 = vpack.c.bf16 %v618, %v617
  %v639 = vpack.c.bf16 %v620, %v619
  %v640 = vpack.c.bf16 %v622, %v621
  %v641 = vpack.c.bf16 %v624, %v623
  %v642 = vpack.c.bf16 %v626, %v625
  %v643 = vld [vmem:[%s7] sm:$0xf]
  %v644 = vld [vmem:[%s7 + $0x4] sm:$0xf]
  %v645 = vld [vmem:[%s7 + $0x8] sm:$0xf]
  %v646 = vld [vmem:[%s7 + $0xc] sm:$0xf]
  %v647 = vld [vmem:[%s7 + $0x10] sm:$0xf]
  %v648 = vld [vmem:[%s7 + $0x14] sm:$0xf]
  %v649 = vld [vmem:[%s7 + $0x18] sm:$0xf]
  %v650 = vld [vmem:[%s7 + $0x1c] sm:$0xf]
  %v651 = vld [vmem:[%s7 + $0x20] sm:$0xf]
  %v652 = vld [vmem:[%s7 + $0x24] sm:$0xf]
  %v653 = vld [vmem:[%s7 + $0x28] sm:$0xf]
  %v654 = vld [vmem:[%s7 + $0x2c] sm:$0xf]
  %v655 = vld [vmem:[%s7 + $0x30] sm:$0xf]
  %v656 = vld [vmem:[%s7 + $0x34] sm:$0xf]
  %v657 = vld [vmem:[%s7 + $0x38] sm:$0xf]
  %v658 = vld [vmem:[%s7 + $0x3c] sm:$0xf]
  %v659 = vld [vmem:[%s9] sm:$0x1]
  %v661 = vlaneseq
  %v662 = vshrl.u32 %v661, 7
  %v663 = vsub.s32 0, %v662
  %v664 = vrot.slane %v659, %v663
  %v682 = vunpack.c.l.b16 %v643
  %v683 = vunpack.c.l.b16 %v644
  %v684 = vunpack.c.l.b16 %v645
  %v685 = vunpack.c.l.b16 %v646
  %v686 = vunpack.c.l.b16 %v647
  %v687 = vunpack.c.l.b16 %v648
  %v688 = vunpack.c.l.b16 %v649
  %v689 = vunpack.c.l.b16 %v650
  %v690 = vunpack.c.l.b16 %v651
  %v691 = vunpack.c.l.b16 %v652
  %v692 = vunpack.c.l.b16 %v653
  %v693 = vunpack.c.l.b16 %v654
  %v694 = vunpack.c.l.b16 %v655
  %v695 = vunpack.c.l.b16 %v656
  %v696 = vunpack.c.l.b16 %v657
  %v697 = vunpack.c.l.b16 %v658
  %v698 = vpack.c.b16 %v683, %v682
  %v699 = vpack.c.b16 %v685, %v684
  %v700 = vpack.c.b16 %v687, %v686
  %v701 = vpack.c.b16 %v689, %v688
  %v702 = vpack.c.b16 %v691, %v690
  %v703 = vpack.c.b16 %v693, %v692
  %v704 = vpack.c.b16 %v695, %v694
  %v705 = vpack.c.b16 %v697, %v696
  %714 = vmatprep.subr.bf16.mxu0 0
  %715 = vmatpush1.bf16.msra.mxu0 %v698
  %716 = vmatprep.subr.bf16.mxu0 0
  %717 = vmatpush1.bf16.msra.mxu0 %v699
  %718 = vmatprep.subr.bf16.mxu0 0
  %719 = vmatpush1.bf16.msra.mxu0 %v700
  %720 = vmatprep.subr.bf16.mxu0 0
  %721 = vmatpush1.bf16.msra.mxu0 %v701
  %722 = vmatprep.subr.bf16.mxu0 0
  %723 = vmatpush1.bf16.msra.mxu0 %v702
  %724 = vmatprep.subr.bf16.mxu0 0
  %725 = vmatpush1.bf16.msra.mxu0 %v703
  %726 = vmatprep.subr.bf16.mxu0 0
  %727 = vmatpush1.bf16.msra.mxu0 %v704
  %728 = vmatprep.subr.bf16.mxu0 0
  %729 = vmatpush1.bf16.msra.mxu0 %v705
  %730 = vmatprep.subr.bf16.mxu0 0
  %731 = vmatpush1.bf16.msra.mxu0 0
  %732 = vmatprep.subr.bf16.mxu0 0
  %733 = vmatpush1.bf16.msra.mxu0 0
  %734 = vmatprep.subr.bf16.mxu0 0
  %735 = vmatpush1.bf16.msra.mxu0 0
  %736 = vmatprep.subr.bf16.mxu0 0
  %737 = vmatpush1.bf16.msra.mxu0 0
  %738 = vmatprep.subr.bf16.mxu0 0
  %739 = vmatpush1.bf16.msra.mxu0 0
  %740 = vmatprep.subr.bf16.mxu0 0
  %741 = vmatpush1.bf16.msra.mxu0 0
  %742 = vmatprep.subr.bf16.mxu0 0
  %743 = vmatpush1.bf16.msra.mxu0 0
  %744 = vmatprep.subr.bf16.mxu0 0
  %745 = vmatpush1.bf16.msra.mxu0 0
  %746 = vmatprep.mubr.bf16.mxu0 0
  %747 = vmatmul.mubr.bf16.gmra.mrb[0].mxu0 %v627
  %v748 = vpop.f32.mrb[0].mxu0
  %v749 = vadd.f32 %v664, %v748
  %v750 = vpop.f32.mrb[0].mxu0
  %v751 = vpop.f32.mrb[0].mxu0
  %v752 = vadd.f32 %v664, %v751
  %v753 = vpop.f32.mrb[0].mxu0
  %754 = vmatprep.mubr.bf16.mxu0 0
  %755 = vmatmul.mubr.bf16.gmra.mrb[0].mxu0 %v628
  %v756 = vpop.f32.mrb[0].mxu0
  %v757 = vadd.f32 %v664, %v756
  %v758 = vpop.f32.mrb[0].mxu0
  %v759 = vpop.f32.mrb[0].mxu0
  %v760 = vadd.f32 %v664, %v759
  %v761 = vpop.f32.mrb[0].mxu0
  %762 = vmatprep.mubr.bf16.mxu0 0
  %763 = vmatmul.mubr.bf16.gmra.mrb[0].mxu0 %v629
  %v764 = vpop.f32.mrb[0].mxu0
  %v765 = vadd.f32 %v664, %v764
  %v766 = vpop.f32.mrb[0].mxu0
  %v767 = vpop.f32.mrb[0].mxu0
  %v768 = vadd.f32 %v664, %v767
  %v769 = vpop.f32.mrb[0].mxu0
  %770 = vmatprep.mubr.bf16.mxu0 0
  %771 = vmatmul.mubr.bf16.gmra.mrb[0].mxu0 %v630
  %v772 = vpop.f32.mrb[0].mxu0
  %v773 = vadd.f32 %v664, %v772
  %v774 = vpop.f32.mrb[0].mxu0
  %v775 = vpop.f32.mrb[0].mxu0
  %v776 = vadd.f32 %v664, %v775
  %v777 = vpop.f32.mrb[0].mxu0
  %778 = vmatprep.mubr.bf16.mxu0 0
  %779 = vmatmul.mubr.bf16.gmra.mrb[0].mxu0 %v631
  %v780 = vpop.f32.mrb[0].mxu0
  %v781 = vadd.f32 %v664, %v780
  %v782 = vpop.f32.mrb[0].mxu0
  %v783 = vpop.f32.mrb[0].mxu0
  %v784 = vadd.f32 %v664, %v783
  %v785 = vpop.f32.mrb[0].mxu0
  %786 = vmatprep.mubr.bf16.mxu0 0
  %787 = vmatmul.mubr.bf16.gmra.mrb[0].mxu0 %v632
  %v788 = vpop.f32.mrb[0].mxu0
  %v789 = vadd.f32 %v664, %v788
  %v790 = vpop.f32.mrb[0].mxu0
  %v791 = vpop.f32.mrb[0].mxu0
  %v792 = vadd.f32 %v664, %v791
  %v793 = vpop.f32.mrb[0].mxu0
  %794 = vmatprep.mubr.bf16.mxu0 0
  %795 = vmatmul.mubr.bf16.gmra.mrb[0].mxu0 %v633
  %v796 = vpop.f32.mrb[0].mxu0
  %v797 = vadd.f32 %v664, %v796
  %v798 = vpop.f32.mrb[0].mxu0
  %v799 = vpop.f32.mrb[0].mxu0
  %v800 = vadd.f32 %v664, %v799
  %v801 = vpop.f32.mrb[0].mxu0
  %802 = vmatprep.mubr.bf16.mxu0 0
  %803 = vmatmul.mubr.bf16.gmra.mrb[0].mxu0 %v634
  %v804 = vpop.f32.mrb[0].mxu0
  %v805 = vadd.f32 %v664, %v804
  %v806 = vpop.f32.mrb[0].mxu0
  %v807 = vpop.f32.mrb[0].mxu0
  %v808 = vadd.f32 %v664, %v807
  %v809 = vpop.f32.mrb[0].mxu0
  %810 = vmatprep.mubr.bf16.mxu0 0
  %811 = vmatmul.mubr.bf16.gmra.mrb[0].mxu0 %v635
  %v812 = vpop.f32.mrb[0].mxu0
  %v813 = vadd.f32 %v664, %v812
  %v814 = vpop.f32.mrb[0].mxu0
  %v815 = vpop.f32.mrb[0].mxu0
  %v816 = vadd.f32 %v664, %v815
  %v817 = vpop.f32.mrb[0].mxu0
  %818 = vmatprep.mubr.bf16.mxu0 0
  %819 = vmatmul.mubr.bf16.gmra.mrb[0].mxu0 %v636
  %v820 = vpop.f32.mrb[0].mxu0
  %v821 = vadd.f32 %v664, %v820
  %v822 = vpop.f32.mrb[0].mxu0
  %v823 = vpop.f32.mrb[0].mxu0
  %v824 = vadd.f32 %v664, %v823
  %v825 = vpop.f32.mrb[0].mxu0
  %826 = vmatprep.mubr.bf16.mxu0 0
  %827 = vmatmul.mubr.bf16.gmra.mrb[0].mxu0 %v637
  %v828 = vpop.f32.mrb[0].mxu0
  %v829 = vadd.f32 %v664, %v828
  %v830 = vpop.f32.mrb[0].mxu0
  %v831 = vpop.f32.mrb[0].mxu0
  %v832 = vadd.f32 %v664, %v831
  %v833 = vpop.f32.mrb[0].mxu0
  %834 = vmatprep.mubr.bf16.mxu0 0
  %835 = vmatmul.mubr.bf16.gmra.mrb[0].mxu0 %v638
  %v836 = vpop.f32.mrb[0].mxu0
  %v837 = vadd.f32 %v664, %v836
  %v838 = vpop.f32.mrb[0].mxu0
  %v839 = vpop.f32.mrb[0].mxu0
  %v840 = vadd.f32 %v664, %v839
  %v841 = vpop.f32.mrb[0].mxu0
  %842 = vmatprep.mubr.bf16.mxu0 0
  %843 = vmatmul.mubr.bf16.gmra.mrb[0].mxu0 %v639
  %v844 = vpop.f32.mrb[0].mxu0
  %v845 = vadd.f32 %v664, %v844
  %v846 = vpop.f32.mrb[0].mxu0
  %v847 = vpop.f32.mrb[0].mxu0
  %v848 = vadd.f32 %v664, %v847
  %v849 = vpop.f32.mrb[0].mxu0
  %850 = vmatprep.mubr.bf16.mxu0 0
  %851 = vmatmul.mubr.bf16.gmra.mrb[0].mxu0 %v640
  %v852 = vpop.f32.mrb[0].mxu0
  %v853 = vadd.f32 %v664, %v852
  %v854 = vpop.f32.mrb[0].mxu0
  %v855 = vpop.f32.mrb[0].mxu0
  %v856 = vadd.f32 %v664, %v855
  %v857 = vpop.f32.mrb[0].mxu0
  %858 = vmatprep.mubr.bf16.mxu0 0
  %859 = vmatmul.mubr.bf16.gmra.mrb[0].mxu0 %v641
  %v860 = vpop.f32.mrb[0].mxu0
  %v861 = vadd.f32 %v664, %v860
  %v862 = vpop.f32.mrb[0].mxu0
  %v863 = vpop.f32.mrb[0].mxu0
  %v864 = vadd.f32 %v664, %v863
  %v865 = vpop.f32.mrb[0].mxu0
  %866 = vmatprep.mubr.bf16.mxu0 0
  %867 = vmatmul.mubr.bf16.gmra.mrb[0].mxu0 %v642
  %v868 = vpop.f32.mrb[0].mxu0
  %v869 = vadd.f32 %v664, %v868
  %v870 = vpop.f32.mrb[0].mxu0
  %v871 = vpop.f32.mrb[0].mxu0
  %v872 = vadd.f32 %v664, %v871
  %v873 = vpop.f32.mrb[0].mxu0
  %874 = vdwg.mxu0
  %vm875 = vcmp.gt.f32.partialorder %v749, 0.0
  %vm876 = vcmp.gt.f32.partialorder %v752, 0.0
  %vm877 = vcmp.gt.f32.partialorder %v757, 0.0
  %vm878 = vcmp.gt.f32.partialorder %v760, 0.0
  %vm879 = vcmp.gt.f32.partialorder %v765, 0.0
  %vm880 = vcmp.gt.f32.partialorder %v768, 0.0
  %vm881 = vcmp.gt.f32.partialorder %v773, 0.0
  %vm882 = vcmp.gt.f32.partialorder %v776, 0.0
  %vm883 = vcmp.gt.f32.partialorder %v781, 0.0
  %vm884 = vcmp.gt.f32.partialorder %v784, 0.0
  %vm885 = vcmp.gt.f32.partialorder %v789, 0.0
  %vm886 = vcmp.gt.f32.partialorder %v792, 0.0
  %vm887 = vcmp.gt.f32.partialorder %v797, 0.0
  %vm888 = vcmp.gt.f32.partialorder %v800, 0.0
  %vm889 = vcmp.gt.f32.partialorder %v805, 0.0
  %vm890 = vcmp.gt.f32.partialorder %v808, 0.0
  %vm891 = vcmp.gt.f32.partialorder %v813, 0.0
  %vm892 = vcmp.gt.f32.partialorder %v816, 0.0
  %vm893 = vcmp.gt.f32.partialorder %v821, 0.0
  %vm894 = vcmp.gt.f32.partialorder %v824, 0.0
  %vm895 = vcmp.gt.f32.partialorder %v829, 0.0
  %vm896 = vcmp.gt.f32.partialorder %v832, 0.0
  %vm897 = vcmp.gt.f32.partialorder %v837, 0.0
  %vm898 = vcmp.gt.f32.partialorder %v840, 0.0
  %vm899 = vcmp.gt.f32.partialorder %v845, 0.0
  %vm900 = vcmp.gt.f32.partialorder %v848, 0.0
  %vm901 = vcmp.gt.f32.partialorder %v853, 0.0
  %vm902 = vcmp.gt.f32.partialorder %v856, 0.0
  %vm903 = vcmp.gt.f32.partialorder %v861, 0.0
  %vm904 = vcmp.gt.f32.partialorder %v864, 0.0
  %vm905 = vcmp.gt.f32.partialorder %v869, 0.0
  %vm906 = vcmp.gt.f32.partialorder %v872, 0.0
  %v907 = vmul.f32 %v749, 0.01
  %v908 = vmul.f32 %v752, 0.01
  %v909 = vmul.f32 %v757, 0.01
  %v910 = vmul.f32 %v760, 0.01
  %v911 = vmul.f32 %v765, 0.01
  %v912 = vmul.f32 %v768, 0.01
  %v913 = vmul.f32 %v773, 0.01
  %v914 = vmul.f32 %v776, 0.01
  %v915 = vmul.f32 %v781, 0.01
  %v916 = vmul.f32 %v784, 0.01
  %v917 = vmul.f32 %v789, 0.01
  %v918 = vmul.f32 %v792, 0.01
  %v919 = vmul.f32 %v797, 0.01
  %v920 = vmul.f32 %v800, 0.01
  %v921 = vmul.f32 %v805, 0.01
  %v922 = vmul.f32 %v808, 0.01
  %v923 = vmul.f32 %v813, 0.01
  %v924 = vmul.f32 %v816, 0.01
  %v925 = vmul.f32 %v821, 0.01
  %v926 = vmul.f32 %v824, 0.01
  %v927 = vmul.f32 %v829, 0.01
  %v928 = vmul.f32 %v832, 0.01
  %v929 = vmul.f32 %v837, 0.01
  %v930 = vmul.f32 %v840, 0.01
  %v931 = vmul.f32 %v845, 0.01
  %v932 = vmul.f32 %v848, 0.01
  %v933 = vmul.f32 %v853, 0.01
  %v934 = vmul.f32 %v856, 0.01
  %v935 = vmul.f32 %v861, 0.01
  %v936 = vmul.f32 %v864, 0.01
  %v937 = vmul.f32 %v869, 0.01
  %v938 = vmul.f32 %v872, 0.01
  %v939 = vsel %vm875, %v749, %v907
  %v940 = vsel %vm876, %v752, %v908
  %v941 = vsel %vm877, %v757, %v909
  %v942 = vsel %vm878, %v760, %v910
  %v943 = vsel %vm879, %v765, %v911
  %v944 = vsel %vm880, %v768, %v912
  %v945 = vsel %vm881, %v773, %v913
  %v946 = vsel %vm882, %v776, %v914
  %v947 = vsel %vm883, %v781, %v915
  %v948 = vsel %vm884, %v784, %v916
  %v949 = vsel %vm885, %v789, %v917
  %v950 = vsel %vm886, %v792, %v918
  %v951 = vsel %vm887, %v797, %v919
  %v952 = vsel %vm888, %v800, %v920
  %v953 = vsel %vm889, %v805, %v921
  %v954 = vsel %vm890, %v808, %v922
  %v955 = vsel %vm891, %v813, %v923
  %v956 = vsel %vm892, %v816, %v924
  %v957 = vsel %vm893, %v821, %v925
  %v958 = vsel %vm894, %v824, %v926
  %v959 = vsel %vm895, %v829, %v927
  %v960 = vsel %vm896, %v832, %v928
  %v961 = vsel %vm897, %v837, %v929
  %v962 = vsel %vm898, %v840, %v930
  %v963 = vsel %vm899, %v845, %v931
  %v964 = vsel %vm900, %v848, %v932
  %v965 = vsel %vm901, %v853, %v933
  %v966 = vsel %vm902, %v856, %v934
  %v967 = vsel %vm903, %v861, %v935
  %v968 = vsel %vm904, %v864, %v936
  %v969 = vsel %vm905, %v869, %v937
  %v970 = vsel %vm906, %v872, %v938
  %v971 = vpack.c.bf16 %v940, %v939
  %v972 = vpack.c.bf16 %v942, %v941
  %v973 = vpack.c.bf16 %v944, %v943
  %v974 = vpack.c.bf16 %v946, %v945
  %v975 = vpack.c.bf16 %v948, %v947
  %v976 = vpack.c.bf16 %v950, %v949
  %v977 = vpack.c.bf16 %v952, %v951
  %v978 = vpack.c.bf16 %v954, %v953
  %v979 = vpack.c.bf16 %v956, %v955
  %v980 = vpack.c.bf16 %v958, %v957
  %v981 = vpack.c.bf16 %v960, %v959
  %v982 = vpack.c.bf16 %v962, %v961
  %v983 = vpack.c.bf16 %v964, %v963
  %v984 = vpack.c.bf16 %v966, %v965
  %v985 = vpack.c.bf16 %v968, %v967
  %v986 = vpack.c.bf16 %v970, %v969
  %v987 = vld [vmem:[%s11] sm:$0xf]
  %v988 = vld [vmem:[%s11 + $0x4] sm:$0xf]
  %v989 = vld [vmem:[%s11 + $0x8] sm:$0xf]
  %v990 = vld [vmem:[%s11 + $0xc] sm:$0xf]
  %v991 = vld [vmem:[%s11 + $0x10] sm:$0xf]
  %v992 = vld [vmem:[%s11 + $0x14] sm:$0xf]
  %v993 = vld [vmem:[%s11 + $0x18] sm:$0xf]
  %v994 = vld [vmem:[%s11 + $0x1c] sm:$0xf]
  %v995 = vld [vmem:[%s13] sm:$0x1]
  %v997 = vlaneseq
  %v998 = vshrl.u32 %v997, 7
  %v999 = vsub.s32 0, %v998
  %v1000 = vrot.slane %v995, %v999
  %v1010 = vunpack.c.l.b16 %v987
  %v1011 = vunpack.c.l.b16 %v988
  %v1012 = vunpack.c.l.b16 %v989
  %v1013 = vunpack.c.l.b16 %v990
  %v1014 = vunpack.c.l.b16 %v991
  %v1015 = vunpack.c.l.b16 %v992
  %v1016 = vunpack.c.l.b16 %v993
  %v1017 = vunpack.c.l.b16 %v994
  %v1018 = vpack.c.b16 %v1011, %v1010
  %v1019 = vpack.c.b16 %v1013, %v1012
  %v1020 = vpack.c.b16 %v1015, %v1014
  %v1021 = vpack.c.b16 %v1017, %v1016
  %vm1026 = vcmask 523264
  %v1028 = vsel %vm1026, %v971, 0
  %v1031 = vsel %vm1026, %v972, 0
  %v1034 = vsel %vm1026, %v973, 0
  %v1037 = vsel %vm1026, %v974, 0
  %v1040 = vsel %vm1026, %v975, 0
  %v1043 = vsel %vm1026, %v976, 0
  %v1046 = vsel %vm1026, %v977, 0
  %v1049 = vsel %vm1026, %v978, 0
  %v1052 = vsel %vm1026, %v979, 0
  %v1055 = vsel %vm1026, %v980, 0
  %v1058 = vsel %vm1026, %v981, 0
  %v1061 = vsel %vm1026, %v982, 0
  %v1064 = vsel %vm1026, %v983, 0
  %v1067 = vsel %vm1026, %v984, 0
  %v1070 = vsel %vm1026, %v985, 0
  %v1073 = vsel %vm1026, %v986, 0
  %1075 = vmatprep.subr.bf16.mxu0 0
  %1076 = vmatpush1.bf16.msra.mxu0 %v1018
  %1077 = vmatprep.subr.bf16.mxu0 0
  %1078 = vmatpush1.bf16.msra.mxu0 %v1019
  %1079 = vmatprep.subr.bf16.mxu0 0
  %1080 = vmatpush1.bf16.msra.mxu0 %v1020
  %1081 = vmatprep.subr.bf16.mxu0 0
  %1082 = vmatpush1.bf16.msra.mxu0 %v1021
  %1083 = vmatprep.subr.bf16.mxu0 0
  %1084 = vmatpush1.bf16.msra.mxu0 0
  %1085 = vmatprep.subr.bf16.mxu0 0
  %1086 = vmatpush1.bf16.msra.mxu0 0
  %1087 = vmatprep.subr.bf16.mxu0 0
  %1088 = vmatpush1.bf16.msra.mxu0 0
  %1089 = vmatprep.subr.bf16.mxu0 0
  %1090 = vmatpush1.bf16.msra.mxu0 0
  %1091 = vmatprep.subr.bf16.mxu0 0
  %1092 = vmatpush1.bf16.msra.mxu0 0
  %1093 = vmatprep.subr.bf16.mxu0 0
  %1094 = vmatpush1.bf16.msra.mxu0 0
  %1095 = vmatprep.subr.bf16.mxu0 0
  %1096 = vmatpush1.bf16.msra.mxu0 0
  %1097 = vmatprep.subr.bf16.mxu0 0
  %1098 = vmatpush1.bf16.msra.mxu0 0
  %1099 = vmatprep.subr.bf16.mxu0 0
  %1100 = vmatpush1.bf16.msra.mxu0 0
  %1101 = vmatprep.subr.bf16.mxu0 0
  %1102 = vmatpush1.bf16.msra.mxu0 0
  %1103 = vmatprep.subr.bf16.mxu0 0
  %1104 = vmatpush1.bf16.msra.mxu0 0
  %1105 = vmatprep.subr.bf16.mxu0 0
  %1106 = vmatpush1.bf16.msra.mxu0 0
  %1107 = vmatprep.mubr.bf16.mxu0 0
  %1108 = vmatmul.mubr.bf16.gmra.mrb[0].mxu0 %v1028
  %v1109 = vpop.f32.mrb[0].mxu0
  %v1110 = vadd.f32 %v1000, %v1109
  %v1111 = vpop.f32.mrb[0].mxu0
  %v1112 = vpop.f32.mrb[0].mxu0
  %v1113 = vadd.f32 %v1000, %v1112
  %v1114 = vpop.f32.mrb[0].mxu0
  %1115 = vmatprep.mubr.bf16.mxu0 0
  %1116 = vmatmul.mubr.bf16.gmra.mrb[0].mxu0 %v1031
  %v1117 = vpop.f32.mrb[0].mxu0
  %v1118 = vadd.f32 %v1000, %v1117
  %v1119 = vpop.f32.mrb[0].mxu0
  %v1120 = vpop.f32.mrb[0].mxu0
  %v1121 = vadd.f32 %v1000, %v1120
  %v1122 = vpop.f32.mrb[0].mxu0
  %1123 = vmatprep.mubr.bf16.mxu0 0
  %1124 = vmatmul.mubr.bf16.gmra.mrb[0].mxu0 %v1034
  %v1125 = vpop.f32.mrb[0].mxu0
  %v1126 = vadd.f32 %v1000, %v1125
  %v1127 = vpop.f32.mrb[0].mxu0
  %v1128 = vpop.f32.mrb[0].mxu0
  %v1129 = vadd.f32 %v1000, %v1128
  %v1130 = vpop.f32.mrb[0].mxu0
  %1131 = vmatprep.mubr.bf16.mxu0 0
  %1132 = vmatmul.mubr.bf16.gmra.mrb[0].mxu0 %v1037
  %v1133 = vpop.f32.mrb[0].mxu0
  %v1134 = vadd.f32 %v1000, %v1133
  %v1135 = vpop.f32.mrb[0].mxu0
  %v1136 = vpop.f32.mrb[0].mxu0
  %v1137 = vadd.f32 %v1000, %v1136
  %v1138 = vpop.f32.mrb[0].mxu0
  %1139 = vmatprep.mubr.bf16.mxu0 0
  %1140 = vmatmul.mubr.bf16.gmra.mrb[0].mxu0 %v1040
  %v1141 = vpop.f32.mrb[0].mxu0
  %v1142 = vadd.f32 %v1000, %v1141
  %v1143 = vpop.f32.mrb[0].mxu0
  %v1144 = vpop.f32.mrb[0].mxu0
  %v1145 = vadd.f32 %v1000, %v1144
  %v1146 = vpop.f32.mrb[0].mxu0
  %1147 = vmatprep.mubr.bf16.mxu0 0
  %1148 = vmatmul.mubr.bf16.gmra.mrb[0].mxu0 %v1043
  %v1149 = vpop.f32.mrb[0].mxu0
  %v1150 = vadd.f32 %v1000, %v1149
  %v1151 = vpop.f32.mrb[0].mxu0
  %v1152 = vpop.f32.mrb[0].mxu0
  %v1153 = vadd.f32 %v1000, %v1152
  %v1154 = vpop.f32.mrb[0].mxu0
  %1155 = vmatprep.mubr.bf16.mxu0 0
  %1156 = vmatmul.mubr.bf16.gmra.mrb[0].mxu0 %v1046
  %v1157 = vpop.f32.mrb[0].mxu0
  %v1158 = vadd.f32 %v1000, %v1157
  %v1159 = vpop.f32.mrb[0].mxu0
  %v1160 = vpop.f32.mrb[0].mxu0
  %v1161 = vadd.f32 %v1000, %v1160
  %v1162 = vpop.f32.mrb[0].mxu0
  %1163 = vmatprep.mubr.bf16.mxu0 0
  %1164 = vmatmul.mubr.bf16.gmra.mrb[0].mxu0 %v1049
  %v1165 = vpop.f32.mrb[0].mxu0
  %v1166 = vadd.f32 %v1000, %v1165
  %v1167 = vpop.f32.mrb[0].mxu0
  %v1168 = vpop.f32.mrb[0].mxu0
  %v1169 = vadd.f32 %v1000, %v1168
  %v1170 = vpop.f32.mrb[0].mxu0
  %1171 = vmatprep.mubr.bf16.mxu0 0
  %1172 = vmatmul.mubr.bf16.gmra.mrb[0].mxu0 %v1052
  %v1173 = vpop.f32.mrb[0].mxu0
  %v1174 = vadd.f32 %v1000, %v1173
  %v1175 = vpop.f32.mrb[0].mxu0
  %v1176 = vpop.f32.mrb[0].mxu0
  %v1177 = vadd.f32 %v1000, %v1176
  %v1178 = vpop.f32.mrb[0].mxu0
  %1179 = vmatprep.mubr.bf16.mxu0 0
  %1180 = vmatmul.mubr.bf16.gmra.mrb[0].mxu0 %v1055
  %v1181 = vpop.f32.mrb[0].mxu0
  %v1182 = vadd.f32 %v1000, %v1181
  %v1183 = vpop.f32.mrb[0].mxu0
  %v1184 = vpop.f32.mrb[0].mxu0
  %v1185 = vadd.f32 %v1000, %v1184
  %v1186 = vpop.f32.mrb[0].mxu0
  %1187 = vmatprep.mubr.bf16.mxu0 0
  %1188 = vmatmul.mubr.bf16.gmra.mrb[0].mxu0 %v1058
  %v1189 = vpop.f32.mrb[0].mxu0
  %v1190 = vadd.f32 %v1000, %v1189
  %v1191 = vpop.f32.mrb[0].mxu0
  %v1192 = vpop.f32.mrb[0].mxu0
  %v1193 = vadd.f32 %v1000, %v1192
  %v1194 = vpop.f32.mrb[0].mxu0
  %1195 = vmatprep.mubr.bf16.mxu0 0
  %1196 = vmatmul.mubr.bf16.gmra.mrb[0].mxu0 %v1061
  %v1197 = vpop.f32.mrb[0].mxu0
  %v1198 = vadd.f32 %v1000, %v1197
  %v1199 = vpop.f32.mrb[0].mxu0
  %v1200 = vpop.f32.mrb[0].mxu0
  %v1201 = vadd.f32 %v1000, %v1200
  %v1202 = vpop.f32.mrb[0].mxu0
  %1203 = vmatprep.mubr.bf16.mxu0 0
  %1204 = vmatmul.mubr.bf16.gmra.mrb[0].mxu0 %v1064
  %v1205 = vpop.f32.mrb[0].mxu0
  %v1206 = vadd.f32 %v1000, %v1205
  %v1207 = vpop.f32.mrb[0].mxu0
  %v1208 = vpop.f32.mrb[0].mxu0
  %v1209 = vadd.f32 %v1000, %v1208
  %v1210 = vpop.f32.mrb[0].mxu0
  %1211 = vmatprep.mubr.bf16.mxu0 0
  %1212 = vmatmul.mubr.bf16.gmra.mrb[0].mxu0 %v1067
  %v1213 = vpop.f32.mrb[0].mxu0
  %v1214 = vadd.f32 %v1000, %v1213
  %v1215 = vpop.f32.mrb[0].mxu0
  %v1216 = vpop.f32.mrb[0].mxu0
  %v1217 = vadd.f32 %v1000, %v1216
  %v1218 = vpop.f32.mrb[0].mxu0
  %1219 = vmatprep.mubr.bf16.mxu0 0
  %1220 = vmatmul.mubr.bf16.gmra.mrb[0].mxu0 %v1070
  %v1221 = vpop.f32.mrb[0].mxu0
  %v1222 = vadd.f32 %v1000, %v1221
  %v1223 = vpop.f32.mrb[0].mxu0
  %v1224 = vpop.f32.mrb[0].mxu0
  %v1225 = vadd.f32 %v1000, %v1224
  %v1226 = vpop.f32.mrb[0].mxu0
  %1227 = vmatprep.mubr.bf16.mxu0 0
  %1228 = vmatmul.mubr.bf16.gmra.mrb[0].mxu0 %v1073
  %v1229 = vpop.f32.mrb[0].mxu0
  %v1230 = vadd.f32 %v1000, %v1229
  %v1231 = vpop.f32.mrb[0].mxu0
  %v1232 = vpop.f32.mrb[0].mxu0
  %v1233 = vadd.f32 %v1000, %v1232
  %v1234 = vpop.f32.mrb[0].mxu0
  %1235 = vdwg.mxu0
  %v1236 = vld [vmem:[%s15] sm:$0xff]
  %v1237 = vld [vmem:[%s15 + $0x8] sm:$0xff]
  %v1238 = vld [vmem:[%s15 + $0x10] sm:$0xff]
  %v1239 = vld [vmem:[%s15 + $0x18] sm:$0xff]
  %v1240 = vld [vmem:[%s15 + $0x20] sm:$0xff]
  %v1241 = vld [vmem:[%s15 + $0x28] sm:$0xff]
  %v1242 = vld [vmem:[%s15 + $0x30] sm:$0xff]
  %v1243 = vld [vmem:[%s15 + $0x38] sm:$0xff]
  %v1244 = vld [vmem:[%s15 + $0x40] sm:$0xff]
  %v1245 = vld [vmem:[%s15 + $0x48] sm:$0xff]
  %v1246 = vld [vmem:[%s15 + $0x50] sm:$0xff]
  %v1247 = vld [vmem:[%s15 + $0x58] sm:$0xff]
  %v1248 = vld [vmem:[%s15 + $0x60] sm:$0xff]
  %v1249 = vld [vmem:[%s15 + $0x68] sm:$0xff]
  %v1250 = vld [vmem:[%s15 + $0x70] sm:$0xff]
  %v1251 = vld [vmem:[%s15 + $0x78] sm:$0xff]
  %v1252 = vld [vmem:[%s15 + $0x80] sm:$0xff]
  %v1253 = vld [vmem:[%s15 + $0x88] sm:$0xff]
  %v1254 = vld [vmem:[%s15 + $0x90] sm:$0xff]
  %v1255 = vld [vmem:[%s15 + $0x98] sm:$0xff]
  %v1256 = vld [vmem:[%s15 + $0xa0] sm:$0xff]
  %v1257 = vld [vmem:[%s15 + $0xa8] sm:$0xff]
  %v1258 = vld [vmem:[%s15 + $0xb0] sm:$0xff]
  %v1259 = vld [vmem:[%s15 + $0xb8] sm:$0xff]
  %v1260 = vld [vmem:[%s15 + $0xc0] sm:$0xff]
  %v1261 = vld [vmem:[%s15 + $0xc8] sm:$0xff]
  %v1262 = vld [vmem:[%s15 + $0xd0] sm:$0xff]
  %v1263 = vld [vmem:[%s15 + $0xd8] sm:$0xff]
  %v1264 = vld [vmem:[%s15 + $0xe0] sm:$0xff]
  %v1265 = vld [vmem:[%s15 + $0xe8] sm:$0xff]
  %v1266 = vld [vmem:[%s15 + $0xf0] sm:$0xff]
  %v1267 = vld [vmem:[%s15 + $0xf8] sm:$0xff]
  %v1268 = vmul.f32 %v1110, %v1236
  %v1269 = vmul.f32 %v1113, %v1237
  %v1270 = vmul.f32 %v1118, %v1238
  %v1271 = vmul.f32 %v1121, %v1239
  %v1272 = vmul.f32 %v1126, %v1240
  %v1273 = vmul.f32 %v1129, %v1241
  %v1274 = vmul.f32 %v1134, %v1242
  %v1275 = vmul.f32 %v1137, %v1243
  %v1276 = vmul.f32 %v1142, %v1244
  %v1277 = vmul.f32 %v1145, %v1245
  %v1278 = vmul.f32 %v1150, %v1246
  %v1279 = vmul.f32 %v1153, %v1247
  %v1280 = vmul.f32 %v1158, %v1248
  %v1281 = vmul.f32 %v1161, %v1249
  %v1282 = vmul.f32 %v1166, %v1250
  %v1283 = vmul.f32 %v1169, %v1251
  %v1284 = vmul.f32 %v1174, %v1252
  %v1285 = vmul.f32 %v1177, %v1253
  %v1286 = vmul.f32 %v1182, %v1254
  %v1287 = vmul.f32 %v1185, %v1255
  %v1288 = vmul.f32 %v1190, %v1256
  %v1289 = vmul.f32 %v1193, %v1257
  %v1290 = vmul.f32 %v1198, %v1258
  %v1291 = vmul.f32 %v1201, %v1259
  %v1292 = vmul.f32 %v1206, %v1260
  %v1293 = vmul.f32 %v1209, %v1261
  %v1294 = vmul.f32 %v1214, %v1262
  %v1295 = vmul.f32 %v1217, %v1263
  %v1296 = vmul.f32 %v1222, %v1264
  %v1297 = vmul.f32 %v1225, %v1265
  %v1298 = vmul.f32 %v1230, %v1266
  %v1299 = vmul.f32 %v1233, %v1267
  %v1300 = vld [vmem:[%s17] sm:$0xff]
  %v1301 = vld [vmem:[%s17 + $0x8] sm:$0xff]
  %v1302 = vld [vmem:[%s17 + $0x10] sm:$0x11]
  %v1303 = vpack.c.bf16 %v1269, %v1268
  %v1304 = vpack.c.bf16 %v1271, %v1270
  %v1305 = vpack.c.bf16 %v1273, %v1272
  %v1306 = vpack.c.bf16 %v1275, %v1274
  %v1307 = vpack.c.bf16 %v1277, %v1276
  %v1308 = vpack.c.bf16 %v1279, %v1278
  %v1309 = vpack.c.bf16 %v1281, %v1280
  %v1310 = vpack.c.bf16 %v1283, %v1282
  %v1311 = vpack.c.bf16 %v1285, %v1284
  %v1312 = vpack.c.bf16 %v1287, %v1286
  %v1313 = vpack.c.bf16 %v1289, %v1288
  %v1314 = vpack.c.bf16 %v1291, %v1290
  %v1315 = vpack.c.bf16 %v1293, %v1292
  %v1316 = vpack.c.bf16 %v1295, %v1294
  %v1317 = vpack.c.bf16 %v1297, %v1296
  %v1318 = vpack.c.bf16 %v1299, %v1298
  %v1322 = vunpack.c.l.b16 %v1300
  %v1323 = vunpack.c.h.b16 %v1300
  %v1324 = vunpack.c.l.b16 %v1301
  %v1325 = vunpack.c.h.b16 %v1301
  %v1326 = vunpack.c.l.b16 %v1302
  %v1327 = vunpack.c.h.b16 %v1302
  %v1328 = vpack.c.b16 %v1324, %v1322
  %v1329 = vpack.c.b16 %v1325, %v1323
  %v1330 = vpack.c.b16 %v1326, %v1326
  %v1331 = vpack.c.b16 %v1327, %v1327
  %1336 = vmatprep.subr.bf16.mxu0 0
  %1337 = vmatpush1.bf16.msra.mxu0 %v1303
  %1338 = vmatprep.subr.bf16.mxu0 0
  %1339 = vmatpush1.bf16.msra.mxu0 %v1304
  %1340 = vmatprep.subr.bf16.mxu0 0
  %1341 = vmatpush1.bf16.msra.mxu0 %v1305
  %1342 = vmatprep.subr.bf16.mxu0 0
  %1343 = vmatpush1.bf16.msra.mxu0 %v1306
  %1344 = vmatprep.subr.bf16.mxu0 0
  %1345 = vmatpush1.bf16.msra.mxu0 %v1307
  %1346 = vmatprep.subr.bf16.mxu0 0
  %1347 = vmatpush1.bf16.msra.mxu0 %v1308
  %1348 = vmatprep.subr.bf16.mxu0 0
  %1349 = vmatpush1.bf16.msra.mxu0 %v1309
  %1350 = vmatprep.subr.bf16.mxu0 0
  %1351 = vmatpush1.bf16.msra.mxu0 %v1310
  %1352 = vmatprep.subr.bf16.mxu0 0
  %1353 = vmatpush1.bf16.msra.mxu0 %v1311
  %1354 = vmatprep.subr.bf16.mxu0 0
  %1355 = vmatpush1.bf16.msra.mxu0 %v1312
  %1356 = vmatprep.subr.bf16.mxu0 0
  %1357 = vmatpush1.bf16.msra.mxu0 %v1313
  %1358 = vmatprep.subr.bf16.mxu0 0
  %1359 = vmatpush1.bf16.msra.mxu0 %v1314
  %1360 = vmatprep.subr.bf16.mxu0 0
  %1361 = vmatpush1.bf16.msra.mxu0 %v1315
  %1362 = vmatprep.subr.bf16.mxu0 0
  %1363 = vmatpush1.bf16.msra.mxu0 %v1316
  %1364 = vmatprep.subr.bf16.mxu0 0
  %1365 = vmatpush1.bf16.msra.mxu0 %v1317
  %1366 = vmatprep.subr.bf16.mxu0 0
  %1367 = vmatpush1.bf16.msra.mxu0 %v1318
  %1368 = vmatprep.mubr.bf16.mxu0 %v1329
  %1369 = vmatmul.mubr.bf16.gmra.mrb[0].mxu0 %v1328
  %v1370 = vpop.f32.mrb[0].mxu0
  %v1371 = vadd.f32 0.0, %v1370
  %v1372 = vpop.f32.mrb[0].mxu0
  %v1373 = vpop.f32.mrb[0].mxu0
  %v1374 = vadd.f32 0.0, %v1373
  %v1375 = vpop.f32.mrb[0].mxu0
  %1376 = vmatprep.mubr.bf16.mxu0 %v1331
  %1377 = vmatmul.mubr.bf16.gmra.mrb[0].mxu0 %v1330
  %v1378 = vpop.f32.mrb[0].mxu0
  %v1379 = vadd.f32 0.0, %v1378
  %v1380 = vpop.f32.mrb[0].mxu0
  %v1381 = vpop.f32.mrb[0].mxu0
  %v1382 = vpop.f32.mrb[0].mxu0
  %1383 = vdwg.mxu0
  %v1384 = vpack.c.bf16 %v1374, %v1371
  %v1385 = vpack.c.bf16 %v1379, %v1379
  %v1386 = vld [vmem:[%s19] sm:$0xf]
  %v1387 = vld [vmem:[%s19 + $0x4] sm:$0xf]
  %v1388 = vld [vmem:[%s19 + $0x8] sm:$0xf]
  %v1389 = vld [vmem:[%s19 + $0xc] sm:$0xf]
  %v1390 = vld [vmem:[%s19 + $0x10] sm:$0xf]
  %v1391 = vld [vmem:[%s19 + $0x14] sm:$0xf]
  %v1392 = vld [vmem:[%s19 + $0x18] sm:$0xf]
  %v1393 = vld [vmem:[%s19 + $0x1c] sm:$0xf]
  %v1394 = vld [vmem:[%s21] sm:$0xff]
  %v1395 = vld [vmem:[%s21 + $0x8] sm:$0xff]
  %v1396 = vld [vmem:[%s21 + $0x10] sm:$0x1]
  %v1405 = vunpack.c.l.b16 %v1386
  %v1406 = vunpack.c.l.b16 %v1387
  %v1407 = vunpack.c.l.b16 %v1388
  %v1408 = vunpack.c.l.b16 %v1389
  %v1409 = vunpack.c.l.b16 %v1390
  %v1410 = vunpack.c.l.b16 %v1391
  %v1411 = vunpack.c.l.b16 %v1392
  %v1412 = vunpack.c.l.b16 %v1393
  %v1413 = vpack.c.b16 %v1406, %v1405
  %v1414 = vpack.c.b16 %v1408, %v1407
  %v1415 = vpack.c.b16 %v1410, %v1409
  %v1416 = vpack.c.b16 %v1412, %v1411
  %v1422 = vsel %vm1026, %v1384, 0
  %v1425 = vsel %vm1026, %v1385, 0
  %1427 = vmatprep.subr.bf16.mxu0 0
  %1428 = vmatpush1.bf16.msra.mxu0 %v1413
  %1429 = vmatprep.subr.bf16.mxu0 0
  %1430 = vmatpush1.bf16.msra.mxu0 %v1414
  %1431 = vmatprep.subr.bf16.mxu0 0
  %1432 = vmatpush1.bf16.msra.mxu0 %v1415
  %1433 = vmatprep.subr.bf16.mxu0 0
  %1434 = vmatpush1.bf16.msra.mxu0 %v1416
  %1435 = vmatprep.subr.bf16.mxu0 0
  %1436 = vmatpush1.bf16.msra.mxu0 0
  %1437 = vmatprep.subr.bf16.mxu0 0
  %1438 = vmatpush1.bf16.msra.mxu0 0
  %1439 = vmatprep.subr.bf16.mxu0 0
  %1440 = vmatpush1.bf16.msra.mxu0 0
  %1441 = vmatprep.subr.bf16.mxu0 0
  %1442 = vmatpush1.bf16.msra.mxu0 0
  %1443 = vmatprep.subr.bf16.mxu0 0
  %1444 = vmatpush1.bf16.msra.mxu0 0
  %1445 = vmatprep.subr.bf16.mxu0 0
  %1446 = vmatpush1.bf16.msra.mxu0 0
  %1447 = vmatprep.subr.bf16.mxu0 0
  %1448 = vmatpush1.bf16.msra.mxu0 0
  %1449 = vmatprep.subr.bf16.mxu0 0
  %1450 = vmatpush1.bf16.msra.mxu0 0
  %1451 = vmatprep.subr.bf16.mxu0 0
  %1452 = vmatpush1.bf16.msra.mxu0 0
  %1453 = vmatprep.subr.bf16.mxu0 0
  %1454 = vmatpush1.bf16.msra.mxu0 0
  %1455 = vmatprep.subr.bf16.mxu0 0
  %1456 = vmatpush1.bf16.msra.mxu0 0
  %1457 = vmatprep.subr.bf16.mxu0 0
  %1458 = vmatpush1.bf16.msra.mxu0 0
  %1459 = vmatprep.mubr.bf16.mxu0 0
  %1460 = vmatmul.mubr.bf16.gmra.mrb[0].mxu0 %v1422
  %v1461 = vpop.f32.mrb[0].mxu0
  %v1462 = vadd.f32 %v1394, %v1461
  %v1463 = vpop.f32.mrb[0].mxu0
  %v1464 = vpop.f32.mrb[0].mxu0
  %v1465 = vadd.f32 %v1395, %v1464
  %v1466 = vpop.f32.mrb[0].mxu0
  %1467 = vmatprep.mubr.bf16.mxu0 0
  %1468 = vmatmul.mubr.bf16.gmra.mrb[0].mxu0 %v1425
  %v1469 = vpop.f32.mrb[0].mxu0
  %v1470 = vadd.f32 %v1396, %v1469
  %v1471 = vpop.f32.mrb[0].mxu0
  %v1472 = vpop.f32.mrb[0].mxu0
  %v1473 = vpop.f32.mrb[0].mxu0
  %1474 = vdwg.mxu0
  %v1475 = vld [vmem:[%s23] sm:$0x1]
  %v1476 = vld [vmem:[%s25] sm:$0x1]
  %v1477 = vsel %vm1026, %v1462, 0.0
  %1478 = vadd.xlane.f32.xlu0 %v1477
  %v1479 = vpop.xlane.xlu0 %1478
  %v1480 = vsel %vm1026, %v1465, 0.0
  %1481 = vadd.xlane.f32.xlu0 %v1480
  %v1482 = vpop.xlane.xlu0 %1481
  %vm1483 = vcmask 516096
  %v1484 = vsel %vm1483, %v1470, 0.0
  %1485 = vadd.xlane.f32.xlu0 %v1484
  %v1486 = vpop.xlane.xlu0 %1485
  %v1487 = vrcp.pop 64.0
  %v1488 = vmul.f32 %v1479, %v1487
  %v1489 = vmul.f32 %v1482, %v1487
  %v1490 = vmul.f32 %v1486, %v1487
  %v1491 = vsub.f32 %v1462, %v1488
  %v1492 = vsub.f32 %v1465, %v1489
  %v1493 = vsub.f32 %v1470, %v1490
  %v1494 = vmul.f32 %v1491, %v1491
  %v1495 = vmul.f32 %v1492, %v1492
  %v1496 = vmul.f32 %v1493, %v1493
  %v1497 = vsel %vm1026, %v1494, 0.0
  %1498 = vadd.xlane.f32.xlu0 %v1497
  %v1499 = vpop.xlane.xlu0 %1498
  %v1500 = vsel %vm1026, %v1495, 0.0
  %1501 = vadd.xlane.f32.xlu0 %v1500
  %v1502 = vpop.xlane.xlu0 %1501
  %v1503 = vsel %vm1483, %v1496, 0.0
  %1504 = vadd.xlane.f32.xlu0 %v1503
  %v1505 = vpop.xlane.xlu0 %1504
  %v1506 = vmul.f32 %v1499, %v1487
  %v1507 = vmul.f32 %v1502, %v1487
  %v1508 = vmul.f32 %v1505, %v1487
  %v1509 = vadd.f32 %v1506, 1e-05
  %v1510 = vadd.f32 %v1507, 1e-05
  %v1511 = vadd.f32 %v1508, 1e-05
  %v1512 = vrsqrt.pop %v1509
  %v1513 = vrsqrt.pop %v1510
  %v1514 = vrsqrt.pop %v1511
  %v1515 = vmul.f32 %v1491, %v1512
  %v1516 = vmul.f32 %v1492, %v1513
  %v1517 = vmul.f32 %v1493, %v1514
  %v1519 = vlaneseq
  %v1520 = vshrl.u32 %v1519, 7
  %v1521 = vsub.s32 0, %v1520
  %v1522 = vrot.slane %v1475, %v1521
  %v1524 = vmul.f32 %v1515, %v1522
  %v1525 = vmul.f32 %v1516, %v1522
  %v1526 = vmul.f32 %v1517, %v1522
  %v1528 = vlaneseq
  %v1529 = vshrl.u32 %v1528, 7
  %v1530 = vsub.s32 0, %v1529
  %v1531 = vrot.slane %v1476, %v1530
  %v1533 = vadd.f32 %v1524, %v1531
  %v1534 = vadd.f32 %v1525, %v1531
  %v1535 = vadd.f32 %v1526, %v1531
  %v1536 = vpack.c.bf16 %v1534, %v1533
  %v1537 = vpack.c.bf16 %v1535, %v1535
  %v1538 = vld [vmem:[%s27] sm:$0xff]
  %v1539 = vld [vmem:[%s27 + $0x8] sm:$0xff]
  %v1540 = vld [vmem:[%s27 + $0x10] sm:$0xff]
  %v1541 = vld [vmem:[%s27 + $0x18] sm:$0xff]
  %v1542 = vld [vmem:[%s27 + $0x20] sm:$0xff]
  %v1543 = vld [vmem:[%s27 + $0x28] sm:$0xff]
  %v1544 = vld [vmem:[%s27 + $0x30] sm:$0xff]
  %v1545 = vld [vmem:[%s27 + $0x38] sm:$0xff]
  %v1546 = vld [vmem:[%s27 + $0x40] sm:$0xff]
  %v1547 = vld [vmem:[%s27 + $0x48] sm:$0xff]
  %v1548 = vld [vmem:[%s27 + $0x50] sm:$0xff]
  %v1549 = vld [vmem:[%s27 + $0x58] sm:$0xff]
  %v1550 = vld [vmem:[%s27 + $0x60] sm:$0xff]
  %v1551 = vld [vmem:[%s27 + $0x68] sm:$0xff]
  %v1552 = vld [vmem:[%s27 + $0x70] sm:$0xff]
  %v1553 = vld [vmem:[%s27 + $0x78] sm:$0xff]
  %v1554 = vld [vmem:[%s27 + $0x80] sm:$0xff]
  %v1555 = vld [vmem:[%s27 + $0x88] sm:$0xff]
  %v1556 = vld [vmem:[%s27 + $0x90] sm:$0xff]
  %v1557 = vld [vmem:[%s27 + $0x98] sm:$0xff]
  %v1558 = vld [vmem:[%s27 + $0xa0] sm:$0xff]
  %v1559 = vld [vmem:[%s27 + $0xa8] sm:$0xff]
  %v1560 = vld [vmem:[%s27 + $0xb0] sm:$0xff]
  %v1561 = vld [vmem:[%s27 + $0xb8] sm:$0xff]
  %v1562 = vld [vmem:[%s27 + $0xc0] sm:$0xff]
  %v1563 = vld [vmem:[%s27 + $0xc8] sm:$0xff]
  %v1564 = vld [vmem:[%s27 + $0xd0] sm:$0xff]
  %v1565 = vld [vmem:[%s27 + $0xd8] sm:$0xff]
  %v1566 = vld [vmem:[%s27 + $0xe0] sm:$0xff]
  %v1567 = vld [vmem:[%s27 + $0xe8] sm:$0xff]
  %v1568 = vld [vmem:[%s27 + $0xf0] sm:$0xff]
  %v1569 = vld [vmem:[%s27 + $0xf8] sm:$0xff]
  %v1602 = vunpack.c.l.b16 %v1538
  %v1603 = vunpack.c.h.b16 %v1538
  %v1604 = vunpack.c.l.b16 %v1539
  %v1605 = vunpack.c.h.b16 %v1539
  %v1606 = vunpack.c.l.b16 %v1540
  %v1607 = vunpack.c.h.b16 %v1540
  %v1608 = vunpack.c.l.b16 %v1541
  %v1609 = vunpack.c.h.b16 %v1541
  %v1610 = vunpack.c.l.b16 %v1542
  %v1611 = vunpack.c.h.b16 %v1542
  %v1612 = vunpack.c.l.b16 %v1543
  %v1613 = vunpack.c.h.b16 %v1543
  %v1614 = vunpack.c.l.b16 %v1544
  %v1615 = vunpack.c.h.b16 %v1544
  %v1616 = vunpack.c.l.b16 %v1545
  %v1617 = vunpack.c.h.b16 %v1545
  %v1618 = vunpack.c.l.b16 %v1546
  %v1619 = vunpack.c.h.b16 %v1546
  %v1620 = vunpack.c.l.b16 %v1547
  %v1621 = vunpack.c.h.b16 %v1547
  %v1622 = vunpack.c.l.b16 %v1548
  %v1623 = vunpack.c.h.b16 %v1548
  %v1624 = vunpack.c.l.b16 %v1549
  %v1625 = vunpack.c.h.b16 %v1549
  %v1626 = vunpack.c.l.b16 %v1550
  %v1627 = vunpack.c.h.b16 %v1550
  %v1628 = vunpack.c.l.b16 %v1551
  %v1629 = vunpack.c.h.b16 %v1551
  %v1630 = vunpack.c.l.b16 %v1552
  %v1631 = vunpack.c.h.b16 %v1552
  %v1632 = vunpack.c.l.b16 %v1553
  %v1633 = vunpack.c.h.b16 %v1553
  %v1634 = vunpack.c.l.b16 %v1554
  %v1635 = vunpack.c.h.b16 %v1554
  %v1636 = vunpack.c.l.b16 %v1555
  %v1637 = vunpack.c.h.b16 %v1555
  %v1638 = vunpack.c.l.b16 %v1556
  %v1639 = vunpack.c.h.b16 %v1556
  %v1640 = vunpack.c.l.b16 %v1557
  %v1641 = vunpack.c.h.b16 %v1557
  %v1642 = vunpack.c.l.b16 %v1558
  %v1643 = vunpack.c.h.b16 %v1558
  %v1644 = vunpack.c.l.b16 %v1559
  %v1645 = vunpack.c.h.b16 %v1559
  %v1646 = vunpack.c.l.b16 %v1560
  %v1647 = vunpack.c.h.b16 %v1560
  %v1648 = vunpack.c.l.b16 %v1561
  %v1649 = vunpack.c.h.b16 %v1561
  %v1650 = vunpack.c.l.b16 %v1562
  %v1651 = vunpack.c.h.b16 %v1562
  %v1652 = vunpack.c.l.b16 %v1563
  %v1653 = vunpack.c.h.b16 %v1563
  %v1654 = vunpack.c.l.b16 %v1564
  %v1655 = vunpack.c.h.b16 %v1564
  %v1656 = vunpack.c.l.b16 %v1565
  %v1657 = vunpack.c.h.b16 %v1565
  %v1658 = vunpack.c.l.b16 %v1566
  %v1659 = vunpack.c.h.b16 %v1566
  %v1660 = vunpack.c.l.b16 %v1567
  %v1661 = vunpack.c.h.b16 %v1567
  %v1662 = vunpack.c.l.b16 %v1568
  %v1663 = vunpack.c.h.b16 %v1568
  %v1664 = vunpack.c.l.b16 %v1569
  %v1665 = vunpack.c.h.b16 %v1569
  %v1666 = vpack.c.b16 %v1610, %v1602
  %v1667 = vpack.c.b16 %v1611, %v1603
  %v1668 = vpack.c.b16 %v1612, %v1604
  %v1669 = vpack.c.b16 %v1613, %v1605
  %v1670 = vpack.c.b16 %v1614, %v1606
  %v1671 = vpack.c.b16 %v1615, %v1607
  %v1672 = vpack.c.b16 %v1616, %v1608
  %v1673 = vpack.c.b16 %v1617, %v1609
  %v1674 = vpack.c.b16 %v1626, %v1618
  %v1675 = vpack.c.b16 %v1627, %v1619
  %v1676 = vpack.c.b16 %v1628, %v1620
  %v1677 = vpack.c.b16 %v1629, %v1621
  %v1678 = vpack.c.b16 %v1630, %v1622
  %v1679 = vpack.c.b16 %v1631, %v1623
  %v1680 = vpack.c.b16 %v1632, %v1624
  %v1681 = vpack.c.b16 %v1633, %v1625
  %v1682 = vpack.c.b16 %v1642, %v1634
  %v1683 = vpack.c.b16 %v1643, %v1635
  %v1684 = vpack.c.b16 %v1644, %v1636
  %v1685 = vpack.c.b16 %v1645, %v1637
  %v1686 = vpack.c.b16 %v1646, %v1638
  %v1687 = vpack.c.b16 %v1647, %v1639
  %v1688 = vpack.c.b16 %v1648, %v1640
  %v1689 = vpack.c.b16 %v1649, %v1641
  %v1690 = vpack.c.b16 %v1658, %v1650
  %v1691 = vpack.c.b16 %v1659, %v1651
  %v1692 = vpack.c.b16 %v1660, %v1652
  %v1693 = vpack.c.b16 %v1661, %v1653
  %v1694 = vpack.c.b16 %v1662, %v1654
  %v1695 = vpack.c.b16 %v1663, %v1655
  %v1696 = vpack.c.b16 %v1664, %v1656
  %v1697 = vpack.c.b16 %v1665, %v1657
  %v1731 = vsel %vm1026, %v1536, 0
  %v1734 = vsel %vm1026, %v1537, 0
  %1736 = vmatprep.subr.bf16.mxu0 %v1667
  %1737 = vmatpush1.bf16.msra.mxu0 %v1666
  %1738 = vmatprep.subr.bf16.mxu0 %v1675
  %1739 = vmatpush1.bf16.msra.mxu0 %v1674
  %1740 = vmatprep.subr.bf16.mxu0 %v1683
  %1741 = vmatpush1.bf16.msra.mxu0 %v1682
  %1742 = vmatprep.subr.bf16.mxu0 %v1691
  %1743 = vmatpush1.bf16.msra.mxu0 %v1690
  %1744 = vmatprep.subr.bf16.mxu0 0
  %1745 = vmatpush1.bf16.msra.mxu0 0
  %1746 = vmatprep.subr.bf16.mxu0 0
  %1747 = vmatpush1.bf16.msra.mxu0 0
  %1748 = vmatprep.subr.bf16.mxu0 0
  %1749 = vmatpush1.bf16.msra.mxu0 0
  %1750 = vmatprep.subr.bf16.mxu0 0
  %1751 = vmatpush1.bf16.msra.mxu0 0
  %1752 = vmatprep.subr.bf16.mxu0 0
  %1753 = vmatpush1.bf16.msra.mxu0 0
  %1754 = vmatprep.subr.bf16.mxu0 0
  %1755 = vmatpush1.bf16.msra.mxu0 0
  %1756 = vmatprep.subr.bf16.mxu0 0
  %1757 = vmatpush1.bf16.msra.mxu0 0
  %1758 = vmatprep.subr.bf16.mxu0 0
  %1759 = vmatpush1.bf16.msra.mxu0 0
  %1760 = vmatprep.subr.bf16.mxu0 0
  %1761 = vmatpush1.bf16.msra.mxu0 0
  %1762 = vmatprep.subr.bf16.mxu0 0
  %1763 = vmatpush1.bf16.msra.mxu0 0
  %1764 = vmatprep.subr.bf16.mxu0 0
  %1765 = vmatpush1.bf16.msra.mxu0 0
  %1766 = vmatprep.subr.bf16.mxu0 0
  %1767 = vmatpush1.bf16.msra.mxu0 0
  %1768 = vmatprep.mubr.bf16.mxu0 0
  %1769 = vmatmul.mubr.bf16.gmra.mrb[0].mxu0 %v1731
  %v1770 = vpop.f32.mrb[0].mxu0
  %v1771 = vadd.f32 0.0, %v1770
  %v1772 = vpop.f32.mrb[0].mxu0
  %v1773 = vadd.f32 0.0, %v1772
  %v1774 = vpop.f32.mrb[0].mxu0
  %v1775 = vadd.f32 0.0, %v1774
  %v1776 = vpop.f32.mrb[0].mxu0
  %v1777 = vadd.f32 0.0, %v1776
  %1778 = vmatprep.mubr.bf16.mxu0 0
  %1779 = vmatmul.mubr.bf16.gmra.mrb[0].mxu0 %v1734
  %v1780 = vpop.f32.mrb[0].mxu0
  %v1781 = vadd.f32 0.0, %v1780
  %v1782 = vpop.f32.mrb[0].mxu0
  %v1783 = vadd.f32 0.0, %v1782
  %v1784 = vpop.f32.mrb[0].mxu0
  %v1785 = vpop.f32.mrb[0].mxu0
  %1786 = vdwg.mxu0
  %1787 = vmatprep.subr.bf16.mxu0 %v1669
  %1788 = vmatpush1.bf16.msra.mxu0 %v1668
  %1789 = vmatprep.subr.bf16.mxu0 %v1677
  %1790 = vmatpush1.bf16.msra.mxu0 %v1676
  %1791 = vmatprep.subr.bf16.mxu0 %v1685
  %1792 = vmatpush1.bf16.msra.mxu0 %v1684
  %1793 = vmatprep.subr.bf16.mxu0 %v1693
  %1794 = vmatpush1.bf16.msra.mxu0 %v1692
  %1795 = vmatprep.subr.bf16.mxu0 0
  %1796 = vmatpush1.bf16.msra.mxu0 0
  %1797 = vmatprep.subr.bf16.mxu0 0
  %1798 = vmatpush1.bf16.msra.mxu0 0
  %1799 = vmatprep.subr.bf16.mxu0 0
  %1800 = vmatpush1.bf16.msra.mxu0 0
  %1801 = vmatprep.subr.bf16.mxu0 0
  %1802 = vmatpush1.bf16.msra.mxu0 0
  %1803 = vmatprep.subr.bf16.mxu0 0
  %1804 = vmatpush1.bf16.msra.mxu0 0
  %1805 = vmatprep.subr.bf16.mxu0 0
  %1806 = vmatpush1.bf16.msra.mxu0 0
  %1807 = vmatprep.subr.bf16.mxu0 0
  %1808 = vmatpush1.bf16.msra.mxu0 0
  %1809 = vmatprep.subr.bf16.mxu0 0
  %1810 = vmatpush1.bf16.msra.mxu0 0
  %1811 = vmatprep.subr.bf16.mxu0 0
  %1812 = vmatpush1.bf16.msra.mxu0 0
  %1813 = vmatprep.subr.bf16.mxu0 0
  %1814 = vmatpush1.bf16.msra.mxu0 0
  %1815 = vmatprep.subr.bf16.mxu0 0
  %1816 = vmatpush1.bf16.msra.mxu0 0
  %1817 = vmatprep.subr.bf16.mxu0 0
  %1818 = vmatpush1.bf16.msra.mxu0 0
  %1819 = vmatprep.mubr.bf16.mxu0 0
  %1820 = vmatmul.mubr.bf16.gmra.mrb[0].mxu0 %v1731
  %v1821 = vpop.f32.mrb[0].mxu0
  %v1822 = vadd.f32 0.0, %v1821
  %v1823 = vpop.f32.mrb[0].mxu0
  %v1824 = vadd.f32 0.0, %v1823
  %v1825 = vpop.f32.mrb[0].mxu0
  %v1826 = vadd.f32 0.0, %v1825
  %v1827 = vpop.f32.mrb[0].mxu0
  %v1828 = vadd.f32 0.0, %v1827
  %1829 = vmatprep.mubr.bf16.mxu0 0
  %1830 = vmatmul.mubr.bf16.gmra.mrb[0].mxu0 %v1734
  %v1831 = vpop.f32.mrb[0].mxu0
  %v1832 = vadd.f32 0.0, %v1831
  %v1833 = vpop.f32.mrb[0].mxu0
  %v1834 = vadd.f32 0.0, %v1833
  %v1835 = vpop.f32.mrb[0].mxu0
  %v1836 = vpop.f32.mrb[0].mxu0
  %1837 = vdwg.mxu0
  %1838 = vmatprep.subr.bf16.mxu0 %v1671
  %1839 = vmatpush1.bf16.msra.mxu0 %v1670
  %1840 = vmatprep.subr.bf16.mxu0 %v1679
  %1841 = vmatpush1.bf16.msra.mxu0 %v1678
  %1842 = vmatprep.subr.bf16.mxu0 %v1687
  %1843 = vmatpush1.bf16.msra.mxu0 %v1686
  %1844 = vmatprep.subr.bf16.mxu0 %v1695
  %1845 = vmatpush1.bf16.msra.mxu0 %v1694
  %1846 = vmatprep.subr.bf16.mxu0 0
  %1847 = vmatpush1.bf16.msra.mxu0 0
  %1848 = vmatprep.subr.bf16.mxu0 0
  %1849 = vmatpush1.bf16.msra.mxu0 0
  %1850 = vmatprep.subr.bf16.mxu0 0
  %1851 = vmatpush1.bf16.msra.mxu0 0
  %1852 = vmatprep.subr.bf16.mxu0 0
  %1853 = vmatpush1.bf16.msra.mxu0 0
  %1854 = vmatprep.subr.bf16.mxu0 0
  %1855 = vmatpush1.bf16.msra.mxu0 0
  %1856 = vmatprep.subr.bf16.mxu0 0
  %1857 = vmatpush1.bf16.msra.mxu0 0
  %1858 = vmatprep.subr.bf16.mxu0 0
  %1859 = vmatpush1.bf16.msra.mxu0 0
  %1860 = vmatprep.subr.bf16.mxu0 0
  %1861 = vmatpush1.bf16.msra.mxu0 0
  %1862 = vmatprep.subr.bf16.mxu0 0
  %1863 = vmatpush1.bf16.msra.mxu0 0
  %1864 = vmatprep.subr.bf16.mxu0 0
  %1865 = vmatpush1.bf16.msra.mxu0 0
  %1866 = vmatprep.subr.bf16.mxu0 0
  %1867 = vmatpush1.bf16.msra.mxu0 0
  %1868 = vmatprep.subr.bf16.mxu0 0
  %1869 = vmatpush1.bf16.msra.mxu0 0
  %1870 = vmatprep.mubr.bf16.mxu0 0
  %1871 = vmatmul.mubr.bf16.gmra.mrb[0].mxu0 %v1731
  %v1872 = vpop.f32.mrb[0].mxu0
  %v1873 = vadd.f32 0.0, %v1872
  %v1874 = vpop.f32.mrb[0].mxu0
  %v1875 = vadd.f32 0.0, %v1874
  %v1876 = vpop.f32.mrb[0].mxu0
  %v1877 = vadd.f32 0.0, %v1876
  %v1878 = vpop.f32.mrb[0].mxu0
  %v1879 = vadd.f32 0.0, %v1878
  %1880 = vmatprep.mubr.bf16.mxu0 0
  %1881 = vmatmul.mubr.bf16.gmra.mrb[0].mxu0 %v1734
  %v1882 = vpop.f32.mrb[0].mxu0
  %v1883 = vadd.f32 0.0, %v1882
  %v1884 = vpop.f32.mrb[0].mxu0
  %v1885 = vadd.f32 0.0, %v1884
  %v1886 = vpop.f32.mrb[0].mxu0
  %v1887 = vpop.f32.mrb[0].mxu0
  %1888 = vdwg.mxu0
  %1889 = vmatprep.subr.bf16.mxu0 %v1673
  %1890 = vmatpush1.bf16.msra.mxu0 %v1672
  %1891 = vmatprep.subr.bf16.mxu0 %v1681
  %1892 = vmatpush1.bf16.msra.mxu0 %v1680
  %1893 = vmatprep.subr.bf16.mxu0 %v1689
  %1894 = vmatpush1.bf16.msra.mxu0 %v1688
  %1895 = vmatprep.subr.bf16.mxu0 %v1697
  %1896 = vmatpush1.bf16.msra.mxu0 %v1696
  %1897 = vmatprep.subr.bf16.mxu0 0
  %1898 = vmatpush1.bf16.msra.mxu0 0
  %1899 = vmatprep.subr.bf16.mxu0 0
  %1900 = vmatpush1.bf16.msra.mxu0 0
  %1901 = vmatprep.subr.bf16.mxu0 0
  %1902 = vmatpush1.bf16.msra.mxu0 0
  %1903 = vmatprep.subr.bf16.mxu0 0
  %1904 = vmatpush1.bf16.msra.mxu0 0
  %1905 = vmatprep.subr.bf16.mxu0 0
  %1906 = vmatpush1.bf16.msra.mxu0 0
  %1907 = vmatprep.subr.bf16.mxu0 0
  %1908 = vmatpush1.bf16.msra.mxu0 0
  %1909 = vmatprep.subr.bf16.mxu0 0
  %1910 = vmatpush1.bf16.msra.mxu0 0
  %1911 = vmatprep.subr.bf16.mxu0 0
  %1912 = vmatpush1.bf16.msra.mxu0 0
  %1913 = vmatprep.subr.bf16.mxu0 0
  %1914 = vmatpush1.bf16.msra.mxu0 0
  %1915 = vmatprep.subr.bf16.mxu0 0
  %1916 = vmatpush1.bf16.msra.mxu0 0
  %1917 = vmatprep.subr.bf16.mxu0 0
  %1918 = vmatpush1.bf16.msra.mxu0 0
  %1919 = vmatprep.subr.bf16.mxu0 0
  %1920 = vmatpush1.bf16.msra.mxu0 0
  %1921 = vmatprep.mubr.bf16.mxu0 0
  %1922 = vmatmul.mubr.bf16.gmra.mrb[0].mxu0 %v1731
  %v1923 = vpop.f32.mrb[0].mxu0
  %v1924 = vadd.f32 0.0, %v1923
  %v1925 = vpop.f32.mrb[0].mxu0
  %v1926 = vadd.f32 0.0, %v1925
  %v1927 = vpop.f32.mrb[0].mxu0
  %v1928 = vadd.f32 0.0, %v1927
  %v1929 = vpop.f32.mrb[0].mxu0
  %v1930 = vadd.f32 0.0, %v1929
  %1931 = vmatprep.mubr.bf16.mxu0 0
  %1932 = vmatmul.mubr.bf16.gmra.mrb[0].mxu0 %v1734
  %v1933 = vpop.f32.mrb[0].mxu0
  %v1934 = vadd.f32 0.0, %v1933
  %v1935 = vpop.f32.mrb[0].mxu0
  %v1936 = vadd.f32 0.0, %v1935
  %v1937 = vpop.f32.mrb[0].mxu0
  %v1938 = vpop.f32.mrb[0].mxu0
  %1939 = vdwg.mxu0
  %v1940 = vpack.c.bf16 %v1775, %v1771
  %v1941 = vpack.c.bf16 %v1777, %v1773
  %v1942 = vpack.c.bf16 %v1826, %v1822
  %v1943 = vpack.c.bf16 %v1828, %v1824
  %v1944 = vpack.c.bf16 %v1877, %v1873
  %v1945 = vpack.c.bf16 %v1879, %v1875
  %v1946 = vpack.c.bf16 %v1928, %v1924
  %v1947 = vpack.c.bf16 %v1930, %v1926
  %v1948 = vpack.c.bf16 %v1781, %v1781
  %v1949 = vpack.c.bf16 %v1783, %v1783
  %v1950 = vpack.c.bf16 %v1832, %v1832
  %v1951 = vpack.c.bf16 %v1834, %v1834
  %v1952 = vpack.c.bf16 %v1883, %v1883
  %v1953 = vpack.c.bf16 %v1885, %v1885
  %v1954 = vpack.c.bf16 %v1934, %v1934
  %v1955 = vpack.c.bf16 %v1936, %v1936
  %v1956 = vld [vmem:[%s29] sm:$0xff]
  %v1957 = vld [vmem:[%s29 + $0x8] sm:$0xff]
  %v1958 = vld [vmem:[%s29 + $0x10] sm:$0xff]
  %v1959 = vld [vmem:[%s29 + $0x18] sm:$0xff]
  %v1960 = vld [vmem:[%s29 + $0x20] sm:$0xff]
  %v1961 = vld [vmem:[%s29 + $0x28] sm:$0xff]
  %v1962 = vld [vmem:[%s29 + $0x30] sm:$0xff]
  %v1963 = vld [vmem:[%s29 + $0x38] sm:$0xff]
  %v1964 = vld [vmem:[%s29 + $0x40] sm:$0xff]
  %v1965 = vld [vmem:[%s29 + $0x48] sm:$0xff]
  %v1966 = vld [vmem:[%s29 + $0x50] sm:$0xff]
  %v1967 = vld [vmem:[%s29 + $0x58] sm:$0xff]
  %v1968 = vld [vmem:[%s29 + $0x60] sm:$0xff]
  %v1969 = vld [vmem:[%s29 + $0x68] sm:$0xff]
  %v1970 = vld [vmem:[%s29 + $0x70] sm:$0xff]
  %v1971 = vld [vmem:[%s29 + $0x78] sm:$0xff]
  %v1972 = vld [vmem:[%s29 + $0x80] sm:$0xff]
  %v1973 = vld [vmem:[%s29 + $0x88] sm:$0xff]
  %v1974 = vld [vmem:[%s29 + $0x90] sm:$0xff]
  %v1975 = vld [vmem:[%s29 + $0x98] sm:$0xff]
  %v1976 = vld [vmem:[%s29 + $0xa0] sm:$0xff]
  %v1977 = vld [vmem:[%s29 + $0xa8] sm:$0xff]
  %v1978 = vld [vmem:[%s29 + $0xb0] sm:$0xff]
  %v1979 = vld [vmem:[%s29 + $0xb8] sm:$0xff]
  %v1980 = vld [vmem:[%s29 + $0xc0] sm:$0xff]
  %v1981 = vld [vmem:[%s29 + $0xc8] sm:$0xff]
  %v1982 = vld [vmem:[%s29 + $0xd0] sm:$0xff]
  %v1983 = vld [vmem:[%s29 + $0xd8] sm:$0xff]
  %v1984 = vld [vmem:[%s29 + $0xe0] sm:$0xff]
  %v1985 = vld [vmem:[%s29 + $0xe8] sm:$0xff]
  %v1986 = vld [vmem:[%s29 + $0xf0] sm:$0xff]
  %v1987 = vld [vmem:[%s29 + $0xf8] sm:$0xff]
  %v2020 = vunpack.c.l.b16 %v1956
  %v2021 = vunpack.c.h.b16 %v1956
  %v2022 = vunpack.c.l.b16 %v1957
  %v2023 = vunpack.c.h.b16 %v1957
  %v2024 = vunpack.c.l.b16 %v1958
  %v2025 = vunpack.c.h.b16 %v1958
  %v2026 = vunpack.c.l.b16 %v1959
  %v2027 = vunpack.c.h.b16 %v1959
  %v2028 = vunpack.c.l.b16 %v1960
  %v2029 = vunpack.c.h.b16 %v1960
  %v2030 = vunpack.c.l.b16 %v1961
  %v2031 = vunpack.c.h.b16 %v1961
  %v2032 = vunpack.c.l.b16 %v1962
  %v2033 = vunpack.c.h.b16 %v1962
  %v2034 = vunpack.c.l.b16 %v1963
  %v2035 = vunpack.c.h.b16 %v1963
  %v2036 = vunpack.c.l.b16 %v1964
  %v2037 = vunpack.c.h.b16 %v1964
  %v2038 = vunpack.c.l.b16 %v1965
  %v2039 = vunpack.c.h.b16 %v1965
  %v2040 = vunpack.c.l.b16 %v1966
  %v2041 = vunpack.c.h.b16 %v1966
  %v2042 = vunpack.c.l.b16 %v1967
  %v2043 = vunpack.c.h.b16 %v1967
  %v2044 = vunpack.c.l.b16 %v1968
  %v2045 = vunpack.c.h.b16 %v1968
  %v2046 = vunpack.c.l.b16 %v1969
  %v2047 = vunpack.c.h.b16 %v1969
  %v2048 = vunpack.c.l.b16 %v1970
  %v2049 = vunpack.c.h.b16 %v1970
  %v2050 = vunpack.c.l.b16 %v1971
  %v2051 = vunpack.c.h.b16 %v1971
  %v2052 = vunpack.c.l.b16 %v1972
  %v2053 = vunpack.c.h.b16 %v1972
  %v2054 = vunpack.c.l.b16 %v1973
  %v2055 = vunpack.c.h.b16 %v1973
  %v2056 = vunpack.c.l.b16 %v1974
  %v2057 = vunpack.c.h.b16 %v1974
  %v2058 = vunpack.c.l.b16 %v1975
  %v2059 = vunpack.c.h.b16 %v1975
  %v2060 = vunpack.c.l.b16 %v1976
  %v2061 = vunpack.c.h.b16 %v1976
  %v2062 = vunpack.c.l.b16 %v1977
  %v2063 = vunpack.c.h.b16 %v1977
  %v2064 = vunpack.c.l.b16 %v1978
  %v2065 = vunpack.c.h.b16 %v1978
  %v2066 = vunpack.c.l.b16 %v1979
  %v2067 = vunpack.c.h.b16 %v1979
  %v2068 = vunpack.c.l.b16 %v1980
  %v2069 = vunpack.c.h.b16 %v1980
  %v2070 = vunpack.c.l.b16 %v1981
  %v2071 = vunpack.c.h.b16 %v1981
  %v2072 = vunpack.c.l.b16 %v1982
  %v2073 = vunpack.c.h.b16 %v1982
  %v2074 = vunpack.c.l.b16 %v1983
  %v2075 = vunpack.c.h.b16 %v1983
  %v2076 = vunpack.c.l.b16 %v1984
  %v2077 = vunpack.c.h.b16 %v1984
  %v2078 = vunpack.c.l.b16 %v1985
  %v2079 = vunpack.c.h.b16 %v1985
  %v2080 = vunpack.c.l.b16 %v1986
  %v2081 = vunpack.c.h.b16 %v1986
  %v2082 = vunpack.c.l.b16 %v1987
  %v2083 = vunpack.c.h.b16 %v1987
  %v2084 = vpack.c.b16 %v2028, %v2020
  %v2085 = vpack.c.b16 %v2029, %v2021
  %v2086 = vpack.c.b16 %v2030, %v2022
  %v2087 = vpack.c.b16 %v2031, %v2023
  %v2088 = vpack.c.b16 %v2032, %v2024
  %v2089 = vpack.c.b16 %v2033, %v2025
  %v2090 = vpack.c.b16 %v2034, %v2026
  %v2091 = vpack.c.b16 %v2035, %v2027
  %v2092 = vpack.c.b16 %v2044, %v2036
  %v2093 = vpack.c.b16 %v2045, %v2037
  %v2094 = vpack.c.b16 %v2046, %v2038
  %v2095 = vpack.c.b16 %v2047, %v2039
  %v2096 = vpack.c.b16 %v2048, %v2040
  %v2097 = vpack.c.b16 %v2049, %v2041
  %v2098 = vpack.c.b16 %v2050, %v2042
  %v2099 = vpack.c.b16 %v2051, %v2043
  %v2100 = vpack.c.b16 %v2060, %v2052
  %v2101 = vpack.c.b16 %v2061, %v2053
  %v2102 = vpack.c.b16 %v2062, %v2054
  %v2103 = vpack.c.b16 %v2063, %v2055
  %v2104 = vpack.c.b16 %v2064, %v2056
  %v2105 = vpack.c.b16 %v2065, %v2057
  %v2106 = vpack.c.b16 %v2066, %v2058
  %v2107 = vpack.c.b16 %v2067, %v2059
  %v2108 = vpack.c.b16 %v2076, %v2068
  %v2109 = vpack.c.b16 %v2077, %v2069
  %v2110 = vpack.c.b16 %v2078, %v2070
  %v2111 = vpack.c.b16 %v2079, %v2071
  %v2112 = vpack.c.b16 %v2080, %v2072
  %v2113 = vpack.c.b16 %v2081, %v2073
  %v2114 = vpack.c.b16 %v2082, %v2074
  %v2115 = vpack.c.b16 %v2083, %v2075
  %2148 = vmatprep.subr.bf16.mxu0 %v2085
  %2149 = vmatpush1.bf16.msra.mxu0 %v2084
  %2150 = vmatprep.subr.bf16.mxu0 %v2093
  %2151 = vmatpush1.bf16.msra.mxu0 %v2092
  %2152 = vmatprep.subr.bf16.mxu0 %v2101
  %2153 = vmatpush1.bf16.msra.mxu0 %v2100
  %2154 = vmatprep.subr.bf16.mxu0 %v2109
  %2155 = vmatpush1.bf16.msra.mxu0 %v2108
  %2156 = vmatprep.subr.bf16.mxu0 0
  %2157 = vmatpush1.bf16.msra.mxu0 0
  %2158 = vmatprep.subr.bf16.mxu0 0
  %2159 = vmatpush1.bf16.msra.mxu0 0
  %2160 = vmatprep.subr.bf16.mxu0 0
  %2161 = vmatpush1.bf16.msra.mxu0 0
  %2162 = vmatprep.subr.bf16.mxu0 0
  %2163 = vmatpush1.bf16.msra.mxu0 0
  %2164 = vmatprep.subr.bf16.mxu0 0
  %2165 = vmatpush1.bf16.msra.mxu0 0
  %2166 = vmatprep.subr.bf16.mxu0 0
  %2167 = vmatpush1.bf16.msra.mxu0 0
  %2168 = vmatprep.subr.bf16.mxu0 0
  %2169 = vmatpush1.bf16.msra.mxu0 0
  %2170 = vmatprep.subr.bf16.mxu0 0
  %2171 = vmatpush1.bf16.msra.mxu0 0
  %2172 = vmatprep.subr.bf16.mxu0 0
  %2173 = vmatpush1.bf16.msra.mxu0 0
  %2174 = vmatprep.subr.bf16.mxu0 0
  %2175 = vmatpush1.bf16.msra.mxu0 0
  %2176 = vmatprep.subr.bf16.mxu0 0
  %2177 = vmatpush1.bf16.msra.mxu0 0
  %2178 = vmatprep.subr.bf16.mxu0 0
  %2179 = vmatpush1.bf16.msra.mxu0 0
  %2180 = vmatprep.mubr.bf16.mxu0 0
  %2181 = vmatmul.mubr.bf16.gmra.mrb[0].mxu0 %v1731
  %v2182 = vpop.f32.mrb[0].mxu0
  %v2183 = vadd.f32 0.0, %v2182
  %v2184 = vpop.f32.mrb[0].mxu0
  %v2185 = vadd.f32 0.0, %v2184
  %v2186 = vpop.f32.mrb[0].mxu0
  %v2187 = vadd.f32 0.0, %v2186
  %v2188 = vpop.f32.mrb[0].mxu0
  %v2189 = vadd.f32 0.0, %v2188
  %2190 = vmatprep.mubr.bf16.mxu0 0
  %2191 = vmatmul.mubr.bf16.gmra.mrb[0].mxu0 %v1734
  %v2192 = vpop.f32.mrb[0].mxu0
  %v2193 = vadd.f32 0.0, %v2192
  %v2194 = vpop.f32.mrb[0].mxu0
  %v2195 = vadd.f32 0.0, %v2194
  %v2196 = vpop.f32.mrb[0].mxu0
  %v2197 = vpop.f32.mrb[0].mxu0
  %2198 = vdwg.mxu0
  %2199 = vmatprep.subr.bf16.mxu0 %v2087
  %2200 = vmatpush1.bf16.msra.mxu0 %v2086
  %2201 = vmatprep.subr.bf16.mxu0 %v2095
  %2202 = vmatpush1.bf16.msra.mxu0 %v2094
  %2203 = vmatprep.subr.bf16.mxu0 %v2103
  %2204 = vmatpush1.bf16.msra.mxu0 %v2102
  %2205 = vmatprep.subr.bf16.mxu0 %v2111
  %2206 = vmatpush1.bf16.msra.mxu0 %v2110
  %2207 = vmatprep.subr.bf16.mxu0 0
  %2208 = vmatpush1.bf16.msra.mxu0 0
  %2209 = vmatprep.subr.bf16.mxu0 0
  %2210 = vmatpush1.bf16.msra.mxu0 0
  %2211 = vmatprep.subr.bf16.mxu0 0
  %2212 = vmatpush1.bf16.msra.mxu0 0
  %2213 = vmatprep.subr.bf16.mxu0 0
  %2214 = vmatpush1.bf16.msra.mxu0 0
  %2215 = vmatprep.subr.bf16.mxu0 0
  %2216 = vmatpush1.bf16.msra.mxu0 0
  %2217 = vmatprep.subr.bf16.mxu0 0
  %2218 = vmatpush1.bf16.msra.mxu0 0
  %2219 = vmatprep.subr.bf16.mxu0 0
  %2220 = vmatpush1.bf16.msra.mxu0 0
  %2221 = vmatprep.subr.bf16.mxu0 0
  %2222 = vmatpush1.bf16.msra.mxu0 0
  %2223 = vmatprep.subr.bf16.mxu0 0
  %2224 = vmatpush1.bf16.msra.mxu0 0
  %2225 = vmatprep.subr.bf16.mxu0 0
  %2226 = vmatpush1.bf16.msra.mxu0 0
  %2227 = vmatprep.subr.bf16.mxu0 0
  %2228 = vmatpush1.bf16.msra.mxu0 0
  %2229 = vmatprep.subr.bf16.mxu0 0
  %2230 = vmatpush1.bf16.msra.mxu0 0
  %2231 = vmatprep.mubr.bf16.mxu0 0
  %2232 = vmatmul.mubr.bf16.gmra.mrb[0].mxu0 %v1731
  %v2233 = vpop.f32.mrb[0].mxu0
  %v2234 = vadd.f32 0.0, %v2233
  %v2235 = vpop.f32.mrb[0].mxu0
  %v2236 = vadd.f32 0.0, %v2235
  %v2237 = vpop.f32.mrb[0].mxu0
  %v2238 = vadd.f32 0.0, %v2237
  %v2239 = vpop.f32.mrb[0].mxu0
  %v2240 = vadd.f32 0.0, %v2239
  %2241 = vmatprep.mubr.bf16.mxu0 0
  %2242 = vmatmul.mubr.bf16.gmra.mrb[0].mxu0 %v1734
  %v2243 = vpop.f32.mrb[0].mxu0
  %v2244 = vadd.f32 0.0, %v2243
  %v2245 = vpop.f32.mrb[0].mxu0
  %v2246 = vadd.f32 0.0, %v2245
  %v2247 = vpop.f32.mrb[0].mxu0
  %v2248 = vpop.f32.mrb[0].mxu0
  %2249 = vdwg.mxu0
  %2250 = vmatprep.subr.bf16.mxu0 %v2089
  %2251 = vmatpush1.bf16.msra.mxu0 %v2088
  %2252 = vmatprep.subr.bf16.mxu0 %v2097
  %2253 = vmatpush1.bf16.msra.mxu0 %v2096
  %2254 = vmatprep.subr.bf16.mxu0 %v2105
  %2255 = vmatpush1.bf16.msra.mxu0 %v2104
  %2256 = vmatprep.subr.bf16.mxu0 %v2113
  %2257 = vmatpush1.bf16.msra.mxu0 %v2112
  %2258 = vmatprep.subr.bf16.mxu0 0
  %2259 = vmatpush1.bf16.msra.mxu0 0
  %2260 = vmatprep.subr.bf16.mxu0 0
  %2261 = vmatpush1.bf16.msra.mxu0 0
  %2262 = vmatprep.subr.bf16.mxu0 0
  %2263 = vmatpush1.bf16.msra.mxu0 0
  %2264 = vmatprep.subr.bf16.mxu0 0
  %2265 = vmatpush1.bf16.msra.mxu0 0
  %2266 = vmatprep.subr.bf16.mxu0 0
  %2267 = vmatpush1.bf16.msra.mxu0 0
  %2268 = vmatprep.subr.bf16.mxu0 0
  %2269 = vmatpush1.bf16.msra.mxu0 0
  %2270 = vmatprep.subr.bf16.mxu0 0
  %2271 = vmatpush1.bf16.msra.mxu0 0
  %2272 = vmatprep.subr.bf16.mxu0 0
  %2273 = vmatpush1.bf16.msra.mxu0 0
  %2274 = vmatprep.subr.bf16.mxu0 0
  %2275 = vmatpush1.bf16.msra.mxu0 0
  %2276 = vmatprep.subr.bf16.mxu0 0
  %2277 = vmatpush1.bf16.msra.mxu0 0
  %2278 = vmatprep.subr.bf16.mxu0 0
  %2279 = vmatpush1.bf16.msra.mxu0 0
  %2280 = vmatprep.subr.bf16.mxu0 0
  %2281 = vmatpush1.bf16.msra.mxu0 0
  %2282 = vmatprep.mubr.bf16.mxu0 0
  %2283 = vmatmul.mubr.bf16.gmra.mrb[0].mxu0 %v1731
  %v2284 = vpop.f32.mrb[0].mxu0
  %v2285 = vadd.f32 0.0, %v2284
  %v2286 = vpop.f32.mrb[0].mxu0
  %v2287 = vadd.f32 0.0, %v2286
  %v2288 = vpop.f32.mrb[0].mxu0
  %v2289 = vadd.f32 0.0, %v2288
  %v2290 = vpop.f32.mrb[0].mxu0
  %v2291 = vadd.f32 0.0, %v2290
  %2292 = vmatprep.mubr.bf16.mxu0 0
  %2293 = vmatmul.mubr.bf16.gmra.mrb[0].mxu0 %v1734
  %v2294 = vpop.f32.mrb[0].mxu0
  %v2295 = vadd.f32 0.0, %v2294
  %v2296 = vpop.f32.mrb[0].mxu0
  %v2297 = vadd.f32 0.0, %v2296
  %v2298 = vpop.f32.mrb[0].mxu0
  %v2299 = vpop.f32.mrb[0].mxu0
  %2300 = vdwg.mxu0
  %2301 = vmatprep.subr.bf16.mxu0 %v2091
  %2302 = vmatpush1.bf16.msra.mxu0 %v2090
  %2303 = vmatprep.subr.bf16.mxu0 %v2099
  %2304 = vmatpush1.bf16.msra.mxu0 %v2098
  %2305 = vmatprep.subr.bf16.mxu0 %v2107
  %2306 = vmatpush1.bf16.msra.mxu0 %v2106
  %2307 = vmatprep.subr.bf16.mxu0 %v2115
  %2308 = vmatpush1.bf16.msra.mxu0 %v2114
  %2309 = vmatprep.subr.bf16.mxu0 0
  %2310 = vmatpush1.bf16.msra.mxu0 0
  %2311 = vmatprep.subr.bf16.mxu0 0
  %2312 = vmatpush1.bf16.msra.mxu0 0
  %2313 = vmatprep.subr.bf16.mxu0 0
  %2314 = vmatpush1.bf16.msra.mxu0 0
  %2315 = vmatprep.subr.bf16.mxu0 0
  %2316 = vmatpush1.bf16.msra.mxu0 0
  %2317 = vmatprep.subr.bf16.mxu0 0
  %2318 = vmatpush1.bf16.msra.mxu0 0
  %2319 = vmatprep.subr.bf16.mxu0 0
  %2320 = vmatpush1.bf16.msra.mxu0 0
  %2321 = vmatprep.subr.bf16.mxu0 0
  %2322 = vmatpush1.bf16.msra.mxu0 0
  %2323 = vmatprep.subr.bf16.mxu0 0
  %2324 = vmatpush1.bf16.msra.mxu0 0
  %2325 = vmatprep.subr.bf16.mxu0 0
  %2326 = vmatpush1.bf16.msra.mxu0 0
  %2327 = vmatprep.subr.bf16.mxu0 0
  %2328 = vmatpush1.bf16.msra.mxu0 0
  %2329 = vmatprep.subr.bf16.mxu0 0
  %2330 = vmatpush1.bf16.msra.mxu0 0
  %2331 = vmatprep.subr.bf16.mxu0 0
  %2332 = vmatpush1.bf16.msra.mxu0 0
  %2333 = vmatprep.mubr.bf16.mxu0 0
  %2334 = vmatmul.mubr.bf16.gmra.mrb[0].mxu0 %v1731
  %v2335 = vpop.f32.mrb[0].mxu0
  %v2336 = vadd.f32 0.0, %v2335
  %v2337 = vpop.f32.mrb[0].mxu0
  %v2338 = vadd.f32 0.0, %v2337
  %v2339 = vpop.f32.mrb[0].mxu0
  %v2340 = vadd.f32 0.0, %v2339
  %v2341 = vpop.f32.mrb[0].mxu0
  %v2342 = vadd.f32 0.0, %v2341
  %2343 = vmatprep.mubr.bf16.mxu0 0
  %2344 = vmatmul.mubr.bf16.gmra.mrb[0].mxu0 %v1734
  %v2345 = vpop.f32.mrb[0].mxu0
  %v2346 = vadd.f32 0.0, %v2345
  %v2347 = vpop.f32.mrb[0].mxu0
  %v2348 = vadd.f32 0.0, %v2347
  %v2349 = vpop.f32.mrb[0].mxu0
  %v2350 = vpop.f32.mrb[0].mxu0
  %2351 = vdwg.mxu0
  %v2352 = vpack.c.bf16 %v2187, %v2183
  %v2353 = vpack.c.bf16 %v2189, %v2185
  %v2354 = vpack.c.bf16 %v2238, %v2234
  %v2355 = vpack.c.bf16 %v2240, %v2236
  %v2356 = vpack.c.bf16 %v2289, %v2285
  %v2357 = vpack.c.bf16 %v2291, %v2287
  %v2358 = vpack.c.bf16 %v2340, %v2336
  %v2359 = vpack.c.bf16 %v2342, %v2338
  %v2360 = vpack.c.bf16 %v2193, %v2193
  %v2361 = vpack.c.bf16 %v2195, %v2195
  %v2362 = vpack.c.bf16 %v2244, %v2244
  %v2363 = vpack.c.bf16 %v2246, %v2246
  %v2364 = vpack.c.bf16 %v2295, %v2295
  %v2365 = vpack.c.bf16 %v2297, %v2297
  %v2366 = vpack.c.bf16 %v2346, %v2346
  %v2367 = vpack.c.bf16 %v2348, %v2348
  %v2368 = vld [vmem:[%s31] sm:$0xf]
  %v2369 = vld [vmem:[%s31 + $0x4] sm:$0xf]
  %v2370 = vld [vmem:[%s31 + $0x8] sm:$0xf]
  %v2371 = vld [vmem:[%s31 + $0xc] sm:$0xf]
  %v2372 = vld [vmem:[%s31 + $0x10] sm:$0xf]
  %v2373 = vld [vmem:[%s31 + $0x14] sm:$0xf]
  %v2374 = vld [vmem:[%s31 + $0x18] sm:$0xf]
  %v2375 = vld [vmem:[%s31 + $0x1c] sm:$0xf]
  %v2376 = vld [vmem:[%s31 + $0x20] sm:$0xf]
  %v2377 = vld [vmem:[%s31 + $0x24] sm:$0xf]
  %v2378 = vld [vmem:[%s31 + $0x28] sm:$0xf]
  %v2379 = vld [vmem:[%s31 + $0x2c] sm:$0xf]
  %v2380 = vld [vmem:[%s31 + $0x30] sm:$0xf]
  %v2381 = vld [vmem:[%s31 + $0x34] sm:$0xf]
  %v2382 = vld [vmem:[%s31 + $0x38] sm:$0xf]
  %v2383 = vld [vmem:[%s31 + $0x3c] sm:$0xf]
  %v2384 = vld [vmem:[%s31 + $0x40] sm:$0xf]
  %v2385 = vld [vmem:[%s31 + $0x44] sm:$0xf]
  %v2386 = vld [vmem:[%s31 + $0x48] sm:$0xf]
  %v2387 = vld [vmem:[%s31 + $0x4c] sm:$0xf]
  %v2388 = vld [vmem:[%s31 + $0x50] sm:$0xf]
  %v2389 = vld [vmem:[%s31 + $0x54] sm:$0xf]
  %v2390 = vld [vmem:[%s31 + $0x58] sm:$0xf]
  %v2391 = vld [vmem:[%s31 + $0x5c] sm:$0xf]
  %v2392 = vld [vmem:[%s31 + $0x60] sm:$0xf]
  %v2393 = vld [vmem:[%s31 + $0x64] sm:$0xf]
  %v2394 = vld [vmem:[%s31 + $0x68] sm:$0xf]
  %v2395 = vld [vmem:[%s31 + $0x6c] sm:$0xf]
  %v2396 = vld [vmem:[%s31 + $0x70] sm:$0xf]
  %v2397 = vld [vmem:[%s31 + $0x74] sm:$0xf]
  %v2398 = vld [vmem:[%s31 + $0x78] sm:$0xf]
  %v2399 = vld [vmem:[%s31 + $0x7c] sm:$0xf]
  %v2400 = vld [vmem:[%s31 + $0x80] sm:$0xf]
  %v2401 = vld [vmem:[%s31 + $0x84] sm:$0xf]
  %v2402 = vld [vmem:[%s31 + $0x88] sm:$0xf]
  %v2403 = vld [vmem:[%s31 + $0x8c] sm:$0xf]
  %v2404 = vld [vmem:[%s31 + $0x90] sm:$0xf]
  %v2405 = vld [vmem:[%s31 + $0x94] sm:$0xf]
  %v2406 = vld [vmem:[%s31 + $0x98] sm:$0xf]
  %v2407 = vld [vmem:[%s31 + $0x9c] sm:$0xf]
  %v2408 = vld [vmem:[%s31 + $0xa0] sm:$0xf]
  %v2409 = vld [vmem:[%s31 + $0xa4] sm:$0xf]
  %v2410 = vld [vmem:[%s31 + $0xa8] sm:$0xf]
  %v2411 = vld [vmem:[%s31 + $0xac] sm:$0xf]
  %v2412 = vld [vmem:[%s31 + $0xb0] sm:$0xf]
  %v2413 = vld [vmem:[%s31 + $0xb4] sm:$0xf]
  %v2414 = vld [vmem:[%s31 + $0xb8] sm:$0xf]
  %v2415 = vld [vmem:[%s31 + $0xbc] sm:$0xf]
  %v2416 = vld [vmem:[%s31 + $0xc0] sm:$0xf]
  %v2417 = vld [vmem:[%s31 + $0xc4] sm:$0xf]
  %v2418 = vld [vmem:[%s31 + $0xc8] sm:$0xf]
  %v2419 = vld [vmem:[%s31 + $0xcc] sm:$0xf]
  %v2420 = vld [vmem:[%s31 + $0xd0] sm:$0xf]
  %v2421 = vld [vmem:[%s31 + $0xd4] sm:$0xf]
  %v2422 = vld [vmem:[%s31 + $0xd8] sm:$0xf]
  %v2423 = vld [vmem:[%s31 + $0xdc] sm:$0xf]
  %v2424 = vld [vmem:[%s31 + $0xe0] sm:$0xf]
  %v2425 = vld [vmem:[%s31 + $0xe4] sm:$0xf]
  %v2426 = vld [vmem:[%s31 + $0xe8] sm:$0xf]
  %v2427 = vld [vmem:[%s31 + $0xec] sm:$0xf]
  %v2428 = vld [vmem:[%s31 + $0xf0] sm:$0xf]
  %v2429 = vld [vmem:[%s31 + $0xf4] sm:$0xf]
  %v2430 = vld [vmem:[%s31 + $0xf8] sm:$0xf]
  %v2431 = vld [vmem:[%s31 + $0xfc] sm:$0xf]
  %v2432 = vld [vmem:[%s31 + $0x100] sm:$0xf]
  %v2433 = vld [vmem:[%s31 + $0x104] sm:$0xf]
  %v2434 = vld [vmem:[%s31 + $0x108] sm:$0xf]
  %v2435 = vld [vmem:[%s31 + $0x10c] sm:$0xf]
  %v2436 = vld [vmem:[%s31 + $0x110] sm:$0xf]
  %v2437 = vld [vmem:[%s31 + $0x114] sm:$0xf]
  %v2438 = vld [vmem:[%s31 + $0x118] sm:$0xf]
  %v2439 = vld [vmem:[%s31 + $0x11c] sm:$0xf]
  %v2440 = vld [vmem:[%s31 + $0x120] sm:$0xf]
  %v2441 = vld [vmem:[%s31 + $0x124] sm:$0xf]
  %v2442 = vld [vmem:[%s31 + $0x128] sm:$0xf]
  %v2443 = vld [vmem:[%s31 + $0x12c] sm:$0xf]
  %v2444 = vld [vmem:[%s31 + $0x130] sm:$0xf]
  %v2445 = vld [vmem:[%s31 + $0x134] sm:$0xf]
  %v2446 = vld [vmem:[%s31 + $0x138] sm:$0xf]
  %v2447 = vld [vmem:[%s31 + $0x13c] sm:$0xf]
  %v2448 = vld [vmem:[%s31 + $0x140] sm:$0xf]
  %v2449 = vld [vmem:[%s31 + $0x144] sm:$0xf]
  %v2450 = vld [vmem:[%s31 + $0x148] sm:$0xf]
  %v2451 = vld [vmem:[%s31 + $0x14c] sm:$0xf]
  %v2452 = vld [vmem:[%s31 + $0x150] sm:$0xf]
  %v2453 = vld [vmem:[%s31 + $0x154] sm:$0xf]
  %v2454 = vld [vmem:[%s31 + $0x158] sm:$0xf]
  %v2455 = vld [vmem:[%s31 + $0x15c] sm:$0xf]
  %v2456 = vld [vmem:[%s31 + $0x160] sm:$0xf]
  %v2457 = vld [vmem:[%s31 + $0x164] sm:$0xf]
  %v2458 = vld [vmem:[%s31 + $0x168] sm:$0xf]
  %v2459 = vld [vmem:[%s31 + $0x16c] sm:$0xf]
  %v2460 = vld [vmem:[%s31 + $0x170] sm:$0xf]
  %v2461 = vld [vmem:[%s31 + $0x174] sm:$0xf]
  %v2462 = vld [vmem:[%s31 + $0x178] sm:$0xf]
  %v2463 = vld [vmem:[%s31 + $0x17c] sm:$0xf]
  %v2464 = vld [vmem:[%s31 + $0x180] sm:$0xf]
  %v2465 = vld [vmem:[%s31 + $0x184] sm:$0xf]
  %v2466 = vld [vmem:[%s31 + $0x188] sm:$0xf]
  %v2467 = vld [vmem:[%s31 + $0x18c] sm:$0xf]
  %v2468 = vld [vmem:[%s31 + $0x190] sm:$0xf]
  %v2469 = vld [vmem:[%s31 + $0x194] sm:$0xf]
  %v2470 = vld [vmem:[%s31 + $0x198] sm:$0xf]
  %v2471 = vld [vmem:[%s31 + $0x19c] sm:$0xf]
  %v2472 = vld [vmem:[%s31 + $0x1a0] sm:$0xf]
  %v2473 = vld [vmem:[%s31 + $0x1a4] sm:$0xf]
  %v2474 = vld [vmem:[%s31 + $0x1a8] sm:$0xf]
  %v2475 = vld [vmem:[%s31 + $0x1ac] sm:$0xf]
  %v2476 = vld [vmem:[%s31 + $0x1b0] sm:$0xf]
  %v2477 = vld [vmem:[%s31 + $0x1b4] sm:$0xf]
  %v2478 = vld [vmem:[%s31 + $0x1b8] sm:$0xf]
  %v2479 = vld [vmem:[%s31 + $0x1bc] sm:$0xf]
  %v2480 = vld [vmem:[%s31 + $0x1c0] sm:$0xf]
  %v2481 = vld [vmem:[%s31 + $0x1c4] sm:$0xf]
  %v2482 = vld [vmem:[%s31 + $0x1c8] sm:$0xf]
  %v2483 = vld [vmem:[%s31 + $0x1cc] sm:$0xf]
  %v2484 = vld [vmem:[%s31 + $0x1d0] sm:$0xf]
  %v2485 = vld [vmem:[%s31 + $0x1d4] sm:$0xf]
  %v2486 = vld [vmem:[%s31 + $0x1d8] sm:$0xf]
  %v2487 = vld [vmem:[%s31 + $0x1dc] sm:$0xf]
  %v2488 = vld [vmem:[%s31 + $0x1e0] sm:$0xf]
  %v2489 = vld [vmem:[%s31 + $0x1e4] sm:$0xf]
  %v2490 = vld [vmem:[%s31 + $0x1e8] sm:$0xf]
  %v2491 = vld [vmem:[%s31 + $0x1ec] sm:$0xf]
  %v2492 = vld [vmem:[%s31 + $0x1f0] sm:$0xf]
  %v2493 = vld [vmem:[%s31 + $0x1f4] sm:$0xf]
  %v2494 = vld [vmem:[%s31 + $0x1f8] sm:$0xf]
  %v2495 = vld [vmem:[%s31 + $0x1fc] sm:$0xf]
  %v2624 = vunpack.c.l.b16 %v2368
  %v2625 = vunpack.c.l.b16 %v2369
  %v2626 = vunpack.c.l.b16 %v2370
  %v2627 = vunpack.c.l.b16 %v2371
  %v2628 = vunpack.c.l.b16 %v2372
  %v2629 = vunpack.c.l.b16 %v2373
  %v2630 = vunpack.c.l.b16 %v2374
  %v2631 = vunpack.c.l.b16 %v2375
  %v2632 = vunpack.c.l.b16 %v2376
  %v2633 = vunpack.c.l.b16 %v2377
  %v2634 = vunpack.c.l.b16 %v2378
  %v2635 = vunpack.c.l.b16 %v2379
  %v2636 = vunpack.c.l.b16 %v2380
  %v2637 = vunpack.c.l.b16 %v2381
  %v2638 = vunpack.c.l.b16 %v2382
  %v2639 = vunpack.c.l.b16 %v2383
  %v2640 = vunpack.c.l.b16 %v2384
  %v2641 = vunpack.c.l.b16 %v2385
  %v2642 = vunpack.c.l.b16 %v2386
  %v2643 = vunpack.c.l.b16 %v2387
  %v2644 = vunpack.c.l.b16 %v2388
  %v2645 = vunpack.c.l.b16 %v2389
  %v2646 = vunpack.c.l.b16 %v2390
  %v2647 = vunpack.c.l.b16 %v2391
  %v2648 = vunpack.c.l.b16 %v2392
  %v2649 = vunpack.c.l.b16 %v2393
  %v2650 = vunpack.c.l.b16 %v2394
  %v2651 = vunpack.c.l.b16 %v2395
  %v2652 = vunpack.c.l.b16 %v2396
  %v2653 = vunpack.c.l.b16 %v2397
  %v2654 = vunpack.c.l.b16 %v2398
  %v2655 = vunpack.c.l.b16 %v2399
  %v2656 = vunpack.c.l.b16 %v2400
  %v2657 = vunpack.c.l.b16 %v2401
  %v2658 = vunpack.c.l.b16 %v2402
  %v2659 = vunpack.c.l.b16 %v2403
  %v2660 = vunpack.c.l.b16 %v2404
  %v2661 = vunpack.c.l.b16 %v2405
  %v2662 = vunpack.c.l.b16 %v2406
  %v2663 = vunpack.c.l.b16 %v2407
  %v2664 = vunpack.c.l.b16 %v2408
  %v2665 = vunpack.c.l.b16 %v2409
  %v2666 = vunpack.c.l.b16 %v2410
  %v2667 = vunpack.c.l.b16 %v2411
  %v2668 = vunpack.c.l.b16 %v2412
  %v2669 = vunpack.c.l.b16 %v2413
  %v2670 = vunpack.c.l.b16 %v2414
  %v2671 = vunpack.c.l.b16 %v2415
  %v2672 = vunpack.c.l.b16 %v2416
  %v2673 = vunpack.c.l.b16 %v2417
  %v2674 = vunpack.c.l.b16 %v2418
  %v2675 = vunpack.c.l.b16 %v2419
  %v2676 = vunpack.c.l.b16 %v2420
  %v2677 = vunpack.c.l.b16 %v2421
  %v2678 = vunpack.c.l.b16 %v2422
  %v2679 = vunpack.c.l.b16 %v2423
  %v2680 = vunpack.c.l.b16 %v2424
  %v2681 = vunpack.c.l.b16 %v2425
  %v2682 = vunpack.c.l.b16 %v2426
  %v2683 = vunpack.c.l.b16 %v2427
  %v2684 = vunpack.c.l.b16 %v2428
  %v2685 = vunpack.c.l.b16 %v2429
  %v2686 = vunpack.c.l.b16 %v2430
  %v2687 = vunpack.c.l.b16 %v2431
  %v2688 = vunpack.c.l.b16 %v2432
  %v2689 = vunpack.c.l.b16 %v2433
  %v2690 = vunpack.c.l.b16 %v2434
  %v2691 = vunpack.c.l.b16 %v2435
  %v2692 = vunpack.c.l.b16 %v2436
  %v2693 = vunpack.c.l.b16 %v2437
  %v2694 = vunpack.c.l.b16 %v2438
  %v2695 = vunpack.c.l.b16 %v2439
  %v2696 = vunpack.c.l.b16 %v2440
  %v2697 = vunpack.c.l.b16 %v2441
  %v2698 = vunpack.c.l.b16 %v2442
  %v2699 = vunpack.c.l.b16 %v2443
  %v2700 = vunpack.c.l.b16 %v2444
  %v2701 = vunpack.c.l.b16 %v2445
  %v2702 = vunpack.c.l.b16 %v2446
  %v2703 = vunpack.c.l.b16 %v2447
  %v2704 = vunpack.c.l.b16 %v2448
  %v2705 = vunpack.c.l.b16 %v2449
  %v2706 = vunpack.c.l.b16 %v2450
  %v2707 = vunpack.c.l.b16 %v2451
  %v2708 = vunpack.c.l.b16 %v2452
  %v2709 = vunpack.c.l.b16 %v2453
  %v2710 = vunpack.c.l.b16 %v2454
  %v2711 = vunpack.c.l.b16 %v2455
  %v2712 = vunpack.c.l.b16 %v2456
  %v2713 = vunpack.c.l.b16 %v2457
  %v2714 = vunpack.c.l.b16 %v2458
  %v2715 = vunpack.c.l.b16 %v2459
  %v2716 = vunpack.c.l.b16 %v2460
  %v2717 = vunpack.c.l.b16 %v2461
  %v2718 = vunpack.c.l.b16 %v2462
  %v2719 = vunpack.c.l.b16 %v2463
  %v2720 = vunpack.c.l.b16 %v2464
  %v2721 = vunpack.c.l.b16 %v2465
  %v2722 = vunpack.c.l.b16 %v2466
  %v2723 = vunpack.c.l.b16 %v2467
  %v2724 = vunpack.c.l.b16 %v2468
  %v2725 = vunpack.c.l.b16 %v2469
  %v2726 = vunpack.c.l.b16 %v2470
  %v2727 = vunpack.c.l.b16 %v2471
  %v2728 = vunpack.c.l.b16 %v2472
  %v2729 = vunpack.c.l.b16 %v2473
  %v2730 = vunpack.c.l.b16 %v2474
  %v2731 = vunpack.c.l.b16 %v2475
  %v2732 = vunpack.c.l.b16 %v2476
  %v2733 = vunpack.c.l.b16 %v2477
  %v2734 = vunpack.c.l.b16 %v2478
  %v2735 = vunpack.c.l.b16 %v2479
  %v2736 = vunpack.c.l.b16 %v2480
  %v2737 = vunpack.c.l.b16 %v2481
  %v2738 = vunpack.c.l.b16 %v2482
  %v2739 = vunpack.c.l.b16 %v2483
  %v2740 = vunpack.c.l.b16 %v2484
  %v2741 = vunpack.c.l.b16 %v2485
  %v2742 = vunpack.c.l.b16 %v2486
  %v2743 = vunpack.c.l.b16 %v2487
  %v2744 = vunpack.c.l.b16 %v2488
  %v2745 = vunpack.c.l.b16 %v2489
  %v2746 = vunpack.c.l.b16 %v2490
  %v2747 = vunpack.c.l.b16 %v2491
  %v2748 = vunpack.c.l.b16 %v2492
  %v2749 = vunpack.c.l.b16 %v2493
  %v2750 = vunpack.c.l.b16 %v2494
  %v2751 = vunpack.c.l.b16 %v2495
  %v2752 = vpack.c.b16 %v2625, %v2624
  %v2753 = vpack.c.b16 %v2627, %v2626
  %v2754 = vpack.c.b16 %v2629, %v2628
  %v2755 = vpack.c.b16 %v2631, %v2630
  %v2756 = vpack.c.b16 %v2633, %v2632
  %v2757 = vpack.c.b16 %v2635, %v2634
  %v2758 = vpack.c.b16 %v2637, %v2636
  %v2759 = vpack.c.b16 %v2639, %v2638
  %v2760 = vpack.c.b16 %v2641, %v2640
  %v2761 = vpack.c.b16 %v2643, %v2642
  %v2762 = vpack.c.b16 %v2645, %v2644
  %v2763 = vpack.c.b16 %v2647, %v2646
  %v2764 = vpack.c.b16 %v2649, %v2648
  %v2765 = vpack.c.b16 %v2651, %v2650
  %v2766 = vpack.c.b16 %v2653, %v2652
  %v2767 = vpack.c.b16 %v2655, %v2654
  %v2768 = vpack.c.b16 %v2657, %v2656
  %v2769 = vpack.c.b16 %v2659, %v2658
  %v2770 = vpack.c.b16 %v2661, %v2660
  %v2771 = vpack.c.b16 %v2663, %v2662
  %v2772 = vpack.c.b16 %v2665, %v2664
  %v2773 = vpack.c.b16 %v2667, %v2666
  %v2774 = vpack.c.b16 %v2669, %v2668
  %v2775 = vpack.c.b16 %v2671, %v2670
  %v2776 = vpack.c.b16 %v2673, %v2672
  %v2777 = vpack.c.b16 %v2675, %v2674
  %v2778 = vpack.c.b16 %v2677, %v2676
  %v2779 = vpack.c.b16 %v2679, %v2678
  %v2780 = vpack.c.b16 %v2681, %v2680
  %v2781 = vpack.c.b16 %v2683, %v2682
  %v2782 = vpack.c.b16 %v2685, %v2684
  %v2783 = vpack.c.b16 %v2687, %v2686
  %v2784 = vpack.c.b16 %v2689, %v2688
  %v2785 = vpack.c.b16 %v2691, %v2690
  %v2786 = vpack.c.b16 %v2693, %v2692
  %v2787 = vpack.c.b16 %v2695, %v2694
  %v2788 = vpack.c.b16 %v2697, %v2696
  %v2789 = vpack.c.b16 %v2699, %v2698
  %v2790 = vpack.c.b16 %v2701, %v2700
  %v2791 = vpack.c.b16 %v2703, %v2702
  %v2792 = vpack.c.b16 %v2705, %v2704
  %v2793 = vpack.c.b16 %v2707, %v2706
  %v2794 = vpack.c.b16 %v2709, %v2708
  %v2795 = vpack.c.b16 %v2711, %v2710
  %v2796 = vpack.c.b16 %v2713, %v2712
  %v2797 = vpack.c.b16 %v2715, %v2714
  %v2798 = vpack.c.b16 %v2717, %v2716
  %v2799 = vpack.c.b16 %v2719, %v2718
  %v2800 = vpack.c.b16 %v2721, %v2720
  %v2801 = vpack.c.b16 %v2723, %v2722
  %v2802 = vpack.c.b16 %v2725, %v2724
  %v2803 = vpack.c.b16 %v2727, %v2726
  %v2804 = vpack.c.b16 %v2729, %v2728
  %v2805 = vpack.c.b16 %v2731, %v2730
  %v2806 = vpack.c.b16 %v2733, %v2732
  %v2807 = vpack.c.b16 %v2735, %v2734
  %v2808 = vpack.c.b16 %v2737, %v2736
  %v2809 = vpack.c.b16 %v2739, %v2738
  %v2810 = vpack.c.b16 %v2741, %v2740
  %v2811 = vpack.c.b16 %v2743, %v2742
  %v2812 = vpack.c.b16 %v2745, %v2744
  %v2813 = vpack.c.b16 %v2747, %v2746
  %v2814 = vpack.c.b16 %v2749, %v2748
  %v2815 = vpack.c.b16 %v2751, %v2750
  %v2817 = vsel %vm1026, %v2752, 0
  %v2820 = vsel %vm1026, %v2753, 0
  %v2823 = vsel %vm1026, %v2754, 0
  %v2826 = vsel %vm1026, %v2755, 0
  %v2829 = vsel %vm1026, %v2756, 0
  %v2832 = vsel %vm1026, %v2757, 0
  %v2835 = vsel %vm1026, %v2758, 0
  %v2838 = vsel %vm1026, %v2759, 0
  %v2841 = vsel %vm1026, %v2760, 0
  %v2844 = vsel %vm1026, %v2761, 0
  %v2847 = vsel %vm1026, %v2762, 0
  %v2850 = vsel %vm1026, %v2763, 0
  %v2853 = vsel %vm1026, %v2764, 0
  %v2856 = vsel %vm1026, %v2765, 0
  %v2859 = vsel %vm1026, %v2766, 0
  %v2862 = vsel %vm1026, %v2767, 0
  %v2865 = vsel %vm1026, %v2768, 0
  %v2868 = vsel %vm1026, %v2769, 0
  %v2871 = vsel %vm1026, %v2770, 0
  %v2874 = vsel %vm1026, %v2771, 0
  %v2877 = vsel %vm1026, %v2772, 0
  %v2880 = vsel %vm1026, %v2773, 0
  %v2883 = vsel %vm1026, %v2774, 0
  %v2886 = vsel %vm1026, %v2775, 0
  %v2889 = vsel %vm1026, %v2776, 0
  %v2892 = vsel %vm1026, %v2777, 0
  %v2895 = vsel %vm1026, %v2778, 0
  %v2898 = vsel %vm1026, %v2779, 0
  %v2901 = vsel %vm1026, %v2780, 0
  %v2904 = vsel %vm1026, %v2781, 0
  %v2907 = vsel %vm1026, %v2782, 0
  %v2910 = vsel %vm1026, %v2783, 0
  %v2913 = vsel %vm1026, %v2784, 0
  %v2916 = vsel %vm1026, %v2785, 0
  %v2919 = vsel %vm1026, %v2786, 0
  %v2922 = vsel %vm1026, %v2787, 0
  %v2925 = vsel %vm1026, %v2788, 0
  %v2928 = vsel %vm1026, %v2789, 0
  %v2931 = vsel %vm1026, %v2790, 0
  %v2934 = vsel %vm1026, %v2791, 0
  %v2937 = vsel %vm1026, %v2792, 0
  %v2940 = vsel %vm1026, %v2793, 0
  %v2943 = vsel %vm1026, %v2794, 0
  %v2946 = vsel %vm1026, %v2795, 0
  %v2949 = vsel %vm1026, %v2796, 0
  %v2952 = vsel %vm1026, %v2797, 0
  %v2955 = vsel %vm1026, %v2798, 0
  %v2958 = vsel %vm1026, %v2799, 0
  %v2961 = vsel %vm1026, %v2800, 0
  %v2964 = vsel %vm1026, %v2801, 0
  %v2967 = vsel %vm1026, %v2802, 0
  %v2970 = vsel %vm1026, %v2803, 0
  %v2973 = vsel %vm1026, %v2804, 0
  %v2976 = vsel %vm1026, %v2805, 0
  %v2979 = vsel %vm1026, %v2806, 0
  %v2982 = vsel %vm1026, %v2807, 0
  %v2985 = vsel %vm1026, %v2808, 0
  %v2988 = vsel %vm1026, %v2809, 0
  %v2991 = vsel %vm1026, %v2810, 0
  %v2994 = vsel %vm1026, %v2811, 0
  %v2997 = vsel %vm1026, %v2812, 0
  %v3000 = vsel %vm1026, %v2813, 0
  %v3003 = vsel %vm1026, %v2814, 0
  %v3006 = vsel %vm1026, %v2815, 0
  %3008 = vmatprep.subr.bf16.mxu0 0
  %3009 = vmatpush1.bf16.xpose.msra.mxu0 %v1731
  %3010 = vmatprep.subr.bf16.mxu0 0
  %3011 = vmatpush1.bf16.xpose.msra.mxu0 %v1734
  %3012 = vmatprep.subr.bf16.mxu0 0
  %3013 = vmatpush1.bf16.xpose.msra.mxu0 0
  %3014 = vmatprep.subr.bf16.mxu0 0
  %3015 = vmatpush1.bf16.xpose.msra.mxu0 0
  %3016 = vmatprep.subr.bf16.mxu0 0
  %3017 = vmatpush1.bf16.xpose.msra.mxu0 0
  %3018 = vmatprep.subr.bf16.mxu0 0
  %3019 = vmatpush1.bf16.xpose.msra.mxu0 0
  %3020 = vmatprep.subr.bf16.mxu0 0
  %3021 = vmatpush1.bf16.xpose.msra.mxu0 0
  %3022 = vmatprep.subr.bf16.mxu0 0
  %3023 = vmatpush1.bf16.xpose.msra.mxu0 0
  %3024 = vmatprep.subr.bf16.mxu0 0
  %3025 = vmatpush1.bf16.xpose.msra.mxu0 0
  %3026 = vmatprep.subr.bf16.mxu0 0
  %3027 = vmatpush1.bf16.xpose.msra.mxu0 0
  %3028 = vmatprep.subr.bf16.mxu0 0
  %3029 = vmatpush1.bf16.xpose.msra.mxu0 0
  %3030 = vmatprep.subr.bf16.mxu0 0
  %3031 = vmatpush1.bf16.xpose.msra.mxu0 0
  %3032 = vmatprep.subr.bf16.mxu0 0
  %3033 = vmatpush1.bf16.xpose.msra.mxu0 0
  %3034 = vmatprep.subr.bf16.mxu0 0
  %3035 = vmatpush1.bf16.xpose.msra.mxu0 0
  %3036 = vmatprep.subr.bf16.mxu0 0
  %3037 = vmatpush1.bf16.xpose.msra.mxu0 0
  %3038 = vmatprep.subr.bf16.mxu0 0
  %3039 = vmatpush1.bf16.xpose.msra.mxu0 0
  %3040 = vmatprep.mubr.bf16.mxu0 0
  %3041 = vmatmul.mubr.bf16.gmra.mrb[0].mxu0 %v2817
  %v3042 = vpop.f32.mrb[0].mxu0
  %v3043 = vadd.f32 0.0, %v3042
  %v3044 = vpop.f32.mrb[0].mxu0
  %v3045 = vpop.f32.mrb[0].mxu0
  %v3046 = vadd.f32 0.0, %v3045
  %v3047 = vpop.f32.mrb[0].mxu0
  %3048 = vmatprep.mubr.bf16.mxu0 0
  %3049 = vmatmul.mubr.bf16.gmra.mrb[0].mxu0 %v2820
  %v3050 = vpop.f32.mrb[0].mxu0
  %v3051 = vadd.f32 0.0, %v3050
  %v3052 = vpop.f32.mrb[0].mxu0
  %v3053 = vpop.f32.mrb[0].mxu0
  %v3054 = vadd.f32 0.0, %v3053
  %v3055 = vpop.f32.mrb[0].mxu0
  %3056 = vmatprep.mubr.bf16.mxu0 0
  %3057 = vmatmul.mubr.bf16.gmra.mrb[0].mxu0 %v2823
  %v3058 = vpop.f32.mrb[0].mxu0
  %v3059 = vadd.f32 0.0, %v3058
  %v3060 = vpop.f32.mrb[0].mxu0
  %v3061 = vpop.f32.mrb[0].mxu0
  %v3062 = vadd.f32 0.0, %v3061
  %v3063 = vpop.f32.mrb[0].mxu0
  %3064 = vmatprep.mubr.bf16.mxu0 0
  %3065 = vmatmul.mubr.bf16.gmra.mrb[0].mxu0 %v2826
  %v3066 = vpop.f32.mrb[0].mxu0
  %v3067 = vadd.f32 0.0, %v3066
  %v3068 = vpop.f32.mrb[0].mxu0
  %v3069 = vpop.f32.mrb[0].mxu0
  %v3070 = vadd.f32 0.0, %v3069
  %v3071 = vpop.f32.mrb[0].mxu0
  %3072 = vmatprep.mubr.bf16.mxu0 0
  %3073 = vmatmul.mubr.bf16.gmra.mrb[0].mxu0 %v2829
  %v3074 = vpop.f32.mrb[0].mxu0
  %v3075 = vadd.f32 0.0, %v3074
  %v3076 = vpop.f32.mrb[0].mxu0
  %v3077 = vpop.f32.mrb[0].mxu0
  %v3078 = vadd.f32 0.0, %v3077
  %v3079 = vpop.f32.mrb[0].mxu0
  %3080 = vmatprep.mubr.bf16.mxu0 0
  %3081 = vmatmul.mubr.bf16.gmra.mrb[0].mxu0 %v2832
  %v3082 = vpop.f32.mrb[0].mxu0
  %v3083 = vadd.f32 0.0, %v3082
  %v3084 = vpop.f32.mrb[0].mxu0
  %v3085 = vpop.f32.mrb[0].mxu0
  %v3086 = vadd.f32 0.0, %v3085
  %v3087 = vpop.f32.mrb[0].mxu0
  %3088 = vmatprep.mubr.bf16.mxu0 0
  %3089 = vmatmul.mubr.bf16.gmra.mrb[0].mxu0 %v2835
  %v3090 = vpop.f32.mrb[0].mxu0
  %v3091 = vadd.f32 0.0, %v3090
  %v3092 = vpop.f32.mrb[0].mxu0
  %v3093 = vpop.f32.mrb[0].mxu0
  %v3094 = vadd.f32 0.0, %v3093
  %v3095 = vpop.f32.mrb[0].mxu0
  %3096 = vmatprep.mubr.bf16.mxu0 0
  %3097 = vmatmul.mubr.bf16.gmra.mrb[0].mxu0 %v2838
  %v3098 = vpop.f32.mrb[0].mxu0
  %v3099 = vadd.f32 0.0, %v3098
  %v3100 = vpop.f32.mrb[0].mxu0
  %v3101 = vpop.f32.mrb[0].mxu0
  %v3102 = vadd.f32 0.0, %v3101
  %v3103 = vpop.f32.mrb[0].mxu0
  %3104 = vmatprep.mubr.bf16.mxu0 0
  %3105 = vmatmul.mubr.bf16.gmra.mrb[0].mxu0 %v2841
  %v3106 = vpop.f32.mrb[0].mxu0
  %v3107 = vadd.f32 0.0, %v3106
  %v3108 = vpop.f32.mrb[0].mxu0
  %v3109 = vpop.f32.mrb[0].mxu0
  %v3110 = vadd.f32 0.0, %v3109
  %v3111 = vpop.f32.mrb[0].mxu0
  %3112 = vmatprep.mubr.bf16.mxu0 0
  %3113 = vmatmul.mubr.bf16.gmra.mrb[0].mxu0 %v2844
  %v3114 = vpop.f32.mrb[0].mxu0
  %v3115 = vadd.f32 0.0, %v3114
  %v3116 = vpop.f32.mrb[0].mxu0
  %v3117 = vpop.f32.mrb[0].mxu0
  %v3118 = vadd.f32 0.0, %v3117
  %v3119 = vpop.f32.mrb[0].mxu0
  %3120 = vmatprep.mubr.bf16.mxu0 0
  %3121 = vmatmul.mubr.bf16.gmra.mrb[0].mxu0 %v2847
  %v3122 = vpop.f32.mrb[0].mxu0
  %v3123 = vadd.f32 0.0, %v3122
  %v3124 = vpop.f32.mrb[0].mxu0
  %v3125 = vpop.f32.mrb[0].mxu0
  %v3126 = vadd.f32 0.0, %v3125
  %v3127 = vpop.f32.mrb[0].mxu0
  %3128 = vmatprep.mubr.bf16.mxu0 0
  %3129 = vmatmul.mubr.bf16.gmra.mrb[0].mxu0 %v2850
  %v3130 = vpop.f32.mrb[0].mxu0
  %v3131 = vadd.f32 0.0, %v3130
  %v3132 = vpop.f32.mrb[0].mxu0
  %v3133 = vpop.f32.mrb[0].mxu0
  %v3134 = vadd.f32 0.0, %v3133
  %v3135 = vpop.f32.mrb[0].mxu0
  %3136 = vmatprep.mubr.bf16.mxu0 0
  %3137 = vmatmul.mubr.bf16.gmra.mrb[0].mxu0 %v2853
  %v3138 = vpop.f32.mrb[0].mxu0
  %v3139 = vadd.f32 0.0, %v3138
  %v3140 = vpop.f32.mrb[0].mxu0
  %v3141 = vpop.f32.mrb[0].mxu0
  %v3142 = vadd.f32 0.0, %v3141
  %v3143 = vpop.f32.mrb[0].mxu0
  %3144 = vmatprep.mubr.bf16.mxu0 0
  %3145 = vmatmul.mubr.bf16.gmra.mrb[0].mxu0 %v2856
  %v3146 = vpop.f32.mrb[0].mxu0
  %v3147 = vadd.f32 0.0, %v3146
  %v3148 = vpop.f32.mrb[0].mxu0
  %v3149 = vpop.f32.mrb[0].mxu0
  %v3150 = vadd.f32 0.0, %v3149
  %v3151 = vpop.f32.mrb[0].mxu0
  %3152 = vmatprep.mubr.bf16.mxu0 0
  %3153 = vmatmul.mubr.bf16.gmra.mrb[0].mxu0 %v2859
  %v3154 = vpop.f32.mrb[0].mxu0
  %v3155 = vadd.f32 0.0, %v3154
  %v3156 = vpop.f32.mrb[0].mxu0
  %v3157 = vpop.f32.mrb[0].mxu0
  %v3158 = vadd.f32 0.0, %v3157
  %v3159 = vpop.f32.mrb[0].mxu0
  %3160 = vmatprep.mubr.bf16.mxu0 0
  %3161 = vmatmul.mubr.bf16.gmra.mrb[0].mxu0 %v2862
  %v3162 = vpop.f32.mrb[0].mxu0
  %v3163 = vadd.f32 0.0, %v3162
  %v3164 = vpop.f32.mrb[0].mxu0
  %v3165 = vpop.f32.mrb[0].mxu0
  %v3166 = vadd.f32 0.0, %v3165
  %v3167 = vpop.f32.mrb[0].mxu0
  %3168 = vmatprep.mubr.bf16.mxu0 0
  %3169 = vmatmul.mubr.bf16.gmra.mrb[0].mxu0 %v2865
  %v3170 = vpop.f32.mrb[0].mxu0
  %v3171 = vadd.f32 0.0, %v3170
  %v3172 = vpop.f32.mrb[0].mxu0
  %v3173 = vpop.f32.mrb[0].mxu0
  %v3174 = vadd.f32 0.0, %v3173
  %v3175 = vpop.f32.mrb[0].mxu0
  %3176 = vmatprep.mubr.bf16.mxu0 0
  %3177 = vmatmul.mubr.bf16.gmra.mrb[0].mxu0 %v2868
  %v3178 = vpop.f32.mrb[0].mxu0
  %v3179 = vadd.f32 0.0, %v3178
  %v3180 = vpop.f32.mrb[0].mxu0
  %v3181 = vpop.f32.mrb[0].mxu0
  %v3182 = vadd.f32 0.0, %v3181
  %v3183 = vpop.f32.mrb[0].mxu0
  %3184 = vmatprep.mubr.bf16.mxu0 0
  %3185 = vmatmul.mubr.bf16.gmra.mrb[0].mxu0 %v2871
  %v3186 = vpop.f32.mrb[0].mxu0
  %v3187 = vadd.f32 0.0, %v3186
  %v3188 = vpop.f32.mrb[0].mxu0
  %v3189 = vpop.f32.mrb[0].mxu0
  %v3190 = vadd.f32 0.0, %v3189
  %v3191 = vpop.f32.mrb[0].mxu0
  %3192 = vmatprep.mubr.bf16.mxu0 0
  %3193 = vmatmul.mubr.bf16.gmra.mrb[0].mxu0 %v2874
  %v3194 = vpop.f32.mrb[0].mxu0
  %v3195 = vadd.f32 0.0, %v3194
  %v3196 = vpop.f32.mrb[0].mxu0
  %v3197 = vpop.f32.mrb[0].mxu0
  %v3198 = vadd.f32 0.0, %v3197
  %v3199 = vpop.f32.mrb[0].mxu0
  %3200 = vmatprep.mubr.bf16.mxu0 0
  %3201 = vmatmul.mubr.bf16.gmra.mrb[0].mxu0 %v2877
  %v3202 = vpop.f32.mrb[0].mxu0
  %v3203 = vadd.f32 0.0, %v3202
  %v3204 = vpop.f32.mrb[0].mxu0
  %v3205 = vpop.f32.mrb[0].mxu0
  %v3206 = vadd.f32 0.0, %v3205
  %v3207 = vpop.f32.mrb[0].mxu0
  %3208 = vmatprep.mubr.bf16.mxu0 0
  %3209 = vmatmul.mubr.bf16.gmra.mrb[0].mxu0 %v2880
  %v3210 = vpop.f32.mrb[0].mxu0
  %v3211 = vadd.f32 0.0, %v3210
  %v3212 = vpop.f32.mrb[0].mxu0
  %v3213 = vpop.f32.mrb[0].mxu0
  %v3214 = vadd.f32 0.0, %v3213
  %v3215 = vpop.f32.mrb[0].mxu0
  %3216 = vmatprep.mubr.bf16.mxu0 0
  %3217 = vmatmul.mubr.bf16.gmra.mrb[0].mxu0 %v2883
  %v3218 = vpop.f32.mrb[0].mxu0
  %v3219 = vadd.f32 0.0, %v3218
  %v3220 = vpop.f32.mrb[0].mxu0
  %v3221 = vpop.f32.mrb[0].mxu0
  %v3222 = vadd.f32 0.0, %v3221
  %v3223 = vpop.f32.mrb[0].mxu0
  %3224 = vmatprep.mubr.bf16.mxu0 0
  %3225 = vmatmul.mubr.bf16.gmra.mrb[0].mxu0 %v2886
  %v3226 = vpop.f32.mrb[0].mxu0
  %v3227 = vadd.f32 0.0, %v3226
  %v3228 = vpop.f32.mrb[0].mxu0
  %v3229 = vpop.f32.mrb[0].mxu0
  %v3230 = vadd.f32 0.0, %v3229
  %v3231 = vpop.f32.mrb[0].mxu0
  %3232 = vmatprep.mubr.bf16.mxu0 0
  %3233 = vmatmul.mubr.bf16.gmra.mrb[0].mxu0 %v2889
  %v3234 = vpop.f32.mrb[0].mxu0
  %v3235 = vadd.f32 0.0, %v3234
  %v3236 = vpop.f32.mrb[0].mxu0
  %v3237 = vpop.f32.mrb[0].mxu0
  %v3238 = vadd.f32 0.0, %v3237
  %v3239 = vpop.f32.mrb[0].mxu0
  %3240 = vmatprep.mubr.bf16.mxu0 0
  %3241 = vmatmul.mubr.bf16.gmra.mrb[0].mxu0 %v2892
  %v3242 = vpop.f32.mrb[0].mxu0
  %v3243 = vadd.f32 0.0, %v3242
  %v3244 = vpop.f32.mrb[0].mxu0
  %v3245 = vpop.f32.mrb[0].mxu0
  %v3246 = vadd.f32 0.0, %v3245
  %v3247 = vpop.f32.mrb[0].mxu0
  %3248 = vmatprep.mubr.bf16.mxu0 0
  %3249 = vmatmul.mubr.bf16.gmra.mrb[0].mxu0 %v2895
  %v3250 = vpop.f32.mrb[0].mxu0
  %v3251 = vadd.f32 0.0, %v3250
  %v3252 = vpop.f32.mrb[0].mxu0
  %v3253 = vpop.f32.mrb[0].mxu0
  %v3254 = vadd.f32 0.0, %v3253
  %v3255 = vpop.f32.mrb[0].mxu0
  %3256 = vmatprep.mubr.bf16.mxu0 0
  %3257 = vmatmul.mubr.bf16.gmra.mrb[0].mxu0 %v2898
  %v3258 = vpop.f32.mrb[0].mxu0
  %v3259 = vadd.f32 0.0, %v3258
  %v3260 = vpop.f32.mrb[0].mxu0
  %v3261 = vpop.f32.mrb[0].mxu0
  %v3262 = vadd.f32 0.0, %v3261
  %v3263 = vpop.f32.mrb[0].mxu0
  %3264 = vmatprep.mubr.bf16.mxu0 0
  %3265 = vmatmul.mubr.bf16.gmra.mrb[0].mxu0 %v2901
  %v3266 = vpop.f32.mrb[0].mxu0
  %v3267 = vadd.f32 0.0, %v3266
  %v3268 = vpop.f32.mrb[0].mxu0
  %v3269 = vpop.f32.mrb[0].mxu0
  %v3270 = vadd.f32 0.0, %v3269
  %v3271 = vpop.f32.mrb[0].mxu0
  %3272 = vmatprep.mubr.bf16.mxu0 0
  %3273 = vmatmul.mubr.bf16.gmra.mrb[0].mxu0 %v2904
  %v3274 = vpop.f32.mrb[0].mxu0
  %v3275 = vadd.f32 0.0, %v3274
  %v3276 = vpop.f32.mrb[0].mxu0
  %v3277 = vpop.f32.mrb[0].mxu0
  %v3278 = vadd.f32 0.0, %v3277
  %v3279 = vpop.f32.mrb[0].mxu0
  %3280 = vmatprep.mubr.bf16.mxu0 0
  %3281 = vmatmul.mubr.bf16.gmra.mrb[0].mxu0 %v2907
  %v3282 = vpop.f32.mrb[0].mxu0
  %v3283 = vadd.f32 0.0, %v3282
  %v3284 = vpop.f32.mrb[0].mxu0
  %v3285 = vpop.f32.mrb[0].mxu0
  %v3286 = vadd.f32 0.0, %v3285
  %v3287 = vpop.f32.mrb[0].mxu0
  %3288 = vmatprep.mubr.bf16.mxu0 0
  %3289 = vmatmul.mubr.bf16.gmra.mrb[0].mxu0 %v2910
  %v3290 = vpop.f32.mrb[0].mxu0
  %v3291 = vadd.f32 0.0, %v3290
  %v3292 = vpop.f32.mrb[0].mxu0
  %v3293 = vpop.f32.mrb[0].mxu0
  %v3294 = vadd.f32 0.0, %v3293
  %v3295 = vpop.f32.mrb[0].mxu0
  %3296 = vmatprep.mubr.bf16.mxu0 0
  %3297 = vmatmul.mubr.bf16.gmra.mrb[0].mxu0 %v2913
  %v3298 = vpop.f32.mrb[0].mxu0
  %v3299 = vadd.f32 0.0, %v3298
  %v3300 = vpop.f32.mrb[0].mxu0
  %v3301 = vpop.f32.mrb[0].mxu0
  %v3302 = vadd.f32 0.0, %v3301
  %v3303 = vpop.f32.mrb[0].mxu0
  %3304 = vmatprep.mubr.bf16.mxu0 0
  %3305 = vmatmul.mubr.bf16.gmra.mrb[0].mxu0 %v2916
  %v3306 = vpop.f32.mrb[0].mxu0
  %v3307 = vadd.f32 0.0, %v3306
  %v3308 = vpop.f32.mrb[0].mxu0
  %v3309 = vpop.f32.mrb[0].mxu0
  %v3310 = vadd.f32 0.0, %v3309
  %v3311 = vpop.f32.mrb[0].mxu0
  %3312 = vmatprep.mubr.bf16.mxu0 0
  %3313 = vmatmul.mubr.bf16.gmra.mrb[0].mxu0 %v2919
  %v3314 = vpop.f32.mrb[0].mxu0
  %v3315 = vadd.f32 0.0, %v3314
  %v3316 = vpop.f32.mrb[0].mxu0
  %v3317 = vpop.f32.mrb[0].mxu0
  %v3318 = vadd.f32 0.0, %v3317
  %v3319 = vpop.f32.mrb[0].mxu0
  %3320 = vmatprep.mubr.bf16.mxu0 0
  %3321 = vmatmul.mubr.bf16.gmra.mrb[0].mxu0 %v2922
  %v3322 = vpop.f32.mrb[0].mxu0
  %v3323 = vadd.f32 0.0, %v3322
  %v3324 = vpop.f32.mrb[0].mxu0
  %v3325 = vpop.f32.mrb[0].mxu0
  %v3326 = vadd.f32 0.0, %v3325
  %v3327 = vpop.f32.mrb[0].mxu0
  %3328 = vmatprep.mubr.bf16.mxu0 0
  %3329 = vmatmul.mubr.bf16.gmra.mrb[0].mxu0 %v2925
  %v3330 = vpop.f32.mrb[0].mxu0
  %v3331 = vadd.f32 0.0, %v3330
  %v3332 = vpop.f32.mrb[0].mxu0
  %v3333 = vpop.f32.mrb[0].mxu0
  %v3334 = vadd.f32 0.0, %v3333
  %v3335 = vpop.f32.mrb[0].mxu0
  %3336 = vmatprep.mubr.bf16.mxu0 0
  %3337 = vmatmul.mubr.bf16.gmra.mrb[0].mxu0 %v2928
  %v3338 = vpop.f32.mrb[0].mxu0
  %v3339 = vadd.f32 0.0, %v3338
  %v3340 = vpop.f32.mrb[0].mxu0
  %v3341 = vpop.f32.mrb[0].mxu0
  %v3342 = vadd.f32 0.0, %v3341
  %v3343 = vpop.f32.mrb[0].mxu0
  %3344 = vmatprep.mubr.bf16.mxu0 0
  %3345 = vmatmul.mubr.bf16.gmra.mrb[0].mxu0 %v2931
  %v3346 = vpop.f32.mrb[0].mxu0
  %v3347 = vadd.f32 0.0, %v3346
  %v3348 = vpop.f32.mrb[0].mxu0
  %v3349 = vpop.f32.mrb[0].mxu0
  %v3350 = vadd.f32 0.0, %v3349
  %v3351 = vpop.f32.mrb[0].mxu0
  %3352 = vmatprep.mubr.bf16.mxu0 0
  %3353 = vmatmul.mubr.bf16.gmra.mrb[0].mxu0 %v2934
  %v3354 = vpop.f32.mrb[0].mxu0
  %v3355 = vadd.f32 0.0, %v3354
  %v3356 = vpop.f32.mrb[0].mxu0
  %v3357 = vpop.f32.mrb[0].mxu0
  %v3358 = vadd.f32 0.0, %v3357
  %v3359 = vpop.f32.mrb[0].mxu0
  %3360 = vmatprep.mubr.bf16.mxu0 0
  %3361 = vmatmul.mubr.bf16.gmra.mrb[0].mxu0 %v2937
  %v3362 = vpop.f32.mrb[0].mxu0
  %v3363 = vadd.f32 0.0, %v3362
  %v3364 = vpop.f32.mrb[0].mxu0
  %v3365 = vpop.f32.mrb[0].mxu0
  %v3366 = vadd.f32 0.0, %v3365
  %v3367 = vpop.f32.mrb[0].mxu0
  %3368 = vmatprep.mubr.bf16.mxu0 0
  %3369 = vmatmul.mubr.bf16.gmra.mrb[0].mxu0 %v2940
  %v3370 = vpop.f32.mrb[0].mxu0
  %v3371 = vadd.f32 0.0, %v3370
  %v3372 = vpop.f32.mrb[0].mxu0
  %v3373 = vpop.f32.mrb[0].mxu0
  %v3374 = vadd.f32 0.0, %v3373
  %v3375 = vpop.f32.mrb[0].mxu0
  %3376 = vmatprep.mubr.bf16.mxu0 0
  %3377 = vmatmul.mubr.bf16.gmra.mrb[0].mxu0 %v2943
  %v3378 = vpop.f32.mrb[0].mxu0
  %v3379 = vadd.f32 0.0, %v3378
  %v3380 = vpop.f32.mrb[0].mxu0
  %v3381 = vpop.f32.mrb[0].mxu0
  %v3382 = vadd.f32 0.0, %v3381
  %v3383 = vpop.f32.mrb[0].mxu0
  %3384 = vmatprep.mubr.bf16.mxu0 0
  %3385 = vmatmul.mubr.bf16.gmra.mrb[0].mxu0 %v2946
  %v3386 = vpop.f32.mrb[0].mxu0
  %v3387 = vadd.f32 0.0, %v3386
  %v3388 = vpop.f32.mrb[0].mxu0
  %v3389 = vpop.f32.mrb[0].mxu0
  %v3390 = vadd.f32 0.0, %v3389
  %v3391 = vpop.f32.mrb[0].mxu0
  %3392 = vmatprep.mubr.bf16.mxu0 0
  %3393 = vmatmul.mubr.bf16.gmra.mrb[0].mxu0 %v2949
  %v3394 = vpop.f32.mrb[0].mxu0
  %v3395 = vadd.f32 0.0, %v3394
  %v3396 = vpop.f32.mrb[0].mxu0
  %v3397 = vpop.f32.mrb[0].mxu0
  %v3398 = vadd.f32 0.0, %v3397
  %v3399 = vpop.f32.mrb[0].mxu0
  %3400 = vmatprep.mubr.bf16.mxu0 0
  %3401 = vmatmul.mubr.bf16.gmra.mrb[0].mxu0 %v2952
  %v3402 = vpop.f32.mrb[0].mxu0
  %v3403 = vadd.f32 0.0, %v3402
  %v3404 = vpop.f32.mrb[0].mxu0
  %v3405 = vpop.f32.mrb[0].mxu0
  %v3406 = vadd.f32 0.0, %v3405
  %v3407 = vpop.f32.mrb[0].mxu0
  %3408 = vmatprep.mubr.bf16.mxu0 0
  %3409 = vmatmul.mubr.bf16.gmra.mrb[0].mxu0 %v2955
  %v3410 = vpop.f32.mrb[0].mxu0
  %v3411 = vadd.f32 0.0, %v3410
  %v3412 = vpop.f32.mrb[0].mxu0
  %v3413 = vpop.f32.mrb[0].mxu0
  %v3414 = vadd.f32 0.0, %v3413
  %v3415 = vpop.f32.mrb[0].mxu0
  %3416 = vmatprep.mubr.bf16.mxu0 0
  %3417 = vmatmul.mubr.bf16.gmra.mrb[0].mxu0 %v2958
  %v3418 = vpop.f32.mrb[0].mxu0
  %v3419 = vadd.f32 0.0, %v3418
  %v3420 = vpop.f32.mrb[0].mxu0
  %v3421 = vpop.f32.mrb[0].mxu0
  %v3422 = vadd.f32 0.0, %v3421
  %v3423 = vpop.f32.mrb[0].mxu0
  %3424 = vmatprep.mubr.bf16.mxu0 0
  %3425 = vmatmul.mubr.bf16.gmra.mrb[0].mxu0 %v2961
  %v3426 = vpop.f32.mrb[0].mxu0
  %v3427 = vadd.f32 0.0, %v3426
  %v3428 = vpop.f32.mrb[0].mxu0
  %v3429 = vpop.f32.mrb[0].mxu0
  %v3430 = vadd.f32 0.0, %v3429
  %v3431 = vpop.f32.mrb[0].mxu0
  %3432 = vmatprep.mubr.bf16.mxu0 0
  %3433 = vmatmul.mubr.bf16.gmra.mrb[0].mxu0 %v2964
  %v3434 = vpop.f32.mrb[0].mxu0
  %v3435 = vadd.f32 0.0, %v3434
  %v3436 = vpop.f32.mrb[0].mxu0
  %v3437 = vpop.f32.mrb[0].mxu0
  %v3438 = vadd.f32 0.0, %v3437
  %v3439 = vpop.f32.mrb[0].mxu0
  %3440 = vmatprep.mubr.bf16.mxu0 0
  %3441 = vmatmul.mubr.bf16.gmra.mrb[0].mxu0 %v2967
  %v3442 = vpop.f32.mrb[0].mxu0
  %v3443 = vadd.f32 0.0, %v3442
  %v3444 = vpop.f32.mrb[0].mxu0
  %v3445 = vpop.f32.mrb[0].mxu0
  %v3446 = vadd.f32 0.0, %v3445
  %v3447 = vpop.f32.mrb[0].mxu0
  %3448 = vmatprep.mubr.bf16.mxu0 0
  %3449 = vmatmul.mubr.bf16.gmra.mrb[0].mxu0 %v2970
  %v3450 = vpop.f32.mrb[0].mxu0
  %v3451 = vadd.f32 0.0, %v3450
  %v3452 = vpop.f32.mrb[0].mxu0
  %v3453 = vpop.f32.mrb[0].mxu0
  %v3454 = vadd.f32 0.0, %v3453
  %v3455 = vpop.f32.mrb[0].mxu0
  %3456 = vmatprep.mubr.bf16.mxu0 0
  %3457 = vmatmul.mubr.bf16.gmra.mrb[0].mxu0 %v2973
  %v3458 = vpop.f32.mrb[0].mxu0
  %v3459 = vadd.f32 0.0, %v3458
  %v3460 = vpop.f32.mrb[0].mxu0
  %v3461 = vpop.f32.mrb[0].mxu0
  %v3462 = vadd.f32 0.0, %v3461
  %v3463 = vpop.f32.mrb[0].mxu0
  %3464 = vmatprep.mubr.bf16.mxu0 0
  %3465 = vmatmul.mubr.bf16.gmra.mrb[0].mxu0 %v2976
  %v3466 = vpop.f32.mrb[0].mxu0
  %v3467 = vadd.f32 0.0, %v3466
  %v3468 = vpop.f32.mrb[0].mxu0
  %v3469 = vpop.f32.mrb[0].mxu0
  %v3470 = vadd.f32 0.0, %v3469
  %v3471 = vpop.f32.mrb[0].mxu0
  %3472 = vmatprep.mubr.bf16.mxu0 0
  %3473 = vmatmul.mubr.bf16.gmra.mrb[0].mxu0 %v2979
  %v3474 = vpop.f32.mrb[0].mxu0
  %v3475 = vadd.f32 0.0, %v3474
  %v3476 = vpop.f32.mrb[0].mxu0
  %v3477 = vpop.f32.mrb[0].mxu0
  %v3478 = vadd.f32 0.0, %v3477
  %v3479 = vpop.f32.mrb[0].mxu0
  %3480 = vmatprep.mubr.bf16.mxu0 0
  %3481 = vmatmul.mubr.bf16.gmra.mrb[0].mxu0 %v2982
  %v3482 = vpop.f32.mrb[0].mxu0
  %v3483 = vadd.f32 0.0, %v3482
  %v3484 = vpop.f32.mrb[0].mxu0
  %v3485 = vpop.f32.mrb[0].mxu0
  %v3486 = vadd.f32 0.0, %v3485
  %v3487 = vpop.f32.mrb[0].mxu0
  %3488 = vmatprep.mubr.bf16.mxu0 0
  %3489 = vmatmul.mubr.bf16.gmra.mrb[0].mxu0 %v2985
  %v3490 = vpop.f32.mrb[0].mxu0
  %v3491 = vadd.f32 0.0, %v3490
  %v3492 = vpop.f32.mrb[0].mxu0
  %v3493 = vpop.f32.mrb[0].mxu0
  %v3494 = vadd.f32 0.0, %v3493
  %v3495 = vpop.f32.mrb[0].mxu0
  %3496 = vmatprep.mubr.bf16.mxu0 0
  %3497 = vmatmul.mubr.bf16.gmra.mrb[0].mxu0 %v2988
  %v3498 = vpop.f32.mrb[0].mxu0
  %v3499 = vadd.f32 0.0, %v3498
  %v3500 = vpop.f32.mrb[0].mxu0
  %v3501 = vpop.f32.mrb[0].mxu0
  %v3502 = vadd.f32 0.0, %v3501
  %v3503 = vpop.f32.mrb[0].mxu0
  %3504 = vmatprep.mubr.bf16.mxu0 0
  %3505 = vmatmul.mubr.bf16.gmra.mrb[0].mxu0 %v2991
  %v3506 = vpop.f32.mrb[0].mxu0
  %v3507 = vadd.f32 0.0, %v3506
  %v3508 = vpop.f32.mrb[0].mxu0
  %v3509 = vpop.f32.mrb[0].mxu0
  %v3510 = vadd.f32 0.0, %v3509
  %v3511 = vpop.f32.mrb[0].mxu0
  %3512 = vmatprep.mubr.bf16.mxu0 0
  %3513 = vmatmul.mubr.bf16.gmra.mrb[0].mxu0 %v2994
  %v3514 = vpop.f32.mrb[0].mxu0
  %v3515 = vadd.f32 0.0, %v3514
  %v3516 = vpop.f32.mrb[0].mxu0
  %v3517 = vpop.f32.mrb[0].mxu0
  %v3518 = vadd.f32 0.0, %v3517
  %v3519 = vpop.f32.mrb[0].mxu0
  %3520 = vmatprep.mubr.bf16.mxu0 0
  %3521 = vmatmul.mubr.bf16.gmra.mrb[0].mxu0 %v2997
  %v3522 = vpop.f32.mrb[0].mxu0
  %v3523 = vadd.f32 0.0, %v3522
  %v3524 = vpop.f32.mrb[0].mxu0
  %v3525 = vpop.f32.mrb[0].mxu0
  %v3526 = vadd.f32 0.0, %v3525
  %v3527 = vpop.f32.mrb[0].mxu0
  %3528 = vmatprep.mubr.bf16.mxu0 0
  %3529 = vmatmul.mubr.bf16.gmra.mrb[0].mxu0 %v3000
  %v3530 = vpop.f32.mrb[0].mxu0
  %v3531 = vadd.f32 0.0, %v3530
  %v3532 = vpop.f32.mrb[0].mxu0
  %v3533 = vpop.f32.mrb[0].mxu0
  %v3534 = vadd.f32 0.0, %v3533
  %v3535 = vpop.f32.mrb[0].mxu0
  %3536 = vmatprep.mubr.bf16.mxu0 0
  %3537 = vmatmul.mubr.bf16.gmra.mrb[0].mxu0 %v3003
  %v3538 = vpop.f32.mrb[0].mxu0
  %v3539 = vadd.f32 0.0, %v3538
  %v3540 = vpop.f32.mrb[0].mxu0
  %v3541 = vpop.f32.mrb[0].mxu0
  %v3542 = vadd.f32 0.0, %v3541
  %v3543 = vpop.f32.mrb[0].mxu0
  %3544 = vmatprep.mubr.bf16.mxu0 0
  %3545 = vmatmul.mubr.bf16.gmra.mrb[0].mxu0 %v3006
  %v3546 = vpop.f32.mrb[0].mxu0
  %v3547 = vadd.f32 0.0, %v3546
  %v3548 = vpop.f32.mrb[0].mxu0
  %v3549 = vpop.f32.mrb[0].mxu0
  %v3550 = vadd.f32 0.0, %v3549
  %v3551 = vpop.f32.mrb[0].mxu0
  %3552 = vdwg.mxu0
  %v3553 = vpack.c.bf16 %v3046, %v3043
  %v3554 = vpack.c.bf16 %v3054, %v3051
  %v3555 = vpack.c.bf16 %v3062, %v3059
  %v3556 = vpack.c.bf16 %v3070, %v3067
  %v3557 = vpack.c.bf16 %v3078, %v3075
  %v3558 = vpack.c.bf16 %v3086, %v3083
  %v3559 = vpack.c.bf16 %v3094, %v3091
  %v3560 = vpack.c.bf16 %v3102, %v3099
  %v3561 = vpack.c.bf16 %v3110, %v3107
  %v3562 = vpack.c.bf16 %v3118, %v3115
  %v3563 = vpack.c.bf16 %v3126, %v3123
  %v3564 = vpack.c.bf16 %v3134, %v3131
  %v3565 = vpack.c.bf16 %v3142, %v3139
  %v3566 = vpack.c.bf16 %v3150, %v3147
  %v3567 = vpack.c.bf16 %v3158, %v3155
  %v3568 = vpack.c.bf16 %v3166, %v3163
  %v3569 = vpack.c.bf16 %v3174, %v3171
  %v3570 = vpack.c.bf16 %v3182, %v3179
  %v3571 = vpack.c.bf16 %v3190, %v3187
  %v3572 = vpack.c.bf16 %v3198, %v3195
  %v3573 = vpack.c.bf16 %v3206, %v3203
  %v3574 = vpack.c.bf16 %v3214, %v3211
  %v3575 = vpack.c.bf16 %v3222, %v3219
  %v3576 = vpack.c.bf16 %v3230, %v3227
  %v3577 = vpack.c.bf16 %v3238, %v3235
  %v3578 = vpack.c.bf16 %v3246, %v3243
  %v3579 = vpack.c.bf16 %v3254, %v3251
  %v3580 = vpack.c.bf16 %v3262, %v3259
  %v3581 = vpack.c.bf16 %v3270, %v3267
  %v3582 = vpack.c.bf16 %v3278, %v3275
  %v3583 = vpack.c.bf16 %v3286, %v3283
  %v3584 = vpack.c.bf16 %v3294, %v3291
  %v3585 = vpack.c.bf16 %v3302, %v3299
  %v3586 = vpack.c.bf16 %v3310, %v3307
  %v3587 = vpack.c.bf16 %v3318, %v3315
  %v3588 = vpack.c.bf16 %v3326, %v3323
  %v3589 = vpack.c.bf16 %v3334, %v3331
  %v3590 = vpack.c.bf16 %v3342, %v3339
  %v3591 = vpack.c.bf16 %v3350, %v3347
  %v3592 = vpack.c.bf16 %v3358, %v3355
  %v3593 = vpack.c.bf16 %v3366, %v3363
  %v3594 = vpack.c.bf16 %v3374, %v3371
  %v3595 = vpack.c.bf16 %v3382, %v3379
  %v3596 = vpack.c.bf16 %v3390, %v3387
  %v3597 = vpack.c.bf16 %v3398, %v3395
  %v3598 = vpack.c.bf16 %v3406, %v3403
  %v3599 = vpack.c.bf16 %v3414, %v3411
  %v3600 = vpack.c.bf16 %v3422, %v3419
  %v3601 = vpack.c.bf16 %v3430, %v3427
  %v3602 = vpack.c.bf16 %v3438, %v3435
  %v3603 = vpack.c.bf16 %v3446, %v3443
  %v3604 = vpack.c.bf16 %v3454, %v3451
  %v3605 = vpack.c.bf16 %v3462, %v3459
  %v3606 = vpack.c.bf16 %v3470, %v3467
  %v3607 = vpack.c.bf16 %v3478, %v3475
  %v3608 = vpack.c.bf16 %v3486, %v3483
  %v3609 = vpack.c.bf16 %v3494, %v3491
  %v3610 = vpack.c.bf16 %v3502, %v3499
  %v3611 = vpack.c.bf16 %v3510, %v3507
  %v3612 = vpack.c.bf16 %v3518, %v3515
  %v3613 = vpack.c.bf16 %v3526, %v3523
  %v3614 = vpack.c.bf16 %v3534, %v3531
  %v3615 = vpack.c.bf16 %v3542, %v3539
  %v3616 = vpack.c.bf16 %v3550, %v3547
  %v3617 = vld [vmem:[%s33] sm:$0xf]
  %v3618 = vld [vmem:[%s33 + $0x4] sm:$0xf]
  %v3619 = vld [vmem:[%s33 + $0x8] sm:$0xf]
  %v3620 = vld [vmem:[%s33 + $0xc] sm:$0xf]
  %v3621 = vld [vmem:[%s33 + $0x10] sm:$0xf]
  %v3622 = vld [vmem:[%s33 + $0x14] sm:$0xf]
  %v3623 = vld [vmem:[%s33 + $0x18] sm:$0xf]
  %v3624 = vld [vmem:[%s33 + $0x1c] sm:$0xf]
  %v3625 = vld [vmem:[%s33 + $0x20] sm:$0xf]
  %v3626 = vld [vmem:[%s33 + $0x24] sm:$0xf]
  %v3627 = vld [vmem:[%s33 + $0x28] sm:$0xf]
  %v3628 = vld [vmem:[%s33 + $0x2c] sm:$0xf]
  %v3629 = vld [vmem:[%s33 + $0x30] sm:$0xf]
  %v3630 = vld [vmem:[%s33 + $0x34] sm:$0xf]
  %v3631 = vld [vmem:[%s33 + $0x38] sm:$0xf]
  %v3632 = vld [vmem:[%s33 + $0x3c] sm:$0xf]
  %v3633 = vld [vmem:[%s33 + $0x40] sm:$0xf]
  %v3634 = vld [vmem:[%s33 + $0x44] sm:$0xf]
  %v3635 = vld [vmem:[%s33 + $0x48] sm:$0xf]
  %v3636 = vld [vmem:[%s33 + $0x4c] sm:$0xf]
  %v3637 = vld [vmem:[%s33 + $0x50] sm:$0xf]
  %v3638 = vld [vmem:[%s33 + $0x54] sm:$0xf]
  %v3639 = vld [vmem:[%s33 + $0x58] sm:$0xf]
  %v3640 = vld [vmem:[%s33 + $0x5c] sm:$0xf]
  %v3641 = vld [vmem:[%s33 + $0x60] sm:$0xf]
  %v3642 = vld [vmem:[%s33 + $0x64] sm:$0xf]
  %v3643 = vld [vmem:[%s33 + $0x68] sm:$0xf]
  %v3644 = vld [vmem:[%s33 + $0x6c] sm:$0xf]
  %v3645 = vld [vmem:[%s33 + $0x70] sm:$0xf]
  %v3646 = vld [vmem:[%s33 + $0x74] sm:$0xf]
  %v3647 = vld [vmem:[%s33 + $0x78] sm:$0xf]
  %v3648 = vld [vmem:[%s33 + $0x7c] sm:$0xf]
  %v3649 = vld [vmem:[%s33 + $0x80] sm:$0xf]
  %v3650 = vld [vmem:[%s33 + $0x84] sm:$0xf]
  %v3651 = vld [vmem:[%s33 + $0x88] sm:$0xf]
  %v3652 = vld [vmem:[%s33 + $0x8c] sm:$0xf]
  %v3653 = vld [vmem:[%s33 + $0x90] sm:$0xf]
  %v3654 = vld [vmem:[%s33 + $0x94] sm:$0xf]
  %v3655 = vld [vmem:[%s33 + $0x98] sm:$0xf]
  %v3656 = vld [vmem:[%s33 + $0x9c] sm:$0xf]
  %v3657 = vld [vmem:[%s33 + $0xa0] sm:$0xf]
  %v3658 = vld [vmem:[%s33 + $0xa4] sm:$0xf]
  %v3659 = vld [vmem:[%s33 + $0xa8] sm:$0xf]
  %v3660 = vld [vmem:[%s33 + $0xac] sm:$0xf]
  %v3661 = vld [vmem:[%s33 + $0xb0] sm:$0xf]
  %v3662 = vld [vmem:[%s33 + $0xb4] sm:$0xf]
  %v3663 = vld [vmem:[%s33 + $0xb8] sm:$0xf]
  %v3664 = vld [vmem:[%s33 + $0xbc] sm:$0xf]
  %v3665 = vld [vmem:[%s33 + $0xc0] sm:$0xf]
  %v3666 = vld [vmem:[%s33 + $0xc4] sm:$0xf]
  %v3667 = vld [vmem:[%s33 + $0xc8] sm:$0xf]
  %v3668 = vld [vmem:[%s33 + $0xcc] sm:$0xf]
  %v3669 = vld [vmem:[%s33 + $0xd0] sm:$0xf]
  %v3670 = vld [vmem:[%s33 + $0xd4] sm:$0xf]
  %v3671 = vld [vmem:[%s33 + $0xd8] sm:$0xf]
  %v3672 = vld [vmem:[%s33 + $0xdc] sm:$0xf]
  %v3673 = vld [vmem:[%s33 + $0xe0] sm:$0xf]
  %v3674 = vld [vmem:[%s33 + $0xe4] sm:$0xf]
  %v3675 = vld [vmem:[%s33 + $0xe8] sm:$0xf]
  %v3676 = vld [vmem:[%s33 + $0xec] sm:$0xf]
  %v3677 = vld [vmem:[%s33 + $0xf0] sm:$0xf]
  %v3678 = vld [vmem:[%s33 + $0xf4] sm:$0xf]
  %v3679 = vld [vmem:[%s33 + $0xf8] sm:$0xf]
  %v3680 = vld [vmem:[%s33 + $0xfc] sm:$0xf]
  %v3681 = vld [vmem:[%s33 + $0x100] sm:$0xf]
  %v3682 = vld [vmem:[%s33 + $0x104] sm:$0xf]
  %v3683 = vld [vmem:[%s33 + $0x108] sm:$0xf]
  %v3684 = vld [vmem:[%s33 + $0x10c] sm:$0xf]
  %v3685 = vld [vmem:[%s33 + $0x110] sm:$0xf]
  %v3686 = vld [vmem:[%s33 + $0x114] sm:$0xf]
  %v3687 = vld [vmem:[%s33 + $0x118] sm:$0xf]
  %v3688 = vld [vmem:[%s33 + $0x11c] sm:$0xf]
  %v3689 = vld [vmem:[%s33 + $0x120] sm:$0xf]
  %v3690 = vld [vmem:[%s33 + $0x124] sm:$0xf]
  %v3691 = vld [vmem:[%s33 + $0x128] sm:$0xf]
  %v3692 = vld [vmem:[%s33 + $0x12c] sm:$0xf]
  %v3693 = vld [vmem:[%s33 + $0x130] sm:$0xf]
  %v3694 = vld [vmem:[%s33 + $0x134] sm:$0xf]
  %v3695 = vld [vmem:[%s33 + $0x138] sm:$0xf]
  %v3696 = vld [vmem:[%s33 + $0x13c] sm:$0xf]
  %v3697 = vld [vmem:[%s33 + $0x140] sm:$0xf]
  %v3698 = vld [vmem:[%s33 + $0x144] sm:$0xf]
  %v3699 = vld [vmem:[%s33 + $0x148] sm:$0xf]
  %v3700 = vld [vmem:[%s33 + $0x14c] sm:$0xf]
  %v3701 = vld [vmem:[%s33 + $0x150] sm:$0xf]
  %v3702 = vld [vmem:[%s33 + $0x154] sm:$0xf]
  %v3703 = vld [vmem:[%s33 + $0x158] sm:$0xf]
  %v3704 = vld [vmem:[%s33 + $0x15c] sm:$0xf]
  %v3705 = vld [vmem:[%s33 + $0x160] sm:$0xf]
  %v3706 = vld [vmem:[%s33 + $0x164] sm:$0xf]
  %v3707 = vld [vmem:[%s33 + $0x168] sm:$0xf]
  %v3708 = vld [vmem:[%s33 + $0x16c] sm:$0xf]
  %v3709 = vld [vmem:[%s33 + $0x170] sm:$0xf]
  %v3710 = vld [vmem:[%s33 + $0x174] sm:$0xf]
  %v3711 = vld [vmem:[%s33 + $0x178] sm:$0xf]
  %v3712 = vld [vmem:[%s33 + $0x17c] sm:$0xf]
  %v3713 = vld [vmem:[%s33 + $0x180] sm:$0xf]
  %v3714 = vld [vmem:[%s33 + $0x184] sm:$0xf]
  %v3715 = vld [vmem:[%s33 + $0x188] sm:$0xf]
  %v3716 = vld [vmem:[%s33 + $0x18c] sm:$0xf]
  %v3717 = vld [vmem:[%s33 + $0x190] sm:$0xf]
  %v3718 = vld [vmem:[%s33 + $0x194] sm:$0xf]
  %v3719 = vld [vmem:[%s33 + $0x198] sm:$0xf]
  %v3720 = vld [vmem:[%s33 + $0x19c] sm:$0xf]
  %v3721 = vld [vmem:[%s33 + $0x1a0] sm:$0xf]
  %v3722 = vld [vmem:[%s33 + $0x1a4] sm:$0xf]
  %v3723 = vld [vmem:[%s33 + $0x1a8] sm:$0xf]
  %v3724 = vld [vmem:[%s33 + $0x1ac] sm:$0xf]
  %v3725 = vld [vmem:[%s33 + $0x1b0] sm:$0xf]
  %v3726 = vld [vmem:[%s33 + $0x1b4] sm:$0xf]
  %v3727 = vld [vmem:[%s33 + $0x1b8] sm:$0xf]
  %v3728 = vld [vmem:[%s33 + $0x1bc] sm:$0xf]
  %v3729 = vld [vmem:[%s33 + $0x1c0] sm:$0xf]
  %v3730 = vld [vmem:[%s33 + $0x1c4] sm:$0xf]
  %v3731 = vld [vmem:[%s33 + $0x1c8] sm:$0xf]
  %v3732 = vld [vmem:[%s33 + $0x1cc] sm:$0xf]
  %v3733 = vld [vmem:[%s33 + $0x1d0] sm:$0xf]
  %v3734 = vld [vmem:[%s33 + $0x1d4] sm:$0xf]
  %v3735 = vld [vmem:[%s33 + $0x1d8] sm:$0xf]
  %v3736 = vld [vmem:[%s33 + $0x1dc] sm:$0xf]
  %v3737 = vld [vmem:[%s33 + $0x1e0] sm:$0xf]
  %v3738 = vld [vmem:[%s33 + $0x1e4] sm:$0xf]
  %v3739 = vld [vmem:[%s33 + $0x1e8] sm:$0xf]
  %v3740 = vld [vmem:[%s33 + $0x1ec] sm:$0xf]
  %v3741 = vld [vmem:[%s33 + $0x1f0] sm:$0xf]
  %v3742 = vld [vmem:[%s33 + $0x1f4] sm:$0xf]
  %v3743 = vld [vmem:[%s33 + $0x1f8] sm:$0xf]
  %v3744 = vld [vmem:[%s33 + $0x1fc] sm:$0xf]
  %v3745 = vld [vmem:[%s35] sm:$0x1]
  %v3747 = vlaneseq
  %v3748 = vshrl.u32 %v3747, 7
  %v3749 = vsub.s32 0, %v3748
  %v3750 = vrot.slane %v3745, %v3749
  %3752 = vmatprep.subr.bf16.mxu0 0
  %3753 = vmatpush1.bf16.msra.mxu0 %v3553
  %3754 = vmatprep.subr.bf16.mxu0 0
  %3755 = vmatpush1.bf16.msra.mxu0 %v3554
  %3756 = vmatprep.subr.bf16.mxu0 0
  %3757 = vmatpush1.bf16.msra.mxu0 %v3555
  %3758 = vmatprep.subr.bf16.mxu0 0
  %3759 = vmatpush1.bf16.msra.mxu0 %v3556
  %3760 = vmatprep.subr.bf16.mxu0 0
  %3761 = vmatpush1.bf16.msra.mxu0 %v3557
  %3762 = vmatprep.subr.bf16.mxu0 0
  %3763 = vmatpush1.bf16.msra.mxu0 %v3558
  %3764 = vmatprep.subr.bf16.mxu0 0
  %3765 = vmatpush1.bf16.msra.mxu0 %v3559
  %3766 = vmatprep.subr.bf16.mxu0 0
  %3767 = vmatpush1.bf16.msra.mxu0 %v3560
  %3768 = vmatprep.subr.bf16.mxu0 0
  %3769 = vmatpush1.bf16.msra.mxu0 0
  %3770 = vmatprep.subr.bf16.mxu0 0
  %3771 = vmatpush1.bf16.msra.mxu0 0
  %3772 = vmatprep.subr.bf16.mxu0 0
  %3773 = vmatpush1.bf16.msra.mxu0 0
  %3774 = vmatprep.subr.bf16.mxu0 0
  %3775 = vmatpush1.bf16.msra.mxu0 0
  %3776 = vmatprep.subr.bf16.mxu0 0
  %3777 = vmatpush1.bf16.msra.mxu0 0
  %3778 = vmatprep.subr.bf16.mxu0 0
  %3779 = vmatpush1.bf16.msra.mxu0 0
  %3780 = vmatprep.subr.bf16.mxu0 0
  %3781 = vmatpush1.bf16.msra.mxu0 0
  %3782 = vmatprep.subr.bf16.mxu0 0
  %3783 = vmatpush1.bf16.msra.mxu0 0
  %3784 = vmatprep.mubr.bf16.mxu0 0
  %3785 = vmatmul.mubr.bf16.gmra.mrb[0].mxu0 %v1940
  %v3786 = vpop.f32.mrb[0].mxu0
  %v3787 = vadd.f32 0.0, %v3786
  %v3788 = vpop.f32.mrb[0].mxu0
  %v3789 = vpop.f32.mrb[0].mxu0
  %v3790 = vadd.f32 0.0, %v3789
  %v3791 = vpop.f32.mrb[0].mxu0
  %3792 = vmatprep.mubr.bf16.mxu0 0
  %3793 = vmatmul.mubr.bf16.gmra.mrb[0].mxu0 %v1948
  %v3794 = vpop.f32.mrb[0].mxu0
  %v3795 = vadd.f32 0.0, %v3794
  %v3796 = vpop.f32.mrb[0].mxu0
  %v3797 = vpop.f32.mrb[0].mxu0
  %v3798 = vpop.f32.mrb[0].mxu0
  %3799 = vdwg.mxu0
  %v3800 = vmul.f32 %v3787, 0.125
  %v3801 = vmul.f32 %v3790, 0.125
  %v3802 = vmul.f32 %v3795, 0.125
  %v3803 = vmul.f32 %v3800, 1.442695
  %v3804 = vpow.pop %v3803
  %v3805 = vmul.f32 %v3801, 1.442695
  %v3806 = vpow.pop %v3805
  %v3807 = vmul.f32 %v3802, 1.442695
  %v3808 = vpow.pop %v3807
  %vm3809 = vcmask 138240
  %v3810 = vsel %vm3809, %v3804, 0.0
  %3811 = vadd.xlane.f32.xlu0 %v3810
  %v3812 = vpop.xlane.xlu0 %3811
  %v3813 = vsel %vm3809, %v3806, 0.0
  %3814 = vadd.xlane.f32.xlu0 %v3813
  %v3815 = vpop.xlane.xlu0 %3814
  %vm3816 = vcmask 131072
  %v3817 = vsel %vm3816, %v3808, 0.0
  %3818 = vadd.xlane.f32.xlu0 %v3817
  %v3819 = vpop.xlane.xlu0 %3818
  %v3820 = vrcp.pop %v3812
  %v3821 = vmul.f32 %v3804, %v3820
  %v3822 = vrcp.pop %v3815
  %v3823 = vmul.f32 %v3806, %v3822
  %v3824 = vrcp.pop %v3819
  %v3825 = vmul.f32 %v3808, %v3824
  %v3826 = vpack.c.bf16 %v3823, %v3821
  %v3827 = vpack.c.bf16 %v3825, %v3825
  %v3829 = vsel %vm3809, %v3826, 0
  %v3832 = vsel %vm3809, %v3827, 0
  %vm3834 = vcmask 1040384
  %v3835 = vsel 0, 4294967295, 65535
  %v3836 = vsel %vm3834, %v3835, 0
  %v3838 = vand.u32 %v2360, %v3836
  %3840 = vmatprep.subr.bf16.mxu0 0
  %3841 = vmatpush1.bf16.msra.mxu0 %v2352
  %3842 = vmatprep.subr.bf16.mxu0 0
  %3843 = vmatpush1.bf16.msra.mxu0 %v3838
  %3844 = vmatprep.subr.bf16.mxu0 0
  %3845 = vmatpush1.bf16.msra.mxu0 0
  %3846 = vmatprep.subr.bf16.mxu0 0
  %3847 = vmatpush1.bf16.msra.mxu0 0
  %3848 = vmatprep.subr.bf16.mxu0 0
  %3849 = vmatpush1.bf16.msra.mxu0 0
  %3850 = vmatprep.subr.bf16.mxu0 0
  %3851 = vmatpush1.bf16.msra.mxu0 0
  %3852 = vmatprep.subr.bf16.mxu0 0
  %3853 = vmatpush1.bf16.msra.mxu0 0
  %3854 = vmatprep.subr.bf16.mxu0 0
  %3855 = vmatpush1.bf16.msra.mxu0 0
  %3856 = vmatprep.subr.bf16.mxu0 0
  %3857 = vmatpush1.bf16.msra.mxu0 0
  %3858 = vmatprep.subr.bf16.mxu0 0
  %3859 = vmatpush1.bf16.msra.mxu0 0
  %3860 = vmatprep.subr.bf16.mxu0 0
  %3861 = vmatpush1.bf16.msra.mxu0 0
  %3862 = vmatprep.subr.bf16.mxu0 0
  %3863 = vmatpush1.bf16.msra.mxu0 0
  %3864 = vmatprep.subr.bf16.mxu0 0
  %3865 = vmatpush1.bf16.msra.mxu0 0
  %3866 = vmatprep.subr.bf16.mxu0 0
  %3867 = vmatpush1.bf16.msra.mxu0 0
  %3868 = vmatprep.subr.bf16.mxu0 0
  %3869 = vmatpush1.bf16.msra.mxu0 0
  %3870 = vmatprep.subr.bf16.mxu0 0
  %3871 = vmatpush1.bf16.msra.mxu0 0
  %3872 = vmatprep.mubr.bf16.mxu0 0
  %3873 = vmatmul.mubr.bf16.gmra.mrb[0].mxu0 %v3829
  %v3874 = vpop.f32.mrb[0].mxu0
  %v3875 = vadd.f32 0.0, %v3874
  %v3876 = vpop.f32.mrb[0].mxu0
  %v3877 = vpop.f32.mrb[0].mxu0
  %v3878 = vadd.f32 0.0, %v3877
  %v3879 = vpop.f32.mrb[0].mxu0
  %3880 = vmatprep.mubr.bf16.mxu0 0
  %3881 = vmatmul.mubr.bf16.gmra.mrb[0].mxu0 %v3832
  %v3882 = vpop.f32.mrb[0].mxu0
  %v3883 = vadd.f32 0.0, %v3882
  %v3884 = vpop.f32.mrb[0].mxu0
  %v3885 = vpop.f32.mrb[0].mxu0
  %v3886 = vpop.f32.mrb[0].mxu0
  %3887 = vdwg.mxu0
  %v3888 = vpack.c.bf16 %v3878, %v3875
  %v3889 = vpack.c.bf16 %v3883, %v3883
  %v3906 = vunpack.c.l.b16 %v3617
  %v3907 = vunpack.c.l.b16 %v3618
  %v3908 = vunpack.c.l.b16 %v3619
  %v3909 = vunpack.c.l.b16 %v3620
  %v3910 = vunpack.c.l.b16 %v3621
  %v3911 = vunpack.c.l.b16 %v3622
  %v3912 = vunpack.c.l.b16 %v3623
  %v3913 = vunpack.c.l.b16 %v3624
  %v3914 = vunpack.c.l.b16 %v3625
  %v3915 = vunpack.c.l.b16 %v3626
  %v3916 = vunpack.c.l.b16 %v3627
  %v3917 = vunpack.c.l.b16 %v3628
  %v3918 = vunpack.c.l.b16 %v3629
  %v3919 = vunpack.c.l.b16 %v3630
  %v3920 = vunpack.c.l.b16 %v3631
  %v3921 = vunpack.c.l.b16 %v3632
  %v3922 = vpack.c.b16 %v3907, %v3906
  %v3923 = vpack.c.b16 %v3909, %v3908
  %v3924 = vpack.c.b16 %v3911, %v3910
  %v3925 = vpack.c.b16 %v3913, %v3912
  %v3926 = vpack.c.b16 %v3915, %v3914
  %v3927 = vpack.c.b16 %v3917, %v3916
  %v3928 = vpack.c.b16 %v3919, %v3918
  %v3929 = vpack.c.b16 %v3921, %v3920
  %3938 = vmatprep.subr.bf16.mxu0 0
  %3939 = vmatpush1.bf16.msra.mxu0 %v3922
  %3940 = vmatprep.subr.bf16.mxu0 0
  %3941 = vmatpush1.bf16.msra.mxu0 %v3923
  %3942 = vmatprep.subr.bf16.mxu0 0
  %3943 = vmatpush1.bf16.msra.mxu0 %v3924
  %3944 = vmatprep.subr.bf16.mxu0 0
  %3945 = vmatpush1.bf16.msra.mxu0 %v3925
  %3946 = vmatprep.subr.bf16.mxu0 0
  %3947 = vmatpush1.bf16.msra.mxu0 %v3926
  %3948 = vmatprep.subr.bf16.mxu0 0
  %3949 = vmatpush1.bf16.msra.mxu0 %v3927
  %3950 = vmatprep.subr.bf16.mxu0 0
  %3951 = vmatpush1.bf16.msra.mxu0 %v3928
  %3952 = vmatprep.subr.bf16.mxu0 0
  %3953 = vmatpush1.bf16.msra.mxu0 %v3929
  %3954 = vmatprep.subr.bf16.mxu0 0
  %3955 = vmatpush1.bf16.msra.mxu0 0
  %3956 = vmatprep.subr.bf16.mxu0 0
  %3957 = vmatpush1.bf16.msra.mxu0 0
  %3958 = vmatprep.subr.bf16.mxu0 0
  %3959 = vmatpush1.bf16.msra.mxu0 0
  %3960 = vmatprep.subr.bf16.mxu0 0
  %3961 = vmatpush1.bf16.msra.mxu0 0
  %3962 = vmatprep.subr.bf16.mxu0 0
  %3963 = vmatpush1.bf16.msra.mxu0 0
  %3964 = vmatprep.subr.bf16.mxu0 0
  %3965 = vmatpush1.bf16.msra.mxu0 0
  %3966 = vmatprep.subr.bf16.mxu0 0
  %3967 = vmatpush1.bf16.msra.mxu0 0
  %3968 = vmatprep.subr.bf16.mxu0 0
  %3969 = vmatpush1.bf16.msra.mxu0 0
  %3970 = vmatprep.mubr.bf16.mxu0 0
  %3971 = vmatmul.mubr.bf16.gmra.mrb[0].mxu0 %v3888
  %v3972 = vpop.f32.mrb[0].mxu0
  %v3973 = vadd.f32 0.0, %v3972
  %v3974 = vpop.f32.mrb[0].mxu0
  %v3975 = vpop.f32.mrb[0].mxu0
  %v3976 = vadd.f32 0.0, %v3975
  %v3977 = vpop.f32.mrb[0].mxu0
  %3978 = vmatprep.mubr.bf16.mxu0 0
  %3979 = vmatmul.mubr.bf16.gmra.mrb[0].mxu0 %v3889
  %v3980 = vpop.f32.mrb[0].mxu0
  %v3981 = vadd.f32 0.0, %v3980
  %v3982 = vpop.f32.mrb[0].mxu0
  %v3983 = vpop.f32.mrb[0].mxu0
  %v3984 = vpop.f32.mrb[0].mxu0
  %3985 = vdwg.mxu0
  %v3986 = vadd.f32 %v3750, %v3973
  %v3987 = vadd.f32 %v3750, %v3976
  %v3988 = vadd.f32 %v3750, %v3981
  %3989 = vmatprep.subr.bf16.mxu0 0
  %3990 = vmatpush1.bf16.msra.mxu0 %v3561
  %3991 = vmatprep.subr.bf16.mxu0 0
  %3992 = vmatpush1.bf16.msra.mxu0 %v3562
  %3993 = vmatprep.subr.bf16.mxu0 0
  %3994 = vmatpush1.bf16.msra.mxu0 %v3563
  %3995 = vmatprep.subr.bf16.mxu0 0
  %3996 = vmatpush1.bf16.msra.mxu0 %v3564
  %3997 = vmatprep.subr.bf16.mxu0 0
  %3998 = vmatpush1.bf16.msra.mxu0 %v3565
  %3999 = vmatprep.subr.bf16.mxu0 0
  %4000 = vmatpush1.bf16.msra.mxu0 %v3566
  %4001 = vmatprep.subr.bf16.mxu0 0
  %4002 = vmatpush1.bf16.msra.mxu0 %v3567
  %4003 = vmatprep.subr.bf16.mxu0 0
  %4004 = vmatpush1.bf16.msra.mxu0 %v3568
  %4005 = vmatprep.subr.bf16.mxu0 0
  %4006 = vmatpush1.bf16.msra.mxu0 0
  %4007 = vmatprep.subr.bf16.mxu0 0
  %4008 = vmatpush1.bf16.msra.mxu0 0
  %4009 = vmatprep.subr.bf16.mxu0 0
  %4010 = vmatpush1.bf16.msra.mxu0 0
  %4011 = vmatprep.subr.bf16.mxu0 0
  %4012 = vmatpush1.bf16.msra.mxu0 0
  %4013 = vmatprep.subr.bf16.mxu0 0
  %4014 = vmatpush1.bf16.msra.mxu0 0
  %4015 = vmatprep.subr.bf16.mxu0 0
  %4016 = vmatpush1.bf16.msra.mxu0 0
  %4017 = vmatprep.subr.bf16.mxu0 0
  %4018 = vmatpush1.bf16.msra.mxu0 0
  %4019 = vmatprep.subr.bf16.mxu0 0
  %4020 = vmatpush1.bf16.msra.mxu0 0
  %4021 = vmatprep.mubr.bf16.mxu0 0
  %4022 = vmatmul.mubr.bf16.gmra.mrb[0].mxu0 %v1941
  %v4023 = vpop.f32.mrb[0].mxu0
  %v4024 = vadd.f32 0.0, %v4023
  %v4025 = vpop.f32.mrb[0].mxu0
  %v4026 = vpop.f32.mrb[0].mxu0
  %v4027 = vadd.f32 0.0, %v4026
  %v4028 = vpop.f32.mrb[0].mxu0
  %4029 = vmatprep.mubr.bf16.mxu0 0
  %4030 = vmatmul.mubr.bf16.gmra.mrb[0].mxu0 %v1949
  %v4031 = vpop.f32.mrb[0].mxu0
  %v4032 = vadd.f32 0.0, %v4031
  %v4033 = vpop.f32.mrb[0].mxu0
  %v4034 = vpop.f32.mrb[0].mxu0
  %v4035 = vpop.f32.mrb[0].mxu0
  %4036 = vdwg.mxu0
  %v4037 = vmul.f32 %v4024, 0.125
  %v4038 = vmul.f32 %v4027, 0.125
  %v4039 = vmul.f32 %v4032, 0.125
  %v4040 = vmul.f32 %v4037, 1.442695
  %v4041 = vpow.pop %v4040
  %v4042 = vmul.f32 %v4038, 1.442695
  %v4043 = vpow.pop %v4042
  %v4044 = vmul.f32 %v4039, 1.442695
  %v4045 = vpow.pop %v4044
  %v4046 = vsel %vm3809, %v4041, 0.0
  %4047 = vadd.xlane.f32.xlu0 %v4046
  %v4048 = vpop.xlane.xlu0 %4047
  %v4049 = vsel %vm3809, %v4043, 0.0
  %4050 = vadd.xlane.f32.xlu0 %v4049
  %v4051 = vpop.xlane.xlu0 %4050
  %v4052 = vsel %vm3816, %v4045, 0.0
  %4053 = vadd.xlane.f32.xlu0 %v4052
  %v4054 = vpop.xlane.xlu0 %4053
  %v4055 = vrcp.pop %v4048
  %v4056 = vmul.f32 %v4041, %v4055
  %v4057 = vrcp.pop %v4051
  %v4058 = vmul.f32 %v4043, %v4057
  %v4059 = vrcp.pop %v4054
  %v4060 = vmul.f32 %v4045, %v4059
  %v4061 = vpack.c.bf16 %v4058, %v4056
  %v4062 = vpack.c.bf16 %v4060, %v4060
  %v4064 = vsel %vm3809, %v4061, 0
  %v4067 = vsel %vm3809, %v4062, 0
  %v4070 = vand.u32 %v2361, %v3836
  %4072 = vmatprep.subr.bf16.mxu0 0
  %4073 = vmatpush1.bf16.msra.mxu0 %v2353
  %4074 = vmatprep.subr.bf16.mxu0 0
  %4075 = vmatpush1.bf16.msra.mxu0 %v4070
  %4076 = vmatprep.subr.bf16.mxu0 0
  %4077 = vmatpush1.bf16.msra.mxu0 0
  %4078 = vmatprep.subr.bf16.mxu0 0
  %4079 = vmatpush1.bf16.msra.mxu0 0
  %4080 = vmatprep.subr.bf16.mxu0 0
  %4081 = vmatpush1.bf16.msra.mxu0 0
  %4082 = vmatprep.subr.bf16.mxu0 0
  %4083 = vmatpush1.bf16.msra.mxu0 0
  %4084 = vmatprep.subr.bf16.mxu0 0
  %4085 = vmatpush1.bf16.msra.mxu0 0
  %4086 = vmatprep.subr.bf16.mxu0 0
  %4087 = vmatpush1.bf16.msra.mxu0 0
  %4088 = vmatprep.subr.bf16.mxu0 0
  %4089 = vmatpush1.bf16.msra.mxu0 0
  %4090 = vmatprep.subr.bf16.mxu0 0
  %4091 = vmatpush1.bf16.msra.mxu0 0
  %4092 = vmatprep.subr.bf16.mxu0 0
  %4093 = vmatpush1.bf16.msra.mxu0 0
  %4094 = vmatprep.subr.bf16.mxu0 0
  %4095 = vmatpush1.bf16.msra.mxu0 0
  %4096 = vmatprep.subr.bf16.mxu0 0
  %4097 = vmatpush1.bf16.msra.mxu0 0
  %4098 = vmatprep.subr.bf16.mxu0 0
  %4099 = vmatpush1.bf16.msra.mxu0 0
  %4100 = vmatprep.subr.bf16.mxu0 0
  %4101 = vmatpush1.bf16.msra.mxu0 0
  %4102 = vmatprep.subr.bf16.mxu0 0
  %4103 = vmatpush1.bf16.msra.mxu0 0
  %4104 = vmatprep.mubr.bf16.mxu0 0
  %4105 = vmatmul.mubr.bf16.gmra.mrb[0].mxu0 %v4064
  %v4106 = vpop.f32.mrb[0].mxu0
  %v4107 = vadd.f32 0.0, %v4106
  %v4108 = vpop.f32.mrb[0].mxu0
  %v4109 = vpop.f32.mrb[0].mxu0
  %v4110 = vadd.f32 0.0, %v4109
  %v4111 = vpop.f32.mrb[0].mxu0
  %4112 = vmatprep.mubr.bf16.mxu0 0
  %4113 = vmatmul.mubr.bf16.gmra.mrb[0].mxu0 %v4067
  %v4114 = vpop.f32.mrb[0].mxu0
  %v4115 = vadd.f32 0.0, %v4114
  %v4116 = vpop.f32.mrb[0].mxu0
  %v4117 = vpop.f32.mrb[0].mxu0
  %v4118 = vpop.f32.mrb[0].mxu0
  %4119 = vdwg.mxu0
  %v4120 = vpack.c.bf16 %v4110, %v4107
  %v4121 = vpack.c.bf16 %v4115, %v4115
  %v4138 = vunpack.c.l.b16 %v3633
  %v4139 = vunpack.c.l.b16 %v3634
  %v4140 = vunpack.c.l.b16 %v3635
  %v4141 = vunpack.c.l.b16 %v3636
  %v4142 = vunpack.c.l.b16 %v3637
  %v4143 = vunpack.c.l.b16 %v3638
  %v4144 = vunpack.c.l.b16 %v3639
  %v4145 = vunpack.c.l.b16 %v3640
  %v4146 = vunpack.c.l.b16 %v3641
  %v4147 = vunpack.c.l.b16 %v3642
  %v4148 = vunpack.c.l.b16 %v3643
  %v4149 = vunpack.c.l.b16 %v3644
  %v4150 = vunpack.c.l.b16 %v3645
  %v4151 = vunpack.c.l.b16 %v3646
  %v4152 = vunpack.c.l.b16 %v3647
  %v4153 = vunpack.c.l.b16 %v3648
  %v4154 = vpack.c.b16 %v4139, %v4138
  %v4155 = vpack.c.b16 %v4141, %v4140
  %v4156 = vpack.c.b16 %v4143, %v4142
  %v4157 = vpack.c.b16 %v4145, %v4144
  %v4158 = vpack.c.b16 %v4147, %v4146
  %v4159 = vpack.c.b16 %v4149, %v4148
  %v4160 = vpack.c.b16 %v4151, %v4150
  %v4161 = vpack.c.b16 %v4153, %v4152
  %4170 = vmatprep.subr.bf16.mxu0 0
  %4171 = vmatpush1.bf16.msra.mxu0 %v4154
  %4172 = vmatprep.subr.bf16.mxu0 0
  %4173 = vmatpush1.bf16.msra.mxu0 %v4155
  %4174 = vmatprep.subr.bf16.mxu0 0
  %4175 = vmatpush1.bf16.msra.mxu0 %v4156
  %4176 = vmatprep.subr.bf16.mxu0 0
  %4177 = vmatpush1.bf16.msra.mxu0 %v4157
  %4178 = vmatprep.subr.bf16.mxu0 0
  %4179 = vmatpush1.bf16.msra.mxu0 %v4158
  %4180 = vmatprep.subr.bf16.mxu0 0
  %4181 = vmatpush1.bf16.msra.mxu0 %v4159
  %4182 = vmatprep.subr.bf16.mxu0 0
  %4183 = vmatpush1.bf16.msra.mxu0 %v4160
  %4184 = vmatprep.subr.bf16.mxu0 0
  %4185 = vmatpush1.bf16.msra.mxu0 %v4161
  %4186 = vmatprep.subr.bf16.mxu0 0
  %4187 = vmatpush1.bf16.msra.mxu0 0
  %4188 = vmatprep.subr.bf16.mxu0 0
  %4189 = vmatpush1.bf16.msra.mxu0 0
  %4190 = vmatprep.subr.bf16.mxu0 0
  %4191 = vmatpush1.bf16.msra.mxu0 0
  %4192 = vmatprep.subr.bf16.mxu0 0
  %4193 = vmatpush1.bf16.msra.mxu0 0
  %4194 = vmatprep.subr.bf16.mxu0 0
  %4195 = vmatpush1.bf16.msra.mxu0 0
  %4196 = vmatprep.subr.bf16.mxu0 0
  %4197 = vmatpush1.bf16.msra.mxu0 0
  %4198 = vmatprep.subr.bf16.mxu0 0
  %4199 = vmatpush1.bf16.msra.mxu0 0
  %4200 = vmatprep.subr.bf16.mxu0 0
  %4201 = vmatpush1.bf16.msra.mxu0 0
  %4202 = vmatprep.mubr.bf16.mxu0 0
  %4203 = vmatmul.mubr.bf16.gmra.mrb[0].mxu0 %v4120
  %v4204 = vpop.f32.mrb[0].mxu0
  %v4205 = vadd.f32 0.0, %v4204
  %v4206 = vpop.f32.mrb[0].mxu0
  %v4207 = vpop.f32.mrb[0].mxu0
  %v4208 = vadd.f32 0.0, %v4207
  %v4209 = vpop.f32.mrb[0].mxu0
  %4210 = vmatprep.mubr.bf16.mxu0 0
  %4211 = vmatmul.mubr.bf16.gmra.mrb[0].mxu0 %v4121
  %v4212 = vpop.f32.mrb[0].mxu0
  %v4213 = vadd.f32 0.0, %v4212
  %v4214 = vpop.f32.mrb[0].mxu0
  %v4215 = vpop.f32.mrb[0].mxu0
  %v4216 = vpop.f32.mrb[0].mxu0
  %4217 = vdwg.mxu0
  %v4218 = vadd.f32 %v3986, %v4205
  %v4219 = vadd.f32 %v3987, %v4208
  %v4220 = vadd.f32 %v3988, %v4213
  %4221 = vmatprep.subr.bf16.mxu0 0
  %4222 = vmatpush1.bf16.msra.mxu0 %v3569
  %4223 = vmatprep.subr.bf16.mxu0 0
  %4224 = vmatpush1.bf16.msra.mxu0 %v3570
  %4225 = vmatprep.subr.bf16.mxu0 0
  %4226 = vmatpush1.bf16.msra.mxu0 %v3571
  %4227 = vmatprep.subr.bf16.mxu0 0
  %4228 = vmatpush1.bf16.msra.mxu0 %v3572
  %4229 = vmatprep.subr.bf16.mxu0 0
  %4230 = vmatpush1.bf16.msra.mxu0 %v3573
  %4231 = vmatprep.subr.bf16.mxu0 0
  %4232 = vmatpush1.bf16.msra.mxu0 %v3574
  %4233 = vmatprep.subr.bf16.mxu0 0
  %4234 = vmatpush1.bf16.msra.mxu0 %v3575
  %4235 = vmatprep.subr.bf16.mxu0 0
  %4236 = vmatpush1.bf16.msra.mxu0 %v3576
  %4237 = vmatprep.subr.bf16.mxu0 0
  %4238 = vmatpush1.bf16.msra.mxu0 0
  %4239 = vmatprep.subr.bf16.mxu0 0
  %4240 = vmatpush1.bf16.msra.mxu0 0
  %4241 = vmatprep.subr.bf16.mxu0 0
  %4242 = vmatpush1.bf16.msra.mxu0 0
  %4243 = vmatprep.subr.bf16.mxu0 0
  %4244 = vmatpush1.bf16.msra.mxu0 0
  %4245 = vmatprep.subr.bf16.mxu0 0
  %4246 = vmatpush1.bf16.msra.mxu0 0
  %4247 = vmatprep.subr.bf16.mxu0 0
  %4248 = vmatpush1.bf16.msra.mxu0 0
  %4249 = vmatprep.subr.bf16.mxu0 0
  %4250 = vmatpush1.bf16.msra.mxu0 0
  %4251 = vmatprep.subr.bf16.mxu0 0
  %4252 = vmatpush1.bf16.msra.mxu0 0
  %4253 = vmatprep.mubr.bf16.mxu0 0
  %4254 = vmatmul.mubr.bf16.gmra.mrb[0].mxu0 %v1942
  %v4255 = vpop.f32.mrb[0].mxu0
  %v4256 = vadd.f32 0.0, %v4255
  %v4257 = vpop.f32.mrb[0].mxu0
  %v4258 = vpop.f32.mrb[0].mxu0
  %v4259 = vadd.f32 0.0, %v4258
  %v4260 = vpop.f32.mrb[0].mxu0
  %4261 = vmatprep.mubr.bf16.mxu0 0
  %4262 = vmatmul.mubr.bf16.gmra.mrb[0].mxu0 %v1950
  %v4263 = vpop.f32.mrb[0].mxu0
  %v4264 = vadd.f32 0.0, %v4263
  %v4265 = vpop.f32.mrb[0].mxu0
  %v4266 = vpop.f32.mrb[0].mxu0
  %v4267 = vpop.f32.mrb[0].mxu0
  %4268 = vdwg.mxu0
  %v4269 = vmul.f32 %v4256, 0.125
  %v4270 = vmul.f32 %v4259, 0.125
  %v4271 = vmul.f32 %v4264, 0.125
  %v4272 = vmul.f32 %v4269, 1.442695
  %v4273 = vpow.pop %v4272
  %v4274 = vmul.f32 %v4270, 1.442695
  %v4275 = vpow.pop %v4274
  %v4276 = vmul.f32 %v4271, 1.442695
  %v4277 = vpow.pop %v4276
  %v4278 = vsel %vm3809, %v4273, 0.0
  %4279 = vadd.xlane.f32.xlu0 %v4278
  %v4280 = vpop.xlane.xlu0 %4279
  %v4281 = vsel %vm3809, %v4275, 0.0
  %4282 = vadd.xlane.f32.xlu0 %v4281
  %v4283 = vpop.xlane.xlu0 %4282
  %v4284 = vsel %vm3816, %v4277, 0.0
  %4285 = vadd.xlane.f32.xlu0 %v4284
  %v4286 = vpop.xlane.xlu0 %4285
  %v4287 = vrcp.pop %v4280
  %v4288 = vmul.f32 %v4273, %v4287
  %v4289 = vrcp.pop %v4283
  %v4290 = vmul.f32 %v4275, %v4289
  %v4291 = vrcp.pop %v4286
  %v4292 = vmul.f32 %v4277, %v4291
  %v4293 = vpack.c.bf16 %v4290, %v4288
  %v4294 = vpack.c.bf16 %v4292, %v4292
  %v4296 = vsel %vm3809, %v4293, 0
  %v4299 = vsel %vm3809, %v4294, 0
  %v4302 = vand.u32 %v2362, %v3836
  %4304 = vmatprep.subr.bf16.mxu0 0
  %4305 = vmatpush1.bf16.msra.mxu0 %v2354
  %4306 = vmatprep.subr.bf16.mxu0 0
  %4307 = vmatpush1.bf16.msra.mxu0 %v4302
  %4308 = vmatprep.subr.bf16.mxu0 0
  %4309 = vmatpush1.bf16.msra.mxu0 0
  %4310 = vmatprep.subr.bf16.mxu0 0
  %4311 = vmatpush1.bf16.msra.mxu0 0
  %4312 = vmatprep.subr.bf16.mxu0 0
  %4313 = vmatpush1.bf16.msra.mxu0 0
  %4314 = vmatprep.subr.bf16.mxu0 0
  %4315 = vmatpush1.bf16.msra.mxu0 0
  %4316 = vmatprep.subr.bf16.mxu0 0
  %4317 = vmatpush1.bf16.msra.mxu0 0
  %4318 = vmatprep.subr.bf16.mxu0 0
  %4319 = vmatpush1.bf16.msra.mxu0 0
  %4320 = vmatprep.subr.bf16.mxu0 0
  %4321 = vmatpush1.bf16.msra.mxu0 0
  %4322 = vmatprep.subr.bf16.mxu0 0
  %4323 = vmatpush1.bf16.msra.mxu0 0
  %4324 = vmatprep.subr.bf16.mxu0 0
  %4325 = vmatpush1.bf16.msra.mxu0 0
  %4326 = vmatprep.subr.bf16.mxu0 0
  %4327 = vmatpush1.bf16.msra.mxu0 0
  %4328 = vmatprep.subr.bf16.mxu0 0
  %4329 = vmatpush1.bf16.msra.mxu0 0
  %4330 = vmatprep.subr.bf16.mxu0 0
  %4331 = vmatpush1.bf16.msra.mxu0 0
  %4332 = vmatprep.subr.bf16.mxu0 0
  %4333 = vmatpush1.bf16.msra.mxu0 0
  %4334 = vmatprep.subr.bf16.mxu0 0
  %4335 = vmatpush1.bf16.msra.mxu0 0
  %4336 = vmatprep.mubr.bf16.mxu0 0
  %4337 = vmatmul.mubr.bf16.gmra.mrb[0].mxu0 %v4296
  %v4338 = vpop.f32.mrb[0].mxu0
  %v4339 = vadd.f32 0.0, %v4338
  %v4340 = vpop.f32.mrb[0].mxu0
  %v4341 = vpop.f32.mrb[0].mxu0
  %v4342 = vadd.f32 0.0, %v4341
  %v4343 = vpop.f32.mrb[0].mxu0
  %4344 = vmatprep.mubr.bf16.mxu0 0
  %4345 = vmatmul.mubr.bf16.gmra.mrb[0].mxu0 %v4299
  %v4346 = vpop.f32.mrb[0].mxu0
  %v4347 = vadd.f32 0.0, %v4346
  %v4348 = vpop.f32.mrb[0].mxu0
  %v4349 = vpop.f32.mrb[0].mxu0
  %v4350 = vpop.f32.mrb[0].mxu0
  %4351 = vdwg.mxu0
  %v4352 = vpack.c.bf16 %v4342, %v4339
  %v4353 = vpack.c.bf16 %v4347, %v4347
  %v4370 = vunpack.c.l.b16 %v3649
  %v4371 = vunpack.c.l.b16 %v3650
  %v4372 = vunpack.c.l.b16 %v3651
  %v4373 = vunpack.c.l.b16 %v3652
  %v4374 = vunpack.c.l.b16 %v3653
  %v4375 = vunpack.c.l.b16 %v3654
  %v4376 = vunpack.c.l.b16 %v3655
  %v4377 = vunpack.c.l.b16 %v3656
  %v4378 = vunpack.c.l.b16 %v3657
  %v4379 = vunpack.c.l.b16 %v3658
  %v4380 = vunpack.c.l.b16 %v3659
  %v4381 = vunpack.c.l.b16 %v3660
  %v4382 = vunpack.c.l.b16 %v3661
  %v4383 = vunpack.c.l.b16 %v3662
  %v4384 = vunpack.c.l.b16 %v3663
  %v4385 = vunpack.c.l.b16 %v3664
  %v4386 = vpack.c.b16 %v4371, %v4370
  %v4387 = vpack.c.b16 %v4373, %v4372
  %v4388 = vpack.c.b16 %v4375, %v4374
  %v4389 = vpack.c.b16 %v4377, %v4376
  %v4390 = vpack.c.b16 %v4379, %v4378
  %v4391 = vpack.c.b16 %v4381, %v4380
  %v4392 = vpack.c.b16 %v4383, %v4382
  %v4393 = vpack.c.b16 %v4385, %v4384
  %4402 = vmatprep.subr.bf16.mxu0 0
  %4403 = vmatpush1.bf16.msra.mxu0 %v4386
  %4404 = vmatprep.subr.bf16.mxu0 0
  %4405 = vmatpush1.bf16.msra.mxu0 %v4387
  %4406 = vmatprep.subr.bf16.mxu0 0
  %4407 = vmatpush1.bf16.msra.mxu0 %v4388
  %4408 = vmatprep.subr.bf16.mxu0 0
  %4409 = vmatpush1.bf16.msra.mxu0 %v4389
  %4410 = vmatprep.subr.bf16.mxu0 0
  %4411 = vmatpush1.bf16.msra.mxu0 %v4390
  %4412 = vmatprep.subr.bf16.mxu0 0
  %4413 = vmatpush1.bf16.msra.mxu0 %v4391
  %4414 = vmatprep.subr.bf16.mxu0 0
  %4415 = vmatpush1.bf16.msra.mxu0 %v4392
  %4416 = vmatprep.subr.bf16.mxu0 0
  %4417 = vmatpush1.bf16.msra.mxu0 %v4393
  %4418 = vmatprep.subr.bf16.mxu0 0
  %4419 = vmatpush1.bf16.msra.mxu0 0
  %4420 = vmatprep.subr.bf16.mxu0 0
  %4421 = vmatpush1.bf16.msra.mxu0 0
  %4422 = vmatprep.subr.bf16.mxu0 0
  %4423 = vmatpush1.bf16.msra.mxu0 0
  %4424 = vmatprep.subr.bf16.mxu0 0
  %4425 = vmatpush1.bf16.msra.mxu0 0
  %4426 = vmatprep.subr.bf16.mxu0 0
  %4427 = vmatpush1.bf16.msra.mxu0 0
  %4428 = vmatprep.subr.bf16.mxu0 0
  %4429 = vmatpush1.bf16.msra.mxu0 0
  %4430 = vmatprep.subr.bf16.mxu0 0
  %4431 = vmatpush1.bf16.msra.mxu0 0
  %4432 = vmatprep.subr.bf16.mxu0 0
  %4433 = vmatpush1.bf16.msra.mxu0 0
  %4434 = vmatprep.mubr.bf16.mxu0 0
  %4435 = vmatmul.mubr.bf16.gmra.mrb[0].mxu0 %v4352
  %v4436 = vpop.f32.mrb[0].mxu0
  %v4437 = vadd.f32 0.0, %v4436
  %v4438 = vpop.f32.mrb[0].mxu0
  %v4439 = vpop.f32.mrb[0].mxu0
  %v4440 = vadd.f32 0.0, %v4439
  %v4441 = vpop.f32.mrb[0].mxu0
  %4442 = vmatprep.mubr.bf16.mxu0 0
  %4443 = vmatmul.mubr.bf16.gmra.mrb[0].mxu0 %v4353
  %v4444 = vpop.f32.mrb[0].mxu0
  %v4445 = vadd.f32 0.0, %v4444
  %v4446 = vpop.f32.mrb[0].mxu0
  %v4447 = vpop.f32.mrb[0].mxu0
  %v4448 = vpop.f32.mrb[0].mxu0
  %4449 = vdwg.mxu0
  %v4450 = vadd.f32 %v4218, %v4437
  %v4451 = vadd.f32 %v4219, %v4440
  %v4452 = vadd.f32 %v4220, %v4445
  %4453 = vmatprep.subr.bf16.mxu0 0
  %4454 = vmatpush1.bf16.msra.mxu0 %v3577
  %4455 = vmatprep.subr.bf16.mxu0 0
  %4456 = vmatpush1.bf16.msra.mxu0 %v3578
  %4457 = vmatprep.subr.bf16.mxu0 0
  %4458 = vmatpush1.bf16.msra.mxu0 %v3579
  %4459 = vmatprep.subr.bf16.mxu0 0
  %4460 = vmatpush1.bf16.msra.mxu0 %v3580
  %4461 = vmatprep.subr.bf16.mxu0 0
  %4462 = vmatpush1.bf16.msra.mxu0 %v3581
  %4463 = vmatprep.subr.bf16.mxu0 0
  %4464 = vmatpush1.bf16.msra.mxu0 %v3582
  %4465 = vmatprep.subr.bf16.mxu0 0
  %4466 = vmatpush1.bf16.msra.mxu0 %v3583
  %4467 = vmatprep.subr.bf16.mxu0 0
  %4468 = vmatpush1.bf16.msra.mxu0 %v3584
  %4469 = vmatprep.subr.bf16.mxu0 0
  %4470 = vmatpush1.bf16.msra.mxu0 0
  %4471 = vmatprep.subr.bf16.mxu0 0
  %4472 = vmatpush1.bf16.msra.mxu0 0
  %4473 = vmatprep.subr.bf16.mxu0 0
  %4474 = vmatpush1.bf16.msra.mxu0 0
  %4475 = vmatprep.subr.bf16.mxu0 0
  %4476 = vmatpush1.bf16.msra.mxu0 0
  %4477 = vmatprep.subr.bf16.mxu0 0
  %4478 = vmatpush1.bf16.msra.mxu0 0
  %4479 = vmatprep.subr.bf16.mxu0 0
  %4480 = vmatpush1.bf16.msra.mxu0 0
  %4481 = vmatprep.subr.bf16.mxu0 0
  %4482 = vmatpush1.bf16.msra.mxu0 0
  %4483 = vmatprep.subr.bf16.mxu0 0
  %4484 = vmatpush1.bf16.msra.mxu0 0
  %4485 = vmatprep.mubr.bf16.mxu0 0
  %4486 = vmatmul.mubr.bf16.gmra.mrb[0].mxu0 %v1943
  %v4487 = vpop.f32.mrb[0].mxu0
  %v4488 = vadd.f32 0.0, %v4487
  %v4489 = vpop.f32.mrb[0].mxu0
  %v4490 = vpop.f32.mrb[0].mxu0
  %v4491 = vadd.f32 0.0, %v4490
  %v4492 = vpop.f32.mrb[0].mxu0
  %4493 = vmatprep.mubr.bf16.mxu0 0
  %4494 = vmatmul.mubr.bf16.gmra.mrb[0].mxu0 %v1951
  %v4495 = vpop.f32.mrb[0].mxu0
  %v4496 = vadd.f32 0.0, %v4495
  %v4497 = vpop.f32.mrb[0].mxu0
  %v4498 = vpop.f32.mrb[0].mxu0
  %v4499 = vpop.f32.mrb[0].mxu0
  %4500 = vdwg.mxu0
  %v4501 = vmul.f32 %v4488, 0.125
  %v4502 = vmul.f32 %v4491, 0.125
  %v4503 = vmul.f32 %v4496, 0.125
  %v4504 = vmul.f32 %v4501, 1.442695
  %v4505 = vpow.pop %v4504
  %v4506 = vmul.f32 %v4502, 1.442695
  %v4507 = vpow.pop %v4506
  %v4508 = vmul.f32 %v4503, 1.442695
  %v4509 = vpow.pop %v4508
  %v4510 = vsel %vm3809, %v4505, 0.0
  %4511 = vadd.xlane.f32.xlu0 %v4510
  %v4512 = vpop.xlane.xlu0 %4511
  %v4513 = vsel %vm3809, %v4507, 0.0
  %4514 = vadd.xlane.f32.xlu0 %v4513
  %v4515 = vpop.xlane.xlu0 %4514
  %v4516 = vsel %vm3816, %v4509, 0.0
  %4517 = vadd.xlane.f32.xlu0 %v4516
  %v4518 = vpop.xlane.xlu0 %4517
  %v4519 = vrcp.pop %v4512
  %v4520 = vmul.f32 %v4505, %v4519
  %v4521 = vrcp.pop %v4515
  %v4522 = vmul.f32 %v4507, %v4521
  %v4523 = vrcp.pop %v4518
  %v4524 = vmul.f32 %v4509, %v4523
  %v4525 = vpack.c.bf16 %v4522, %v4520
  %v4526 = vpack.c.bf16 %v4524, %v4524
  %v4528 = vsel %vm3809, %v4525, 0
  %v4531 = vsel %vm3809, %v4526, 0
  %v4534 = vand.u32 %v2363, %v3836
  %4536 = vmatprep.subr.bf16.mxu0 0
  %4537 = vmatpush1.bf16.msra.mxu0 %v2355
  %4538 = vmatprep.subr.bf16.mxu0 0
  %4539 = vmatpush1.bf16.msra.mxu0 %v4534
  %4540 = vmatprep.subr.bf16.mxu0 0
  %4541 = vmatpush1.bf16.msra.mxu0 0
  %4542 = vmatprep.subr.bf16.mxu0 0
  %4543 = vmatpush1.bf16.msra.mxu0 0
  %4544 = vmatprep.subr.bf16.mxu0 0
  %4545 = vmatpush1.bf16.msra.mxu0 0
  %4546 = vmatprep.subr.bf16.mxu0 0
  %4547 = vmatpush1.bf16.msra.mxu0 0
  %4548 = vmatprep.subr.bf16.mxu0 0
  %4549 = vmatpush1.bf16.msra.mxu0 0
  %4550 = vmatprep.subr.bf16.mxu0 0
  %4551 = vmatpush1.bf16.msra.mxu0 0
  %4552 = vmatprep.subr.bf16.mxu0 0
  %4553 = vmatpush1.bf16.msra.mxu0 0
  %4554 = vmatprep.subr.bf16.mxu0 0
  %4555 = vmatpush1.bf16.msra.mxu0 0
  %4556 = vmatprep.subr.bf16.mxu0 0
  %4557 = vmatpush1.bf16.msra.mxu0 0
  %4558 = vmatprep.subr.bf16.mxu0 0
  %4559 = vmatpush1.bf16.msra.mxu0 0
  %4560 = vmatprep.subr.bf16.mxu0 0
  %4561 = vmatpush1.bf16.msra.mxu0 0
  %4562 = vmatprep.subr.bf16.mxu0 0
  %4563 = vmatpush1.bf16.msra.mxu0 0
  %4564 = vmatprep.subr.bf16.mxu0 0
  %4565 = vmatpush1.bf16.msra.mxu0 0
  %4566 = vmatprep.subr.bf16.mxu0 0
  %4567 = vmatpush1.bf16.msra.mxu0 0
  %4568 = vmatprep.mubr.bf16.mxu0 0
  %4569 = vmatmul.mubr.bf16.gmra.mrb[0].mxu0 %v4528
  %v4570 = vpop.f32.mrb[0].mxu0
  %v4571 = vadd.f32 0.0, %v4570
  %v4572 = vpop.f32.mrb[0].mxu0
  %v4573 = vpop.f32.mrb[0].mxu0
  %v4574 = vadd.f32 0.0, %v4573
  %v4575 = vpop.f32.mrb[0].mxu0
  %4576 = vmatprep.mubr.bf16.mxu0 0
  %4577 = vmatmul.mubr.bf16.gmra.mrb[0].mxu0 %v4531
  %v4578 = vpop.f32.mrb[0].mxu0
  %v4579 = vadd.f32 0.0, %v4578
  %v4580 = vpop.f32.mrb[0].mxu0
  %v4581 = vpop.f32.mrb[0].mxu0
  %v4582 = vpop.f32.mrb[0].mxu0
  %4583 = vdwg.mxu0
  %v4584 = vpack.c.bf16 %v4574, %v4571
  %v4585 = vpack.c.bf16 %v4579, %v4579
  %v4602 = vunpack.c.l.b16 %v3665
  %v4603 = vunpack.c.l.b16 %v3666
  %v4604 = vunpack.c.l.b16 %v3667
  %v4605 = vunpack.c.l.b16 %v3668
  %v4606 = vunpack.c.l.b16 %v3669
  %v4607 = vunpack.c.l.b16 %v3670
  %v4608 = vunpack.c.l.b16 %v3671
  %v4609 = vunpack.c.l.b16 %v3672
  %v4610 = vunpack.c.l.b16 %v3673
  %v4611 = vunpack.c.l.b16 %v3674
  %v4612 = vunpack.c.l.b16 %v3675
  %v4613 = vunpack.c.l.b16 %v3676
  %v4614 = vunpack.c.l.b16 %v3677
  %v4615 = vunpack.c.l.b16 %v3678
  %v4616 = vunpack.c.l.b16 %v3679
  %v4617 = vunpack.c.l.b16 %v3680
  %v4618 = vpack.c.b16 %v4603, %v4602
  %v4619 = vpack.c.b16 %v4605, %v4604
  %v4620 = vpack.c.b16 %v4607, %v4606
  %v4621 = vpack.c.b16 %v4609, %v4608
  %v4622 = vpack.c.b16 %v4611, %v4610
  %v4623 = vpack.c.b16 %v4613, %v4612
  %v4624 = vpack.c.b16 %v4615, %v4614
  %v4625 = vpack.c.b16 %v4617, %v4616
  %4634 = vmatprep.subr.bf16.mxu0 0
  %4635 = vmatpush1.bf16.msra.mxu0 %v4618
  %4636 = vmatprep.subr.bf16.mxu0 0
  %4637 = vmatpush1.bf16.msra.mxu0 %v4619
  %4638 = vmatprep.subr.bf16.mxu0 0
  %4639 = vmatpush1.bf16.msra.mxu0 %v4620
  %4640 = vmatprep.subr.bf16.mxu0 0
  %4641 = vmatpush1.bf16.msra.mxu0 %v4621
  %4642 = vmatprep.subr.bf16.mxu0 0
  %4643 = vmatpush1.bf16.msra.mxu0 %v4622
  %4644 = vmatprep.subr.bf16.mxu0 0
  %4645 = vmatpush1.bf16.msra.mxu0 %v4623
  %4646 = vmatprep.subr.bf16.mxu0 0
  %4647 = vmatpush1.bf16.msra.mxu0 %v4624
  %4648 = vmatprep.subr.bf16.mxu0 0
  %4649 = vmatpush1.bf16.msra.mxu0 %v4625
  %4650 = vmatprep.subr.bf16.mxu0 0
  %4651 = vmatpush1.bf16.msra.mxu0 0
  %4652 = vmatprep.subr.bf16.mxu0 0
  %4653 = vmatpush1.bf16.msra.mxu0 0
  %4654 = vmatprep.subr.bf16.mxu0 0
  %4655 = vmatpush1.bf16.msra.mxu0 0
  %4656 = vmatprep.subr.bf16.mxu0 0
  %4657 = vmatpush1.bf16.msra.mxu0 0
  %4658 = vmatprep.subr.bf16.mxu0 0
  %4659 = vmatpush1.bf16.msra.mxu0 0
  %4660 = vmatprep.subr.bf16.mxu0 0
  %4661 = vmatpush1.bf16.msra.mxu0 0
  %4662 = vmatprep.subr.bf16.mxu0 0
  %4663 = vmatpush1.bf16.msra.mxu0 0
  %4664 = vmatprep.subr.bf16.mxu0 0
  %4665 = vmatpush1.bf16.msra.mxu0 0
  %4666 = vmatprep.mubr.bf16.mxu0 0
  %4667 = vmatmul.mubr.bf16.gmra.mrb[0].mxu0 %v4584
  %v4668 = vpop.f32.mrb[0].mxu0
  %v4669 = vadd.f32 0.0, %v4668
  %v4670 = vpop.f32.mrb[0].mxu0
  %v4671 = vpop.f32.mrb[0].mxu0
  %v4672 = vadd.f32 0.0, %v4671
  %v4673 = vpop.f32.mrb[0].mxu0
  %4674 = vmatprep.mubr.bf16.mxu0 0
  %4675 = vmatmul.mubr.bf16.gmra.mrb[0].mxu0 %v4585
  %v4676 = vpop.f32.mrb[0].mxu0
  %v4677 = vadd.f32 0.0, %v4676
  %v4678 = vpop.f32.mrb[0].mxu0
  %v4679 = vpop.f32.mrb[0].mxu0
  %v4680 = vpop.f32.mrb[0].mxu0
  %4681 = vdwg.mxu0
  %v4682 = vadd.f32 %v4450, %v4669
  %v4683 = vadd.f32 %v4451, %v4672
  %v4684 = vadd.f32 %v4452, %v4677
  %4685 = vmatprep.subr.bf16.mxu0 0
  %4686 = vmatpush1.bf16.msra.mxu0 %v3585
  %4687 = vmatprep.subr.bf16.mxu0 0
  %4688 = vmatpush1.bf16.msra.mxu0 %v3586
  %4689 = vmatprep.subr.bf16.mxu0 0
  %4690 = vmatpush1.bf16.msra.mxu0 %v3587
  %4691 = vmatprep.subr.bf16.mxu0 0
  %4692 = vmatpush1.bf16.msra.mxu0 %v3588
  %4693 = vmatprep.subr.bf16.mxu0 0
  %4694 = vmatpush1.bf16.msra.mxu0 %v3589
  %4695 = vmatprep.subr.bf16.mxu0 0
  %4696 = vmatpush1.bf16.msra.mxu0 %v3590
  %4697 = vmatprep.subr.bf16.mxu0 0
  %4698 = vmatpush1.bf16.msra.mxu0 %v3591
  %4699 = vmatprep.subr.bf16.mxu0 0
  %4700 = vmatpush1.bf16.msra.mxu0 %v3592
  %4701 = vmatprep.subr.bf16.mxu0 0
  %4702 = vmatpush1.bf16.msra.mxu0 0
  %4703 = vmatprep.subr.bf16.mxu0 0
  %4704 = vmatpush1.bf16.msra.mxu0 0
  %4705 = vmatprep.subr.bf16.mxu0 0
  %4706 = vmatpush1.bf16.msra.mxu0 0
  %4707 = vmatprep.subr.bf16.mxu0 0
  %4708 = vmatpush1.bf16.msra.mxu0 0
  %4709 = vmatprep.subr.bf16.mxu0 0
  %4710 = vmatpush1.bf16.msra.mxu0 0
  %4711 = vmatprep.subr.bf16.mxu0 0
  %4712 = vmatpush1.bf16.msra.mxu0 0
  %4713 = vmatprep.subr.bf16.mxu0 0
  %4714 = vmatpush1.bf16.msra.mxu0 0
  %4715 = vmatprep.subr.bf16.mxu0 0
  %4716 = vmatpush1.bf16.msra.mxu0 0
  %4717 = vmatprep.mubr.bf16.mxu0 0
  %4718 = vmatmul.mubr.bf16.gmra.mrb[0].mxu0 %v1944
  %v4719 = vpop.f32.mrb[0].mxu0
  %v4720 = vadd.f32 0.0, %v4719
  %v4721 = vpop.f32.mrb[0].mxu0
  %v4722 = vpop.f32.mrb[0].mxu0
  %v4723 = vadd.f32 0.0, %v4722
  %v4724 = vpop.f32.mrb[0].mxu0
  %4725 = vmatprep.mubr.bf16.mxu0 0
  %4726 = vmatmul.mubr.bf16.gmra.mrb[0].mxu0 %v1952
  %v4727 = vpop.f32.mrb[0].mxu0
  %v4728 = vadd.f32 0.0, %v4727
  %v4729 = vpop.f32.mrb[0].mxu0
  %v4730 = vpop.f32.mrb[0].mxu0
  %v4731 = vpop.f32.mrb[0].mxu0
  %4732 = vdwg.mxu0
  %v4733 = vmul.f32 %v4720, 0.125
  %v4734 = vmul.f32 %v4723, 0.125
  %v4735 = vmul.f32 %v4728, 0.125
  %v4736 = vmul.f32 %v4733, 1.442695
  %v4737 = vpow.pop %v4736
  %v4738 = vmul.f32 %v4734, 1.442695
  %v4739 = vpow.pop %v4738
  %v4740 = vmul.f32 %v4735, 1.442695
  %v4741 = vpow.pop %v4740
  %v4742 = vsel %vm3809, %v4737, 0.0
  %4743 = vadd.xlane.f32.xlu0 %v4742
  %v4744 = vpop.xlane.xlu0 %4743
  %v4745 = vsel %vm3809, %v4739, 0.0
  %4746 = vadd.xlane.f32.xlu0 %v4745
  %v4747 = vpop.xlane.xlu0 %4746
  %v4748 = vsel %vm3816, %v4741, 0.0
  %4749 = vadd.xlane.f32.xlu0 %v4748
  %v4750 = vpop.xlane.xlu0 %4749
  %v4751 = vrcp.pop %v4744
  %v4752 = vmul.f32 %v4737, %v4751
  %v4753 = vrcp.pop %v4747
  %v4754 = vmul.f32 %v4739, %v4753
  %v4755 = vrcp.pop %v4750
  %v4756 = vmul.f32 %v4741, %v4755
  %v4757 = vpack.c.bf16 %v4754, %v4752
  %v4758 = vpack.c.bf16 %v4756, %v4756
  %v4760 = vsel %vm3809, %v4757, 0
  %v4763 = vsel %vm3809, %v4758, 0
  %v4766 = vand.u32 %v2364, %v3836
  %4768 = vmatprep.subr.bf16.mxu0 0
  %4769 = vmatpush1.bf16.msra.mxu0 %v2356
  %4770 = vmatprep.subr.bf16.mxu0 0
  %4771 = vmatpush1.bf16.msra.mxu0 %v4766
  %4772 = vmatprep.subr.bf16.mxu0 0
  %4773 = vmatpush1.bf16.msra.mxu0 0
  %4774 = vmatprep.subr.bf16.mxu0 0
  %4775 = vmatpush1.bf16.msra.mxu0 0
  %4776 = vmatprep.subr.bf16.mxu0 0
  %4777 = vmatpush1.bf16.msra.mxu0 0
  %4778 = vmatprep.subr.bf16.mxu0 0
  %4779 = vmatpush1.bf16.msra.mxu0 0
  %4780 = vmatprep.subr.bf16.mxu0 0
  %4781 = vmatpush1.bf16.msra.mxu0 0
  %4782 = vmatprep.subr.bf16.mxu0 0
  %4783 = vmatpush1.bf16.msra.mxu0 0
  %4784 = vmatprep.subr.bf16.mxu0 0
  %4785 = vmatpush1.bf16.msra.mxu0 0
  %4786 = vmatprep.subr.bf16.mxu0 0
  %4787 = vmatpush1.bf16.msra.mxu0 0
  %4788 = vmatprep.subr.bf16.mxu0 0
  %4789 = vmatpush1.bf16.msra.mxu0 0
  %4790 = vmatprep.subr.bf16.mxu0 0
  %4791 = vmatpush1.bf16.msra.mxu0 0
  %4792 = vmatprep.subr.bf16.mxu0 0
  %4793 = vmatpush1.bf16.msra.mxu0 0
  %4794 = vmatprep.subr.bf16.mxu0 0
  %4795 = vmatpush1.bf16.msra.mxu0 0
  %4796 = vmatprep.subr.bf16.mxu0 0
  %4797 = vmatpush1.bf16.msra.mxu0 0
  %4798 = vmatprep.subr.bf16.mxu0 0
  %4799 = vmatpush1.bf16.msra.mxu0 0
  %4800 = vmatprep.mubr.bf16.mxu0 0
  %4801 = vmatmul.mubr.bf16.gmra.mrb[0].mxu0 %v4760
  %v4802 = vpop.f32.mrb[0].mxu0
  %v4803 = vadd.f32 0.0, %v4802
  %v4804 = vpop.f32.mrb[0].mxu0
  %v4805 = vpop.f32.mrb[0].mxu0
  %v4806 = vadd.f32 0.0, %v4805
  %v4807 = vpop.f32.mrb[0].mxu0
  %4808 = vmatprep.mubr.bf16.mxu0 0
  %4809 = vmatmul.mubr.bf16.gmra.mrb[0].mxu0 %v4763
  %v4810 = vpop.f32.mrb[0].mxu0
  %v4811 = vadd.f32 0.0, %v4810
  %v4812 = vpop.f32.mrb[0].mxu0
  %v4813 = vpop.f32.mrb[0].mxu0
  %v4814 = vpop.f32.mrb[0].mxu0
  %4815 = vdwg.mxu0
  %v4816 = vpack.c.bf16 %v4806, %v4803
  %v4817 = vpack.c.bf16 %v4811, %v4811
  %v4834 = vunpack.c.l.b16 %v3681
  %v4835 = vunpack.c.l.b16 %v3682
  %v4836 = vunpack.c.l.b16 %v3683
  %v4837 = vunpack.c.l.b16 %v3684
  %v4838 = vunpack.c.l.b16 %v3685
  %v4839 = vunpack.c.l.b16 %v3686
  %v4840 = vunpack.c.l.b16 %v3687
  %v4841 = vunpack.c.l.b16 %v3688
  %v4842 = vunpack.c.l.b16 %v3689
  %v4843 = vunpack.c.l.b16 %v3690
  %v4844 = vunpack.c.l.b16 %v3691
  %v4845 = vunpack.c.l.b16 %v3692
  %v4846 = vunpack.c.l.b16 %v3693
  %v4847 = vunpack.c.l.b16 %v3694
  %v4848 = vunpack.c.l.b16 %v3695
  %v4849 = vunpack.c.l.b16 %v3696
  %v4850 = vpack.c.b16 %v4835, %v4834
  %v4851 = vpack.c.b16 %v4837, %v4836
  %v4852 = vpack.c.b16 %v4839, %v4838
  %v4853 = vpack.c.b16 %v4841, %v4840
  %v4854 = vpack.c.b16 %v4843, %v4842
  %v4855 = vpack.c.b16 %v4845, %v4844
  %v4856 = vpack.c.b16 %v4847, %v4846
  %v4857 = vpack.c.b16 %v4849, %v4848
  %4866 = vmatprep.subr.bf16.mxu0 0
  %4867 = vmatpush1.bf16.msra.mxu0 %v4850
  %4868 = vmatprep.subr.bf16.mxu0 0
  %4869 = vmatpush1.bf16.msra.mxu0 %v4851
  %4870 = vmatprep.subr.bf16.mxu0 0
  %4871 = vmatpush1.bf16.msra.mxu0 %v4852
  %4872 = vmatprep.subr.bf16.mxu0 0
  %4873 = vmatpush1.bf16.msra.mxu0 %v4853
  %4874 = vmatprep.subr.bf16.mxu0 0
  %4875 = vmatpush1.bf16.msra.mxu0 %v4854
  %4876 = vmatprep.subr.bf16.mxu0 0
  %4877 = vmatpush1.bf16.msra.mxu0 %v4855
  %4878 = vmatprep.subr.bf16.mxu0 0
  %4879 = vmatpush1.bf16.msra.mxu0 %v4856
  %4880 = vmatprep.subr.bf16.mxu0 0
  %4881 = vmatpush1.bf16.msra.mxu0 %v4857
  %4882 = vmatprep.subr.bf16.mxu0 0
  %4883 = vmatpush1.bf16.msra.mxu0 0
  %4884 = vmatprep.subr.bf16.mxu0 0
  %4885 = vmatpush1.bf16.msra.mxu0 0
  %4886 = vmatprep.subr.bf16.mxu0 0
  %4887 = vmatpush1.bf16.msra.mxu0 0
  %4888 = vmatprep.subr.bf16.mxu0 0
  %4889 = vmatpush1.bf16.msra.mxu0 0
  %4890 = vmatprep.subr.bf16.mxu0 0
  %4891 = vmatpush1.bf16.msra.mxu0 0
  %4892 = vmatprep.subr.bf16.mxu0 0
  %4893 = vmatpush1.bf16.msra.mxu0 0
  %4894 = vmatprep.subr.bf16.mxu0 0
  %4895 = vmatpush1.bf16.msra.mxu0 0
  %4896 = vmatprep.subr.bf16.mxu0 0
  %4897 = vmatpush1.bf16.msra.mxu0 0
  %4898 = vmatprep.mubr.bf16.mxu0 0
  %4899 = vmatmul.mubr.bf16.gmra.mrb[0].mxu0 %v4816
  %v4900 = vpop.f32.mrb[0].mxu0
  %v4901 = vadd.f32 0.0, %v4900
  %v4902 = vpop.f32.mrb[0].mxu0
  %v4903 = vpop.f32.mrb[0].mxu0
  %v4904 = vadd.f32 0.0, %v4903
  %v4905 = vpop.f32.mrb[0].mxu0
  %4906 = vmatprep.mubr.bf16.mxu0 0
  %4907 = vmatmul.mubr.bf16.gmra.mrb[0].mxu0 %v4817
  %v4908 = vpop.f32.mrb[0].mxu0
  %v4909 = vadd.f32 0.0, %v4908
  %v4910 = vpop.f32.mrb[0].mxu0
  %v4911 = vpop.f32.mrb[0].mxu0
  %v4912 = vpop.f32.mrb[0].mxu0
  %4913 = vdwg.mxu0
  %v4914 = vadd.f32 %v4682, %v4901
  %v4915 = vadd.f32 %v4683, %v4904
  %v4916 = vadd.f32 %v4684, %v4909
  %4917 = vmatprep.subr.bf16.mxu0 0
  %4918 = vmatpush1.bf16.msra.mxu0 %v3593
  %4919 = vmatprep.subr.bf16.mxu0 0
  %4920 = vmatpush1.bf16.msra.mxu0 %v3594
  %4921 = vmatprep.subr.bf16.mxu0 0
  %4922 = vmatpush1.bf16.msra.mxu0 %v3595
  %4923 = vmatprep.subr.bf16.mxu0 0
  %4924 = vmatpush1.bf16.msra.mxu0 %v3596
  %4925 = vmatprep.subr.bf16.mxu0 0
  %4926 = vmatpush1.bf16.msra.mxu0 %v3597
  %4927 = vmatprep.subr.bf16.mxu0 0
  %4928 = vmatpush1.bf16.msra.mxu0 %v3598
  %4929 = vmatprep.subr.bf16.mxu0 0
  %4930 = vmatpush1.bf16.msra.mxu0 %v3599
  %4931 = vmatprep.subr.bf16.mxu0 0
  %4932 = vmatpush1.bf16.msra.mxu0 %v3600
  %4933 = vmatprep.subr.bf16.mxu0 0
  %4934 = vmatpush1.bf16.msra.mxu0 0
  %4935 = vmatprep.subr.bf16.mxu0 0
  %4936 = vmatpush1.bf16.msra.mxu0 0
  %4937 = vmatprep.subr.bf16.mxu0 0
  %4938 = vmatpush1.bf16.msra.mxu0 0
  %4939 = vmatprep.subr.bf16.mxu0 0
  %4940 = vmatpush1.bf16.msra.mxu0 0
  %4941 = vmatprep.subr.bf16.mxu0 0
  %4942 = vmatpush1.bf16.msra.mxu0 0
  %4943 = vmatprep.subr.bf16.mxu0 0
  %4944 = vmatpush1.bf16.msra.mxu0 0
  %4945 = vmatprep.subr.bf16.mxu0 0
  %4946 = vmatpush1.bf16.msra.mxu0 0
  %4947 = vmatprep.subr.bf16.mxu0 0
  %4948 = vmatpush1.bf16.msra.mxu0 0
  %4949 = vmatprep.mubr.bf16.mxu0 0
  %4950 = vmatmul.mubr.bf16.gmra.mrb[0].mxu0 %v1945
  %v4951 = vpop.f32.mrb[0].mxu0
  %v4952 = vadd.f32 0.0, %v4951
  %v4953 = vpop.f32.mrb[0].mxu0
  %v4954 = vpop.f32.mrb[0].mxu0
  %v4955 = vadd.f32 0.0, %v4954
  %v4956 = vpop.f32.mrb[0].mxu0
  %4957 = vmatprep.mubr.bf16.mxu0 0
  %4958 = vmatmul.mubr.bf16.gmra.mrb[0].mxu0 %v1953
  %v4959 = vpop.f32.mrb[0].mxu0
  %v4960 = vadd.f32 0.0, %v4959
  %v4961 = vpop.f32.mrb[0].mxu0
  %v4962 = vpop.f32.mrb[0].mxu0
  %v4963 = vpop.f32.mrb[0].mxu0
  %4964 = vdwg.mxu0
  %v4965 = vmul.f32 %v4952, 0.125
  %v4966 = vmul.f32 %v4955, 0.125
  %v4967 = vmul.f32 %v4960, 0.125
  %v4968 = vmul.f32 %v4965, 1.442695
  %v4969 = vpow.pop %v4968
  %v4970 = vmul.f32 %v4966, 1.442695
  %v4971 = vpow.pop %v4970
  %v4972 = vmul.f32 %v4967, 1.442695
  %v4973 = vpow.pop %v4972
  %v4974 = vsel %vm3809, %v4969, 0.0
  %4975 = vadd.xlane.f32.xlu0 %v4974
  %v4976 = vpop.xlane.xlu0 %4975
  %v4977 = vsel %vm3809, %v4971, 0.0
  %4978 = vadd.xlane.f32.xlu0 %v4977
  %v4979 = vpop.xlane.xlu0 %4978
  %v4980 = vsel %vm3816, %v4973, 0.0
  %4981 = vadd.xlane.f32.xlu0 %v4980
  %v4982 = vpop.xlane.xlu0 %4981
  %v4983 = vrcp.pop %v4976
  %v4984 = vmul.f32 %v4969, %v4983
  %v4985 = vrcp.pop %v4979
  %v4986 = vmul.f32 %v4971, %v4985
  %v4987 = vrcp.pop %v4982
  %v4988 = vmul.f32 %v4973, %v4987
  %v4989 = vpack.c.bf16 %v4986, %v4984
  %v4990 = vpack.c.bf16 %v4988, %v4988
  %v4992 = vsel %vm3809, %v4989, 0
  %v4995 = vsel %vm3809, %v4990, 0
  %v4998 = vand.u32 %v2365, %v3836
  %5000 = vmatprep.subr.bf16.mxu0 0
  %5001 = vmatpush1.bf16.msra.mxu0 %v2357
  %5002 = vmatprep.subr.bf16.mxu0 0
  %5003 = vmatpush1.bf16.msra.mxu0 %v4998
  %5004 = vmatprep.subr.bf16.mxu0 0
  %5005 = vmatpush1.bf16.msra.mxu0 0
  %5006 = vmatprep.subr.bf16.mxu0 0
  %5007 = vmatpush1.bf16.msra.mxu0 0
  %5008 = vmatprep.subr.bf16.mxu0 0
  %5009 = vmatpush1.bf16.msra.mxu0 0
  %5010 = vmatprep.subr.bf16.mxu0 0
  %5011 = vmatpush1.bf16.msra.mxu0 0
  %5012 = vmatprep.subr.bf16.mxu0 0
  %5013 = vmatpush1.bf16.msra.mxu0 0
  %5014 = vmatprep.subr.bf16.mxu0 0
  %5015 = vmatpush1.bf16.msra.mxu0 0
  %5016 = vmatprep.subr.bf16.mxu0 0
  %5017 = vmatpush1.bf16.msra.mxu0 0
  %5018 = vmatprep.subr.bf16.mxu0 0
  %5019 = vmatpush1.bf16.msra.mxu0 0
  %5020 = vmatprep.subr.bf16.mxu0 0
  %5021 = vmatpush1.bf16.msra.mxu0 0
  %5022 = vmatprep.subr.bf16.mxu0 0
  %5023 = vmatpush1.bf16.msra.mxu0 0
  %5024 = vmatprep.subr.bf16.mxu0 0
  %5025 = vmatpush1.bf16.msra.mxu0 0
  %5026 = vmatprep.subr.bf16.mxu0 0
  %5027 = vmatpush1.bf16.msra.mxu0 0
  %5028 = vmatprep.subr.bf16.mxu0 0
  %5029 = vmatpush1.bf16.msra.mxu0 0
  %5030 = vmatprep.subr.bf16.mxu0 0
  %5031 = vmatpush1.bf16.msra.mxu0 0
  %5032 = vmatprep.mubr.bf16.mxu0 0
  %5033 = vmatmul.mubr.bf16.gmra.mrb[0].mxu0 %v4992
  %v5034 = vpop.f32.mrb[0].mxu0
  %v5035 = vadd.f32 0.0, %v5034
  %v5036 = vpop.f32.mrb[0].mxu0
  %v5037 = vpop.f32.mrb[0].mxu0
  %v5038 = vadd.f32 0.0, %v5037
  %v5039 = vpop.f32.mrb[0].mxu0
  %5040 = vmatprep.mubr.bf16.mxu0 0
  %5041 = vmatmul.mubr.bf16.gmra.mrb[0].mxu0 %v4995
  %v5042 = vpop.f32.mrb[0].mxu0
  %v5043 = vadd.f32 0.0, %v5042
  %v5044 = vpop.f32.mrb[0].mxu0
  %v5045 = vpop.f32.mrb[0].mxu0
  %v5046 = vpop.f32.mrb[0].mxu0
  %5047 = vdwg.mxu0
  %v5048 = vpack.c.bf16 %v5038, %v5035
  %v5049 = vpack.c.bf16 %v5043, %v5043
  %v5066 = vunpack.c.l.b16 %v3697
  %v5067 = vunpack.c.l.b16 %v3698
  %v5068 = vunpack.c.l.b16 %v3699
  %v5069 = vunpack.c.l.b16 %v3700
  %v5070 = vunpack.c.l.b16 %v3701
  %v5071 = vunpack.c.l.b16 %v3702
  %v5072 = vunpack.c.l.b16 %v3703
  %v5073 = vunpack.c.l.b16 %v3704
  %v5074 = vunpack.c.l.b16 %v3705
  %v5075 = vunpack.c.l.b16 %v3706
  %v5076 = vunpack.c.l.b16 %v3707
  %v5077 = vunpack.c.l.b16 %v3708
  %v5078 = vunpack.c.l.b16 %v3709
  %v5079 = vunpack.c.l.b16 %v3710
  %v5080 = vunpack.c.l.b16 %v3711
  %v5081 = vunpack.c.l.b16 %v3712
  %v5082 = vpack.c.b16 %v5067, %v5066
  %v5083 = vpack.c.b16 %v5069, %v5068
  %v5084 = vpack.c.b16 %v5071, %v5070
  %v5085 = vpack.c.b16 %v5073, %v5072
  %v5086 = vpack.c.b16 %v5075, %v5074
  %v5087 = vpack.c.b16 %v5077, %v5076
  %v5088 = vpack.c.b16 %v5079, %v5078
  %v5089 = vpack.c.b16 %v5081, %v5080
  %5098 = vmatprep.subr.bf16.mxu0 0
  %5099 = vmatpush1.bf16.msra.mxu0 %v5082
  %5100 = vmatprep.subr.bf16.mxu0 0
  %5101 = vmatpush1.bf16.msra.mxu0 %v5083
  %5102 = vmatprep.subr.bf16.mxu0 0
  %5103 = vmatpush1.bf16.msra.mxu0 %v5084
  %5104 = vmatprep.subr.bf16.mxu0 0
  %5105 = vmatpush1.bf16.msra.mxu0 %v5085
  %5106 = vmatprep.subr.bf16.mxu0 0
  %5107 = vmatpush1.bf16.msra.mxu0 %v5086
  %5108 = vmatprep.subr.bf16.mxu0 0
  %5109 = vmatpush1.bf16.msra.mxu0 %v5087
  %5110 = vmatprep.subr.bf16.mxu0 0
  %5111 = vmatpush1.bf16.msra.mxu0 %v5088
  %5112 = vmatprep.subr.bf16.mxu0 0
  %5113 = vmatpush1.bf16.msra.mxu0 %v5089
  %5114 = vmatprep.subr.bf16.mxu0 0
  %5115 = vmatpush1.bf16.msra.mxu0 0
  %5116 = vmatprep.subr.bf16.mxu0 0
  %5117 = vmatpush1.bf16.msra.mxu0 0
  %5118 = vmatprep.subr.bf16.mxu0 0
  %5119 = vmatpush1.bf16.msra.mxu0 0
  %5120 = vmatprep.subr.bf16.mxu0 0
  %5121 = vmatpush1.bf16.msra.mxu0 0
  %5122 = vmatprep.subr.bf16.mxu0 0
  %5123 = vmatpush1.bf16.msra.mxu0 0
  %5124 = vmatprep.subr.bf16.mxu0 0
  %5125 = vmatpush1.bf16.msra.mxu0 0
  %5126 = vmatprep.subr.bf16.mxu0 0
  %5127 = vmatpush1.bf16.msra.mxu0 0
  %5128 = vmatprep.subr.bf16.mxu0 0
  %5129 = vmatpush1.bf16.msra.mxu0 0
  %5130 = vmatprep.mubr.bf16.mxu0 0
  %5131 = vmatmul.mubr.bf16.gmra.mrb[0].mxu0 %v5048
  %v5132 = vpop.f32.mrb[0].mxu0
  %v5133 = vadd.f32 0.0, %v5132
  %v5134 = vpop.f32.mrb[0].mxu0
  %v5135 = vpop.f32.mrb[0].mxu0
  %v5136 = vadd.f32 0.0, %v5135
  %v5137 = vpop.f32.mrb[0].mxu0
  %5138 = vmatprep.mubr.bf16.mxu0 0
  %5139 = vmatmul.mubr.bf16.gmra.mrb[0].mxu0 %v5049
  %v5140 = vpop.f32.mrb[0].mxu0
  %v5141 = vadd.f32 0.0, %v5140
  %v5142 = vpop.f32.mrb[0].mxu0
  %v5143 = vpop.f32.mrb[0].mxu0
  %v5144 = vpop.f32.mrb[0].mxu0
  %5145 = vdwg.mxu0
  %v5146 = vadd.f32 %v4914, %v5133
  %v5147 = vadd.f32 %v4915, %v5136
  %v5148 = vadd.f32 %v4916, %v5141
  %5149 = vmatprep.subr.bf16.mxu0 0
  %5150 = vmatpush1.bf16.msra.mxu0 %v3601
  %5151 = vmatprep.subr.bf16.mxu0 0
  %5152 = vmatpush1.bf16.msra.mxu0 %v3602
  %5153 = vmatprep.subr.bf16.mxu0 0
  %5154 = vmatpush1.bf16.msra.mxu0 %v3603
  %5155 = vmatprep.subr.bf16.mxu0 0
  %5156 = vmatpush1.bf16.msra.mxu0 %v3604
  %5157 = vmatprep.subr.bf16.mxu0 0
  %5158 = vmatpush1.bf16.msra.mxu0 %v3605
  %5159 = vmatprep.subr.bf16.mxu0 0
  %5160 = vmatpush1.bf16.msra.mxu0 %v3606
  %5161 = vmatprep.subr.bf16.mxu0 0
  %5162 = vmatpush1.bf16.msra.mxu0 %v3607
  %5163 = vmatprep.subr.bf16.mxu0 0
  %5164 = vmatpush1.bf16.msra.mxu0 %v3608
  %5165 = vmatprep.subr.bf16.mxu0 0
  %5166 = vmatpush1.bf16.msra.mxu0 0
  %5167 = vmatprep.subr.bf16.mxu0 0
  %5168 = vmatpush1.bf16.msra.mxu0 0
  %5169 = vmatprep.subr.bf16.mxu0 0
  %5170 = vmatpush1.bf16.msra.mxu0 0
  %5171 = vmatprep.subr.bf16.mxu0 0
  %5172 = vmatpush1.bf16.msra.mxu0 0
  %5173 = vmatprep.subr.bf16.mxu0 0
  %5174 = vmatpush1.bf16.msra.mxu0 0
  %5175 = vmatprep.subr.bf16.mxu0 0
  %5176 = vmatpush1.bf16.msra.mxu0 0
  %5177 = vmatprep.subr.bf16.mxu0 0
  %5178 = vmatpush1.bf16.msra.mxu0 0
  %5179 = vmatprep.subr.bf16.mxu0 0
  %5180 = vmatpush1.bf16.msra.mxu0 0
  %5181 = vmatprep.mubr.bf16.mxu0 0
  %5182 = vmatmul.mubr.bf16.gmra.mrb[0].mxu0 %v1946
  %v5183 = vpop.f32.mrb[0].mxu0
  %v5184 = vadd.f32 0.0, %v5183
  %v5185 = vpop.f32.mrb[0].mxu0
  %v5186 = vpop.f32.mrb[0].mxu0
  %v5187 = vadd.f32 0.0, %v5186
  %v5188 = vpop.f32.mrb[0].mxu0
  %5189 = vmatprep.mubr.bf16.mxu0 0
  %5190 = vmatmul.mubr.bf16.gmra.mrb[0].mxu0 %v1954
  %v5191 = vpop.f32.mrb[0].mxu0
  %v5192 = vadd.f32 0.0, %v5191
  %v5193 = vpop.f32.mrb[0].mxu0
  %v5194 = vpop.f32.mrb[0].mxu0
  %v5195 = vpop.f32.mrb[0].mxu0
  %5196 = vdwg.mxu0
  %v5197 = vmul.f32 %v5184, 0.125
  %v5198 = vmul.f32 %v5187, 0.125
  %v5199 = vmul.f32 %v5192, 0.125
  %v5200 = vmul.f32 %v5197, 1.442695
  %v5201 = vpow.pop %v5200
  %v5202 = vmul.f32 %v5198, 1.442695
  %v5203 = vpow.pop %v5202
  %v5204 = vmul.f32 %v5199, 1.442695
  %v5205 = vpow.pop %v5204
  %v5206 = vsel %vm3809, %v5201, 0.0
  %5207 = vadd.xlane.f32.xlu0 %v5206
  %v5208 = vpop.xlane.xlu0 %5207
  %v5209 = vsel %vm3809, %v5203, 0.0
  %5210 = vadd.xlane.f32.xlu0 %v5209
  %v5211 = vpop.xlane.xlu0 %5210
  %v5212 = vsel %vm3816, %v5205, 0.0
  %5213 = vadd.xlane.f32.xlu0 %v5212
  %v5214 = vpop.xlane.xlu0 %5213
  %v5215 = vrcp.pop %v5208
  %v5216 = vmul.f32 %v5201, %v5215
  %v5217 = vrcp.pop %v5211
  %v5218 = vmul.f32 %v5203, %v5217
  %v5219 = vrcp.pop %v5214
  %v5220 = vmul.f32 %v5205, %v5219
  %v5221 = vpack.c.bf16 %v5218, %v5216
  %v5222 = vpack.c.bf16 %v5220, %v5220
  %v5224 = vsel %vm3809, %v5221, 0
  %v5227 = vsel %vm3809, %v5222, 0
  %v5230 = vand.u32 %v2366, %v3836
  %5232 = vmatprep.subr.bf16.mxu0 0
  %5233 = vmatpush1.bf16.msra.mxu0 %v2358
  %5234 = vmatprep.subr.bf16.mxu0 0
  %5235 = vmatpush1.bf16.msra.mxu0 %v5230
  %5236 = vmatprep.subr.bf16.mxu0 0
  %5237 = vmatpush1.bf16.msra.mxu0 0
  %5238 = vmatprep.subr.bf16.mxu0 0
  %5239 = vmatpush1.bf16.msra.mxu0 0
  %5240 = vmatprep.subr.bf16.mxu0 0
  %5241 = vmatpush1.bf16.msra.mxu0 0
  %5242 = vmatprep.subr.bf16.mxu0 0
  %5243 = vmatpush1.bf16.msra.mxu0 0
  %5244 = vmatprep.subr.bf16.mxu0 0
  %5245 = vmatpush1.bf16.msra.mxu0 0
  %5246 = vmatprep.subr.bf16.mxu0 0
  %5247 = vmatpush1.bf16.msra.mxu0 0
  %5248 = vmatprep.subr.bf16.mxu0 0
  %5249 = vmatpush1.bf16.msra.mxu0 0
  %5250 = vmatprep.subr.bf16.mxu0 0
  %5251 = vmatpush1.bf16.msra.mxu0 0
  %5252 = vmatprep.subr.bf16.mxu0 0
  %5253 = vmatpush1.bf16.msra.mxu0 0
  %5254 = vmatprep.subr.bf16.mxu0 0
  %5255 = vmatpush1.bf16.msra.mxu0 0
  %5256 = vmatprep.subr.bf16.mxu0 0
  %5257 = vmatpush1.bf16.msra.mxu0 0
  %5258 = vmatprep.subr.bf16.mxu0 0
  %5259 = vmatpush1.bf16.msra.mxu0 0
  %5260 = vmatprep.subr.bf16.mxu0 0
  %5261 = vmatpush1.bf16.msra.mxu0 0
  %5262 = vmatprep.subr.bf16.mxu0 0
  %5263 = vmatpush1.bf16.msra.mxu0 0
  %5264 = vmatprep.mubr.bf16.mxu0 0
  %5265 = vmatmul.mubr.bf16.gmra.mrb[0].mxu0 %v5224
  %v5266 = vpop.f32.mrb[0].mxu0
  %v5267 = vadd.f32 0.0, %v5266
  %v5268 = vpop.f32.mrb[0].mxu0
  %v5269 = vpop.f32.mrb[0].mxu0
  %v5270 = vadd.f32 0.0, %v5269
  %v5271 = vpop.f32.mrb[0].mxu0
  %5272 = vmatprep.mubr.bf16.mxu0 0
  %5273 = vmatmul.mubr.bf16.gmra.mrb[0].mxu0 %v5227
  %v5274 = vpop.f32.mrb[0].mxu0
  %v5275 = vadd.f32 0.0, %v5274
  %v5276 = vpop.f32.mrb[0].mxu0
  %v5277 = vpop.f32.mrb[0].mxu0
  %v5278 = vpop.f32.mrb[0].mxu0
  %5279 = vdwg.mxu0
  %v5280 = vpack.c.bf16 %v5270, %v5267
  %v5281 = vpack.c.bf16 %v5275, %v5275
  %v5298 = vunpack.c.l.b16 %v3713
  %v5299 = vunpack.c.l.b16 %v3714
  %v5300 = vunpack.c.l.b16 %v3715
  %v5301 = vunpack.c.l.b16 %v3716
  %v5302 = vunpack.c.l.b16 %v3717
  %v5303 = vunpack.c.l.b16 %v3718
  %v5304 = vunpack.c.l.b16 %v3719
  %v5305 = vunpack.c.l.b16 %v3720
  %v5306 = vunpack.c.l.b16 %v3721
  %v5307 = vunpack.c.l.b16 %v3722
  %v5308 = vunpack.c.l.b16 %v3723
  %v5309 = vunpack.c.l.b16 %v3724
  %v5310 = vunpack.c.l.b16 %v3725
  %v5311 = vunpack.c.l.b16 %v3726
  %v5312 = vunpack.c.l.b16 %v3727
  %v5313 = vunpack.c.l.b16 %v3728
  %v5314 = vpack.c.b16 %v5299, %v5298
  %v5315 = vpack.c.b16 %v5301, %v5300
  %v5316 = vpack.c.b16 %v5303, %v5302
  %v5317 = vpack.c.b16 %v5305, %v5304
  %v5318 = vpack.c.b16 %v5307, %v5306
  %v5319 = vpack.c.b16 %v5309, %v5308
  %v5320 = vpack.c.b16 %v5311, %v5310
  %v5321 = vpack.c.b16 %v5313, %v5312
  %5330 = vmatprep.subr.bf16.mxu0 0
  %5331 = vmatpush1.bf16.msra.mxu0 %v5314
  %5332 = vmatprep.subr.bf16.mxu0 0
  %5333 = vmatpush1.bf16.msra.mxu0 %v5315
  %5334 = vmatprep.subr.bf16.mxu0 0
  %5335 = vmatpush1.bf16.msra.mxu0 %v5316
  %5336 = vmatprep.subr.bf16.mxu0 0
  %5337 = vmatpush1.bf16.msra.mxu0 %v5317
  %5338 = vmatprep.subr.bf16.mxu0 0
  %5339 = vmatpush1.bf16.msra.mxu0 %v5318
  %5340 = vmatprep.subr.bf16.mxu0 0
  %5341 = vmatpush1.bf16.msra.mxu0 %v5319
  %5342 = vmatprep.subr.bf16.mxu0 0
  %5343 = vmatpush1.bf16.msra.mxu0 %v5320
  %5344 = vmatprep.subr.bf16.mxu0 0
  %5345 = vmatpush1.bf16.msra.mxu0 %v5321
  %5346 = vmatprep.subr.bf16.mxu0 0
  %5347 = vmatpush1.bf16.msra.mxu0 0
  %5348 = vmatprep.subr.bf16.mxu0 0
  %5349 = vmatpush1.bf16.msra.mxu0 0
  %5350 = vmatprep.subr.bf16.mxu0 0
  %5351 = vmatpush1.bf16.msra.mxu0 0
  %5352 = vmatprep.subr.bf16.mxu0 0
  %5353 = vmatpush1.bf16.msra.mxu0 0
  %5354 = vmatprep.subr.bf16.mxu0 0
  %5355 = vmatpush1.bf16.msra.mxu0 0
  %5356 = vmatprep.subr.bf16.mxu0 0
  %5357 = vmatpush1.bf16.msra.mxu0 0
  %5358 = vmatprep.subr.bf16.mxu0 0
  %5359 = vmatpush1.bf16.msra.mxu0 0
  %5360 = vmatprep.subr.bf16.mxu0 0
  %5361 = vmatpush1.bf16.msra.mxu0 0
  %5362 = vmatprep.mubr.bf16.mxu0 0
  %5363 = vmatmul.mubr.bf16.gmra.mrb[0].mxu0 %v5280
  %v5364 = vpop.f32.mrb[0].mxu0
  %v5365 = vadd.f32 0.0, %v5364
  %v5366 = vpop.f32.mrb[0].mxu0
  %v5367 = vpop.f32.mrb[0].mxu0
  %v5368 = vadd.f32 0.0, %v5367
  %v5369 = vpop.f32.mrb[0].mxu0
  %5370 = vmatprep.mubr.bf16.mxu0 0
  %5371 = vmatmul.mubr.bf16.gmra.mrb[0].mxu0 %v5281
  %v5372 = vpop.f32.mrb[0].mxu0
  %v5373 = vadd.f32 0.0, %v5372
  %v5374 = vpop.f32.mrb[0].mxu0
  %v5375 = vpop.f32.mrb[0].mxu0
  %v5376 = vpop.f32.mrb[0].mxu0
  %5377 = vdwg.mxu0
  %v5378 = vadd.f32 %v5146, %v5365
  %v5379 = vadd.f32 %v5147, %v5368
  %v5380 = vadd.f32 %v5148, %v5373
  %5381 = vmatprep.subr.bf16.mxu0 0
  %5382 = vmatpush1.bf16.msra.mxu0 %v3609
  %5383 = vmatprep.subr.bf16.mxu0 0
  %5384 = vmatpush1.bf16.msra.mxu0 %v3610
  %5385 = vmatprep.subr.bf16.mxu0 0
  %5386 = vmatpush1.bf16.msra.mxu0 %v3611
  %5387 = vmatprep.subr.bf16.mxu0 0
  %5388 = vmatpush1.bf16.msra.mxu0 %v3612
  %5389 = vmatprep.subr.bf16.mxu0 0
  %5390 = vmatpush1.bf16.msra.mxu0 %v3613
  %5391 = vmatprep.subr.bf16.mxu0 0
  %5392 = vmatpush1.bf16.msra.mxu0 %v3614
  %5393 = vmatprep.subr.bf16.mxu0 0
  %5394 = vmatpush1.bf16.msra.mxu0 %v3615
  %5395 = vmatprep.subr.bf16.mxu0 0
  %5396 = vmatpush1.bf16.msra.mxu0 %v3616
  %5397 = vmatprep.subr.bf16.mxu0 0
  %5398 = vmatpush1.bf16.msra.mxu0 0
  %5399 = vmatprep.subr.bf16.mxu0 0
  %5400 = vmatpush1.bf16.msra.mxu0 0
  %5401 = vmatprep.subr.bf16.mxu0 0
  %5402 = vmatpush1.bf16.msra.mxu0 0
  %5403 = vmatprep.subr.bf16.mxu0 0
  %5404 = vmatpush1.bf16.msra.mxu0 0
  %5405 = vmatprep.subr.bf16.mxu0 0
  %5406 = vmatpush1.bf16.msra.mxu0 0
  %5407 = vmatprep.subr.bf16.mxu0 0
  %5408 = vmatpush1.bf16.msra.mxu0 0
  %5409 = vmatprep.subr.bf16.mxu0 0
  %5410 = vmatpush1.bf16.msra.mxu0 0
  %5411 = vmatprep.subr.bf16.mxu0 0
  %5412 = vmatpush1.bf16.msra.mxu0 0
  %5413 = vmatprep.mubr.bf16.mxu0 0
  %5414 = vmatmul.mubr.bf16.gmra.mrb[0].mxu0 %v1947
  %v5415 = vpop.f32.mrb[0].mxu0
  %v5416 = vadd.f32 0.0, %v5415
  %v5417 = vpop.f32.mrb[0].mxu0
  %v5418 = vpop.f32.mrb[0].mxu0
  %v5419 = vadd.f32 0.0, %v5418
  %v5420 = vpop.f32.mrb[0].mxu0
  %5421 = vmatprep.mubr.bf16.mxu0 0
  %5422 = vmatmul.mubr.bf16.gmra.mrb[0].mxu0 %v1955
  %v5423 = vpop.f32.mrb[0].mxu0
  %v5424 = vadd.f32 0.0, %v5423
  %v5425 = vpop.f32.mrb[0].mxu0
  %v5426 = vpop.f32.mrb[0].mxu0
  %v5427 = vpop.f32.mrb[0].mxu0
  %5428 = vdwg.mxu0
  %v5429 = vmul.f32 %v5416, 0.125
  %v5430 = vmul.f32 %v5419, 0.125
  %v5431 = vmul.f32 %v5424, 0.125
  %v5432 = vmul.f32 %v5429, 1.442695
  %v5433 = vpow.pop %v5432
  %v5434 = vmul.f32 %v5430, 1.442695
  %v5435 = vpow.pop %v5434
  %v5436 = vmul.f32 %v5431, 1.442695
  %v5437 = vpow.pop %v5436
  %v5438 = vsel %vm3809, %v5433, 0.0
  %5439 = vadd.xlane.f32.xlu0 %v5438
  %v5440 = vpop.xlane.xlu0 %5439
  %v5441 = vsel %vm3809, %v5435, 0.0
  %5442 = vadd.xlane.f32.xlu0 %v5441
  %v5443 = vpop.xlane.xlu0 %5442
  %v5444 = vsel %vm3816, %v5437, 0.0
  %5445 = vadd.xlane.f32.xlu0 %v5444
  %v5446 = vpop.xlane.xlu0 %5445
  %v5447 = vrcp.pop %v5440
  %v5448 = vmul.f32 %v5433, %v5447
  %v5449 = vrcp.pop %v5443
  %v5450 = vmul.f32 %v5435, %v5449
  %v5451 = vrcp.pop %v5446
  %v5452 = vmul.f32 %v5437, %v5451
  %v5453 = vpack.c.bf16 %v5450, %v5448
  %v5454 = vpack.c.bf16 %v5452, %v5452
  %v5456 = vsel %vm3809, %v5453, 0
  %v5459 = vsel %vm3809, %v5454, 0
  %v5462 = vand.u32 %v2367, %v3836
  %5464 = vmatprep.subr.bf16.mxu0 0
  %5465 = vmatpush1.bf16.msra.mxu0 %v2359
  %5466 = vmatprep.subr.bf16.mxu0 0
  %5467 = vmatpush1.bf16.msra.mxu0 %v5462
  %5468 = vmatprep.subr.bf16.mxu0 0
  %5469 = vmatpush1.bf16.msra.mxu0 0
  %5470 = vmatprep.subr.bf16.mxu0 0
  %5471 = vmatpush1.bf16.msra.mxu0 0
  %5472 = vmatprep.subr.bf16.mxu0 0
  %5473 = vmatpush1.bf16.msra.mxu0 0
  %5474 = vmatprep.subr.bf16.mxu0 0
  %5475 = vmatpush1.bf16.msra.mxu0 0
  %5476 = vmatprep.subr.bf16.mxu0 0
  %5477 = vmatpush1.bf16.msra.mxu0 0
  %5478 = vmatprep.subr.bf16.mxu0 0
  %5479 = vmatpush1.bf16.msra.mxu0 0
  %5480 = vmatprep.subr.bf16.mxu0 0
  %5481 = vmatpush1.bf16.msra.mxu0 0
  %5482 = vmatprep.subr.bf16.mxu0 0
  %5483 = vmatpush1.bf16.msra.mxu0 0
  %5484 = vmatprep.subr.bf16.mxu0 0
  %5485 = vmatpush1.bf16.msra.mxu0 0
  %5486 = vmatprep.subr.bf16.mxu0 0
  %5487 = vmatpush1.bf16.msra.mxu0 0
  %5488 = vmatprep.subr.bf16.mxu0 0
  %5489 = vmatpush1.bf16.msra.mxu0 0
  %5490 = vmatprep.subr.bf16.mxu0 0
  %5491 = vmatpush1.bf16.msra.mxu0 0
  %5492 = vmatprep.subr.bf16.mxu0 0
  %5493 = vmatpush1.bf16.msra.mxu0 0
  %5494 = vmatprep.subr.bf16.mxu0 0
  %5495 = vmatpush1.bf16.msra.mxu0 0
  %5496 = vmatprep.mubr.bf16.mxu0 0
  %5497 = vmatmul.mubr.bf16.gmra.mrb[0].mxu0 %v5456
  %v5498 = vpop.f32.mrb[0].mxu0
  %v5499 = vadd.f32 0.0, %v5498
  %v5500 = vpop.f32.mrb[0].mxu0
  %v5501 = vpop.f32.mrb[0].mxu0
  %v5502 = vadd.f32 0.0, %v5501
  %v5503 = vpop.f32.mrb[0].mxu0
  %5504 = vmatprep.mubr.bf16.mxu0 0
  %5505 = vmatmul.mubr.bf16.gmra.mrb[0].mxu0 %v5459
  %v5506 = vpop.f32.mrb[0].mxu0
  %v5507 = vadd.f32 0.0, %v5506
  %v5508 = vpop.f32.mrb[0].mxu0
  %v5509 = vpop.f32.mrb[0].mxu0
  %v5510 = vpop.f32.mrb[0].mxu0
  %5511 = vdwg.mxu0
  %v5512 = vpack.c.bf16 %v5502, %v5499
  %v5513 = vpack.c.bf16 %v5507, %v5507
  %v5530 = vunpack.c.l.b16 %v3729
  %v5531 = vunpack.c.l.b16 %v3730
  %v5532 = vunpack.c.l.b16 %v3731
  %v5533 = vunpack.c.l.b16 %v3732
  %v5534 = vunpack.c.l.b16 %v3733
  %v5535 = vunpack.c.l.b16 %v3734
  %v5536 = vunpack.c.l.b16 %v3735
  %v5537 = vunpack.c.l.b16 %v3736
  %v5538 = vunpack.c.l.b16 %v3737
  %v5539 = vunpack.c.l.b16 %v3738
  %v5540 = vunpack.c.l.b16 %v3739
  %v5541 = vunpack.c.l.b16 %v3740
  %v5542 = vunpack.c.l.b16 %v3741
  %v5543 = vunpack.c.l.b16 %v3742
  %v5544 = vunpack.c.l.b16 %v3743
  %v5545 = vunpack.c.l.b16 %v3744
  %v5546 = vpack.c.b16 %v5531, %v5530
  %v5547 = vpack.c.b16 %v5533, %v5532
  %v5548 = vpack.c.b16 %v5535, %v5534
  %v5549 = vpack.c.b16 %v5537, %v5536
  %v5550 = vpack.c.b16 %v5539, %v5538
  %v5551 = vpack.c.b16 %v5541, %v5540
  %v5552 = vpack.c.b16 %v5543, %v5542
  %v5553 = vpack.c.b16 %v5545, %v5544
  %5562 = vmatprep.subr.bf16.mxu0 0
  %5563 = vmatpush1.bf16.msra.mxu0 %v5546
  %5564 = vmatprep.subr.bf16.mxu0 0
  %5565 = vmatpush1.bf16.msra.mxu0 %v5547
  %5566 = vmatprep.subr.bf16.mxu0 0
  %5567 = vmatpush1.bf16.msra.mxu0 %v5548
  %5568 = vmatprep.subr.bf16.mxu0 0
  %5569 = vmatpush1.bf16.msra.mxu0 %v5549
  %5570 = vmatprep.subr.bf16.mxu0 0
  %5571 = vmatpush1.bf16.msra.mxu0 %v5550
  %5572 = vmatprep.subr.bf16.mxu0 0
  %5573 = vmatpush1.bf16.msra.mxu0 %v5551
  %5574 = vmatprep.subr.bf16.mxu0 0
  %5575 = vmatpush1.bf16.msra.mxu0 %v5552
  %5576 = vmatprep.subr.bf16.mxu0 0
  %5577 = vmatpush1.bf16.msra.mxu0 %v5553
  %5578 = vmatprep.subr.bf16.mxu0 0
  %5579 = vmatpush1.bf16.msra.mxu0 0
  %5580 = vmatprep.subr.bf16.mxu0 0
  %5581 = vmatpush1.bf16.msra.mxu0 0
  %5582 = vmatprep.subr.bf16.mxu0 0
  %5583 = vmatpush1.bf16.msra.mxu0 0
  %5584 = vmatprep.subr.bf16.mxu0 0
  %5585 = vmatpush1.bf16.msra.mxu0 0
  %5586 = vmatprep.subr.bf16.mxu0 0
  %5587 = vmatpush1.bf16.msra.mxu0 0
  %5588 = vmatprep.subr.bf16.mxu0 0
  %5589 = vmatpush1.bf16.msra.mxu0 0
  %5590 = vmatprep.subr.bf16.mxu0 0
  %5591 = vmatpush1.bf16.msra.mxu0 0
  %5592 = vmatprep.subr.bf16.mxu0 0
  %5593 = vmatpush1.bf16.msra.mxu0 0
  %5594 = vmatprep.mubr.bf16.mxu0 0
  %5595 = vmatmul.mubr.bf16.gmra.mrb[0].mxu0 %v5512
  %v5596 = vpop.f32.mrb[0].mxu0
  %v5597 = vadd.f32 0.0, %v5596
  %v5598 = vpop.f32.mrb[0].mxu0
  %v5599 = vpop.f32.mrb[0].mxu0
  %v5600 = vadd.f32 0.0, %v5599
  %v5601 = vpop.f32.mrb[0].mxu0
  %5602 = vmatprep.mubr.bf16.mxu0 0
  %5603 = vmatmul.mubr.bf16.gmra.mrb[0].mxu0 %v5513
  %v5604 = vpop.f32.mrb[0].mxu0
  %v5605 = vadd.f32 0.0, %v5604
  %v5606 = vpop.f32.mrb[0].mxu0
  %v5607 = vpop.f32.mrb[0].mxu0
  %v5608 = vpop.f32.mrb[0].mxu0
  %5609 = vdwg.mxu0
  %v5610 = vadd.f32 %v5378, %v5597
  %v5611 = vadd.f32 %v5379, %v5600
  %v5612 = vadd.f32 %v5380, %v5605
  %v5613 = vadd.f32 %v1462, %v5610
  %v5614 = vadd.f32 %v1465, %v5611
  %v5615 = vadd.f32 %v1470, %v5612
  %v5616 = vld [vmem:[%s37] sm:$0x1]
  %v5617 = vld [vmem:[%s39] sm:$0x1]
  %v5618 = vsel %vm1026, %v5613, 0.0
  %5619 = vadd.xlane.f32.xlu0 %v5618
  %v5620 = vpop.xlane.xlu0 %5619
  %v5621 = vsel %vm1026, %v5614, 0.0
  %5622 = vadd.xlane.f32.xlu0 %v5621
  %v5623 = vpop.xlane.xlu0 %5622
  %v5624 = vsel %vm1483, %v5615, 0.0
  %5625 = vadd.xlane.f32.xlu0 %v5624
  %v5626 = vpop.xlane.xlu0 %5625
  %v5627 = vmul.f32 %v5620, %v1487
  %v5628 = vmul.f32 %v5623, %v1487
  %v5629 = vmul.f32 %v5626, %v1487
  %v5630 = vsub.f32 %v5613, %v5627
  %v5631 = vsub.f32 %v5614, %v5628
  %v5632 = vsub.f32 %v5615, %v5629
  %v5633 = vmul.f32 %v5630, %v5630
  %v5634 = vmul.f32 %v5631, %v5631
  %v5635 = vmul.f32 %v5632, %v5632
  %v5636 = vsel %vm1026, %v5633, 0.0
  %5637 = vadd.xlane.f32.xlu0 %v5636
  %v5638 = vpop.xlane.xlu0 %5637
  %v5639 = vsel %vm1026, %v5634, 0.0
  %5640 = vadd.xlane.f32.xlu0 %v5639
  %v5641 = vpop.xlane.xlu0 %5640
  %v5642 = vsel %vm1483, %v5635, 0.0
  %5643 = vadd.xlane.f32.xlu0 %v5642
  %v5644 = vpop.xlane.xlu0 %5643
  %v5645 = vmul.f32 %v5638, %v1487
  %v5646 = vmul.f32 %v5641, %v1487
  %v5647 = vmul.f32 %v5644, %v1487
  %v5648 = vadd.f32 %v5645, 1e-05
  %v5649 = vadd.f32 %v5646, 1e-05
  %v5650 = vadd.f32 %v5647, 1e-05
  %v5651 = vrsqrt.pop %v5648
  %v5652 = vrsqrt.pop %v5649
  %v5653 = vrsqrt.pop %v5650
  %v5654 = vmul.f32 %v5630, %v5651
  %v5655 = vmul.f32 %v5631, %v5652
  %v5656 = vmul.f32 %v5632, %v5653
  %v5658 = vlaneseq
  %v5659 = vshrl.u32 %v5658, 7
  %v5660 = vsub.s32 0, %v5659
  %v5661 = vrot.slane %v5616, %v5660
  %v5663 = vmul.f32 %v5654, %v5661
  %v5664 = vmul.f32 %v5655, %v5661
  %v5665 = vmul.f32 %v5656, %v5661
  %v5667 = vlaneseq
  %v5668 = vshrl.u32 %v5667, 7
  %v5669 = vsub.s32 0, %v5668
  %v5670 = vrot.slane %v5617, %v5669
  %v5672 = vadd.f32 %v5663, %v5670
  %v5673 = vadd.f32 %v5664, %v5670
  %v5674 = vadd.f32 %v5665, %v5670
  %v5675 = vpack.c.bf16 %v5673, %v5672
  %v5676 = vpack.c.bf16 %v5674, %v5674
  %v5677 = vld [vmem:[%s41] sm:$0xf]
  %v5678 = vld [vmem:[%s41 + $0x4] sm:$0xf]
  %v5679 = vld [vmem:[%s41 + $0x8] sm:$0xf]
  %v5680 = vld [vmem:[%s41 + $0xc] sm:$0xf]
  %v5681 = vld [vmem:[%s41 + $0x10] sm:$0xf]
  %v5682 = vld [vmem:[%s41 + $0x14] sm:$0xf]
  %v5683 = vld [vmem:[%s41 + $0x18] sm:$0xf]
  %v5684 = vld [vmem:[%s41 + $0x1c] sm:$0xf]
  %v5685 = vld [vmem:[%s43] sm:$0x1]
  %v5687 = vlaneseq
  %v5688 = vshrl.u32 %v5687, 7
  %v5689 = vsub.s32 0, %v5688
  %v5690 = vrot.slane %v5685, %v5689
  %v5700 = vunpack.c.l.b16 %v5677
  %v5701 = vunpack.c.l.b16 %v5678
  %v5702 = vunpack.c.l.b16 %v5679
  %v5703 = vunpack.c.l.b16 %v5680
  %v5704 = vunpack.c.l.b16 %v5681
  %v5705 = vunpack.c.l.b16 %v5682
  %v5706 = vunpack.c.l.b16 %v5683
  %v5707 = vunpack.c.l.b16 %v5684
  %v5708 = vpack.c.b16 %v5701, %v5700
  %v5709 = vpack.c.b16 %v5703, %v5702
  %v5710 = vpack.c.b16 %v5705, %v5704
  %v5711 = vpack.c.b16 %v5707, %v5706
  %v5717 = vsel %vm1026, %v5675, 0
  %v5720 = vsel %vm1026, %v5676, 0
  %5722 = vmatprep.subr.bf16.mxu0 0
  %5723 = vmatpush1.bf16.msra.mxu0 %v5708
  %5724 = vmatprep.subr.bf16.mxu0 0
  %5725 = vmatpush1.bf16.msra.mxu0 %v5709
  %5726 = vmatprep.subr.bf16.mxu0 0
  %5727 = vmatpush1.bf16.msra.mxu0 %v5710
  %5728 = vmatprep.subr.bf16.mxu0 0
  %5729 = vmatpush1.bf16.msra.mxu0 %v5711
  %5730 = vmatprep.subr.bf16.mxu0 0
  %5731 = vmatpush1.bf16.msra.mxu0 0
  %5732 = vmatprep.subr.bf16.mxu0 0
  %5733 = vmatpush1.bf16.msra.mxu0 0
  %5734 = vmatprep.subr.bf16.mxu0 0
  %5735 = vmatpush1.bf16.msra.mxu0 0
  %5736 = vmatprep.subr.bf16.mxu0 0
  %5737 = vmatpush1.bf16.msra.mxu0 0
  %5738 = vmatprep.subr.bf16.mxu0 0
  %5739 = vmatpush1.bf16.msra.mxu0 0
  %5740 = vmatprep.subr.bf16.mxu0 0
  %5741 = vmatpush1.bf16.msra.mxu0 0
  %5742 = vmatprep.subr.bf16.mxu0 0
  %5743 = vmatpush1.bf16.msra.mxu0 0
  %5744 = vmatprep.subr.bf16.mxu0 0
  %5745 = vmatpush1.bf16.msra.mxu0 0
  %5746 = vmatprep.subr.bf16.mxu0 0
  %5747 = vmatpush1.bf16.msra.mxu0 0
  %5748 = vmatprep.subr.bf16.mxu0 0
  %5749 = vmatpush1.bf16.msra.mxu0 0
  %5750 = vmatprep.subr.bf16.mxu0 0
  %5751 = vmatpush1.bf16.msra.mxu0 0
  %5752 = vmatprep.subr.bf16.mxu0 0
  %5753 = vmatpush1.bf16.msra.mxu0 0
  %5754 = vmatprep.mubr.bf16.mxu0 0
  %5755 = vmatmul.mubr.bf16.gmra.mrb[0].mxu0 %v5717
  %v5756 = vpop.f32.mrb[0].mxu0
  %v5757 = vadd.f32 %v5690, %v5756
  %v5758 = vpop.f32.mrb[0].mxu0
  %v5759 = vpop.f32.mrb[0].mxu0
  %v5760 = vadd.f32 %v5690, %v5759
  %v5761 = vpop.f32.mrb[0].mxu0
  %5762 = vmatprep.mubr.bf16.mxu0 0
  %5763 = vmatmul.mubr.bf16.gmra.mrb[0].mxu0 %v5720
  %v5764 = vpop.f32.mrb[0].mxu0
  %v5765 = vadd.f32 %v5690, %v5764
  %v5766 = vpop.f32.mrb[0].mxu0
  %v5767 = vpop.f32.mrb[0].mxu0
  %v5768 = vpop.f32.mrb[0].mxu0
  %5769 = vdwg.mxu0
  %v5770 = vmul.f32 %v5757, %v5757
  %v5771 = vmul.f32 %v5760, %v5760
  %v5772 = vmul.f32 %v5765, %v5765
  %v5773 = vmul.f32 %v5757, %v5770
  %v5774 = vmul.f32 %v5760, %v5771
  %v5775 = vmul.f32 %v5765, %v5772
  %v5776 = vmul.f32 %v5773, 0.044715
  %v5777 = vmul.f32 %v5774, 0.044715
  %v5778 = vmul.f32 %v5775, 0.044715
  %v5779 = vadd.f32 %v5757, %v5776
  %v5780 = vadd.f32 %v5760, %v5777
  %v5781 = vadd.f32 %v5765, %v5778
  %v5782 = vmul.f32 %v5779, 0.7978846
  %v5783 = vmul.f32 %v5780, 0.7978846
  %v5784 = vmul.f32 %v5781, 0.7978846
  %v5785 = vtanh.pop %v5782
  %v5786 = vtanh.pop %v5783
  %v5787 = vtanh.pop %v5784
  %v5788 = vadd.f32 %v5785, 1.0
  %v5789 = vadd.f32 %v5786, 1.0
  %v5790 = vadd.f32 %v5787, 1.0
  %v5791 = vmul.f32 %v5788, 0.5
  %v5792 = vmul.f32 %v5789, 0.5
  %v5793 = vmul.f32 %v5790, 0.5
  %v5794 = vmul.f32 %v5757, %v5791
  %v5795 = vmul.f32 %v5760, %v5792
  %v5796 = vmul.f32 %v5765, %v5793
  %v5797 = vpack.c.bf16 %v5795, %v5794
  %v5798 = vpack.c.bf16 %v5796, %v5796
  %v5799 = vld [vmem:[%s45] sm:$0xf]
  %v5800 = vld [vmem:[%s45 + $0x4] sm:$0xf]
  %v5801 = vld [vmem:[%s45 + $0x8] sm:$0xf]
  %v5802 = vld [vmem:[%s45 + $0xc] sm:$0xf]
  %v5803 = vld [vmem:[%s45 + $0x10] sm:$0xf]
  %v5804 = vld [vmem:[%s45 + $0x14] sm:$0xf]
  %v5805 = vld [vmem:[%s45 + $0x18] sm:$0xf]
  %v5806 = vld [vmem:[%s45 + $0x1c] sm:$0xf]
  %v5807 = vld [vmem:[%s45 + $0x20] sm:$0xf]
  %v5808 = vld [vmem:[%s45 + $0x24] sm:$0xf]
  %v5809 = vld [vmem:[%s45 + $0x28] sm:$0xf]
  %v5810 = vld [vmem:[%s45 + $0x2c] sm:$0xf]
  %v5811 = vld [vmem:[%s45 + $0x30] sm:$0xf]
  %v5812 = vld [vmem:[%s45 + $0x34] sm:$0xf]
  %v5813 = vld [vmem:[%s45 + $0x38] sm:$0xf]
  %v5814 = vld [vmem:[%s45 + $0x3c] sm:$0xf]
  %v5831 = vunpack.c.l.b16 %v5799
  %v5832 = vunpack.c.l.b16 %v5800
  %v5833 = vunpack.c.l.b16 %v5801
  %v5834 = vunpack.c.l.b16 %v5802
  %v5835 = vunpack.c.l.b16 %v5803
  %v5836 = vunpack.c.l.b16 %v5804
  %v5837 = vunpack.c.l.b16 %v5805
  %v5838 = vunpack.c.l.b16 %v5806
  %v5839 = vunpack.c.l.b16 %v5807
  %v5840 = vunpack.c.l.b16 %v5808
  %v5841 = vunpack.c.l.b16 %v5809
  %v5842 = vunpack.c.l.b16 %v5810
  %v5843 = vunpack.c.l.b16 %v5811
  %v5844 = vunpack.c.l.b16 %v5812
  %v5845 = vunpack.c.l.b16 %v5813
  %v5846 = vunpack.c.l.b16 %v5814
  %v5847 = vpack.c.b16 %v5832, %v5831
  %v5848 = vpack.c.b16 %v5834, %v5833
  %v5849 = vpack.c.b16 %v5836, %v5835
  %v5850 = vpack.c.b16 %v5838, %v5837
  %v5851 = vpack.c.b16 %v5840, %v5839
  %v5852 = vpack.c.b16 %v5842, %v5841
  %v5853 = vpack.c.b16 %v5844, %v5843
  %v5854 = vpack.c.b16 %v5846, %v5845
  %5863 = vmatprep.subr.bf16.mxu0 0
  %5864 = vmatpush1.bf16.msra.mxu0 %v5847
  %5865 = vmatprep.subr.bf16.mxu0 0
  %5866 = vmatpush1.bf16.msra.mxu0 %v5848
  %5867 = vmatprep.subr.bf16.mxu0 0
  %5868 = vmatpush1.bf16.msra.mxu0 %v5849
  %5869 = vmatprep.subr.bf16.mxu0 0
  %5870 = vmatpush1.bf16.msra.mxu0 %v5850
  %5871 = vmatprep.subr.bf16.mxu0 0
  %5872 = vmatpush1.bf16.msra.mxu0 %v5851
  %5873 = vmatprep.subr.bf16.mxu0 0
  %5874 = vmatpush1.bf16.msra.mxu0 %v5852
  %5875 = vmatprep.subr.bf16.mxu0 0
  %5876 = vmatpush1.bf16.msra.mxu0 %v5853
  %5877 = vmatprep.subr.bf16.mxu0 0
  %5878 = vmatpush1.bf16.msra.mxu0 %v5854
  %5879 = vmatprep.subr.bf16.mxu0 0
  %5880 = vmatpush1.bf16.msra.mxu0 0
  %5881 = vmatprep.subr.bf16.mxu0 0
  %5882 = vmatpush1.bf16.msra.mxu0 0
  %5883 = vmatprep.subr.bf16.mxu0 0
  %5884 = vmatpush1.bf16.msra.mxu0 0
  %5885 = vmatprep.subr.bf16.mxu0 0
  %5886 = vmatpush1.bf16.msra.mxu0 0
  %5887 = vmatprep.subr.bf16.mxu0 0
  %5888 = vmatpush1.bf16.msra.mxu0 0
  %5889 = vmatprep.subr.bf16.mxu0 0
  %5890 = vmatpush1.bf16.msra.mxu0 0
  %5891 = vmatprep.subr.bf16.mxu0 0
  %5892 = vmatpush1.bf16.msra.mxu0 0
  %5893 = vmatprep.subr.bf16.mxu0 0
  %5894 = vmatpush1.bf16.msra.mxu0 0
  %5895 = vmatprep.mubr.bf16.mxu0 0
  %5896 = vmatmul.mubr.bf16.gmra.mrb[0].mxu0 %v5797
  %v5897 = vpop.f32.mrb[0].mxu0
  %v5898 = vadd.f32 0.0, %v5897
  %v5899 = vpop.f32.mrb[0].mxu0
  %v5900 = vpop.f32.mrb[0].mxu0
  %v5901 = vadd.f32 0.0, %v5900
  %v5902 = vpop.f32.mrb[0].mxu0
  %5903 = vmatprep.mubr.bf16.mxu0 0
  %5904 = vmatmul.mubr.bf16.gmra.mrb[0].mxu0 %v5798
  %v5905 = vpop.f32.mrb[0].mxu0
  %v5906 = vadd.f32 0.0, %v5905
  %v5907 = vpop.f32.mrb[0].mxu0
  %v5908 = vpop.f32.mrb[0].mxu0
  %v5909 = vpop.f32.mrb[0].mxu0
  %5910 = vdwg.mxu0
  %v5911 = vadd.f32 %v5613, %v5898
  %v5912 = vadd.f32 %v5614, %v5901
  %v5913 = vadd.f32 %v5615, %v5906
  %v5914 = vld [vmem:[%s47] sm:$0x1]
  %v5916 = vlaneseq
  %v5917 = vshrl.u32 %v5916, 7
  %v5918 = vsub.s32 0, %v5917
  %v5919 = vrot.slane %v5914, %v5918
  %v5921 = vadd.f32 %v5911, %v5919
  %v5922 = vadd.f32 %v5912, %v5919
  %v5923 = vadd.f32 %v5913, %v5919
  %s5924 = scalar_lea.vmem %s23, 1
  %v5925 = vld [vmem:[%s5924] sm:$0x1]
  %s5926 = scalar_lea.vmem %s25, 1
  %v5927 = vld [vmem:[%s5926] sm:$0x1]
  %v5928 = vsel %vm1026, %v5921, 0.0
  %5929 = vadd.xlane.f32.xlu0 %v5928
  %v5930 = vpop.xlane.xlu0 %5929
  %v5931 = vsel %vm1026, %v5922, 0.0
  %5932 = vadd.xlane.f32.xlu0 %v5931
  %v5933 = vpop.xlane.xlu0 %5932
  %v5934 = vsel %vm1483, %v5923, 0.0
  %5935 = vadd.xlane.f32.xlu0 %v5934
  %v5936 = vpop.xlane.xlu0 %5935
  %v5937 = vmul.f32 %v5930, %v1487
  %v5938 = vmul.f32 %v5933, %v1487
  %v5939 = vmul.f32 %v5936, %v1487
  %v5940 = vsub.f32 %v5921, %v5937
  %v5941 = vsub.f32 %v5922, %v5938
  %v5942 = vsub.f32 %v5923, %v5939
  %v5943 = vmul.f32 %v5940, %v5940
  %v5944 = vmul.f32 %v5941, %v5941
  %v5945 = vmul.f32 %v5942, %v5942
  %v5946 = vsel %vm1026, %v5943, 0.0
  %5947 = vadd.xlane.f32.xlu0 %v5946
  %v5948 = vpop.xlane.xlu0 %5947
  %v5949 = vsel %vm1026, %v5944, 0.0
  %5950 = vadd.xlane.f32.xlu0 %v5949
  %v5951 = vpop.xlane.xlu0 %5950
  %v5952 = vsel %vm1483, %v5945, 0.0
  %5953 = vadd.xlane.f32.xlu0 %v5952
  %v5954 = vpop.xlane.xlu0 %5953
  %v5955 = vmul.f32 %v5948, %v1487
  %v5956 = vmul.f32 %v5951, %v1487
  %v5957 = vmul.f32 %v5954, %v1487
  %v5958 = vadd.f32 %v5955, 1e-05
  %v5959 = vadd.f32 %v5956, 1e-05
  %v5960 = vadd.f32 %v5957, 1e-05
  %v5961 = vrsqrt.pop %v5958
  %v5962 = vrsqrt.pop %v5959
  %v5963 = vrsqrt.pop %v5960
  %v5964 = vmul.f32 %v5940, %v5961
  %v5965 = vmul.f32 %v5941, %v5962
  %v5966 = vmul.f32 %v5942, %v5963
  %v5968 = vlaneseq
  %v5969 = vshrl.u32 %v5968, 7
  %v5970 = vsub.s32 0, %v5969
  %v5971 = vrot.slane %v5925, %v5970
  %v5973 = vmul.f32 %v5964, %v5971
  %v5974 = vmul.f32 %v5965, %v5971
  %v5975 = vmul.f32 %v5966, %v5971
  %v5977 = vlaneseq
  %v5978 = vshrl.u32 %v5977, 7
  %v5979 = vsub.s32 0, %v5978
  %v5980 = vrot.slane %v5927, %v5979
  %v5982 = vadd.f32 %v5973, %v5980
  %v5983 = vadd.f32 %v5974, %v5980
  %v5984 = vadd.f32 %v5975, %v5980
  %v5985 = vpack.c.bf16 %v5983, %v5982
  %v5986 = vpack.c.bf16 %v5984, %v5984
  %s5987 = scalar_lea.vmem %s27, 256
  %v5988 = vld [vmem:[%s5987] sm:$0xff]
  %v5989 = vld [vmem:[%s5987 + $0x8] sm:$0xff]
  %v5990 = vld [vmem:[%s5987 + $0x10] sm:$0xff]
  %v5991 = vld [vmem:[%s5987 + $0x18] sm:$0xff]
  %v5992 = vld [vmem:[%s5987 + $0x20] sm:$0xff]
  %v5993 = vld [vmem:[%s5987 + $0x28] sm:$0xff]
  %v5994 = vld [vmem:[%s5987 + $0x30] sm:$0xff]
  %v5995 = vld [vmem:[%s5987 + $0x38] sm:$0xff]
  %v5996 = vld [vmem:[%s5987 + $0x40] sm:$0xff]
  %v5997 = vld [vmem:[%s5987 + $0x48] sm:$0xff]
  %v5998 = vld [vmem:[%s5987 + $0x50] sm:$0xff]
  %v5999 = vld [vmem:[%s5987 + $0x58] sm:$0xff]
  %v6000 = vld [vmem:[%s5987 + $0x60] sm:$0xff]
  %v6001 = vld [vmem:[%s5987 + $0x68] sm:$0xff]
  %v6002 = vld [vmem:[%s5987 + $0x70] sm:$0xff]
  %v6003 = vld [vmem:[%s5987 + $0x78] sm:$0xff]
  %v6004 = vld [vmem:[%s5987 + $0x80] sm:$0xff]
  %v6005 = vld [vmem:[%s5987 + $0x88] sm:$0xff]
  %v6006 = vld [vmem:[%s5987 + $0x90] sm:$0xff]
  %v6007 = vld [vmem:[%s5987 + $0x98] sm:$0xff]
  %v6008 = vld [vmem:[%s5987 + $0xa0] sm:$0xff]
  %v6009 = vld [vmem:[%s5987 + $0xa8] sm:$0xff]
  %v6010 = vld [vmem:[%s5987 + $0xb0] sm:$0xff]
  %v6011 = vld [vmem:[%s5987 + $0xb8] sm:$0xff]
  %v6012 = vld [vmem:[%s5987 + $0xc0] sm:$0xff]
  %v6013 = vld [vmem:[%s5987 + $0xc8] sm:$0xff]
  %v6014 = vld [vmem:[%s5987 + $0xd0] sm:$0xff]
  %v6015 = vld [vmem:[%s5987 + $0xd8] sm:$0xff]
  %v6016 = vld [vmem:[%s5987 + $0xe0] sm:$0xff]
  %v6017 = vld [vmem:[%s5987 + $0xe8] sm:$0xff]
  %v6018 = vld [vmem:[%s5987 + $0xf0] sm:$0xff]
  %v6019 = vld [vmem:[%s5987 + $0xf8] sm:$0xff]
  %v6052 = vunpack.c.l.b16 %v5988
  %v6053 = vunpack.c.h.b16 %v5988
  %v6054 = vunpack.c.l.b16 %v5989
  %v6055 = vunpack.c.h.b16 %v5989
  %v6056 = vunpack.c.l.b16 %v5990
  %v6057 = vunpack.c.h.b16 %v5990
  %v6058 = vunpack.c.l.b16 %v5991
  %v6059 = vunpack.c.h.b16 %v5991
  %v6060 = vunpack.c.l.b16 %v5992
  %v6061 = vunpack.c.h.b16 %v5992
  %v6062 = vunpack.c.l.b16 %v5993
  %v6063 = vunpack.c.h.b16 %v5993
  %v6064 = vunpack.c.l.b16 %v5994
  %v6065 = vunpack.c.h.b16 %v5994
  %v6066 = vunpack.c.l.b16 %v5995
  %v6067 = vunpack.c.h.b16 %v5995
  %v6068 = vunpack.c.l.b16 %v5996
  %v6069 = vunpack.c.h.b16 %v5996
  %v6070 = vunpack.c.l.b16 %v5997
  %v6071 = vunpack.c.h.b16 %v5997
  %v6072 = vunpack.c.l.b16 %v5998
  %v6073 = vunpack.c.h.b16 %v5998
  %v6074 = vunpack.c.l.b16 %v5999
  %v6075 = vunpack.c.h.b16 %v5999
  %v6076 = vunpack.c.l.b16 %v6000
  %v6077 = vunpack.c.h.b16 %v6000
  %v6078 = vunpack.c.l.b16 %v6001
  %v6079 = vunpack.c.h.b16 %v6001
  %v6080 = vunpack.c.l.b16 %v6002
  %v6081 = vunpack.c.h.b16 %v6002
  %v6082 = vunpack.c.l.b16 %v6003
  %v6083 = vunpack.c.h.b16 %v6003
  %v6084 = vunpack.c.l.b16 %v6004
  %v6085 = vunpack.c.h.b16 %v6004
  %v6086 = vunpack.c.l.b16 %v6005
  %v6087 = vunpack.c.h.b16 %v6005
  %v6088 = vunpack.c.l.b16 %v6006
  %v6089 = vunpack.c.h.b16 %v6006
  %v6090 = vunpack.c.l.b16 %v6007
  %v6091 = vunpack.c.h.b16 %v6007
  %v6092 = vunpack.c.l.b16 %v6008
  %v6093 = vunpack.c.h.b16 %v6008
  %v6094 = vunpack.c.l.b16 %v6009
  %v6095 = vunpack.c.h.b16 %v6009
  %v6096 = vunpack.c.l.b16 %v6010
  %v6097 = vunpack.c.h.b16 %v6010
  %v6098 = vunpack.c.l.b16 %v6011
  %v6099 = vunpack.c.h.b16 %v6011
  %v6100 = vunpack.c.l.b16 %v6012
  %v6101 = vunpack.c.h.b16 %v6012
  %v6102 = vunpack.c.l.b16 %v6013
  %v6103 = vunpack.c.h.b16 %v6013
  %v6104 = vunpack.c.l.b16 %v6014
  %v6105 = vunpack.c.h.b16 %v6014
  %v6106 = vunpack.c.l.b16 %v6015
  %v6107 = vunpack.c.h.b16 %v6015
  %v6108 = vunpack.c.l.b16 %v6016
  %v6109 = vunpack.c.h.b16 %v6016
  %v6110 = vunpack.c.l.b16 %v6017
  %v6111 = vunpack.c.h.b16 %v6017
  %v6112 = vunpack.c.l.b16 %v6018
  %v6113 = vunpack.c.h.b16 %v6018
  %v6114 = vunpack.c.l.b16 %v6019
  %v6115 = vunpack.c.h.b16 %v6019
  %v6116 = vpack.c.b16 %v6060, %v6052
  %v6117 = vpack.c.b16 %v6061, %v6053
  %v6118 = vpack.c.b16 %v6062, %v6054
  %v6119 = vpack.c.b16 %v6063, %v6055
  %v6120 = vpack.c.b16 %v6064, %v6056
  %v6121 = vpack.c.b16 %v6065, %v6057
  %v6122 = vpack.c.b16 %v6066, %v6058
  %v6123 = vpack.c.b16 %v6067, %v6059
  %v6124 = vpack.c.b16 %v6076, %v6068
  %v6125 = vpack.c.b16 %v6077, %v6069
  %v6126 = vpack.c.b16 %v6078, %v6070
  %v6127 = vpack.c.b16 %v6079, %v6071
  %v6128 = vpack.c.b16 %v6080, %v6072
  %v6129 = vpack.c.b16 %v6081, %v6073
  %v6130 = vpack.c.b16 %v6082, %v6074
  %v6131 = vpack.c.b16 %v6083, %v6075
  %v6132 = vpack.c.b16 %v6092, %v6084
  %v6133 = vpack.c.b16 %v6093, %v6085
  %v6134 = vpack.c.b16 %v6094, %v6086
  %v6135 = vpack.c.b16 %v6095, %v6087
  %v6136 = vpack.c.b16 %v6096, %v6088
  %v6137 = vpack.c.b16 %v6097, %v6089
  %v6138 = vpack.c.b16 %v6098, %v6090
  %v6139 = vpack.c.b16 %v6099, %v6091
  %v6140 = vpack.c.b16 %v6108, %v6100
  %v6141 = vpack.c.b16 %v6109, %v6101
  %v6142 = vpack.c.b16 %v6110, %v6102
  %v6143 = vpack.c.b16 %v6111, %v6103
  %v6144 = vpack.c.b16 %v6112, %v6104
  %v6145 = vpack.c.b16 %v6113, %v6105
  %v6146 = vpack.c.b16 %v6114, %v6106
  %v6147 = vpack.c.b16 %v6115, %v6107
  %v6181 = vsel %vm1026, %v5985, 0
  %v6184 = vsel %vm1026, %v5986, 0
  %6186 = vmatprep.subr.bf16.mxu0 %v6117
  %6187 = vmatpush1.bf16.msra.mxu0 %v6116
  %6188 = vmatprep.subr.bf16.mxu0 %v6125
  %6189 = vmatpush1.bf16.msra.mxu0 %v6124
  %6190 = vmatprep.subr.bf16.mxu0 %v6133
  %6191 = vmatpush1.bf16.msra.mxu0 %v6132
  %6192 = vmatprep.subr.bf16.mxu0 %v6141
  %6193 = vmatpush1.bf16.msra.mxu0 %v6140
  %6194 = vmatprep.subr.bf16.mxu0 0
  %6195 = vmatpush1.bf16.msra.mxu0 0
  %6196 = vmatprep.subr.bf16.mxu0 0
  %6197 = vmatpush1.bf16.msra.mxu0 0
  %6198 = vmatprep.subr.bf16.mxu0 0
  %6199 = vmatpush1.bf16.msra.mxu0 0
  %6200 = vmatprep.subr.bf16.mxu0 0
  %6201 = vmatpush1.bf16.msra.mxu0 0
  %6202 = vmatprep.subr.bf16.mxu0 0
  %6203 = vmatpush1.bf16.msra.mxu0 0
  %6204 = vmatprep.subr.bf16.mxu0 0
  %6205 = vmatpush1.bf16.msra.mxu0 0
  %6206 = vmatprep.subr.bf16.mxu0 0
  %6207 = vmatpush1.bf16.msra.mxu0 0
  %6208 = vmatprep.subr.bf16.mxu0 0
  %6209 = vmatpush1.bf16.msra.mxu0 0
  %6210 = vmatprep.subr.bf16.mxu0 0
  %6211 = vmatpush1.bf16.msra.mxu0 0
  %6212 = vmatprep.subr.bf16.mxu0 0
  %6213 = vmatpush1.bf16.msra.mxu0 0
  %6214 = vmatprep.subr.bf16.mxu0 0
  %6215 = vmatpush1.bf16.msra.mxu0 0
  %6216 = vmatprep.subr.bf16.mxu0 0
  %6217 = vmatpush1.bf16.msra.mxu0 0
  %6218 = vmatprep.mubr.bf16.mxu0 0
  %6219 = vmatmul.mubr.bf16.gmra.mrb[0].mxu0 %v6181
  %v6220 = vpop.f32.mrb[0].mxu0
  %v6221 = vadd.f32 0.0, %v6220
  %v6222 = vpop.f32.mrb[0].mxu0
  %v6223 = vadd.f32 0.0, %v6222
  %v6224 = vpop.f32.mrb[0].mxu0
  %v6225 = vadd.f32 0.0, %v6224
  %v6226 = vpop.f32.mrb[0].mxu0
  %v6227 = vadd.f32 0.0, %v6226
  %6228 = vmatprep.mubr.bf16.mxu0 0
  %6229 = vmatmul.mubr.bf16.gmra.mrb[0].mxu0 %v6184
  %v6230 = vpop.f32.mrb[0].mxu0
  %v6231 = vadd.f32 0.0, %v6230
  %v6232 = vpop.f32.mrb[0].mxu0
  %v6233 = vadd.f32 0.0, %v6232
  %v6234 = vpop.f32.mrb[0].mxu0
  %v6235 = vpop.f32.mrb[0].mxu0
  %6236 = vdwg.mxu0
  %6237 = vmatprep.subr.bf16.mxu0 %v6119
  %6238 = vmatpush1.bf16.msra.mxu0 %v6118
  %6239 = vmatprep.subr.bf16.mxu0 %v6127
  %6240 = vmatpush1.bf16.msra.mxu0 %v6126
  %6241 = vmatprep.subr.bf16.mxu0 %v6135
  %6242 = vmatpush1.bf16.msra.mxu0 %v6134
  %6243 = vmatprep.subr.bf16.mxu0 %v6143
  %6244 = vmatpush1.bf16.msra.mxu0 %v6142
  %6245 = vmatprep.subr.bf16.mxu0 0
  %6246 = vmatpush1.bf16.msra.mxu0 0
  %6247 = vmatprep.subr.bf16.mxu0 0
  %6248 = vmatpush1.bf16.msra.mxu0 0
  %6249 = vmatprep.subr.bf16.mxu0 0
  %6250 = vmatpush1.bf16.msra.mxu0 0
  %6251 = vmatprep.subr.bf16.mxu0 0
  %6252 = vmatpush1.bf16.msra.mxu0 0
  %6253 = vmatprep.subr.bf16.mxu0 0
  %6254 = vmatpush1.bf16.msra.mxu0 0
  %6255 = vmatprep.subr.bf16.mxu0 0
  %6256 = vmatpush1.bf16.msra.mxu0 0
  %6257 = vmatprep.subr.bf16.mxu0 0
  %6258 = vmatpush1.bf16.msra.mxu0 0
  %6259 = vmatprep.subr.bf16.mxu0 0
  %6260 = vmatpush1.bf16.msra.mxu0 0
  %6261 = vmatprep.subr.bf16.mxu0 0
  %6262 = vmatpush1.bf16.msra.mxu0 0
  %6263 = vmatprep.subr.bf16.mxu0 0
  %6264 = vmatpush1.bf16.msra.mxu0 0
  %6265 = vmatprep.subr.bf16.mxu0 0
  %6266 = vmatpush1.bf16.msra.mxu0 0
  %6267 = vmatprep.subr.bf16.mxu0 0
  %6268 = vmatpush1.bf16.msra.mxu0 0
  %6269 = vmatprep.mubr.bf16.mxu0 0
  %6270 = vmatmul.mubr.bf16.gmra.mrb[0].mxu0 %v6181
  %v6271 = vpop.f32.mrb[0].mxu0
  %v6272 = vadd.f32 0.0, %v6271
  %v6273 = vpop.f32.mrb[0].mxu0
  %v6274 = vadd.f32 0.0, %v6273
  %v6275 = vpop.f32.mrb[0].mxu0
  %v6276 = vadd.f32 0.0, %v6275
  %v6277 = vpop.f32.mrb[0].mxu0
  %v6278 = vadd.f32 0.0, %v6277
  %6279 = vmatprep.mubr.bf16.mxu0 0
  %6280 = vmatmul.mubr.bf16.gmra.mrb[0].mxu0 %v6184
  %v6281 = vpop.f32.mrb[0].mxu0
  %v6282 = vadd.f32 0.0, %v6281
  %v6283 = vpop.f32.mrb[0].mxu0
  %v6284 = vadd.f32 0.0, %v6283
  %v6285 = vpop.f32.mrb[0].mxu0
  %v6286 = vpop.f32.mrb[0].mxu0
  %6287 = vdwg.mxu0
  %6288 = vmatprep.subr.bf16.mxu0 %v6121
  %6289 = vmatpush1.bf16.msra.mxu0 %v6120
  %6290 = vmatprep.subr.bf16.mxu0 %v6129
  %6291 = vmatpush1.bf16.msra.mxu0 %v6128
  %6292 = vmatprep.subr.bf16.mxu0 %v6137
  %6293 = vmatpush1.bf16.msra.mxu0 %v6136
  %6294 = vmatprep.subr.bf16.mxu0 %v6145
  %6295 = vmatpush1.bf16.msra.mxu0 %v6144
  %6296 = vmatprep.subr.bf16.mxu0 0
  %6297 = vmatpush1.bf16.msra.mxu0 0
  %6298 = vmatprep.subr.bf16.mxu0 0
  %6299 = vmatpush1.bf16.msra.mxu0 0
  %6300 = vmatprep.subr.bf16.mxu0 0
  %6301 = vmatpush1.bf16.msra.mxu0 0
  %6302 = vmatprep.subr.bf16.mxu0 0
  %6303 = vmatpush1.bf16.msra.mxu0 0
  %6304 = vmatprep.subr.bf16.mxu0 0
  %6305 = vmatpush1.bf16.msra.mxu0 0
  %6306 = vmatprep.subr.bf16.mxu0 0
  %6307 = vmatpush1.bf16.msra.mxu0 0
  %6308 = vmatprep.subr.bf16.mxu0 0
  %6309 = vmatpush1.bf16.msra.mxu0 0
  %6310 = vmatprep.subr.bf16.mxu0 0
  %6311 = vmatpush1.bf16.msra.mxu0 0
  %6312 = vmatprep.subr.bf16.mxu0 0
  %6313 = vmatpush1.bf16.msra.mxu0 0
  %6314 = vmatprep.subr.bf16.mxu0 0
  %6315 = vmatpush1.bf16.msra.mxu0 0
  %6316 = vmatprep.subr.bf16.mxu0 0
  %6317 = vmatpush1.bf16.msra.mxu0 0
  %6318 = vmatprep.subr.bf16.mxu0 0
  %6319 = vmatpush1.bf16.msra.mxu0 0
  %6320 = vmatprep.mubr.bf16.mxu0 0
  %6321 = vmatmul.mubr.bf16.gmra.mrb[0].mxu0 %v6181
  %v6322 = vpop.f32.mrb[0].mxu0
  %v6323 = vadd.f32 0.0, %v6322
  %v6324 = vpop.f32.mrb[0].mxu0
  %v6325 = vadd.f32 0.0, %v6324
  %v6326 = vpop.f32.mrb[0].mxu0
  %v6327 = vadd.f32 0.0, %v6326
  %v6328 = vpop.f32.mrb[0].mxu0
  %v6329 = vadd.f32 0.0, %v6328
  %6330 = vmatprep.mubr.bf16.mxu0 0
  %6331 = vmatmul.mubr.bf16.gmra.mrb[0].mxu0 %v6184
  %v6332 = vpop.f32.mrb[0].mxu0
  %v6333 = vadd.f32 0.0, %v6332
  %v6334 = vpop.f32.mrb[0].mxu0
  %v6335 = vadd.f32 0.0, %v6334
  %v6336 = vpop.f32.mrb[0].mxu0
  %v6337 = vpop.f32.mrb[0].mxu0
  %6338 = vdwg.mxu0
  %6339 = vmatprep.subr.bf16.mxu0 %v6123
  %6340 = vmatpush1.bf16.msra.mxu0 %v6122
  %6341 = vmatprep.subr.bf16.mxu0 %v6131
  %6342 = vmatpush1.bf16.msra.mxu0 %v6130
  %6343 = vmatprep.subr.bf16.mxu0 %v6139
  %6344 = vmatpush1.bf16.msra.mxu0 %v6138
  %6345 = vmatprep.subr.bf16.mxu0 %v6147
  %6346 = vmatpush1.bf16.msra.mxu0 %v6146
  %6347 = vmatprep.subr.bf16.mxu0 0
  %6348 = vmatpush1.bf16.msra.mxu0 0
  %6349 = vmatprep.subr.bf16.mxu0 0
  %6350 = vmatpush1.bf16.msra.mxu0 0
  %6351 = vmatprep.subr.bf16.mxu0 0
  %6352 = vmatpush1.bf16.msra.mxu0 0
  %6353 = vmatprep.subr.bf16.mxu0 0
  %6354 = vmatpush1.bf16.msra.mxu0 0
  %6355 = vmatprep.subr.bf16.mxu0 0
  %6356 = vmatpush1.bf16.msra.mxu0 0
  %6357 = vmatprep.subr.bf16.mxu0 0
  %6358 = vmatpush1.bf16.msra.mxu0 0
  %6359 = vmatprep.subr.bf16.mxu0 0
  %6360 = vmatpush1.bf16.msra.mxu0 0
  %6361 = vmatprep.subr.bf16.mxu0 0
  %6362 = vmatpush1.bf16.msra.mxu0 0
  %6363 = vmatprep.subr.bf16.mxu0 0
  %6364 = vmatpush1.bf16.msra.mxu0 0
  %6365 = vmatprep.subr.bf16.mxu0 0
  %6366 = vmatpush1.bf16.msra.mxu0 0
  %6367 = vmatprep.subr.bf16.mxu0 0
  %6368 = vmatpush1.bf16.msra.mxu0 0
  %6369 = vmatprep.subr.bf16.mxu0 0
  %6370 = vmatpush1.bf16.msra.mxu0 0
  %6371 = vmatprep.mubr.bf16.mxu0 0
  %6372 = vmatmul.mubr.bf16.gmra.mrb[0].mxu0 %v6181
  %v6373 = vpop.f32.mrb[0].mxu0
  %v6374 = vadd.f32 0.0, %v6373
  %v6375 = vpop.f32.mrb[0].mxu0
  %v6376 = vadd.f32 0.0, %v6375
  %v6377 = vpop.f32.mrb[0].mxu0
  %v6378 = vadd.f32 0.0, %v6377
  %v6379 = vpop.f32.mrb[0].mxu0
  %v6380 = vadd.f32 0.0, %v6379
  %6381 = vmatprep.mubr.bf16.mxu0 0
  %6382 = vmatmul.mubr.bf16.gmra.mrb[0].mxu0 %v6184
  %v6383 = vpop.f32.mrb[0].mxu0
  %v6384 = vadd.f32 0.0, %v6383
  %v6385 = vpop.f32.mrb[0].mxu0
  %v6386 = vadd.f32 0.0, %v6385
  %v6387 = vpop.f32.mrb[0].mxu0
  %v6388 = vpop.f32.mrb[0].mxu0
  %6389 = vdwg.mxu0
  %v6390 = vpack.c.bf16 %v6225, %v6221
  %v6391 = vpack.c.bf16 %v6227, %v6223
  %v6392 = vpack.c.bf16 %v6276, %v6272
  %v6393 = vpack.c.bf16 %v6278, %v6274
  %v6394 = vpack.c.bf16 %v6327, %v6323
  %v6395 = vpack.c.bf16 %v6329, %v6325
  %v6396 = vpack.c.bf16 %v6378, %v6374
  %v6397 = vpack.c.bf16 %v6380, %v6376
  %v6398 = vpack.c.bf16 %v6231, %v6231
  %v6399 = vpack.c.bf16 %v6233, %v6233
  %v6400 = vpack.c.bf16 %v6282, %v6282
  %v6401 = vpack.c.bf16 %v6284, %v6284
  %v6402 = vpack.c.bf16 %v6333, %v6333
  %v6403 = vpack.c.bf16 %v6335, %v6335
  %v6404 = vpack.c.bf16 %v6384, %v6384
  %v6405 = vpack.c.bf16 %v6386, %v6386
  %s6406 = scalar_lea.vmem %s29, 256
  %v6407 = vld [vmem:[%s6406] sm:$0xff]
  %v6408 = vld [vmem:[%s6406 + $0x8] sm:$0xff]
  %v6409 = vld [vmem:[%s6406 + $0x10] sm:$0xff]
  %v6410 = vld [vmem:[%s6406 + $0x18] sm:$0xff]
  %v6411 = vld [vmem:[%s6406 + $0x20] sm:$0xff]
  %v6412 = vld [vmem:[%s6406 + $0x28] sm:$0xff]
  %v6413 = vld [vmem:[%s6406 + $0x30] sm:$0xff]
  %v6414 = vld [vmem:[%s6406 + $0x38] sm:$0xff]
  %v6415 = vld [vmem:[%s6406 + $0x40] sm:$0xff]
  %v6416 = vld [vmem:[%s6406 + $0x48] sm:$0xff]
  %v6417 = vld [vmem:[%s6406 + $0x50] sm:$0xff]
  %v6418 = vld [vmem:[%s6406 + $0x58] sm:$0xff]
  %v6419 = vld [vmem:[%s6406 + $0x60] sm:$0xff]
  %v6420 = vld [vmem:[%s6406 + $0x68] sm:$0xff]
  %v6421 = vld [vmem:[%s6406 + $0x70] sm:$0xff]
  %v6422 = vld [vmem:[%s6406 + $0x78] sm:$0xff]
  %v6423 = vld [vmem:[%s6406 + $0x80] sm:$0xff]
  %v6424 = vld [vmem:[%s6406 + $0x88] sm:$0xff]
  %v6425 = vld [vmem:[%s6406 + $0x90] sm:$0xff]
  %v6426 = vld [vmem:[%s6406 + $0x98] sm:$0xff]
  %v6427 = vld [vmem:[%s6406 + $0xa0] sm:$0xff]
  %v6428 = vld [vmem:[%s6406 + $0xa8] sm:$0xff]
  %v6429 = vld [vmem:[%s6406 + $0xb0] sm:$0xff]
  %v6430 = vld [vmem:[%s6406 + $0xb8] sm:$0xff]
  %v6431 = vld [vmem:[%s6406 + $0xc0] sm:$0xff]
  %v6432 = vld [vmem:[%s6406 + $0xc8] sm:$0xff]
  %v6433 = vld [vmem:[%s6406 + $0xd0] sm:$0xff]
  %v6434 = vld [vmem:[%s6406 + $0xd8] sm:$0xff]
  %v6435 = vld [vmem:[%s6406 + $0xe0] sm:$0xff]
  %v6436 = vld [vmem:[%s6406 + $0xe8] sm:$0xff]
  %v6437 = vld [vmem:[%s6406 + $0xf0] sm:$0xff]
  %v6438 = vld [vmem:[%s6406 + $0xf8] sm:$0xff]
  %v6471 = vunpack.c.l.b16 %v6407
  %v6472 = vunpack.c.h.b16 %v6407
  %v6473 = vunpack.c.l.b16 %v6408
  %v6474 = vunpack.c.h.b16 %v6408
  %v6475 = vunpack.c.l.b16 %v6409
  %v6476 = vunpack.c.h.b16 %v6409
  %v6477 = vunpack.c.l.b16 %v6410
  %v6478 = vunpack.c.h.b16 %v6410
  %v6479 = vunpack.c.l.b16 %v6411
  %v6480 = vunpack.c.h.b16 %v6411
  %v6481 = vunpack.c.l.b16 %v6412
  %v6482 = vunpack.c.h.b16 %v6412
  %v6483 = vunpack.c.l.b16 %v6413
  %v6484 = vunpack.c.h.b16 %v6413
  %v6485 = vunpack.c.l.b16 %v6414
  %v6486 = vunpack.c.h.b16 %v6414
  %v6487 = vunpack.c.l.b16 %v6415
  %v6488 = vunpack.c.h.b16 %v6415
  %v6489 = vunpack.c.l.b16 %v6416
  %v6490 = vunpack.c.h.b16 %v6416
  %v6491 = vunpack.c.l.b16 %v6417
  %v6492 = vunpack.c.h.b16 %v6417
  %v6493 = vunpack.c.l.b16 %v6418
  %v6494 = vunpack.c.h.b16 %v6418
  %v6495 = vunpack.c.l.b16 %v6419
  %v6496 = vunpack.c.h.b16 %v6419
  %v6497 = vunpack.c.l.b16 %v6420
  %v6498 = vunpack.c.h.b16 %v6420
  %v6499 = vunpack.c.l.b16 %v6421
  %v6500 = vunpack.c.h.b16 %v6421
  %v6501 = vunpack.c.l.b16 %v6422
  %v6502 = vunpack.c.h.b16 %v6422
  %v6503 = vunpack.c.l.b16 %v6423
  %v6504 = vunpack.c.h.b16 %v6423
  %v6505 = vunpack.c.l.b16 %v6424
  %v6506 = vunpack.c.h.b16 %v6424
  %v6507 = vunpack.c.l.b16 %v6425
  %v6508 = vunpack.c.h.b16 %v6425
  %v6509 = vunpack.c.l.b16 %v6426
  %v6510 = vunpack.c.h.b16 %v6426
  %v6511 = vunpack.c.l.b16 %v6427
  %v6512 = vunpack.c.h.b16 %v6427
  %v6513 = vunpack.c.l.b16 %v6428
  %v6514 = vunpack.c.h.b16 %v6428
  %v6515 = vunpack.c.l.b16 %v6429
  %v6516 = vunpack.c.h.b16 %v6429
  %v6517 = vunpack.c.l.b16 %v6430
  %v6518 = vunpack.c.h.b16 %v6430
  %v6519 = vunpack.c.l.b16 %v6431
  %v6520 = vunpack.c.h.b16 %v6431
  %v6521 = vunpack.c.l.b16 %v6432
  %v6522 = vunpack.c.h.b16 %v6432
  %v6523 = vunpack.c.l.b16 %v6433
  %v6524 = vunpack.c.h.b16 %v6433
  %v6525 = vunpack.c.l.b16 %v6434
  %v6526 = vunpack.c.h.b16 %v6434
  %v6527 = vunpack.c.l.b16 %v6435
  %v6528 = vunpack.c.h.b16 %v6435
  %v6529 = vunpack.c.l.b16 %v6436
  %v6530 = vunpack.c.h.b16 %v6436
  %v6531 = vunpack.c.l.b16 %v6437
  %v6532 = vunpack.c.h.b16 %v6437
  %v6533 = vunpack.c.l.b16 %v6438
  %v6534 = vunpack.c.h.b16 %v6438
  %v6535 = vpack.c.b16 %v6479, %v6471
  %v6536 = vpack.c.b16 %v6480, %v6472
  %v6537 = vpack.c.b16 %v6481, %v6473
  %v6538 = vpack.c.b16 %v6482, %v6474
  %v6539 = vpack.c.b16 %v6483, %v6475
  %v6540 = vpack.c.b16 %v6484, %v6476
  %v6541 = vpack.c.b16 %v6485, %v6477
  %v6542 = vpack.c.b16 %v6486, %v6478
  %v6543 = vpack.c.b16 %v6495, %v6487
  %v6544 = vpack.c.b16 %v6496, %v6488
  %v6545 = vpack.c.b16 %v6497, %v6489
  %v6546 = vpack.c.b16 %v6498, %v6490
  %v6547 = vpack.c.b16 %v6499, %v6491
  %v6548 = vpack.c.b16 %v6500, %v6492
  %v6549 = vpack.c.b16 %v6501, %v6493
  %v6550 = vpack.c.b16 %v6502, %v6494
  %v6551 = vpack.c.b16 %v6511, %v6503
  %v6552 = vpack.c.b16 %v6512, %v6504
  %v6553 = vpack.c.b16 %v6513, %v6505
  %v6554 = vpack.c.b16 %v6514, %v6506
  %v6555 = vpack.c.b16 %v6515, %v6507
  %v6556 = vpack.c.b16 %v6516, %v6508
  %v6557 = vpack.c.b16 %v6517, %v6509
  %v6558 = vpack.c.b16 %v6518, %v6510
  %v6559 = vpack.c.b16 %v6527, %v6519
  %v6560 = vpack.c.b16 %v6528, %v6520
  %v6561 = vpack.c.b16 %v6529, %v6521
  %v6562 = vpack.c.b16 %v6530, %v6522
  %v6563 = vpack.c.b16 %v6531, %v6523
  %v6564 = vpack.c.b16 %v6532, %v6524
  %v6565 = vpack.c.b16 %v6533, %v6525
  %v6566 = vpack.c.b16 %v6534, %v6526
  %6599 = vmatprep.subr.bf16.mxu0 %v6536
  %6600 = vmatpush1.bf16.msra.mxu0 %v6535
  %6601 = vmatprep.subr.bf16.mxu0 %v6544
  %6602 = vmatpush1.bf16.msra.mxu0 %v6543
  %6603 = vmatprep.subr.bf16.mxu0 %v6552
  %6604 = vmatpush1.bf16.msra.mxu0 %v6551
  %6605 = vmatprep.subr.bf16.mxu0 %v6560
  %6606 = vmatpush1.bf16.msra.mxu0 %v6559
  %6607 = vmatprep.subr.bf16.mxu0 0
  %6608 = vmatpush1.bf16.msra.mxu0 0
  %6609 = vmatprep.subr.bf16.mxu0 0
  %6610 = vmatpush1.bf16.msra.mxu0 0
  %6611 = vmatprep.subr.bf16.mxu0 0
  %6612 = vmatpush1.bf16.msra.mxu0 0
  %6613 = vmatprep.subr.bf16.mxu0 0
  %6614 = vmatpush1.bf16.msra.mxu0 0
  %6615 = vmatprep.subr.bf16.mxu0 0
  %6616 = vmatpush1.bf16.msra.mxu0 0
  %6617 = vmatprep.subr.bf16.mxu0 0
  %6618 = vmatpush1.bf16.msra.mxu0 0
  %6619 = vmatprep.subr.bf16.mxu0 0
  %6620 = vmatpush1.bf16.msra.mxu0 0
  %6621 = vmatprep.subr.bf16.mxu0 0
  %6622 = vmatpush1.bf16.msra.mxu0 0
  %6623 = vmatprep.subr.bf16.mxu0 0
  %6624 = vmatpush1.bf16.msra.mxu0 0
  %6625 = vmatprep.subr.bf16.mxu0 0
  %6626 = vmatpush1.bf16.msra.mxu0 0
  %6627 = vmatprep.subr.bf16.mxu0 0
  %6628 = vmatpush1.bf16.msra.mxu0 0
  %6629 = vmatprep.subr.bf16.mxu0 0
  %6630 = vmatpush1.bf16.msra.mxu0 0
  %6631 = vmatprep.mubr.bf16.mxu0 0
  %6632 = vmatmul.mubr.bf16.gmra.mrb[0].mxu0 %v6181
  %v6633 = vpop.f32.mrb[0].mxu0
  %v6634 = vadd.f32 0.0, %v6633
  %v6635 = vpop.f32.mrb[0].mxu0
  %v6636 = vadd.f32 0.0, %v6635
  %v6637 = vpop.f32.mrb[0].mxu0
  %v6638 = vadd.f32 0.0, %v6637
  %v6639 = vpop.f32.mrb[0].mxu0
  %v6640 = vadd.f32 0.0, %v6639
  %6641 = vmatprep.mubr.bf16.mxu0 0
  %6642 = vmatmul.mubr.bf16.gmra.mrb[0].mxu0 %v6184
  %v6643 = vpop.f32.mrb[0].mxu0
  %v6644 = vadd.f32 0.0, %v6643
  %v6645 = vpop.f32.mrb[0].mxu0
  %v6646 = vadd.f32 0.0, %v6645
  %v6647 = vpop.f32.mrb[0].mxu0
  %v6648 = vpop.f32.mrb[0].mxu0
  %6649 = vdwg.mxu0
  %6650 = vmatprep.subr.bf16.mxu0 %v6538
  %6651 = vmatpush1.bf16.msra.mxu0 %v6537
  %6652 = vmatprep.subr.bf16.mxu0 %v6546
  %6653 = vmatpush1.bf16.msra.mxu0 %v6545
  %6654 = vmatprep.subr.bf16.mxu0 %v6554
  %6655 = vmatpush1.bf16.msra.mxu0 %v6553
  %6656 = vmatprep.subr.bf16.mxu0 %v6562
  %6657 = vmatpush1.bf16.msra.mxu0 %v6561
  %6658 = vmatprep.subr.bf16.mxu0 0
  %6659 = vmatpush1.bf16.msra.mxu0 0
  %6660 = vmatprep.subr.bf16.mxu0 0
  %6661 = vmatpush1.bf16.msra.mxu0 0
  %6662 = vmatprep.subr.bf16.mxu0 0
  %6663 = vmatpush1.bf16.msra.mxu0 0
  %6664 = vmatprep.subr.bf16.mxu0 0
  %6665 = vmatpush1.bf16.msra.mxu0 0
  %6666 = vmatprep.subr.bf16.mxu0 0
  %6667 = vmatpush1.bf16.msra.mxu0 0
  %6668 = vmatprep.subr.bf16.mxu0 0
  %6669 = vmatpush1.bf16.msra.mxu0 0
  %6670 = vmatprep.subr.bf16.mxu0 0
  %6671 = vmatpush1.bf16.msra.mxu0 0
  %6672 = vmatprep.subr.bf16.mxu0 0
  %6673 = vmatpush1.bf16.msra.mxu0 0
  %6674 = vmatprep.subr.bf16.mxu0 0
  %6675 = vmatpush1.bf16.msra.mxu0 0
  %6676 = vmatprep.subr.bf16.mxu0 0
  %6677 = vmatpush1.bf16.msra.mxu0 0
  %6678 = vmatprep.subr.bf16.mxu0 0
  %6679 = vmatpush1.bf16.msra.mxu0 0
  %6680 = vmatprep.subr.bf16.mxu0 0
  %6681 = vmatpush1.bf16.msra.mxu0 0
  %6682 = vmatprep.mubr.bf16.mxu0 0
  %6683 = vmatmul.mubr.bf16.gmra.mrb[0].mxu0 %v6181
  %v6684 = vpop.f32.mrb[0].mxu0
  %v6685 = vadd.f32 0.0, %v6684
  %v6686 = vpop.f32.mrb[0].mxu0
  %v6687 = vadd.f32 0.0, %v6686
  %v6688 = vpop.f32.mrb[0].mxu0
  %v6689 = vadd.f32 0.0, %v6688
  %v6690 = vpop.f32.mrb[0].mxu0
  %v6691 = vadd.f32 0.0, %v6690
  %6692 = vmatprep.mubr.bf16.mxu0 0
  %6693 = vmatmul.mubr.bf16.gmra.mrb[0].mxu0 %v6184
  %v6694 = vpop.f32.mrb[0].mxu0
  %v6695 = vadd.f32 0.0, %v6694
  %v6696 = vpop.f32.mrb[0].mxu0
  %v6697 = vadd.f32 0.0, %v6696
  %v6698 = vpop.f32.mrb[0].mxu0
  %v6699 = vpop.f32.mrb[0].mxu0
  %6700 = vdwg.mxu0
  %6701 = vmatprep.subr.bf16.mxu0 %v6540
  %6702 = vmatpush1.bf16.msra.mxu0 %v6539
  %6703 = vmatprep.subr.bf16.mxu0 %v6548
  %6704 = vmatpush1.bf16.msra.mxu0 %v6547
  %6705 = vmatprep.subr.bf16.mxu0 %v6556
  %6706 = vmatpush1.bf16.msra.mxu0 %v6555
  %6707 = vmatprep.subr.bf16.mxu0 %v6564
  %6708 = vmatpush1.bf16.msra.mxu0 %v6563
  %6709 = vmatprep.subr.bf16.mxu0 0
  %6710 = vmatpush1.bf16.msra.mxu0 0
  %6711 = vmatprep.subr.bf16.mxu0 0
  %6712 = vmatpush1.bf16.msra.mxu0 0
  %6713 = vmatprep.subr.bf16.mxu0 0
  %6714 = vmatpush1.bf16.msra.mxu0 0
  %6715 = vmatprep.subr.bf16.mxu0 0
  %6716 = vmatpush1.bf16.msra.mxu0 0
  %6717 = vmatprep.subr.bf16.mxu0 0
  %6718 = vmatpush1.bf16.msra.mxu0 0
  %6719 = vmatprep.subr.bf16.mxu0 0
  %6720 = vmatpush1.bf16.msra.mxu0 0
  %6721 = vmatprep.subr.bf16.mxu0 0
  %6722 = vmatpush1.bf16.msra.mxu0 0
  %6723 = vmatprep.subr.bf16.mxu0 0
  %6724 = vmatpush1.bf16.msra.mxu0 0
  %6725 = vmatprep.subr.bf16.mxu0 0
  %6726 = vmatpush1.bf16.msra.mxu0 0
  %6727 = vmatprep.subr.bf16.mxu0 0
  %6728 = vmatpush1.bf16.msra.mxu0 0
  %6729 = vmatprep.subr.bf16.mxu0 0
  %6730 = vmatpush1.bf16.msra.mxu0 0
  %6731 = vmatprep.subr.bf16.mxu0 0
  %6732 = vmatpush1.bf16.msra.mxu0 0
  %6733 = vmatprep.mubr.bf16.mxu0 0
  %6734 = vmatmul.mubr.bf16.gmra.mrb[0].mxu0 %v6181
  %v6735 = vpop.f32.mrb[0].mxu0
  %v6736 = vadd.f32 0.0, %v6735
  %v6737 = vpop.f32.mrb[0].mxu0
  %v6738 = vadd.f32 0.0, %v6737
  %v6739 = vpop.f32.mrb[0].mxu0
  %v6740 = vadd.f32 0.0, %v6739
  %v6741 = vpop.f32.mrb[0].mxu0
  %v6742 = vadd.f32 0.0, %v6741
  %6743 = vmatprep.mubr.bf16.mxu0 0
  %6744 = vmatmul.mubr.bf16.gmra.mrb[0].mxu0 %v6184
  %v6745 = vpop.f32.mrb[0].mxu0
  %v6746 = vadd.f32 0.0, %v6745
  %v6747 = vpop.f32.mrb[0].mxu0
  %v6748 = vadd.f32 0.0, %v6747
  %v6749 = vpop.f32.mrb[0].mxu0
  %v6750 = vpop.f32.mrb[0].mxu0
  %6751 = vdwg.mxu0
  %6752 = vmatprep.subr.bf16.mxu0 %v6542
  %6753 = vmatpush1.bf16.msra.mxu0 %v6541
  %6754 = vmatprep.subr.bf16.mxu0 %v6550
  %6755 = vmatpush1.bf16.msra.mxu0 %v6549
  %6756 = vmatprep.subr.bf16.mxu0 %v6558
  %6757 = vmatpush1.bf16.msra.mxu0 %v6557
  %6758 = vmatprep.subr.bf16.mxu0 %v6566
  %6759 = vmatpush1.bf16.msra.mxu0 %v6565
  %6760 = vmatprep.subr.bf16.mxu0 0
  %6761 = vmatpush1.bf16.msra.mxu0 0
  %6762 = vmatprep.subr.bf16.mxu0 0
  %6763 = vmatpush1.bf16.msra.mxu0 0
  %6764 = vmatprep.subr.bf16.mxu0 0
  %6765 = vmatpush1.bf16.msra.mxu0 0
  %6766 = vmatprep.subr.bf16.mxu0 0
  %6767 = vmatpush1.bf16.msra.mxu0 0
  %6768 = vmatprep.subr.bf16.mxu0 0
  %6769 = vmatpush1.bf16.msra.mxu0 0
  %6770 = vmatprep.subr.bf16.mxu0 0
  %6771 = vmatpush1.bf16.msra.mxu0 0
  %6772 = vmatprep.subr.bf16.mxu0 0
  %6773 = vmatpush1.bf16.msra.mxu0 0
  %6774 = vmatprep.subr.bf16.mxu0 0
  %6775 = vmatpush1.bf16.msra.mxu0 0
  %6776 = vmatprep.subr.bf16.mxu0 0
  %6777 = vmatpush1.bf16.msra.mxu0 0
  %6778 = vmatprep.subr.bf16.mxu0 0
  %6779 = vmatpush1.bf16.msra.mxu0 0
  %6780 = vmatprep.subr.bf16.mxu0 0
  %6781 = vmatpush1.bf16.msra.mxu0 0
  %6782 = vmatprep.subr.bf16.mxu0 0
  %6783 = vmatpush1.bf16.msra.mxu0 0
  %6784 = vmatprep.mubr.bf16.mxu0 0
  %6785 = vmatmul.mubr.bf16.gmra.mrb[0].mxu0 %v6181
  %v6786 = vpop.f32.mrb[0].mxu0
  %v6787 = vadd.f32 0.0, %v6786
  %v6788 = vpop.f32.mrb[0].mxu0
  %v6789 = vadd.f32 0.0, %v6788
  %v6790 = vpop.f32.mrb[0].mxu0
  %v6791 = vadd.f32 0.0, %v6790
  %v6792 = vpop.f32.mrb[0].mxu0
  %v6793 = vadd.f32 0.0, %v6792
  %6794 = vmatprep.mubr.bf16.mxu0 0
  %6795 = vmatmul.mubr.bf16.gmra.mrb[0].mxu0 %v6184
  %v6796 = vpop.f32.mrb[0].mxu0
  %v6797 = vadd.f32 0.0, %v6796
  %v6798 = vpop.f32.mrb[0].mxu0
  %v6799 = vadd.f32 0.0, %v6798
  %v6800 = vpop.f32.mrb[0].mxu0
  %v6801 = vpop.f32.mrb[0].mxu0
  %6802 = vdwg.mxu0
  %v6803 = vpack.c.bf16 %v6638, %v6634
  %v6804 = vpack.c.bf16 %v6640, %v6636
  %v6805 = vpack.c.bf16 %v6689, %v6685
  %v6806 = vpack.c.bf16 %v6691, %v6687
  %v6807 = vpack.c.bf16 %v6740, %v6736
  %v6808 = vpack.c.bf16 %v6742, %v6738
  %v6809 = vpack.c.bf16 %v6791, %v6787
  %v6810 = vpack.c.bf16 %v6793, %v6789
  %v6811 = vpack.c.bf16 %v6644, %v6644
  %v6812 = vpack.c.bf16 %v6646, %v6646
  %v6813 = vpack.c.bf16 %v6695, %v6695
  %v6814 = vpack.c.bf16 %v6697, %v6697
  %v6815 = vpack.c.bf16 %v6746, %v6746
  %v6816 = vpack.c.bf16 %v6748, %v6748
  %v6817 = vpack.c.bf16 %v6797, %v6797
  %v6818 = vpack.c.bf16 %v6799, %v6799
  %s6819 = scalar_lea.vmem %s31, 512
  %v6820 = vld [vmem:[%s6819] sm:$0xf]
  %v6821 = vld [vmem:[%s6819 + $0x4] sm:$0xf]
  %v6822 = vld [vmem:[%s6819 + $0x8] sm:$0xf]
  %v6823 = vld [vmem:[%s6819 + $0xc] sm:$0xf]
  %v6824 = vld [vmem:[%s6819 + $0x10] sm:$0xf]
  %v6825 = vld [vmem:[%s6819 + $0x14] sm:$0xf]
  %v6826 = vld [vmem:[%s6819 + $0x18] sm:$0xf]
  %v6827 = vld [vmem:[%s6819 + $0x1c] sm:$0xf]
  %v6828 = vld [vmem:[%s6819 + $0x20] sm:$0xf]
  %v6829 = vld [vmem:[%s6819 + $0x24] sm:$0xf]
  %v6830 = vld [vmem:[%s6819 + $0x28] sm:$0xf]
  %v6831 = vld [vmem:[%s6819 + $0x2c] sm:$0xf]
  %v6832 = vld [vmem:[%s6819 + $0x30] sm:$0xf]
  %v6833 = vld [vmem:[%s6819 + $0x34] sm:$0xf]
  %v6834 = vld [vmem:[%s6819 + $0x38] sm:$0xf]
  %v6835 = vld [vmem:[%s6819 + $0x3c] sm:$0xf]
  %v6836 = vld [vmem:[%s6819 + $0x40] sm:$0xf]
  %v6837 = vld [vmem:[%s6819 + $0x44] sm:$0xf]
  %v6838 = vld [vmem:[%s6819 + $0x48] sm:$0xf]
  %v6839 = vld [vmem:[%s6819 + $0x4c] sm:$0xf]
  %v6840 = vld [vmem:[%s6819 + $0x50] sm:$0xf]
  %v6841 = vld [vmem:[%s6819 + $0x54] sm:$0xf]
  %v6842 = vld [vmem:[%s6819 + $0x58] sm:$0xf]
  %v6843 = vld [vmem:[%s6819 + $0x5c] sm:$0xf]
  %v6844 = vld [vmem:[%s6819 + $0x60] sm:$0xf]
  %v6845 = vld [vmem:[%s6819 + $0x64] sm:$0xf]
  %v6846 = vld [vmem:[%s6819 + $0x68] sm:$0xf]
  %v6847 = vld [vmem:[%s6819 + $0x6c] sm:$0xf]
  %v6848 = vld [vmem:[%s6819 + $0x70] sm:$0xf]
  %v6849 = vld [vmem:[%s6819 + $0x74] sm:$0xf]
  %v6850 = vld [vmem:[%s6819 + $0x78] sm:$0xf]
  %v6851 = vld [vmem:[%s6819 + $0x7c] sm:$0xf]
  %v6852 = vld [vmem:[%s6819 + $0x80] sm:$0xf]
  %v6853 = vld [vmem:[%s6819 + $0x84] sm:$0xf]
  %v6854 = vld [vmem:[%s6819 + $0x88] sm:$0xf]
  %v6855 = vld [vmem:[%s6819 + $0x8c] sm:$0xf]
  %v6856 = vld [vmem:[%s6819 + $0x90] sm:$0xf]
  %v6857 = vld [vmem:[%s6819 + $0x94] sm:$0xf]
  %v6858 = vld [vmem:[%s6819 + $0x98] sm:$0xf]
  %v6859 = vld [vmem:[%s6819 + $0x9c] sm:$0xf]
  %v6860 = vld [vmem:[%s6819 + $0xa0] sm:$0xf]
  %v6861 = vld [vmem:[%s6819 + $0xa4] sm:$0xf]
  %v6862 = vld [vmem:[%s6819 + $0xa8] sm:$0xf]
  %v6863 = vld [vmem:[%s6819 + $0xac] sm:$0xf]
  %v6864 = vld [vmem:[%s6819 + $0xb0] sm:$0xf]
  %v6865 = vld [vmem:[%s6819 + $0xb4] sm:$0xf]
  %v6866 = vld [vmem:[%s6819 + $0xb8] sm:$0xf]
  %v6867 = vld [vmem:[%s6819 + $0xbc] sm:$0xf]
  %v6868 = vld [vmem:[%s6819 + $0xc0] sm:$0xf]
  %v6869 = vld [vmem:[%s6819 + $0xc4] sm:$0xf]
  %v6870 = vld [vmem:[%s6819 + $0xc8] sm:$0xf]
  %v6871 = vld [vmem:[%s6819 + $0xcc] sm:$0xf]
  %v6872 = vld [vmem:[%s6819 + $0xd0] sm:$0xf]
  %v6873 = vld [vmem:[%s6819 + $0xd4] sm:$0xf]
  %v6874 = vld [vmem:[%s6819 + $0xd8] sm:$0xf]
  %v6875 = vld [vmem:[%s6819 + $0xdc] sm:$0xf]
  %v6876 = vld [vmem:[%s6819 + $0xe0] sm:$0xf]
  %v6877 = vld [vmem:[%s6819 + $0xe4] sm:$0xf]
  %v6878 = vld [vmem:[%s6819 + $0xe8] sm:$0xf]
  %v6879 = vld [vmem:[%s6819 + $0xec] sm:$0xf]
  %v6880 = vld [vmem:[%s6819 + $0xf0] sm:$0xf]
  %v6881 = vld [vmem:[%s6819 + $0xf4] sm:$0xf]
  %v6882 = vld [vmem:[%s6819 + $0xf8] sm:$0xf]
  %v6883 = vld [vmem:[%s6819 + $0xfc] sm:$0xf]
  %v6884 = vld [vmem:[%s6819 + $0x100] sm:$0xf]
  %v6885 = vld [vmem:[%s6819 + $0x104] sm:$0xf]
  %v6886 = vld [vmem:[%s6819 + $0x108] sm:$0xf]
  %v6887 = vld [vmem:[%s6819 + $0x10c] sm:$0xf]
  %v6888 = vld [vmem:[%s6819 + $0x110] sm:$0xf]
  %v6889 = vld [vmem:[%s6819 + $0x114] sm:$0xf]
  %v6890 = vld [vmem:[%s6819 + $0x118] sm:$0xf]
  %v6891 = vld [vmem:[%s6819 + $0x11c] sm:$0xf]
  %v6892 = vld [vmem:[%s6819 + $0x120] sm:$0xf]
  %v6893 = vld [vmem:[%s6819 + $0x124] sm:$0xf]
  %v6894 = vld [vmem:[%s6819 + $0x128] sm:$0xf]
  %v6895 = vld [vmem:[%s6819 + $0x12c] sm:$0xf]
  %v6896 = vld [vmem:[%s6819 + $0x130] sm:$0xf]
  %v6897 = vld [vmem:[%s6819 + $0x134] sm:$0xf]
  %v6898 = vld [vmem:[%s6819 + $0x138] sm:$0xf]
  %v6899 = vld [vmem:[%s6819 + $0x13c] sm:$0xf]
  %v6900 = vld [vmem:[%s6819 + $0x140] sm:$0xf]
  %v6901 = vld [vmem:[%s6819 + $0x144] sm:$0xf]
  %v6902 = vld [vmem:[%s6819 + $0x148] sm:$0xf]
  %v6903 = vld [vmem:[%s6819 + $0x14c] sm:$0xf]
  %v6904 = vld [vmem:[%s6819 + $0x150] sm:$0xf]
  %v6905 = vld [vmem:[%s6819 + $0x154] sm:$0xf]
  %v6906 = vld [vmem:[%s6819 + $0x158] sm:$0xf]
  %v6907 = vld [vmem:[%s6819 + $0x15c] sm:$0xf]
  %v6908 = vld [vmem:[%s6819 + $0x160] sm:$0xf]
  %v6909 = vld [vmem:[%s6819 + $0x164] sm:$0xf]
  %v6910 = vld [vmem:[%s6819 + $0x168] sm:$0xf]
  %v6911 = vld [vmem:[%s6819 + $0x16c] sm:$0xf]
  %v6912 = vld [vmem:[%s6819 + $0x170] sm:$0xf]
  %v6913 = vld [vmem:[%s6819 + $0x174] sm:$0xf]
  %v6914 = vld [vmem:[%s6819 + $0x178] sm:$0xf]
  %v6915 = vld [vmem:[%s6819 + $0x17c] sm:$0xf]
  %v6916 = vld [vmem:[%s6819 + $0x180] sm:$0xf]
  %v6917 = vld [vmem:[%s6819 + $0x184] sm:$0xf]
  %v6918 = vld [vmem:[%s6819 + $0x188] sm:$0xf]
  %v6919 = vld [vmem:[%s6819 + $0x18c] sm:$0xf]
  %v6920 = vld [vmem:[%s6819 + $0x190] sm:$0xf]
  %v6921 = vld [vmem:[%s6819 + $0x194] sm:$0xf]
  %v6922 = vld [vmem:[%s6819 + $0x198] sm:$0xf]
  %v6923 = vld [vmem:[%s6819 + $0x19c] sm:$0xf]
  %v6924 = vld [vmem:[%s6819 + $0x1a0] sm:$0xf]
  %v6925 = vld [vmem:[%s6819 + $0x1a4] sm:$0xf]
  %v6926 = vld [vmem:[%s6819 + $0x1a8] sm:$0xf]
  %v6927 = vld [vmem:[%s6819 + $0x1ac] sm:$0xf]
  %v6928 = vld [vmem:[%s6819 + $0x1b0] sm:$0xf]
  %v6929 = vld [vmem:[%s6819 + $0x1b4] sm:$0xf]
  %v6930 = vld [vmem:[%s6819 + $0x1b8] sm:$0xf]
  %v6931 = vld [vmem:[%s6819 + $0x1bc] sm:$0xf]
  %v6932 = vld [vmem:[%s6819 + $0x1c0] sm:$0xf]
  %v6933 = vld [vmem:[%s6819 + $0x1c4] sm:$0xf]
  %v6934 = vld [vmem:[%s6819 + $0x1c8] sm:$0xf]
  %v6935 = vld [vmem:[%s6819 + $0x1cc] sm:$0xf]
  %v6936 = vld [vmem:[%s6819 + $0x1d0] sm:$0xf]
  %v6937 = vld [vmem:[%s6819 + $0x1d4] sm:$0xf]
  %v6938 = vld [vmem:[%s6819 + $0x1d8] sm:$0xf]
  %v6939 = vld [vmem:[%s6819 + $0x1dc] sm:$0xf]
  %v6940 = vld [vmem:[%s6819 + $0x1e0] sm:$0xf]
  %v6941 = vld [vmem:[%s6819 + $0x1e4] sm:$0xf]
  %v6942 = vld [vmem:[%s6819 + $0x1e8] sm:$0xf]
  %v6943 = vld [vmem:[%s6819 + $0x1ec] sm:$0xf]
  %v6944 = vld [vmem:[%s6819 + $0x1f0] sm:$0xf]
  %v6945 = vld [vmem:[%s6819 + $0x1f4] sm:$0xf]
  %v6946 = vld [vmem:[%s6819 + $0x1f8] sm:$0xf]
  %v6947 = vld [vmem:[%s6819 + $0x1fc] sm:$0xf]
  %v7076 = vunpack.c.l.b16 %v6820
  %v7077 = vunpack.c.l.b16 %v6821
  %v7078 = vunpack.c.l.b16 %v6822
  %v7079 = vunpack.c.l.b16 %v6823
  %v7080 = vunpack.c.l.b16 %v6824
  %v7081 = vunpack.c.l.b16 %v6825
  %v7082 = vunpack.c.l.b16 %v6826
  %v7083 = vunpack.c.l.b16 %v6827
  %v7084 = vunpack.c.l.b16 %v6828
  %v7085 = vunpack.c.l.b16 %v6829
  %v7086 = vunpack.c.l.b16 %v6830
  %v7087 = vunpack.c.l.b16 %v6831
  %v7088 = vunpack.c.l.b16 %v6832
  %v7089 = vunpack.c.l.b16 %v6833
  %v7090 = vunpack.c.l.b16 %v6834
  %v7091 = vunpack.c.l.b16 %v6835
  %v7092 = vunpack.c.l.b16 %v6836
  %v7093 = vunpack.c.l.b16 %v6837
  %v7094 = vunpack.c.l.b16 %v6838
  %v7095 = vunpack.c.l.b16 %v6839
  %v7096 = vunpack.c.l.b16 %v6840
  %v7097 = vunpack.c.l.b16 %v6841
  %v7098 = vunpack.c.l.b16 %v6842
  %v7099 = vunpack.c.l.b16 %v6843
  %v7100 = vunpack.c.l.b16 %v6844
  %v7101 = vunpack.c.l.b16 %v6845
  %v7102 = vunpack.c.l.b16 %v6846
  %v7103 = vunpack.c.l.b16 %v6847
  %v7104 = vunpack.c.l.b16 %v6848
  %v7105 = vunpack.c.l.b16 %v6849
  %v7106 = vunpack.c.l.b16 %v6850
  %v7107 = vunpack.c.l.b16 %v6851
  %v7108 = vunpack.c.l.b16 %v6852
  %v7109 = vunpack.c.l.b16 %v6853
  %v7110 = vunpack.c.l.b16 %v6854
  %v7111 = vunpack.c.l.b16 %v6855
  %v7112 = vunpack.c.l.b16 %v6856
  %v7113 = vunpack.c.l.b16 %v6857
  %v7114 = vunpack.c.l.b16 %v6858
  %v7115 = vunpack.c.l.b16 %v6859
  %v7116 = vunpack.c.l.b16 %v6860
  %v7117 = vunpack.c.l.b16 %v6861
  %v7118 = vunpack.c.l.b16 %v6862
  %v7119 = vunpack.c.l.b16 %v6863
  %v7120 = vunpack.c.l.b16 %v6864
  %v7121 = vunpack.c.l.b16 %v6865
  %v7122 = vunpack.c.l.b16 %v6866
  %v7123 = vunpack.c.l.b16 %v6867
  %v7124 = vunpack.c.l.b16 %v6868
  %v7125 = vunpack.c.l.b16 %v6869
  %v7126 = vunpack.c.l.b16 %v6870
  %v7127 = vunpack.c.l.b16 %v6871
  %v7128 = vunpack.c.l.b16 %v6872
  %v7129 = vunpack.c.l.b16 %v6873
  %v7130 = vunpack.c.l.b16 %v6874
  %v7131 = vunpack.c.l.b16 %v6875
  %v7132 = vunpack.c.l.b16 %v6876
  %v7133 = vunpack.c.l.b16 %v6877
  %v7134 = vunpack.c.l.b16 %v6878
  %v7135 = vunpack.c.l.b16 %v6879
  %v7136 = vunpack.c.l.b16 %v6880
  %v7137 = vunpack.c.l.b16 %v6881
  %v7138 = vunpack.c.l.b16 %v6882
  %v7139 = vunpack.c.l.b16 %v6883
  %v7140 = vunpack.c.l.b16 %v6884
  %v7141 = vunpack.c.l.b16 %v6885
  %v7142 = vunpack.c.l.b16 %v6886
  %v7143 = vunpack.c.l.b16 %v6887
  %v7144 = vunpack.c.l.b16 %v6888
  %v7145 = vunpack.c.l.b16 %v6889
  %v7146 = vunpack.c.l.b16 %v6890
  %v7147 = vunpack.c.l.b16 %v6891
  %v7148 = vunpack.c.l.b16 %v6892
  %v7149 = vunpack.c.l.b16 %v6893
  %v7150 = vunpack.c.l.b16 %v6894
  %v7151 = vunpack.c.l.b16 %v6895
  %v7152 = vunpack.c.l.b16 %v6896
  %v7153 = vunpack.c.l.b16 %v6897
  %v7154 = vunpack.c.l.b16 %v6898
  %v7155 = vunpack.c.l.b16 %v6899
  %v7156 = vunpack.c.l.b16 %v6900
  %v7157 = vunpack.c.l.b16 %v6901
  %v7158 = vunpack.c.l.b16 %v6902
  %v7159 = vunpack.c.l.b16 %v6903
  %v7160 = vunpack.c.l.b16 %v6904
  %v7161 = vunpack.c.l.b16 %v6905
  %v7162 = vunpack.c.l.b16 %v6906
  %v7163 = vunpack.c.l.b16 %v6907
  %v7164 = vunpack.c.l.b16 %v6908
  %v7165 = vunpack.c.l.b16 %v6909
  %v7166 = vunpack.c.l.b16 %v6910
  %v7167 = vunpack.c.l.b16 %v6911
  %v7168 = vunpack.c.l.b16 %v6912
  %v7169 = vunpack.c.l.b16 %v6913
  %v7170 = vunpack.c.l.b16 %v6914
  %v7171 = vunpack.c.l.b16 %v6915
  %v7172 = vunpack.c.l.b16 %v6916
  %v7173 = vunpack.c.l.b16 %v6917
  %v7174 = vunpack.c.l.b16 %v6918
  %v7175 = vunpack.c.l.b16 %v6919
  %v7176 = vunpack.c.l.b16 %v6920
  %v7177 = vunpack.c.l.b16 %v6921
  %v7178 = vunpack.c.l.b16 %v6922
  %v7179 = vunpack.c.l.b16 %v6923
  %v7180 = vunpack.c.l.b16 %v6924
  %v7181 = vunpack.c.l.b16 %v6925
  %v7182 = vunpack.c.l.b16 %v6926
  %v7183 = vunpack.c.l.b16 %v6927
  %v7184 = vunpack.c.l.b16 %v6928
  %v7185 = vunpack.c.l.b16 %v6929
  %v7186 = vunpack.c.l.b16 %v6930
  %v7187 = vunpack.c.l.b16 %v6931
  %v7188 = vunpack.c.l.b16 %v6932
  %v7189 = vunpack.c.l.b16 %v6933
  %v7190 = vunpack.c.l.b16 %v6934
  %v7191 = vunpack.c.l.b16 %v6935
  %v7192 = vunpack.c.l.b16 %v6936
  %v7193 = vunpack.c.l.b16 %v6937
  %v7194 = vunpack.c.l.b16 %v6938
  %v7195 = vunpack.c.l.b16 %v6939
  %v7196 = vunpack.c.l.b16 %v6940
  %v7197 = vunpack.c.l.b16 %v6941
  %v7198 = vunpack.c.l.b16 %v6942
  %v7199 = vunpack.c.l.b16 %v6943
  %v7200 = vunpack.c.l.b16 %v6944
  %v7201 = vunpack.c.l.b16 %v6945
  %v7202 = vunpack.c.l.b16 %v6946
  %v7203 = vunpack.c.l.b16 %v6947
  %v7204 = vpack.c.b16 %v7077, %v7076
  %v7205 = vpack.c.b16 %v7079, %v7078
  %v7206 = vpack.c.b16 %v7081, %v7080
  %v7207 = vpack.c.b16 %v7083, %v7082
  %v7208 = vpack.c.b16 %v7085, %v7084
  %v7209 = vpack.c.b16 %v7087, %v7086
  %v7210 = vpack.c.b16 %v7089, %v7088
  %v7211 = vpack.c.b16 %v7091, %v7090
  %v7212 = vpack.c.b16 %v7093, %v7092
  %v7213 = vpack.c.b16 %v7095, %v7094
  %v7214 = vpack.c.b16 %v7097, %v7096
  %v7215 = vpack.c.b16 %v7099, %v7098
  %v7216 = vpack.c.b16 %v7101, %v7100
  %v7217 = vpack.c.b16 %v7103, %v7102
  %v7218 = vpack.c.b16 %v7105, %v7104
  %v7219 = vpack.c.b16 %v7107, %v7106
  %v7220 = vpack.c.b16 %v7109, %v7108
  %v7221 = vpack.c.b16 %v7111, %v7110
  %v7222 = vpack.c.b16 %v7113, %v7112
  %v7223 = vpack.c.b16 %v7115, %v7114
  %v7224 = vpack.c.b16 %v7117, %v7116
  %v7225 = vpack.c.b16 %v7119, %v7118
  %v7226 = vpack.c.b16 %v7121, %v7120
  %v7227 = vpack.c.b16 %v7123, %v7122
  %v7228 = vpack.c.b16 %v7125, %v7124
  %v7229 = vpack.c.b16 %v7127, %v7126
  %v7230 = vpack.c.b16 %v7129, %v7128
  %v7231 = vpack.c.b16 %v7131, %v7130
  %v7232 = vpack.c.b16 %v7133, %v7132
  %v7233 = vpack.c.b16 %v7135, %v7134
  %v7234 = vpack.c.b16 %v7137, %v7136
  %v7235 = vpack.c.b16 %v7139, %v7138
  %v7236 = vpack.c.b16 %v7141, %v7140
  %v7237 = vpack.c.b16 %v7143, %v7142
  %v7238 = vpack.c.b16 %v7145, %v7144
  %v7239 = vpack.c.b16 %v7147, %v7146
  %v7240 = vpack.c.b16 %v7149, %v7148
  %v7241 = vpack.c.b16 %v7151, %v7150
  %v7242 = vpack.c.b16 %v7153, %v7152
  %v7243 = vpack.c.b16 %v7155, %v7154
  %v7244 = vpack.c.b16 %v7157, %v7156
  %v7245 = vpack.c.b16 %v7159, %v7158
  %v7246 = vpack.c.b16 %v7161, %v7160
  %v7247 = vpack.c.b16 %v7163, %v7162
  %v7248 = vpack.c.b16 %v7165, %v7164
  %v7249 = vpack.c.b16 %v7167, %v7166
  %v7250 = vpack.c.b16 %v7169, %v7168
  %v7251 = vpack.c.b16 %v7171, %v7170
  %v7252 = vpack.c.b16 %v7173, %v7172
  %v7253 = vpack.c.b16 %v7175, %v7174
  %v7254 = vpack.c.b16 %v7177, %v7176
  %v7255 = vpack.c.b16 %v7179, %v7178
  %v7256 = vpack.c.b16 %v7181, %v7180
  %v7257 = vpack.c.b16 %v7183, %v7182
  %v7258 = vpack.c.b16 %v7185, %v7184
  %v7259 = vpack.c.b16 %v7187, %v7186
  %v7260 = vpack.c.b16 %v7189, %v7188
  %v7261 = vpack.c.b16 %v7191, %v7190
  %v7262 = vpack.c.b16 %v7193, %v7192
  %v7263 = vpack.c.b16 %v7195, %v7194
  %v7264 = vpack.c.b16 %v7197, %v7196
  %v7265 = vpack.c.b16 %v7199, %v7198
  %v7266 = vpack.c.b16 %v7201, %v7200
  %v7267 = vpack.c.b16 %v7203, %v7202
  %v7269 = vsel %vm1026, %v7204, 0
  %v7272 = vsel %vm1026, %v7205, 0
  %v7275 = vsel %vm1026, %v7206, 0
  %v7278 = vsel %vm1026, %v7207, 0
  %v7281 = vsel %vm1026, %v7208, 0
  %v7284 = vsel %vm1026, %v7209, 0
  %v7287 = vsel %vm1026, %v7210, 0
  %v7290 = vsel %vm1026, %v7211, 0
  %v7293 = vsel %vm1026, %v7212, 0
  %v7296 = vsel %vm1026, %v7213, 0
  %v7299 = vsel %vm1026, %v7214, 0
  %v7302 = vsel %vm1026, %v7215, 0
  %v7305 = vsel %vm1026, %v7216, 0
  %v7308 = vsel %vm1026, %v7217, 0
  %v7311 = vsel %vm1026, %v7218, 0
  %v7314 = vsel %vm1026, %v7219, 0
  %v7317 = vsel %vm1026, %v7220, 0
  %v7320 = vsel %vm1026, %v7221, 0
  %v7323 = vsel %vm1026, %v7222, 0
  %v7326 = vsel %vm1026, %v7223, 0
  %v7329 = vsel %vm1026, %v7224, 0
  %v7332 = vsel %vm1026, %v7225, 0
  %v7335 = vsel %vm1026, %v7226, 0
  %v7338 = vsel %vm1026, %v7227, 0
  %v7341 = vsel %vm1026, %v7228, 0
  %v7344 = vsel %vm1026, %v7229, 0
  %v7347 = vsel %vm1026, %v7230, 0
  %v7350 = vsel %vm1026, %v7231, 0
  %v7353 = vsel %vm1026, %v7232, 0
  %v7356 = vsel %vm1026, %v7233, 0
  %v7359 = vsel %vm1026, %v7234, 0
  %v7362 = vsel %vm1026, %v7235, 0
  %v7365 = vsel %vm1026, %v7236, 0
  %v7368 = vsel %vm1026, %v7237, 0
  %v7371 = vsel %vm1026, %v7238, 0
  %v7374 = vsel %vm1026, %v7239, 0
  %v7377 = vsel %vm1026, %v7240, 0
  %v7380 = vsel %vm1026, %v7241, 0
  %v7383 = vsel %vm1026, %v7242, 0
  %v7386 = vsel %vm1026, %v7243, 0
  %v7389 = vsel %vm1026, %v7244, 0
  %v7392 = vsel %vm1026, %v7245, 0
  %v7395 = vsel %vm1026, %v7246, 0
  %v7398 = vsel %vm1026, %v7247, 0
  %v7401 = vsel %vm1026, %v7248, 0
  %v7404 = vsel %vm1026, %v7249, 0
  %v7407 = vsel %vm1026, %v7250, 0
  %v7410 = vsel %vm1026, %v7251, 0
  %v7413 = vsel %vm1026, %v7252, 0
  %v7416 = vsel %vm1026, %v7253, 0
  %v7419 = vsel %vm1026, %v7254, 0
  %v7422 = vsel %vm1026, %v7255, 0
  %v7425 = vsel %vm1026, %v7256, 0
  %v7428 = vsel %vm1026, %v7257, 0
  %v7431 = vsel %vm1026, %v7258, 0
  %v7434 = vsel %vm1026, %v7259, 0
  %v7437 = vsel %vm1026, %v7260, 0
  %v7440 = vsel %vm1026, %v7261, 0
  %v7443 = vsel %vm1026, %v7262, 0
  %v7446 = vsel %vm1026, %v7263, 0
  %v7449 = vsel %vm1026, %v7264, 0
  %v7452 = vsel %vm1026, %v7265, 0
  %v7455 = vsel %vm1026, %v7266, 0
  %v7458 = vsel %vm1026, %v7267, 0
  %7460 = vmatprep.subr.bf16.mxu0 0
  %7461 = vmatpush1.bf16.xpose.msra.mxu0 %v6181
  %7462 = vmatprep.subr.bf16.mxu0 0
  %7463 = vmatpush1.bf16.xpose.msra.mxu0 %v6184
  %7464 = vmatprep.subr.bf16.mxu0 0
  %7465 = vmatpush1.bf16.xpose.msra.mxu0 0
  %7466 = vmatprep.subr.bf16.mxu0 0
  %7467 = vmatpush1.bf16.xpose.msra.mxu0 0
  %7468 = vmatprep.subr.bf16.mxu0 0
  %7469 = vmatpush1.bf16.xpose.msra.mxu0 0
  %7470 = vmatprep.subr.bf16.mxu0 0
  %7471 = vmatpush1.bf16.xpose.msra.mxu0 0
  %7472 = vmatprep.subr.bf16.mxu0 0
  %7473 = vmatpush1.bf16.xpose.msra.mxu0 0
  %7474 = vmatprep.subr.bf16.mxu0 0
  %7475 = vmatpush1.bf16.xpose.msra.mxu0 0
  %7476 = vmatprep.subr.bf16.mxu0 0
  %7477 = vmatpush1.bf16.xpose.msra.mxu0 0
  %7478 = vmatprep.subr.bf16.mxu0 0
  %7479 = vmatpush1.bf16.xpose.msra.mxu0 0
  %7480 = vmatprep.subr.bf16.mxu0 0
  %7481 = vmatpush1.bf16.xpose.msra.mxu0 0
  %7482 = vmatprep.subr.bf16.mxu0 0
  %7483 = vmatpush1.bf16.xpose.msra.mxu0 0
  %7484 = vmatprep.subr.bf16.mxu0 0
  %7485 = vmatpush1.bf16.xpose.msra.mxu0 0
  %7486 = vmatprep.subr.bf16.mxu0 0
  %7487 = vmatpush1.bf16.xpose.msra.mxu0 0
  %7488 = vmatprep.subr.bf16.mxu0 0
  %7489 = vmatpush1.bf16.xpose.msra.mxu0 0
  %7490 = vmatprep.subr.bf16.mxu0 0
  %7491 = vmatpush1.bf16.xpose.msra.mxu0 0
  %7492 = vmatprep.mubr.bf16.mxu0 0
  %7493 = vmatmul.mubr.bf16.gmra.mrb[0].mxu0 %v7269
  %v7494 = vpop.f32.mrb[0].mxu0
  %v7495 = vadd.f32 0.0, %v7494
  %v7496 = vpop.f32.mrb[0].mxu0
  %v7497 = vpop.f32.mrb[0].mxu0
  %v7498 = vadd.f32 0.0, %v7497
  %v7499 = vpop.f32.mrb[0].mxu0
  %7500 = vmatprep.mubr.bf16.mxu0 0
  %7501 = vmatmul.mubr.bf16.gmra.mrb[0].mxu0 %v7272
  %v7502 = vpop.f32.mrb[0].mxu0
  %v7503 = vadd.f32 0.0, %v7502
  %v7504 = vpop.f32.mrb[0].mxu0
  %v7505 = vpop.f32.mrb[0].mxu0
  %v7506 = vadd.f32 0.0, %v7505
  %v7507 = vpop.f32.mrb[0].mxu0
  %7508 = vmatprep.mubr.bf16.mxu0 0
  %7509 = vmatmul.mubr.bf16.gmra.mrb[0].mxu0 %v7275
  %v7510 = vpop.f32.mrb[0].mxu0
  %v7511 = vadd.f32 0.0, %v7510
  %v7512 = vpop.f32.mrb[0].mxu0
  %v7513 = vpop.f32.mrb[0].mxu0
  %v7514 = vadd.f32 0.0, %v7513
  %v7515 = vpop.f32.mrb[0].mxu0
  %7516 = vmatprep.mubr.bf16.mxu0 0
  %7517 = vmatmul.mubr.bf16.gmra.mrb[0].mxu0 %v7278
  %v7518 = vpop.f32.mrb[0].mxu0
  %v7519 = vadd.f32 0.0, %v7518
  %v7520 = vpop.f32.mrb[0].mxu0
  %v7521 = vpop.f32.mrb[0].mxu0
  %v7522 = vadd.f32 0.0, %v7521
  %v7523 = vpop.f32.mrb[0].mxu0
  %7524 = vmatprep.mubr.bf16.mxu0 0
  %7525 = vmatmul.mubr.bf16.gmra.mrb[0].mxu0 %v7281
  %v7526 = vpop.f32.mrb[0].mxu0
  %v7527 = vadd.f32 0.0, %v7526
  %v7528 = vpop.f32.mrb[0].mxu0
  %v7529 = vpop.f32.mrb[0].mxu0
  %v7530 = vadd.f32 0.0, %v7529
  %v7531 = vpop.f32.mrb[0].mxu0
  %7532 = vmatprep.mubr.bf16.mxu0 0
  %7533 = vmatmul.mubr.bf16.gmra.mrb[0].mxu0 %v7284
  %v7534 = vpop.f32.mrb[0].mxu0
  %v7535 = vadd.f32 0.0, %v7534
  %v7536 = vpop.f32.mrb[0].mxu0
  %v7537 = vpop.f32.mrb[0].mxu0
  %v7538 = vadd.f32 0.0, %v7537
  %v7539 = vpop.f32.mrb[0].mxu0
  %7540 = vmatprep.mubr.bf16.mxu0 0
  %7541 = vmatmul.mubr.bf16.gmra.mrb[0].mxu0 %v7287
  %v7542 = vpop.f32.mrb[0].mxu0
  %v7543 = vadd.f32 0.0, %v7542
  %v7544 = vpop.f32.mrb[0].mxu0
  %v7545 = vpop.f32.mrb[0].mxu0
  %v7546 = vadd.f32 0.0, %v7545
  %v7547 = vpop.f32.mrb[0].mxu0
  %7548 = vmatprep.mubr.bf16.mxu0 0
  %7549 = vmatmul.mubr.bf16.gmra.mrb[0].mxu0 %v7290
  %v7550 = vpop.f32.mrb[0].mxu0
  %v7551 = vadd.f32 0.0, %v7550
  %v7552 = vpop.f32.mrb[0].mxu0
  %v7553 = vpop.f32.mrb[0].mxu0
  %v7554 = vadd.f32 0.0, %v7553
  %v7555 = vpop.f32.mrb[0].mxu0
  %7556 = vmatprep.mubr.bf16.mxu0 0
  %7557 = vmatmul.mubr.bf16.gmra.mrb[0].mxu0 %v7293
  %v7558 = vpop.f32.mrb[0].mxu0
  %v7559 = vadd.f32 0.0, %v7558
  %v7560 = vpop.f32.mrb[0].mxu0
  %v7561 = vpop.f32.mrb[0].mxu0
  %v7562 = vadd.f32 0.0, %v7561
  %v7563 = vpop.f32.mrb[0].mxu0
  %7564 = vmatprep.mubr.bf16.mxu0 0
  %7565 = vmatmul.mubr.bf16.gmra.mrb[0].mxu0 %v7296
  %v7566 = vpop.f32.mrb[0].mxu0
  %v7567 = vadd.f32 0.0, %v7566
  %v7568 = vpop.f32.mrb[0].mxu0
  %v7569 = vpop.f32.mrb[0].mxu0
  %v7570 = vadd.f32 0.0, %v7569
  %v7571 = vpop.f32.mrb[0].mxu0
  %7572 = vmatprep.mubr.bf16.mxu0 0
  %7573 = vmatmul.mubr.bf16.gmra.mrb[0].mxu0 %v7299
  %v7574 = vpop.f32.mrb[0].mxu0
  %v7575 = vadd.f32 0.0, %v7574
  %v7576 = vpop.f32.mrb[0].mxu0
  %v7577 = vpop.f32.mrb[0].mxu0
  %v7578 = vadd.f32 0.0, %v7577
  %v7579 = vpop.f32.mrb[0].mxu0
  %7580 = vmatprep.mubr.bf16.mxu0 0
  %7581 = vmatmul.mubr.bf16.gmra.mrb[0].mxu0 %v7302
  %v7582 = vpop.f32.mrb[0].mxu0
  %v7583 = vadd.f32 0.0, %v7582
  %v7584 = vpop.f32.mrb[0].mxu0
  %v7585 = vpop.f32.mrb[0].mxu0
  %v7586 = vadd.f32 0.0, %v7585
  %v7587 = vpop.f32.mrb[0].mxu0
  %7588 = vmatprep.mubr.bf16.mxu0 0
  %7589 = vmatmul.mubr.bf16.gmra.mrb[0].mxu0 %v7305
  %v7590 = vpop.f32.mrb[0].mxu0
  %v7591 = vadd.f32 0.0, %v7590
  %v7592 = vpop.f32.mrb[0].mxu0
  %v7593 = vpop.f32.mrb[0].mxu0
  %v7594 = vadd.f32 0.0, %v7593
  %v7595 = vpop.f32.mrb[0].mxu0
  %7596 = vmatprep.mubr.bf16.mxu0 0
  %7597 = vmatmul.mubr.bf16.gmra.mrb[0].mxu0 %v7308
  %v7598 = vpop.f32.mrb[0].mxu0
  %v7599 = vadd.f32 0.0, %v7598
  %v7600 = vpop.f32.mrb[0].mxu0
  %v7601 = vpop.f32.mrb[0].mxu0
  %v7602 = vadd.f32 0.0, %v7601
  %v7603 = vpop.f32.mrb[0].mxu0
  %7604 = vmatprep.mubr.bf16.mxu0 0
  %7605 = vmatmul.mubr.bf16.gmra.mrb[0].mxu0 %v7311
  %v7606 = vpop.f32.mrb[0].mxu0
  %v7607 = vadd.f32 0.0, %v7606
  %v7608 = vpop.f32.mrb[0].mxu0
  %v7609 = vpop.f32.mrb[0].mxu0
  %v7610 = vadd.f32 0.0, %v7609
  %v7611 = vpop.f32.mrb[0].mxu0
  %7612 = vmatprep.mubr.bf16.mxu0 0
  %7613 = vmatmul.mubr.bf16.gmra.mrb[0].mxu0 %v7314
  %v7614 = vpop.f32.mrb[0].mxu0
  %v7615 = vadd.f32 0.0, %v7614
  %v7616 = vpop.f32.mrb[0].mxu0
  %v7617 = vpop.f32.mrb[0].mxu0
  %v7618 = vadd.f32 0.0, %v7617
  %v7619 = vpop.f32.mrb[0].mxu0
  %7620 = vmatprep.mubr.bf16.mxu0 0
  %7621 = vmatmul.mubr.bf16.gmra.mrb[0].mxu0 %v7317
  %v7622 = vpop.f32.mrb[0].mxu0
  %v7623 = vadd.f32 0.0, %v7622
  %v7624 = vpop.f32.mrb[0].mxu0
  %v7625 = vpop.f32.mrb[0].mxu0
  %v7626 = vadd.f32 0.0, %v7625
  %v7627 = vpop.f32.mrb[0].mxu0
  %7628 = vmatprep.mubr.bf16.mxu0 0
  %7629 = vmatmul.mubr.bf16.gmra.mrb[0].mxu0 %v7320
  %v7630 = vpop.f32.mrb[0].mxu0
  %v7631 = vadd.f32 0.0, %v7630
  %v7632 = vpop.f32.mrb[0].mxu0
  %v7633 = vpop.f32.mrb[0].mxu0
  %v7634 = vadd.f32 0.0, %v7633
  %v7635 = vpop.f32.mrb[0].mxu0
  %7636 = vmatprep.mubr.bf16.mxu0 0
  %7637 = vmatmul.mubr.bf16.gmra.mrb[0].mxu0 %v7323
  %v7638 = vpop.f32.mrb[0].mxu0
  %v7639 = vadd.f32 0.0, %v7638
  %v7640 = vpop.f32.mrb[0].mxu0
  %v7641 = vpop.f32.mrb[0].mxu0
  %v7642 = vadd.f32 0.0, %v7641
  %v7643 = vpop.f32.mrb[0].mxu0
  %7644 = vmatprep.mubr.bf16.mxu0 0
  %7645 = vmatmul.mubr.bf16.gmra.mrb[0].mxu0 %v7326
  %v7646 = vpop.f32.mrb[0].mxu0
  %v7647 = vadd.f32 0.0, %v7646
  %v7648 = vpop.f32.mrb[0].mxu0
  %v7649 = vpop.f32.mrb[0].mxu0
  %v7650 = vadd.f32 0.0, %v7649
  %v7651 = vpop.f32.mrb[0].mxu0
  %7652 = vmatprep.mubr.bf16.mxu0 0
  %7653 = vmatmul.mubr.bf16.gmra.mrb[0].mxu0 %v7329
  %v7654 = vpop.f32.mrb[0].mxu0
  %v7655 = vadd.f32 0.0, %v7654
  %v7656 = vpop.f32.mrb[0].mxu0
  %v7657 = vpop.f32.mrb[0].mxu0
  %v7658 = vadd.f32 0.0, %v7657
  %v7659 = vpop.f32.mrb[0].mxu0
  %7660 = vmatprep.mubr.bf16.mxu0 0
  %7661 = vmatmul.mubr.bf16.gmra.mrb[0].mxu0 %v7332
  %v7662 = vpop.f32.mrb[0].mxu0
  %v7663 = vadd.f32 0.0, %v7662
  %v7664 = vpop.f32.mrb[0].mxu0
  %v7665 = vpop.f32.mrb[0].mxu0
  %v7666 = vadd.f32 0.0, %v7665
  %v7667 = vpop.f32.mrb[0].mxu0
  %7668 = vmatprep.mubr.bf16.mxu0 0
  %7669 = vmatmul.mubr.bf16.gmra.mrb[0].mxu0 %v7335
  %v7670 = vpop.f32.mrb[0].mxu0
  %v7671 = vadd.f32 0.0, %v7670
  %v7672 = vpop.f32.mrb[0].mxu0
  %v7673 = vpop.f32.mrb[0].mxu0
  %v7674 = vadd.f32 0.0, %v7673
  %v7675 = vpop.f32.mrb[0].mxu0
  %7676 = vmatprep.mubr.bf16.mxu0 0
  %7677 = vmatmul.mubr.bf16.gmra.mrb[0].mxu0 %v7338
  %v7678 = vpop.f32.mrb[0].mxu0
  %v7679 = vadd.f32 0.0, %v7678
  %v7680 = vpop.f32.mrb[0].mxu0
  %v7681 = vpop.f32.mrb[0].mxu0
  %v7682 = vadd.f32 0.0, %v7681
  %v7683 = vpop.f32.mrb[0].mxu0
  %7684 = vmatprep.mubr.bf16.mxu0 0
  %7685 = vmatmul.mubr.bf16.gmra.mrb[0].mxu0 %v7341
  %v7686 = vpop.f32.mrb[0].mxu0
  %v7687 = vadd.f32 0.0, %v7686
  %v7688 = vpop.f32.mrb[0].mxu0
  %v7689 = vpop.f32.mrb[0].mxu0
  %v7690 = vadd.f32 0.0, %v7689
  %v7691 = vpop.f32.mrb[0].mxu0
  %7692 = vmatprep.mubr.bf16.mxu0 0
  %7693 = vmatmul.mubr.bf16.gmra.mrb[0].mxu0 %v7344
  %v7694 = vpop.f32.mrb[0].mxu0
  %v7695 = vadd.f32 0.0, %v7694
  %v7696 = vpop.f32.mrb[0].mxu0
  %v7697 = vpop.f32.mrb[0].mxu0
  %v7698 = vadd.f32 0.0, %v7697
  %v7699 = vpop.f32.mrb[0].mxu0
  %7700 = vmatprep.mubr.bf16.mxu0 0
  %7701 = vmatmul.mubr.bf16.gmra.mrb[0].mxu0 %v7347
  %v7702 = vpop.f32.mrb[0].mxu0
  %v7703 = vadd.f32 0.0, %v7702
  %v7704 = vpop.f32.mrb[0].mxu0
  %v7705 = vpop.f32.mrb[0].mxu0
  %v7706 = vadd.f32 0.0, %v7705
  %v7707 = vpop.f32.mrb[0].mxu0
  %7708 = vmatprep.mubr.bf16.mxu0 0
  %7709 = vmatmul.mubr.bf16.gmra.mrb[0].mxu0 %v7350
  %v7710 = vpop.f32.mrb[0].mxu0
  %v7711 = vadd.f32 0.0, %v7710
  %v7712 = vpop.f32.mrb[0].mxu0
  %v7713 = vpop.f32.mrb[0].mxu0
  %v7714 = vadd.f32 0.0, %v7713
  %v7715 = vpop.f32.mrb[0].mxu0
  %7716 = vmatprep.mubr.bf16.mxu0 0
  %7717 = vmatmul.mubr.bf16.gmra.mrb[0].mxu0 %v7353
  %v7718 = vpop.f32.mrb[0].mxu0
  %v7719 = vadd.f32 0.0, %v7718
  %v7720 = vpop.f32.mrb[0].mxu0
  %v7721 = vpop.f32.mrb[0].mxu0
  %v7722 = vadd.f32 0.0, %v7721
  %v7723 = vpop.f32.mrb[0].mxu0
  %7724 = vmatprep.mubr.bf16.mxu0 0
  %7725 = vmatmul.mubr.bf16.gmra.mrb[0].mxu0 %v7356
  %v7726 = vpop.f32.mrb[0].mxu0
  %v7727 = vadd.f32 0.0, %v7726
  %v7728 = vpop.f32.mrb[0].mxu0
  %v7729 = vpop.f32.mrb[0].mxu0
  %v7730 = vadd.f32 0.0, %v7729
  %v7731 = vpop.f32.mrb[0].mxu0
  %7732 = vmatprep.mubr.bf16.mxu0 0
  %7733 = vmatmul.mubr.bf16.gmra.mrb[0].mxu0 %v7359
  %v7734 = vpop.f32.mrb[0].mxu0
  %v7735 = vadd.f32 0.0, %v7734
  %v7736 = vpop.f32.mrb[0].mxu0
  %v7737 = vpop.f32.mrb[0].mxu0
  %v7738 = vadd.f32 0.0, %v7737
  %v7739 = vpop.f32.mrb[0].mxu0
  %7740 = vmatprep.mubr.bf16.mxu0 0
  %7741 = vmatmul.mubr.bf16.gmra.mrb[0].mxu0 %v7362
  %v7742 = vpop.f32.mrb[0].mxu0
  %v7743 = vadd.f32 0.0, %v7742
  %v7744 = vpop.f32.mrb[0].mxu0
  %v7745 = vpop.f32.mrb[0].mxu0
  %v7746 = vadd.f32 0.0, %v7745
  %v7747 = vpop.f32.mrb[0].mxu0
  %7748 = vmatprep.mubr.bf16.mxu0 0
  %7749 = vmatmul.mubr.bf16.gmra.mrb[0].mxu0 %v7365
  %v7750 = vpop.f32.mrb[0].mxu0
  %v7751 = vadd.f32 0.0, %v7750
  %v7752 = vpop.f32.mrb[0].mxu0
  %v7753 = vpop.f32.mrb[0].mxu0
  %v7754 = vadd.f32 0.0, %v7753
  %v7755 = vpop.f32.mrb[0].mxu0
  %7756 = vmatprep.mubr.bf16.mxu0 0
  %7757 = vmatmul.mubr.bf16.gmra.mrb[0].mxu0 %v7368
  %v7758 = vpop.f32.mrb[0].mxu0
  %v7759 = vadd.f32 0.0, %v7758
  %v7760 = vpop.f32.mrb[0].mxu0
  %v7761 = vpop.f32.mrb[0].mxu0
  %v7762 = vadd.f32 0.0, %v7761
  %v7763 = vpop.f32.mrb[0].mxu0
  %7764 = vmatprep.mubr.bf16.mxu0 0
  %7765 = vmatmul.mubr.bf16.gmra.mrb[0].mxu0 %v7371
  %v7766 = vpop.f32.mrb[0].mxu0
  %v7767 = vadd.f32 0.0, %v7766
  %v7768 = vpop.f32.mrb[0].mxu0
  %v7769 = vpop.f32.mrb[0].mxu0
  %v7770 = vadd.f32 0.0, %v7769
  %v7771 = vpop.f32.mrb[0].mxu0
  %7772 = vmatprep.mubr.bf16.mxu0 0
  %7773 = vmatmul.mubr.bf16.gmra.mrb[0].mxu0 %v7374
  %v7774 = vpop.f32.mrb[0].mxu0
  %v7775 = vadd.f32 0.0, %v7774
  %v7776 = vpop.f32.mrb[0].mxu0
  %v7777 = vpop.f32.mrb[0].mxu0
  %v7778 = vadd.f32 0.0, %v7777
  %v7779 = vpop.f32.mrb[0].mxu0
  %7780 = vmatprep.mubr.bf16.mxu0 0
  %7781 = vmatmul.mubr.bf16.gmra.mrb[0].mxu0 %v7377
  %v7782 = vpop.f32.mrb[0].mxu0
  %v7783 = vadd.f32 0.0, %v7782
  %v7784 = vpop.f32.mrb[0].mxu0
  %v7785 = vpop.f32.mrb[0].mxu0
  %v7786 = vadd.f32 0.0, %v7785
  %v7787 = vpop.f32.mrb[0].mxu0
  %7788 = vmatprep.mubr.bf16.mxu0 0
  %7789 = vmatmul.mubr.bf16.gmra.mrb[0].mxu0 %v7380
  %v7790 = vpop.f32.mrb[0].mxu0
  %v7791 = vadd.f32 0.0, %v7790
  %v7792 = vpop.f32.mrb[0].mxu0
  %v7793 = vpop.f32.mrb[0].mxu0
  %v7794 = vadd.f32 0.0, %v7793
  %v7795 = vpop.f32.mrb[0].mxu0
  %7796 = vmatprep.mubr.bf16.mxu0 0
  %7797 = vmatmul.mubr.bf16.gmra.mrb[0].mxu0 %v7383
  %v7798 = vpop.f32.mrb[0].mxu0
  %v7799 = vadd.f32 0.0, %v7798
  %v7800 = vpop.f32.mrb[0].mxu0
  %v7801 = vpop.f32.mrb[0].mxu0
  %v7802 = vadd.f32 0.0, %v7801
  %v7803 = vpop.f32.mrb[0].mxu0
  %7804 = vmatprep.mubr.bf16.mxu0 0
  %7805 = vmatmul.mubr.bf16.gmra.mrb[0].mxu0 %v7386
  %v7806 = vpop.f32.mrb[0].mxu0
  %v7807 = vadd.f32 0.0, %v7806
  %v7808 = vpop.f32.mrb[0].mxu0
  %v7809 = vpop.f32.mrb[0].mxu0
  %v7810 = vadd.f32 0.0, %v7809
  %v7811 = vpop.f32.mrb[0].mxu0
  %7812 = vmatprep.mubr.bf16.mxu0 0
  %7813 = vmatmul.mubr.bf16.gmra.mrb[0].mxu0 %v7389
  %v7814 = vpop.f32.mrb[0].mxu0
  %v7815 = vadd.f32 0.0, %v7814
  %v7816 = vpop.f32.mrb[0].mxu0
  %v7817 = vpop.f32.mrb[0].mxu0
  %v7818 = vadd.f32 0.0, %v7817
  %v7819 = vpop.f32.mrb[0].mxu0
  %7820 = vmatprep.mubr.bf16.mxu0 0
  %7821 = vmatmul.mubr.bf16.gmra.mrb[0].mxu0 %v7392
  %v7822 = vpop.f32.mrb[0].mxu0
  %v7823 = vadd.f32 0.0, %v7822
  %v7824 = vpop.f32.mrb[0].mxu0
  %v7825 = vpop.f32.mrb[0].mxu0
  %v7826 = vadd.f32 0.0, %v7825
  %v7827 = vpop.f32.mrb[0].mxu0
  %7828 = vmatprep.mubr.bf16.mxu0 0
  %7829 = vmatmul.mubr.bf16.gmra.mrb[0].mxu0 %v7395
  %v7830 = vpop.f32.mrb[0].mxu0
  %v7831 = vadd.f32 0.0, %v7830
  %v7832 = vpop.f32.mrb[0].mxu0
  %v7833 = vpop.f32.mrb[0].mxu0
  %v7834 = vadd.f32 0.0, %v7833
  %v7835 = vpop.f32.mrb[0].mxu0
  %7836 = vmatprep.mubr.bf16.mxu0 0
  %7837 = vmatmul.mubr.bf16.gmra.mrb[0].mxu0 %v7398
  %v7838 = vpop.f32.mrb[0].mxu0
  %v7839 = vadd.f32 0.0, %v7838
  %v7840 = vpop.f32.mrb[0].mxu0
  %v7841 = vpop.f32.mrb[0].mxu0
  %v7842 = vadd.f32 0.0, %v7841
  %v7843 = vpop.f32.mrb[0].mxu0
  %7844 = vmatprep.mubr.bf16.mxu0 0
  %7845 = vmatmul.mubr.bf16.gmra.mrb[0].mxu0 %v7401
  %v7846 = vpop.f32.mrb[0].mxu0
  %v7847 = vadd.f32 0.0, %v7846
  %v7848 = vpop.f32.mrb[0].mxu0
  %v7849 = vpop.f32.mrb[0].mxu0
  %v7850 = vadd.f32 0.0, %v7849
  %v7851 = vpop.f32.mrb[0].mxu0
  %7852 = vmatprep.mubr.bf16.mxu0 0
  %7853 = vmatmul.mubr.bf16.gmra.mrb[0].mxu0 %v7404
  %v7854 = vpop.f32.mrb[0].mxu0
  %v7855 = vadd.f32 0.0, %v7854
  %v7856 = vpop.f32.mrb[0].mxu0
  %v7857 = vpop.f32.mrb[0].mxu0
  %v7858 = vadd.f32 0.0, %v7857
  %v7859 = vpop.f32.mrb[0].mxu0
  %7860 = vmatprep.mubr.bf16.mxu0 0
  %7861 = vmatmul.mubr.bf16.gmra.mrb[0].mxu0 %v7407
  %v7862 = vpop.f32.mrb[0].mxu0
  %v7863 = vadd.f32 0.0, %v7862
  %v7864 = vpop.f32.mrb[0].mxu0
  %v7865 = vpop.f32.mrb[0].mxu0
  %v7866 = vadd.f32 0.0, %v7865
  %v7867 = vpop.f32.mrb[0].mxu0
  %7868 = vmatprep.mubr.bf16.mxu0 0
  %7869 = vmatmul.mubr.bf16.gmra.mrb[0].mxu0 %v7410
  %v7870 = vpop.f32.mrb[0].mxu0
  %v7871 = vadd.f32 0.0, %v7870
  %v7872 = vpop.f32.mrb[0].mxu0
  %v7873 = vpop.f32.mrb[0].mxu0
  %v7874 = vadd.f32 0.0, %v7873
  %v7875 = vpop.f32.mrb[0].mxu0
  %7876 = vmatprep.mubr.bf16.mxu0 0
  %7877 = vmatmul.mubr.bf16.gmra.mrb[0].mxu0 %v7413
  %v7878 = vpop.f32.mrb[0].mxu0
  %v7879 = vadd.f32 0.0, %v7878
  %v7880 = vpop.f32.mrb[0].mxu0
  %v7881 = vpop.f32.mrb[0].mxu0
  %v7882 = vadd.f32 0.0, %v7881
  %v7883 = vpop.f32.mrb[0].mxu0
  %7884 = vmatprep.mubr.bf16.mxu0 0
  %7885 = vmatmul.mubr.bf16.gmra.mrb[0].mxu0 %v7416
  %v7886 = vpop.f32.mrb[0].mxu0
  %v7887 = vadd.f32 0.0, %v7886
  %v7888 = vpop.f32.mrb[0].mxu0
  %v7889 = vpop.f32.mrb[0].mxu0
  %v7890 = vadd.f32 0.0, %v7889
  %v7891 = vpop.f32.mrb[0].mxu0
  %7892 = vmatprep.mubr.bf16.mxu0 0
  %7893 = vmatmul.mubr.bf16.gmra.mrb[0].mxu0 %v7419
  %v7894 = vpop.f32.mrb[0].mxu0
  %v7895 = vadd.f32 0.0, %v7894
  %v7896 = vpop.f32.mrb[0].mxu0
  %v7897 = vpop.f32.mrb[0].mxu0
  %v7898 = vadd.f32 0.0, %v7897
  %v7899 = vpop.f32.mrb[0].mxu0
  %7900 = vmatprep.mubr.bf16.mxu0 0
  %7901 = vmatmul.mubr.bf16.gmra.mrb[0].mxu0 %v7422
  %v7902 = vpop.f32.mrb[0].mxu0
  %v7903 = vadd.f32 0.0, %v7902
  %v7904 = vpop.f32.mrb[0].mxu0
  %v7905 = vpop.f32.mrb[0].mxu0
  %v7906 = vadd.f32 0.0, %v7905
  %v7907 = vpop.f32.mrb[0].mxu0
  %7908 = vmatprep.mubr.bf16.mxu0 0
  %7909 = vmatmul.mubr.bf16.gmra.mrb[0].mxu0 %v7425
  %v7910 = vpop.f32.mrb[0].mxu0
  %v7911 = vadd.f32 0.0, %v7910
  %v7912 = vpop.f32.mrb[0].mxu0
  %v7913 = vpop.f32.mrb[0].mxu0
  %v7914 = vadd.f32 0.0, %v7913
  %v7915 = vpop.f32.mrb[0].mxu0
  %7916 = vmatprep.mubr.bf16.mxu0 0
  %7917 = vmatmul.mubr.bf16.gmra.mrb[0].mxu0 %v7428
  %v7918 = vpop.f32.mrb[0].mxu0
  %v7919 = vadd.f32 0.0, %v7918
  %v7920 = vpop.f32.mrb[0].mxu0
  %v7921 = vpop.f32.mrb[0].mxu0
  %v7922 = vadd.f32 0.0, %v7921
  %v7923 = vpop.f32.mrb[0].mxu0
  %7924 = vmatprep.mubr.bf16.mxu0 0
  %7925 = vmatmul.mubr.bf16.gmra.mrb[0].mxu0 %v7431
  %v7926 = vpop.f32.mrb[0].mxu0
  %v7927 = vadd.f32 0.0, %v7926
  %v7928 = vpop.f32.mrb[0].mxu0
  %v7929 = vpop.f32.mrb[0].mxu0
  %v7930 = vadd.f32 0.0, %v7929
  %v7931 = vpop.f32.mrb[0].mxu0
  %7932 = vmatprep.mubr.bf16.mxu0 0
  %7933 = vmatmul.mubr.bf16.gmra.mrb[0].mxu0 %v7434
  %v7934 = vpop.f32.mrb[0].mxu0
  %v7935 = vadd.f32 0.0, %v7934
  %v7936 = vpop.f32.mrb[0].mxu0
  %v7937 = vpop.f32.mrb[0].mxu0
  %v7938 = vadd.f32 0.0, %v7937
  %v7939 = vpop.f32.mrb[0].mxu0
  %7940 = vmatprep.mubr.bf16.mxu0 0
  %7941 = vmatmul.mubr.bf16.gmra.mrb[0].mxu0 %v7437
  %v7942 = vpop.f32.mrb[0].mxu0
  %v7943 = vadd.f32 0.0, %v7942
  %v7944 = vpop.f32.mrb[0].mxu0
  %v7945 = vpop.f32.mrb[0].mxu0
  %v7946 = vadd.f32 0.0, %v7945
  %v7947 = vpop.f32.mrb[0].mxu0
  %7948 = vmatprep.mubr.bf16.mxu0 0
  %7949 = vmatmul.mubr.bf16.gmra.mrb[0].mxu0 %v7440
  %v7950 = vpop.f32.mrb[0].mxu0
  %v7951 = vadd.f32 0.0, %v7950
  %v7952 = vpop.f32.mrb[0].mxu0
  %v7953 = vpop.f32.mrb[0].mxu0
  %v7954 = vadd.f32 0.0, %v7953
  %v7955 = vpop.f32.mrb[0].mxu0
  %7956 = vmatprep.mubr.bf16.mxu0 0
  %7957 = vmatmul.mubr.bf16.gmra.mrb[0].mxu0 %v7443
  %v7958 = vpop.f32.mrb[0].mxu0
  %v7959 = vadd.f32 0.0, %v7958
  %v7960 = vpop.f32.mrb[0].mxu0
  %v7961 = vpop.f32.mrb[0].mxu0
  %v7962 = vadd.f32 0.0, %v7961
  %v7963 = vpop.f32.mrb[0].mxu0
  %7964 = vmatprep.mubr.bf16.mxu0 0
  %7965 = vmatmul.mubr.bf16.gmra.mrb[0].mxu0 %v7446
  %v7966 = vpop.f32.mrb[0].mxu0
  %v7967 = vadd.f32 0.0, %v7966
  %v7968 = vpop.f32.mrb[0].mxu0
  %v7969 = vpop.f32.mrb[0].mxu0
  %v7970 = vadd.f32 0.0, %v7969
  %v7971 = vpop.f32.mrb[0].mxu0
  %7972 = vmatprep.mubr.bf16.mxu0 0
  %7973 = vmatmul.mubr.bf16.gmra.mrb[0].mxu0 %v7449
  %v7974 = vpop.f32.mrb[0].mxu0
  %v7975 = vadd.f32 0.0, %v7974
  %v7976 = vpop.f32.mrb[0].mxu0
  %v7977 = vpop.f32.mrb[0].mxu0
  %v7978 = vadd.f32 0.0, %v7977
  %v7979 = vpop.f32.mrb[0].mxu0
  %7980 = vmatprep.mubr.bf16.mxu0 0
  %7981 = vmatmul.mubr.bf16.gmra.mrb[0].mxu0 %v7452
  %v7982 = vpop.f32.mrb[0].mxu0
  %v7983 = vadd.f32 0.0, %v7982
  %v7984 = vpop.f32.mrb[0].mxu0
  %v7985 = vpop.f32.mrb[0].mxu0
  %v7986 = vadd.f32 0.0, %v7985
  %v7987 = vpop.f32.mrb[0].mxu0
  %7988 = vmatprep.mubr.bf16.mxu0 0
  %7989 = vmatmul.mubr.bf16.gmra.mrb[0].mxu0 %v7455
  %v7990 = vpop.f32.mrb[0].mxu0
  %v7991 = vadd.f32 0.0, %v7990
  %v7992 = vpop.f32.mrb[0].mxu0
  %v7993 = vpop.f32.mrb[0].mxu0
  %v7994 = vadd.f32 0.0, %v7993
  %v7995 = vpop.f32.mrb[0].mxu0
  %7996 = vmatprep.mubr.bf16.mxu0 0
  %7997 = vmatmul.mubr.bf16.gmra.mrb[0].mxu0 %v7458
  %v7998 = vpop.f32.mrb[0].mxu0
  %v7999 = vadd.f32 0.0, %v7998
  %v8000 = vpop.f32.mrb[0].mxu0
  %v8001 = vpop.f32.mrb[0].mxu0
  %v8002 = vadd.f32 0.0, %v8001
  %v8003 = vpop.f32.mrb[0].mxu0
  %8004 = vdwg.mxu0
  %v8005 = vpack.c.bf16 %v7498, %v7495
  %v8006 = vpack.c.bf16 %v7506, %v7503
  %v8007 = vpack.c.bf16 %v7514, %v7511
  %v8008 = vpack.c.bf16 %v7522, %v7519
  %v8009 = vpack.c.bf16 %v7530, %v7527
  %v8010 = vpack.c.bf16 %v7538, %v7535
  %v8011 = vpack.c.bf16 %v7546, %v7543
  %v8012 = vpack.c.bf16 %v7554, %v7551
  %v8013 = vpack.c.bf16 %v7562, %v7559
  %v8014 = vpack.c.bf16 %v7570, %v7567
  %v8015 = vpack.c.bf16 %v7578, %v7575
  %v8016 = vpack.c.bf16 %v7586, %v7583
  %v8017 = vpack.c.bf16 %v7594, %v7591
  %v8018 = vpack.c.bf16 %v7602, %v7599
  %v8019 = vpack.c.bf16 %v7610, %v7607
  %v8020 = vpack.c.bf16 %v7618, %v7615
  %v8021 = vpack.c.bf16 %v7626, %v7623
  %v8022 = vpack.c.bf16 %v7634, %v7631
  %v8023 = vpack.c.bf16 %v7642, %v7639
  %v8024 = vpack.c.bf16 %v7650, %v7647
  %v8025 = vpack.c.bf16 %v7658, %v7655
  %v8026 = vpack.c.bf16 %v7666, %v7663
  %v8027 = vpack.c.bf16 %v7674, %v7671
  %v8028 = vpack.c.bf16 %v7682, %v7679
  %v8029 = vpack.c.bf16 %v7690, %v7687
  %v8030 = vpack.c.bf16 %v7698, %v7695
  %v8031 = vpack.c.bf16 %v7706, %v7703
  %v8032 = vpack.c.bf16 %v7714, %v7711
  %v8033 = vpack.c.bf16 %v7722, %v7719
  %v8034 = vpack.c.bf16 %v7730, %v7727
  %v8035 = vpack.c.bf16 %v7738, %v7735
  %v8036 = vpack.c.bf16 %v7746, %v7743
  %v8037 = vpack.c.bf16 %v7754, %v7751
  %v8038 = vpack.c.bf16 %v7762, %v7759
  %v8039 = vpack.c.bf16 %v7770, %v7767
  %v8040 = vpack.c.bf16 %v7778, %v7775
  %v8041 = vpack.c.bf16 %v7786, %v7783
  %v8042 = vpack.c.bf16 %v7794, %v7791
  %v8043 = vpack.c.bf16 %v7802, %v7799
  %v8044 = vpack.c.bf16 %v7810, %v7807
  %v8045 = vpack.c.bf16 %v7818, %v7815
  %v8046 = vpack.c.bf16 %v7826, %v7823
  %v8047 = vpack.c.bf16 %v7834, %v7831
  %v8048 = vpack.c.bf16 %v7842, %v7839
  %v8049 = vpack.c.bf16 %v7850, %v7847
  %v8050 = vpack.c.bf16 %v7858, %v7855
  %v8051 = vpack.c.bf16 %v7866, %v7863
  %v8052 = vpack.c.bf16 %v7874, %v7871
  %v8053 = vpack.c.bf16 %v7882, %v7879
  %v8054 = vpack.c.bf16 %v7890, %v7887
  %v8055 = vpack.c.bf16 %v7898, %v7895
  %v8056 = vpack.c.bf16 %v7906, %v7903
  %v8057 = vpack.c.bf16 %v7914, %v7911
  %v8058 = vpack.c.bf16 %v7922, %v7919
  %v8059 = vpack.c.bf16 %v7930, %v7927
  %v8060 = vpack.c.bf16 %v7938, %v7935
  %v8061 = vpack.c.bf16 %v7946, %v7943
  %v8062 = vpack.c.bf16 %v7954, %v7951
  %v8063 = vpack.c.bf16 %v7962, %v7959
  %v8064 = vpack.c.bf16 %v7970, %v7967
  %v8065 = vpack.c.bf16 %v7978, %v7975
  %v8066 = vpack.c.bf16 %v7986, %v7983
  %v8067 = vpack.c.bf16 %v7994, %v7991
  %v8068 = vpack.c.bf16 %v8002, %v7999
  %s8069 = scalar_lea.vmem %s33, 512
  %v8070 = vld [vmem:[%s8069] sm:$0xf]
  %v8071 = vld [vmem:[%s8069 + $0x4] sm:$0xf]
  %v8072 = vld [vmem:[%s8069 + $0x8] sm:$0xf]
  %v8073 = vld [vmem:[%s8069 + $0xc] sm:$0xf]
  %v8074 = vld [vmem:[%s8069 + $0x10] sm:$0xf]
  %v8075 = vld [vmem:[%s8069 + $0x14] sm:$0xf]
  %v8076 = vld [vmem:[%s8069 + $0x18] sm:$0xf]
  %v8077 = vld [vmem:[%s8069 + $0x1c] sm:$0xf]
  %v8078 = vld [vmem:[%s8069 + $0x20] sm:$0xf]
  %v8079 = vld [vmem:[%s8069 + $0x24] sm:$0xf]
  %v8080 = vld [vmem:[%s8069 + $0x28] sm:$0xf]
  %v8081 = vld [vmem:[%s8069 + $0x2c] sm:$0xf]
  %v8082 = vld [vmem:[%s8069 + $0x30] sm:$0xf]
  %v8083 = vld [vmem:[%s8069 + $0x34] sm:$0xf]
  %v8084 = vld [vmem:[%s8069 + $0x38] sm:$0xf]
  %v8085 = vld [vmem:[%s8069 + $0x3c] sm:$0xf]
  %v8086 = vld [vmem:[%s8069 + $0x40] sm:$0xf]
  %v8087 = vld [vmem:[%s8069 + $0x44] sm:$0xf]
  %v8088 = vld [vmem:[%s8069 + $0x48] sm:$0xf]
  %v8089 = vld [vmem:[%s8069 + $0x4c] sm:$0xf]
  %v8090 = vld [vmem:[%s8069 + $0x50] sm:$0xf]
  %v8091 = vld [vmem:[%s8069 + $0x54] sm:$0xf]
  %v8092 = vld [vmem:[%s8069 + $0x58] sm:$0xf]
  %v8093 = vld [vmem:[%s8069 + $0x5c] sm:$0xf]
  %v8094 = vld [vmem:[%s8069 + $0x60] sm:$0xf]
  %v8095 = vld [vmem:[%s8069 + $0x64] sm:$0xf]
  %v8096 = vld [vmem:[%s8069 + $0x68] sm:$0xf]
  %v8097 = vld [vmem:[%s8069 + $0x6c] sm:$0xf]
  %v8098 = vld [vmem:[%s8069 + $0x70] sm:$0xf]
  %v8099 = vld [vmem:[%s8069 + $0x74] sm:$0xf]
  %v8100 = vld [vmem:[%s8069 + $0x78] sm:$0xf]
  %v8101 = vld [vmem:[%s8069 + $0x7c] sm:$0xf]
  %v8102 = vld [vmem:[%s8069 + $0x80] sm:$0xf]
  %v8103 = vld [vmem:[%s8069 + $0x84] sm:$0xf]
  %v8104 = vld [vmem:[%s8069 + $0x88] sm:$0xf]
  %v8105 = vld [vmem:[%s8069 + $0x8c] sm:$0xf]
  %v8106 = vld [vmem:[%s8069 + $0x90] sm:$0xf]
  %v8107 = vld [vmem:[%s8069 + $0x94] sm:$0xf]
  %v8108 = vld [vmem:[%s8069 + $0x98] sm:$0xf]
  %v8109 = vld [vmem:[%s8069 + $0x9c] sm:$0xf]
  %v8110 = vld [vmem:[%s8069 + $0xa0] sm:$0xf]
  %v8111 = vld [vmem:[%s8069 + $0xa4] sm:$0xf]
  %v8112 = vld [vmem:[%s8069 + $0xa8] sm:$0xf]
  %v8113 = vld [vmem:[%s8069 + $0xac] sm:$0xf]
  %v8114 = vld [vmem:[%s8069 + $0xb0] sm:$0xf]
  %v8115 = vld [vmem:[%s8069 + $0xb4] sm:$0xf]
  %v8116 = vld [vmem:[%s8069 + $0xb8] sm:$0xf]
  %v8117 = vld [vmem:[%s8069 + $0xbc] sm:$0xf]
  %v8118 = vld [vmem:[%s8069 + $0xc0] sm:$0xf]
  %v8119 = vld [vmem:[%s8069 + $0xc4] sm:$0xf]
  %v8120 = vld [vmem:[%s8069 + $0xc8] sm:$0xf]
  %v8121 = vld [vmem:[%s8069 + $0xcc] sm:$0xf]
  %v8122 = vld [vmem:[%s8069 + $0xd0] sm:$0xf]
  %v8123 = vld [vmem:[%s8069 + $0xd4] sm:$0xf]
  %v8124 = vld [vmem:[%s8069 + $0xd8] sm:$0xf]
  %v8125 = vld [vmem:[%s8069 + $0xdc] sm:$0xf]
  %v8126 = vld [vmem:[%s8069 + $0xe0] sm:$0xf]
  %v8127 = vld [vmem:[%s8069 + $0xe4] sm:$0xf]
  %v8128 = vld [vmem:[%s8069 + $0xe8] sm:$0xf]
  %v8129 = vld [vmem:[%s8069 + $0xec] sm:$0xf]
  %v8130 = vld [vmem:[%s8069 + $0xf0] sm:$0xf]
  %v8131 = vld [vmem:[%s8069 + $0xf4] sm:$0xf]
  %v8132 = vld [vmem:[%s8069 + $0xf8] sm:$0xf]
  %v8133 = vld [vmem:[%s8069 + $0xfc] sm:$0xf]
  %v8134 = vld [vmem:[%s8069 + $0x100] sm:$0xf]
  %v8135 = vld [vmem:[%s8069 + $0x104] sm:$0xf]
  %v8136 = vld [vmem:[%s8069 + $0x108] sm:$0xf]
  %v8137 = vld [vmem:[%s8069 + $0x10c] sm:$0xf]
  %v8138 = vld [vmem:[%s8069 + $0x110] sm:$0xf]
  %v8139 = vld [vmem:[%s8069 + $0x114] sm:$0xf]
  %v8140 = vld [vmem:[%s8069 + $0x118] sm:$0xf]
  %v8141 = vld [vmem:[%s8069 + $0x11c] sm:$0xf]
  %v8142 = vld [vmem:[%s8069 + $0x120] sm:$0xf]
  %v8143 = vld [vmem:[%s8069 + $0x124] sm:$0xf]
  %v8144 = vld [vmem:[%s8069 + $0x128] sm:$0xf]
  %v8145 = vld [vmem:[%s8069 + $0x12c] sm:$0xf]
  %v8146 = vld [vmem:[%s8069 + $0x130] sm:$0xf]
  %v8147 = vld [vmem:[%s8069 + $0x134] sm:$0xf]
  %v8148 = vld [vmem:[%s8069 + $0x138] sm:$0xf]
  %v8149 = vld [vmem:[%s8069 + $0x13c] sm:$0xf]
  %v8150 = vld [vmem:[%s8069 + $0x140] sm:$0xf]
  %v8151 = vld [vmem:[%s8069 + $0x144] sm:$0xf]
  %v8152 = vld [vmem:[%s8069 + $0x148] sm:$0xf]
  %v8153 = vld [vmem:[%s8069 + $0x14c] sm:$0xf]
  %v8154 = vld [vmem:[%s8069 + $0x150] sm:$0xf]
  %v8155 = vld [vmem:[%s8069 + $0x154] sm:$0xf]
  %v8156 = vld [vmem:[%s8069 + $0x158] sm:$0xf]
  %v8157 = vld [vmem:[%s8069 + $0x15c] sm:$0xf]
  %v8158 = vld [vmem:[%s8069 + $0x160] sm:$0xf]
  %v8159 = vld [vmem:[%s8069 + $0x164] sm:$0xf]
  %v8160 = vld [vmem:[%s8069 + $0x168] sm:$0xf]
  %v8161 = vld [vmem:[%s8069 + $0x16c] sm:$0xf]
  %v8162 = vld [vmem:[%s8069 + $0x170] sm:$0xf]
  %v8163 = vld [vmem:[%s8069 + $0x174] sm:$0xf]
  %v8164 = vld [vmem:[%s8069 + $0x178] sm:$0xf]
  %v8165 = vld [vmem:[%s8069 + $0x17c] sm:$0xf]
  %v8166 = vld [vmem:[%s8069 + $0x180] sm:$0xf]
  %v8167 = vld [vmem:[%s8069 + $0x184] sm:$0xf]
  %v8168 = vld [vmem:[%s8069 + $0x188] sm:$0xf]
  %v8169 = vld [vmem:[%s8069 + $0x18c] sm:$0xf]
  %v8170 = vld [vmem:[%s8069 + $0x190] sm:$0xf]
  %v8171 = vld [vmem:[%s8069 + $0x194] sm:$0xf]
  %v8172 = vld [vmem:[%s8069 + $0x198] sm:$0xf]
  %v8173 = vld [vmem:[%s8069 + $0x19c] sm:$0xf]
  %v8174 = vld [vmem:[%s8069 + $0x1a0] sm:$0xf]
  %v8175 = vld [vmem:[%s8069 + $0x1a4] sm:$0xf]
  %v8176 = vld [vmem:[%s8069 + $0x1a8] sm:$0xf]
  %v8177 = vld [vmem:[%s8069 + $0x1ac] sm:$0xf]
  %v8178 = vld [vmem:[%s8069 + $0x1b0] sm:$0xf]
  %v8179 = vld [vmem:[%s8069 + $0x1b4] sm:$0xf]
  %v8180 = vld [vmem:[%s8069 + $0x1b8] sm:$0xf]
  %v8181 = vld [vmem:[%s8069 + $0x1bc] sm:$0xf]
  %v8182 = vld [vmem:[%s8069 + $0x1c0] sm:$0xf]
  %v8183 = vld [vmem:[%s8069 + $0x1c4] sm:$0xf]
  %v8184 = vld [vmem:[%s8069 + $0x1c8] sm:$0xf]
  %v8185 = vld [vmem:[%s8069 + $0x1cc] sm:$0xf]
  %v8186 = vld [vmem:[%s8069 + $0x1d0] sm:$0xf]
  %v8187 = vld [vmem:[%s8069 + $0x1d4] sm:$0xf]
  %v8188 = vld [vmem:[%s8069 + $0x1d8] sm:$0xf]
  %v8189 = vld [vmem:[%s8069 + $0x1dc] sm:$0xf]
  %v8190 = vld [vmem:[%s8069 + $0x1e0] sm:$0xf]
  %v8191 = vld [vmem:[%s8069 + $0x1e4] sm:$0xf]
  %v8192 = vld [vmem:[%s8069 + $0x1e8] sm:$0xf]
  %v8193 = vld [vmem:[%s8069 + $0x1ec] sm:$0xf]
  %v8194 = vld [vmem:[%s8069 + $0x1f0] sm:$0xf]
  %v8195 = vld [vmem:[%s8069 + $0x1f4] sm:$0xf]
  %v8196 = vld [vmem:[%s8069 + $0x1f8] sm:$0xf]
  %v8197 = vld [vmem:[%s8069 + $0x1fc] sm:$0xf]
  %s8198 = scalar_lea.vmem %s35, 1
  %v8199 = vld [vmem:[%s8198] sm:$0x1]
  %v8201 = vlaneseq
  %v8202 = vshrl.u32 %v8201, 7
  %v8203 = vsub.s32 0, %v8202
  %v8204 = vrot.slane %v8199, %v8203
  %8206 = vmatprep.subr.bf16.mxu0 0
  %8207 = vmatpush1.bf16.msra.mxu0 %v8005
  %8208 = vmatprep.subr.bf16.mxu0 0
  %8209 = vmatpush1.bf16.msra.mxu0 %v8006
  %8210 = vmatprep.subr.bf16.mxu0 0
  %8211 = vmatpush1.bf16.msra.mxu0 %v8007
  %8212 = vmatprep.subr.bf16.mxu0 0
  %8213 = vmatpush1.bf16.msra.mxu0 %v8008
  %8214 = vmatprep.subr.bf16.mxu0 0
  %8215 = vmatpush1.bf16.msra.mxu0 %v8009
  %8216 = vmatprep.subr.bf16.mxu0 0
  %8217 = vmatpush1.bf16.msra.mxu0 %v8010
  %8218 = vmatprep.subr.bf16.mxu0 0
  %8219 = vmatpush1.bf16.msra.mxu0 %v8011
  %8220 = vmatprep.subr.bf16.mxu0 0
  %8221 = vmatpush1.bf16.msra.mxu0 %v8012
  %8222 = vmatprep.subr.bf16.mxu0 0
  %8223 = vmatpush1.bf16.msra.mxu0 0
  %8224 = vmatprep.subr.bf16.mxu0 0
  %8225 = vmatpush1.bf16.msra.mxu0 0
  %8226 = vmatprep.subr.bf16.mxu0 0
  %8227 = vmatpush1.bf16.msra.mxu0 0
  %8228 = vmatprep.subr.bf16.mxu0 0
  %8229 = vmatpush1.bf16.msra.mxu0 0
  %8230 = vmatprep.subr.bf16.mxu0 0
  %8231 = vmatpush1.bf16.msra.mxu0 0
  %8232 = vmatprep.subr.bf16.mxu0 0
  %8233 = vmatpush1.bf16.msra.mxu0 0
  %8234 = vmatprep.subr.bf16.mxu0 0
  %8235 = vmatpush1.bf16.msra.mxu0 0
  %8236 = vmatprep.subr.bf16.mxu0 0
  %8237 = vmatpush1.bf16.msra.mxu0 0
  %8238 = vmatprep.mubr.bf16.mxu0 0
  %8239 = vmatmul.mubr.bf16.gmra.mrb[0].mxu0 %v6390
  %v8240 = vpop.f32.mrb[0].mxu0
  %v8241 = vadd.f32 0.0, %v8240
  %v8242 = vpop.f32.mrb[0].mxu0
  %v8243 = vpop.f32.mrb[0].mxu0
  %v8244 = vadd.f32 0.0, %v8243
  %v8245 = vpop.f32.mrb[0].mxu0
  %8246 = vmatprep.mubr.bf16.mxu0 0
  %8247 = vmatmul.mubr.bf16.gmra.mrb[0].mxu0 %v6398
  %v8248 = vpop.f32.mrb[0].mxu0
  %v8249 = vadd.f32 0.0, %v8248
  %v8250 = vpop.f32.mrb[0].mxu0
  %v8251 = vpop.f32.mrb[0].mxu0
  %v8252 = vpop.f32.mrb[0].mxu0
  %8253 = vdwg.mxu0
  %v8254 = vmul.f32 %v8241, 0.125
  %v8255 = vmul.f32 %v8244, 0.125
  %v8256 = vmul.f32 %v8249, 0.125
  %v8257 = vmul.f32 %v8254, 1.442695
  %v8258 = vpow.pop %v8257
  %v8259 = vmul.f32 %v8255, 1.442695
  %v8260 = vpow.pop %v8259
  %v8261 = vmul.f32 %v8256, 1.442695
  %v8262 = vpow.pop %v8261
  %v8263 = vsel %vm3809, %v8258, 0.0
  %8264 = vadd.xlane.f32.xlu0 %v8263
  %v8265 = vpop.xlane.xlu0 %8264
  %v8266 = vsel %vm3809, %v8260, 0.0
  %8267 = vadd.xlane.f32.xlu0 %v8266
  %v8268 = vpop.xlane.xlu0 %8267
  %v8269 = vsel %vm3816, %v8262, 0.0
  %8270 = vadd.xlane.f32.xlu0 %v8269
  %v8271 = vpop.xlane.xlu0 %8270
  %v8272 = vrcp.pop %v8265
  %v8273 = vmul.f32 %v8258, %v8272
  %v8274 = vrcp.pop %v8268
  %v8275 = vmul.f32 %v8260, %v8274
  %v8276 = vrcp.pop %v8271
  %v8277 = vmul.f32 %v8262, %v8276
  %v8278 = vpack.c.bf16 %v8275, %v8273
  %v8279 = vpack.c.bf16 %v8277, %v8277
  %v8281 = vsel %vm3809, %v8278, 0
  %v8284 = vsel %vm3809, %v8279, 0
  %v8287 = vand.u32 %v6811, %v3836
  %8289 = vmatprep.subr.bf16.mxu0 0
  %8290 = vmatpush1.bf16.msra.mxu0 %v6803
  %8291 = vmatprep.subr.bf16.mxu0 0
  %8292 = vmatpush1.bf16.msra.mxu0 %v8287
  %8293 = vmatprep.subr.bf16.mxu0 0
  %8294 = vmatpush1.bf16.msra.mxu0 0
  %8295 = vmatprep.subr.bf16.mxu0 0
  %8296 = vmatpush1.bf16.msra.mxu0 0
  %8297 = vmatprep.subr.bf16.mxu0 0
  %8298 = vmatpush1.bf16.msra.mxu0 0
  %8299 = vmatprep.subr.bf16.mxu0 0
  %8300 = vmatpush1.bf16.msra.mxu0 0
  %8301 = vmatprep.subr.bf16.mxu0 0
  %8302 = vmatpush1.bf16.msra.mxu0 0
  %8303 = vmatprep.subr.bf16.mxu0 0
  %8304 = vmatpush1.bf16.msra.mxu0 0
  %8305 = vmatprep.subr.bf16.mxu0 0
  %8306 = vmatpush1.bf16.msra.mxu0 0
  %8307 = vmatprep.subr.bf16.mxu0 0
  %8308 = vmatpush1.bf16.msra.mxu0 0
  %8309 = vmatprep.subr.bf16.mxu0 0
  %8310 = vmatpush1.bf16.msra.mxu0 0
  %8311 = vmatprep.subr.bf16.mxu0 0
  %8312 = vmatpush1.bf16.msra.mxu0 0
  %8313 = vmatprep.subr.bf16.mxu0 0
  %8314 = vmatpush1.bf16.msra.mxu0 0
  %8315 = vmatprep.subr.bf16.mxu0 0
  %8316 = vmatpush1.bf16.msra.mxu0 0
  %8317 = vmatprep.subr.bf16.mxu0 0
  %8318 = vmatpush1.bf16.msra.mxu0 0
  %8319 = vmatprep.subr.bf16.mxu0 0
  %8320 = vmatpush1.bf16.msra.mxu0 0
  %8321 = vmatprep.mubr.bf16.mxu0 0
  %8322 = vmatmul.mubr.bf16.gmra.mrb[0].mxu0 %v8281
  %v8323 = vpop.f32.mrb[0].mxu0
  %v8324 = vadd.f32 0.0, %v8323
  %v8325 = vpop.f32.mrb[0].mxu0
  %v8326 = vpop.f32.mrb[0].mxu0
  %v8327 = vadd.f32 0.0, %v8326
  %v8328 = vpop.f32.mrb[0].mxu0
  %8329 = vmatprep.mubr.bf16.mxu0 0
  %8330 = vmatmul.mubr.bf16.gmra.mrb[0].mxu0 %v8284
  %v8331 = vpop.f32.mrb[0].mxu0
  %v8332 = vadd.f32 0.0, %v8331
  %v8333 = vpop.f32.mrb[0].mxu0
  %v8334 = vpop.f32.mrb[0].mxu0
  %v8335 = vpop.f32.mrb[0].mxu0
  %8336 = vdwg.mxu0
  %v8337 = vpack.c.bf16 %v8327, %v8324
  %v8338 = vpack.c.bf16 %v8332, %v8332
  %v8355 = vunpack.c.l.b16 %v8070
  %v8356 = vunpack.c.l.b16 %v8071
  %v8357 = vunpack.c.l.b16 %v8072
  %v8358 = vunpack.c.l.b16 %v8073
  %v8359 = vunpack.c.l.b16 %v8074
  %v8360 = vunpack.c.l.b16 %v8075
  %v8361 = vunpack.c.l.b16 %v8076
  %v8362 = vunpack.c.l.b16 %v8077
  %v8363 = vunpack.c.l.b16 %v8078
  %v8364 = vunpack.c.l.b16 %v8079
  %v8365 = vunpack.c.l.b16 %v8080
  %v8366 = vunpack.c.l.b16 %v8081
  %v8367 = vunpack.c.l.b16 %v8082
  %v8368 = vunpack.c.l.b16 %v8083
  %v8369 = vunpack.c.l.b16 %v8084
  %v8370 = vunpack.c.l.b16 %v8085
  %v8371 = vpack.c.b16 %v8356, %v8355
  %v8372 = vpack.c.b16 %v8358, %v8357
  %v8373 = vpack.c.b16 %v8360, %v8359
  %v8374 = vpack.c.b16 %v8362, %v8361
  %v8375 = vpack.c.b16 %v8364, %v8363
  %v8376 = vpack.c.b16 %v8366, %v8365
  %v8377 = vpack.c.b16 %v8368, %v8367
  %v8378 = vpack.c.b16 %v8370, %v8369
  %8387 = vmatprep.subr.bf16.mxu0 0
  %8388 = vmatpush1.bf16.msra.mxu0 %v8371
  %8389 = vmatprep.subr.bf16.mxu0 0
  %8390 = vmatpush1.bf16.msra.mxu0 %v8372
  %8391 = vmatprep.subr.bf16.mxu0 0
  %8392 = vmatpush1.bf16.msra.mxu0 %v8373
  %8393 = vmatprep.subr.bf16.mxu0 0
  %8394 = vmatpush1.bf16.msra.mxu0 %v8374
  %8395 = vmatprep.subr.bf16.mxu0 0
  %8396 = vmatpush1.bf16.msra.mxu0 %v8375
  %8397 = vmatprep.subr.bf16.mxu0 0
  %8398 = vmatpush1.bf16.msra.mxu0 %v8376
  %8399 = vmatprep.subr.bf16.mxu0 0
  %8400 = vmatpush1.bf16.msra.mxu0 %v8377
  %8401 = vmatprep.subr.bf16.mxu0 0
  %8402 = vmatpush1.bf16.msra.mxu0 %v8378
  %8403 = vmatprep.subr.bf16.mxu0 0
  %8404 = vmatpush1.bf16.msra.mxu0 0
  %8405 = vmatprep.subr.bf16.mxu0 0
  %8406 = vmatpush1.bf16.msra.mxu0 0
  %8407 = vmatprep.subr.bf16.mxu0 0
  %8408 = vmatpush1.bf16.msra.mxu0 0
  %8409 = vmatprep.subr.bf16.mxu0 0
  %8410 = vmatpush1.bf16.msra.mxu0 0
  %8411 = vmatprep.subr.bf16.mxu0 0
  %8412 = vmatpush1.bf16.msra.mxu0 0
  %8413 = vmatprep.subr.bf16.mxu0 0
  %8414 = vmatpush1.bf16.msra.mxu0 0
  %8415 = vmatprep.subr.bf16.mxu0 0
  %8416 = vmatpush1.bf16.msra.mxu0 0
  %8417 = vmatprep.subr.bf16.mxu0 0
  %8418 = vmatpush1.bf16.msra.mxu0 0
  %8419 = vmatprep.mubr.bf16.mxu0 0
  %8420 = vmatmul.mubr.bf16.gmra.mrb[0].mxu0 %v8337
  %v8421 = vpop.f32.mrb[0].mxu0
  %v8422 = vadd.f32 0.0, %v8421
  %v8423 = vpop.f32.mrb[0].mxu0
  %v8424 = vpop.f32.mrb[0].mxu0
  %v8425 = vadd.f32 0.0, %v8424
  %v8426 = vpop.f32.mrb[0].mxu0
  %8427 = vmatprep.mubr.bf16.mxu0 0
  %8428 = vmatmul.mubr.bf16.gmra.mrb[0].mxu0 %v8338
  %v8429 = vpop.f32.mrb[0].mxu0
  %v8430 = vadd.f32 0.0, %v8429
  %v8431 = vpop.f32.mrb[0].mxu0
  %v8432 = vpop.f32.mrb[0].mxu0
  %v8433 = vpop.f32.mrb[0].mxu0
  %8434 = vdwg.mxu0
  %v8435 = vadd.f32 %v8204, %v8422
  %v8436 = vadd.f32 %v8204, %v8425
  %v8437 = vadd.f32 %v8204, %v8430
  %8438 = vmatprep.subr.bf16.mxu0 0
  %8439 = vmatpush1.bf16.msra.mxu0 %v8013
  %8440 = vmatprep.subr.bf16.mxu0 0
  %8441 = vmatpush1.bf16.msra.mxu0 %v8014
  %8442 = vmatprep.subr.bf16.mxu0 0
  %8443 = vmatpush1.bf16.msra.mxu0 %v8015
  %8444 = vmatprep.subr.bf16.mxu0 0
  %8445 = vmatpush1.bf16.msra.mxu0 %v8016
  %8446 = vmatprep.subr.bf16.mxu0 0
  %8447 = vmatpush1.bf16.msra.mxu0 %v8017
  %8448 = vmatprep.subr.bf16.mxu0 0
  %8449 = vmatpush1.bf16.msra.mxu0 %v8018
  %8450 = vmatprep.subr.bf16.mxu0 0
  %8451 = vmatpush1.bf16.msra.mxu0 %v8019
  %8452 = vmatprep.subr.bf16.mxu0 0
  %8453 = vmatpush1.bf16.msra.mxu0 %v8020
  %8454 = vmatprep.subr.bf16.mxu0 0
  %8455 = vmatpush1.bf16.msra.mxu0 0
  %8456 = vmatprep.subr.bf16.mxu0 0
  %8457 = vmatpush1.bf16.msra.mxu0 0
  %8458 = vmatprep.subr.bf16.mxu0 0
  %8459 = vmatpush1.bf16.msra.mxu0 0
  %8460 = vmatprep.subr.bf16.mxu0 0
  %8461 = vmatpush1.bf16.msra.mxu0 0
  %8462 = vmatprep.subr.bf16.mxu0 0
  %8463 = vmatpush1.bf16.msra.mxu0 0
  %8464 = vmatprep.subr.bf16.mxu0 0
  %8465 = vmatpush1.bf16.msra.mxu0 0
  %8466 = vmatprep.subr.bf16.mxu0 0
  %8467 = vmatpush1.bf16.msra.mxu0 0
  %8468 = vmatprep.subr.bf16.mxu0 0
  %8469 = vmatpush1.bf16.msra.mxu0 0
  %8470 = vmatprep.mubr.bf16.mxu0 0
  %8471 = vmatmul.mubr.bf16.gmra.mrb[0].mxu0 %v6391
  %v8472 = vpop.f32.mrb[0].mxu0
  %v8473 = vadd.f32 0.0, %v8472
  %v8474 = vpop.f32.mrb[0].mxu0
  %v8475 = vpop.f32.mrb[0].mxu0
  %v8476 = vadd.f32 0.0, %v8475
  %v8477 = vpop.f32.mrb[0].mxu0
  %8478 = vmatprep.mubr.bf16.mxu0 0
  %8479 = vmatmul.mubr.bf16.gmra.mrb[0].mxu0 %v6399
  %v8480 = vpop.f32.mrb[0].mxu0
  %v8481 = vadd.f32 0.0, %v8480
  %v8482 = vpop.f32.mrb[0].mxu0
  %v8483 = vpop.f32.mrb[0].mxu0
  %v8484 = vpop.f32.mrb[0].mxu0
  %8485 = vdwg.mxu0
  %v8486 = vmul.f32 %v8473, 0.125
  %v8487 = vmul.f32 %v8476, 0.125
  %v8488 = vmul.f32 %v8481, 0.125
  %v8489 = vmul.f32 %v8486, 1.442695
  %v8490 = vpow.pop %v8489
  %v8491 = vmul.f32 %v8487, 1.442695
  %v8492 = vpow.pop %v8491
  %v8493 = vmul.f32 %v8488, 1.442695
  %v8494 = vpow.pop %v8493
  %v8495 = vsel %vm3809, %v8490, 0.0
  %8496 = vadd.xlane.f32.xlu0 %v8495
  %v8497 = vpop.xlane.xlu0 %8496
  %v8498 = vsel %vm3809, %v8492, 0.0
  %8499 = vadd.xlane.f32.xlu0 %v8498
  %v8500 = vpop.xlane.xlu0 %8499
  %v8501 = vsel %vm3816, %v8494, 0.0
  %8502 = vadd.xlane.f32.xlu0 %v8501
  %v8503 = vpop.xlane.xlu0 %8502
  %v8504 = vrcp.pop %v8497
  %v8505 = vmul.f32 %v8490, %v8504
  %v8506 = vrcp.pop %v8500
  %v8507 = vmul.f32 %v8492, %v8506
  %v8508 = vrcp.pop %v8503
  %v8509 = vmul.f32 %v8494, %v8508
  %v8510 = vpack.c.bf16 %v8507, %v8505
  %v8511 = vpack.c.bf16 %v8509, %v8509
  %v8513 = vsel %vm3809, %v8510, 0
  %v8516 = vsel %vm3809, %v8511, 0
  %v8519 = vand.u32 %v6812, %v3836
  %8521 = vmatprep.subr.bf16.mxu0 0
  %8522 = vmatpush1.bf16.msra.mxu0 %v6804
  %8523 = vmatprep.subr.bf16.mxu0 0
  %8524 = vmatpush1.bf16.msra.mxu0 %v8519
  %8525 = vmatprep.subr.bf16.mxu0 0
  %8526 = vmatpush1.bf16.msra.mxu0 0
  %8527 = vmatprep.subr.bf16.mxu0 0
  %8528 = vmatpush1.bf16.msra.mxu0 0
  %8529 = vmatprep.subr.bf16.mxu0 0
  %8530 = vmatpush1.bf16.msra.mxu0 0
  %8531 = vmatprep.subr.bf16.mxu0 0
  %8532 = vmatpush1.bf16.msra.mxu0 0
  %8533 = vmatprep.subr.bf16.mxu0 0
  %8534 = vmatpush1.bf16.msra.mxu0 0
  %8535 = vmatprep.subr.bf16.mxu0 0
  %8536 = vmatpush1.bf16.msra.mxu0 0
  %8537 = vmatprep.subr.bf16.mxu0 0
  %8538 = vmatpush1.bf16.msra.mxu0 0
  %8539 = vmatprep.subr.bf16.mxu0 0
  %8540 = vmatpush1.bf16.msra.mxu0 0
  %8541 = vmatprep.subr.bf16.mxu0 0
  %8542 = vmatpush1.bf16.msra.mxu0 0
  %8543 = vmatprep.subr.bf16.mxu0 0
  %8544 = vmatpush1.bf16.msra.mxu0 0
  %8545 = vmatprep.subr.bf16.mxu0 0
  %8546 = vmatpush1.bf16.msra.mxu0 0
  %8547 = vmatprep.subr.bf16.mxu0 0
  %8548 = vmatpush1.bf16.msra.mxu0 0
  %8549 = vmatprep.subr.bf16.mxu0 0
  %8550 = vmatpush1.bf16.msra.mxu0 0
  %8551 = vmatprep.subr.bf16.mxu0 0
  %8552 = vmatpush1.bf16.msra.mxu0 0
  %8553 = vmatprep.mubr.bf16.mxu0 0
  %8554 = vmatmul.mubr.bf16.gmra.mrb[0].mxu0 %v8513
  %v8555 = vpop.f32.mrb[0].mxu0
  %v8556 = vadd.f32 0.0, %v8555
  %v8557 = vpop.f32.mrb[0].mxu0
  %v8558 = vpop.f32.mrb[0].mxu0
  %v8559 = vadd.f32 0.0, %v8558
  %v8560 = vpop.f32.mrb[0].mxu0
  %8561 = vmatprep.mubr.bf16.mxu0 0
  %8562 = vmatmul.mubr.bf16.gmra.mrb[0].mxu0 %v8516
  %v8563 = vpop.f32.mrb[0].mxu0
  %v8564 = vadd.f32 0.0, %v8563
  %v8565 = vpop.f32.mrb[0].mxu0
  %v8566 = vpop.f32.mrb[0].mxu0
  %v8567 = vpop.f32.mrb[0].mxu0
  %8568 = vdwg.mxu0
  %v8569 = vpack.c.bf16 %v8559, %v8556
  %v8570 = vpack.c.bf16 %v8564, %v8564
  %v8587 = vunpack.c.l.b16 %v8086
  %v8588 = vunpack.c.l.b16 %v8087
  %v8589 = vunpack.c.l.b16 %v8088
  %v8590 = vunpack.c.l.b16 %v8089
  %v8591 = vunpack.c.l.b16 %v8090
  %v8592 = vunpack.c.l.b16 %v8091
  %v8593 = vunpack.c.l.b16 %v8092
  %v8594 = vunpack.c.l.b16 %v8093
  %v8595 = vunpack.c.l.b16 %v8094
  %v8596 = vunpack.c.l.b16 %v8095
  %v8597 = vunpack.c.l.b16 %v8096
  %v8598 = vunpack.c.l.b16 %v8097
  %v8599 = vunpack.c.l.b16 %v8098
  %v8600 = vunpack.c.l.b16 %v8099
  %v8601 = vunpack.c.l.b16 %v8100
  %v8602 = vunpack.c.l.b16 %v8101
  %v8603 = vpack.c.b16 %v8588, %v8587
  %v8604 = vpack.c.b16 %v8590, %v8589
  %v8605 = vpack.c.b16 %v8592, %v8591
  %v8606 = vpack.c.b16 %v8594, %v8593
  %v8607 = vpack.c.b16 %v8596, %v8595
  %v8608 = vpack.c.b16 %v8598, %v8597
  %v8609 = vpack.c.b16 %v8600, %v8599
  %v8610 = vpack.c.b16 %v8602, %v8601
  %8619 = vmatprep.subr.bf16.mxu0 0
  %8620 = vmatpush1.bf16.msra.mxu0 %v8603
  %8621 = vmatprep.subr.bf16.mxu0 0
  %8622 = vmatpush1.bf16.msra.mxu0 %v8604
  %8623 = vmatprep.subr.bf16.mxu0 0
  %8624 = vmatpush1.bf16.msra.mxu0 %v8605
  %8625 = vmatprep.subr.bf16.mxu0 0
  %8626 = vmatpush1.bf16.msra.mxu0 %v8606
  %8627 = vmatprep.subr.bf16.mxu0 0
  %8628 = vmatpush1.bf16.msra.mxu0 %v8607
  %8629 = vmatprep.subr.bf16.mxu0 0
  %8630 = vmatpush1.bf16.msra.mxu0 %v8608
  %8631 = vmatprep.subr.bf16.mxu0 0
  %8632 = vmatpush1.bf16.msra.mxu0 %v8609
  %8633 = vmatprep.subr.bf16.mxu0 0
  %8634 = vmatpush1.bf16.msra.mxu0 %v8610
  %8635 = vmatprep.subr.bf16.mxu0 0
  %8636 = vmatpush1.bf16.msra.mxu0 0
  %8637 = vmatprep.subr.bf16.mxu0 0
  %8638 = vmatpush1.bf16.msra.mxu0 0
  %8639 = vmatprep.subr.bf16.mxu0 0
  %8640 = vmatpush1.bf16.msra.mxu0 0
  %8641 = vmatprep.subr.bf16.mxu0 0
  %8642 = vmatpush1.bf16.msra.mxu0 0
  %8643 = vmatprep.subr.bf16.mxu0 0
  %8644 = vmatpush1.bf16.msra.mxu0 0
  %8645 = vmatprep.subr.bf16.mxu0 0
  %8646 = vmatpush1.bf16.msra.mxu0 0
  %8647 = vmatprep.subr.bf16.mxu0 0
  %8648 = vmatpush1.bf16.msra.mxu0 0
  %8649 = vmatprep.subr.bf16.mxu0 0
  %8650 = vmatpush1.bf16.msra.mxu0 0
  %8651 = vmatprep.mubr.bf16.mxu0 0
  %8652 = vmatmul.mubr.bf16.gmra.mrb[0].mxu0 %v8569
  %v8653 = vpop.f32.mrb[0].mxu0
  %v8654 = vadd.f32 0.0, %v8653
  %v8655 = vpop.f32.mrb[0].mxu0
  %v8656 = vpop.f32.mrb[0].mxu0
  %v8657 = vadd.f32 0.0, %v8656
  %v8658 = vpop.f32.mrb[0].mxu0
  %8659 = vmatprep.mubr.bf16.mxu0 0
  %8660 = vmatmul.mubr.bf16.gmra.mrb[0].mxu0 %v8570
  %v8661 = vpop.f32.mrb[0].mxu0
  %v8662 = vadd.f32 0.0, %v8661
  %v8663 = vpop.f32.mrb[0].mxu0
  %v8664 = vpop.f32.mrb[0].mxu0
  %v8665 = vpop.f32.mrb[0].mxu0
  %8666 = vdwg.mxu0
  %v8667 = vadd.f32 %v8435, %v8654
  %v8668 = vadd.f32 %v8436, %v8657
  %v8669 = vadd.f32 %v8437, %v8662
  %8670 = vmatprep.subr.bf16.mxu0 0
  %8671 = vmatpush1.bf16.msra.mxu0 %v8021
  %8672 = vmatprep.subr.bf16.mxu0 0
  %8673 = vmatpush1.bf16.msra.mxu0 %v8022
  %8674 = vmatprep.subr.bf16.mxu0 0
  %8675 = vmatpush1.bf16.msra.mxu0 %v8023
  %8676 = vmatprep.subr.bf16.mxu0 0
  %8677 = vmatpush1.bf16.msra.mxu0 %v8024
  %8678 = vmatprep.subr.bf16.mxu0 0
  %8679 = vmatpush1.bf16.msra.mxu0 %v8025
  %8680 = vmatprep.subr.bf16.mxu0 0
  %8681 = vmatpush1.bf16.msra.mxu0 %v8026
  %8682 = vmatprep.subr.bf16.mxu0 0
  %8683 = vmatpush1.bf16.msra.mxu0 %v8027
  %8684 = vmatprep.subr.bf16.mxu0 0
  %8685 = vmatpush1.bf16.msra.mxu0 %v8028
  %8686 = vmatprep.subr.bf16.mxu0 0
  %8687 = vmatpush1.bf16.msra.mxu0 0
  %8688 = vmatprep.subr.bf16.mxu0 0
  %8689 = vmatpush1.bf16.msra.mxu0 0
  %8690 = vmatprep.subr.bf16.mxu0 0
  %8691 = vmatpush1.bf16.msra.mxu0 0
  %8692 = vmatprep.subr.bf16.mxu0 0
  %8693 = vmatpush1.bf16.msra.mxu0 0
  %8694 = vmatprep.subr.bf16.mxu0 0
  %8695 = vmatpush1.bf16.msra.mxu0 0
  %8696 = vmatprep.subr.bf16.mxu0 0
  %8697 = vmatpush1.bf16.msra.mxu0 0
  %8698 = vmatprep.subr.bf16.mxu0 0
  %8699 = vmatpush1.bf16.msra.mxu0 0
  %8700 = vmatprep.subr.bf16.mxu0 0
  %8701 = vmatpush1.bf16.msra.mxu0 0
  %8702 = vmatprep.mubr.bf16.mxu0 0
  %8703 = vmatmul.mubr.bf16.gmra.mrb[0].mxu0 %v6392
  %v8704 = vpop.f32.mrb[0].mxu0
  %v8705 = vadd.f32 0.0, %v8704
  %v8706 = vpop.f32.mrb[0].mxu0
  %v8707 = vpop.f32.mrb[0].mxu0
  %v8708 = vadd.f32 0.0, %v8707
  %v8709 = vpop.f32.mrb[0].mxu0
  %8710 = vmatprep.mubr.bf16.mxu0 0
  %8711 = vmatmul.mubr.bf16.gmra.mrb[0].mxu0 %v6400
  %v8712 = vpop.f32.mrb[0].mxu0
  %v8713 = vadd.f32 0.0, %v8712
  %v8714 = vpop.f32.mrb[0].mxu0
  %v8715 = vpop.f32.mrb[0].mxu0
  %v8716 = vpop.f32.mrb[0].mxu0
  %8717 = vdwg.mxu0
  %v8718 = vmul.f32 %v8705, 0.125
  %v8719 = vmul.f32 %v8708, 0.125
  %v8720 = vmul.f32 %v8713, 0.125
  %v8721 = vmul.f32 %v8718, 1.442695
  %v8722 = vpow.pop %v8721
  %v8723 = vmul.f32 %v8719, 1.442695
  %v8724 = vpow.pop %v8723
  %v8725 = vmul.f32 %v8720, 1.442695
  %v8726 = vpow.pop %v8725
  %v8727 = vsel %vm3809, %v8722, 0.0
  %8728 = vadd.xlane.f32.xlu0 %v8727
  %v8729 = vpop.xlane.xlu0 %8728
  %v8730 = vsel %vm3809, %v8724, 0.0
  %8731 = vadd.xlane.f32.xlu0 %v8730
  %v8732 = vpop.xlane.xlu0 %8731
  %v8733 = vsel %vm3816, %v8726, 0.0
  %8734 = vadd.xlane.f32.xlu0 %v8733
  %v8735 = vpop.xlane.xlu0 %8734
  %v8736 = vrcp.pop %v8729
  %v8737 = vmul.f32 %v8722, %v8736
  %v8738 = vrcp.pop %v8732
  %v8739 = vmul.f32 %v8724, %v8738
  %v8740 = vrcp.pop %v8735
  %v8741 = vmul.f32 %v8726, %v8740
  %v8742 = vpack.c.bf16 %v8739, %v8737
  %v8743 = vpack.c.bf16 %v8741, %v8741
  %v8745 = vsel %vm3809, %v8742, 0
  %v8748 = vsel %vm3809, %v8743, 0
  %v8751 = vand.u32 %v6813, %v3836
  %8753 = vmatprep.subr.bf16.mxu0 0
  %8754 = vmatpush1.bf16.msra.mxu0 %v6805
  %8755 = vmatprep.subr.bf16.mxu0 0
  %8756 = vmatpush1.bf16.msra.mxu0 %v8751
  %8757 = vmatprep.subr.bf16.mxu0 0
  %8758 = vmatpush1.bf16.msra.mxu0 0
  %8759 = vmatprep.subr.bf16.mxu0 0
  %8760 = vmatpush1.bf16.msra.mxu0 0
  %8761 = vmatprep.subr.bf16.mxu0 0
  %8762 = vmatpush1.bf16.msra.mxu0 0
  %8763 = vmatprep.subr.bf16.mxu0 0
  %8764 = vmatpush1.bf16.msra.mxu0 0
  %8765 = vmatprep.subr.bf16.mxu0 0
  %8766 = vmatpush1.bf16.msra.mxu0 0
  %8767 = vmatprep.subr.bf16.mxu0 0
  %8768 = vmatpush1.bf16.msra.mxu0 0
  %8769 = vmatprep.subr.bf16.mxu0 0
  %8770 = vmatpush1.bf16.msra.mxu0 0
  %8771 = vmatprep.subr.bf16.mxu0 0
  %8772 = vmatpush1.bf16.msra.mxu0 0
  %8773 = vmatprep.subr.bf16.mxu0 0
  %8774 = vmatpush1.bf16.msra.mxu0 0
  %8775 = vmatprep.subr.bf16.mxu0 0
  %8776 = vmatpush1.bf16.msra.mxu0 0
  %8777 = vmatprep.subr.bf16.mxu0 0
  %8778 = vmatpush1.bf16.msra.mxu0 0
  %8779 = vmatprep.subr.bf16.mxu0 0
  %8780 = vmatpush1.bf16.msra.mxu0 0
  %8781 = vmatprep.subr.bf16.mxu0 0
  %8782 = vmatpush1.bf16.msra.mxu0 0
  %8783 = vmatprep.subr.bf16.mxu0 0
  %8784 = vmatpush1.bf16.msra.mxu0 0
  %8785 = vmatprep.mubr.bf16.mxu0 0
  %8786 = vmatmul.mubr.bf16.gmra.mrb[0].mxu0 %v8745
  %v8787 = vpop.f32.mrb[0].mxu0
  %v8788 = vadd.f32 0.0, %v8787
  %v8789 = vpop.f32.mrb[0].mxu0
  %v8790 = vpop.f32.mrb[0].mxu0
  %v8791 = vadd.f32 0.0, %v8790
  %v8792 = vpop.f32.mrb[0].mxu0
  %8793 = vmatprep.mubr.bf16.mxu0 0
  %8794 = vmatmul.mubr.bf16.gmra.mrb[0].mxu0 %v8748
  %v8795 = vpop.f32.mrb[0].mxu0
  %v8796 = vadd.f32 0.0, %v8795
  %v8797 = vpop.f32.mrb[0].mxu0
  %v8798 = vpop.f32.mrb[0].mxu0
  %v8799 = vpop.f32.mrb[0].mxu0
  %8800 = vdwg.mxu0
  %v8801 = vpack.c.bf16 %v8791, %v8788
  %v8802 = vpack.c.bf16 %v8796, %v8796
  %v8819 = vunpack.c.l.b16 %v8102
  %v8820 = vunpack.c.l.b16 %v8103
  %v8821 = vunpack.c.l.b16 %v8104
  %v8822 = vunpack.c.l.b16 %v8105
  %v8823 = vunpack.c.l.b16 %v8106
  %v8824 = vunpack.c.l.b16 %v8107
  %v8825 = vunpack.c.l.b16 %v8108
  %v8826 = vunpack.c.l.b16 %v8109
  %v8827 = vunpack.c.l.b16 %v8110
  %v8828 = vunpack.c.l.b16 %v8111
  %v8829 = vunpack.c.l.b16 %v8112
  %v8830 = vunpack.c.l.b16 %v8113
  %v8831 = vunpack.c.l.b16 %v8114
  %v8832 = vunpack.c.l.b16 %v8115
  %v8833 = vunpack.c.l.b16 %v8116
  %v8834 = vunpack.c.l.b16 %v8117
  %v8835 = vpack.c.b16 %v8820, %v8819
  %v8836 = vpack.c.b16 %v8822, %v8821
  %v8837 = vpack.c.b16 %v8824, %v8823
  %v8838 = vpack.c.b16 %v8826, %v8825
  %v8839 = vpack.c.b16 %v8828, %v8827
  %v8840 = vpack.c.b16 %v8830, %v8829
  %v8841 = vpack.c.b16 %v8832, %v8831
  %v8842 = vpack.c.b16 %v8834, %v8833
  %8851 = vmatprep.subr.bf16.mxu0 0
  %8852 = vmatpush1.bf16.msra.mxu0 %v8835
  %8853 = vmatprep.subr.bf16.mxu0 0
  %8854 = vmatpush1.bf16.msra.mxu0 %v8836
  %8855 = vmatprep.subr.bf16.mxu0 0
  %8856 = vmatpush1.bf16.msra.mxu0 %v8837
  %8857 = vmatprep.subr.bf16.mxu0 0
  %8858 = vmatpush1.bf16.msra.mxu0 %v8838
  %8859 = vmatprep.subr.bf16.mxu0 0
  %8860 = vmatpush1.bf16.msra.mxu0 %v8839
  %8861 = vmatprep.subr.bf16.mxu0 0
  %8862 = vmatpush1.bf16.msra.mxu0 %v8840
  %8863 = vmatprep.subr.bf16.mxu0 0
  %8864 = vmatpush1.bf16.msra.mxu0 %v8841
  %8865 = vmatprep.subr.bf16.mxu0 0
  %8866 = vmatpush1.bf16.msra.mxu0 %v8842
  %8867 = vmatprep.subr.bf16.mxu0 0
  %8868 = vmatpush1.bf16.msra.mxu0 0
  %8869 = vmatprep.subr.bf16.mxu0 0
  %8870 = vmatpush1.bf16.msra.mxu0 0
  %8871 = vmatprep.subr.bf16.mxu0 0
  %8872 = vmatpush1.bf16.msra.mxu0 0
  %8873 = vmatprep.subr.bf16.mxu0 0
  %8874 = vmatpush1.bf16.msra.mxu0 0
  %8875 = vmatprep.subr.bf16.mxu0 0
  %8876 = vmatpush1.bf16.msra.mxu0 0
  %8877 = vmatprep.subr.bf16.mxu0 0
  %8878 = vmatpush1.bf16.msra.mxu0 0
  %8879 = vmatprep.subr.bf16.mxu0 0
  %8880 = vmatpush1.bf16.msra.mxu0 0
  %8881 = vmatprep.subr.bf16.mxu0 0
  %8882 = vmatpush1.bf16.msra.mxu0 0
  %8883 = vmatprep.mubr.bf16.mxu0 0
  %8884 = vmatmul.mubr.bf16.gmra.mrb[0].mxu0 %v8801
  %v8885 = vpop.f32.mrb[0].mxu0
  %v8886 = vadd.f32 0.0, %v8885
  %v8887 = vpop.f32.mrb[0].mxu0
  %v8888 = vpop.f32.mrb[0].mxu0
  %v8889 = vadd.f32 0.0, %v8888
  %v8890 = vpop.f32.mrb[0].mxu0
  %8891 = vmatprep.mubr.bf16.mxu0 0
  %8892 = vmatmul.mubr.bf16.gmra.mrb[0].mxu0 %v8802
  %v8893 = vpop.f32.mrb[0].mxu0
  %v8894 = vadd.f32 0.0, %v8893
  %v8895 = vpop.f32.mrb[0].mxu0
  %v8896 = vpop.f32.mrb[0].mxu0
  %v8897 = vpop.f32.mrb[0].mxu0
  %8898 = vdwg.mxu0
  %v8899 = vadd.f32 %v8667, %v8886
  %v8900 = vadd.f32 %v8668, %v8889
  %v8901 = vadd.f32 %v8669, %v8894
  %8902 = vmatprep.subr.bf16.mxu0 0
  %8903 = vmatpush1.bf16.msra.mxu0 %v8029
  %8904 = vmatprep.subr.bf16.mxu0 0
  %8905 = vmatpush1.bf16.msra.mxu0 %v8030
  %8906 = vmatprep.subr.bf16.mxu0 0
  %8907 = vmatpush1.bf16.msra.mxu0 %v8031
  %8908 = vmatprep.subr.bf16.mxu0 0
  %8909 = vmatpush1.bf16.msra.mxu0 %v8032
  %8910 = vmatprep.subr.bf16.mxu0 0
  %8911 = vmatpush1.bf16.msra.mxu0 %v8033
  %8912 = vmatprep.subr.bf16.mxu0 0
  %8913 = vmatpush1.bf16.msra.mxu0 %v8034
  %8914 = vmatprep.subr.bf16.mxu0 0
  %8915 = vmatpush1.bf16.msra.mxu0 %v8035
  %8916 = vmatprep.subr.bf16.mxu0 0
  %8917 = vmatpush1.bf16.msra.mxu0 %v8036
  %8918 = vmatprep.subr.bf16.mxu0 0
  %8919 = vmatpush1.bf16.msra.mxu0 0
  %8920 = vmatprep.subr.bf16.mxu0 0
  %8921 = vmatpush1.bf16.msra.mxu0 0
  %8922 = vmatprep.subr.bf16.mxu0 0
  %8923 = vmatpush1.bf16.msra.mxu0 0
  %8924 = vmatprep.subr.bf16.mxu0 0
  %8925 = vmatpush1.bf16.msra.mxu0 0
  %8926 = vmatprep.subr.bf16.mxu0 0
  %8927 = vmatpush1.bf16.msra.mxu0 0
  %8928 = vmatprep.subr.bf16.mxu0 0
  %8929 = vmatpush1.bf16.msra.mxu0 0
  %8930 = vmatprep.subr.bf16.mxu0 0
  %8931 = vmatpush1.bf16.msra.mxu0 0
  %8932 = vmatprep.subr.bf16.mxu0 0
  %8933 = vmatpush1.bf16.msra.mxu0 0
  %8934 = vmatprep.mubr.bf16.mxu0 0
  %8935 = vmatmul.mubr.bf16.gmra.mrb[0].mxu0 %v6393
  %v8936 = vpop.f32.mrb[0].mxu0
  %v8937 = vadd.f32 0.0, %v8936
  %v8938 = vpop.f32.mrb[0].mxu0
  %v8939 = vpop.f32.mrb[0].mxu0
  %v8940 = vadd.f32 0.0, %v8939
  %v8941 = vpop.f32.mrb[0].mxu0
  %8942 = vmatprep.mubr.bf16.mxu0 0
  %8943 = vmatmul.mubr.bf16.gmra.mrb[0].mxu0 %v6401
  %v8944 = vpop.f32.mrb[0].mxu0
  %v8945 = vadd.f32 0.0, %v8944
  %v8946 = vpop.f32.mrb[0].mxu0
  %v8947 = vpop.f32.mrb[0].mxu0
  %v8948 = vpop.f32.mrb[0].mxu0
  %8949 = vdwg.mxu0
  %v8950 = vmul.f32 %v8937, 0.125
  %v8951 = vmul.f32 %v8940, 0.125
  %v8952 = vmul.f32 %v8945, 0.125
  %v8953 = vmul.f32 %v8950, 1.442695
  %v8954 = vpow.pop %v8953
  %v8955 = vmul.f32 %v8951, 1.442695
  %v8956 = vpow.pop %v8955
  %v8957 = vmul.f32 %v8952, 1.442695
  %v8958 = vpow.pop %v8957
  %v8959 = vsel %vm3809, %v8954, 0.0
  %8960 = vadd.xlane.f32.xlu0 %v8959
  %v8961 = vpop.xlane.xlu0 %8960
  %v8962 = vsel %vm3809, %v8956, 0.0
  %8963 = vadd.xlane.f32.xlu0 %v8962
  %v8964 = vpop.xlane.xlu0 %8963
  %v8965 = vsel %vm3816, %v8958, 0.0
  %8966 = vadd.xlane.f32.xlu0 %v8965
  %v8967 = vpop.xlane.xlu0 %8966
  %v8968 = vrcp.pop %v8961
  %v8969 = vmul.f32 %v8954, %v8968
  %v8970 = vrcp.pop %v8964
  %v8971 = vmul.f32 %v8956, %v8970
  %v8972 = vrcp.pop %v8967
  %v8973 = vmul.f32 %v8958, %v8972
  %v8974 = vpack.c.bf16 %v8971, %v8969
  %v8975 = vpack.c.bf16 %v8973, %v8973
  %v8977 = vsel %vm3809, %v8974, 0
  %v8980 = vsel %vm3809, %v8975, 0
  %v8983 = vand.u32 %v6814, %v3836
  %8985 = vmatprep.subr.bf16.mxu0 0
  %8986 = vmatpush1.bf16.msra.mxu0 %v6806
  %8987 = vmatprep.subr.bf16.mxu0 0
  %8988 = vmatpush1.bf16.msra.mxu0 %v8983
  %8989 = vmatprep.subr.bf16.mxu0 0
  %8990 = vmatpush1.bf16.msra.mxu0 0
  %8991 = vmatprep.subr.bf16.mxu0 0
  %8992 = vmatpush1.bf16.msra.mxu0 0
  %8993 = vmatprep.subr.bf16.mxu0 0
  %8994 = vmatpush1.bf16.msra.mxu0 0
  %8995 = vmatprep.subr.bf16.mxu0 0
  %8996 = vmatpush1.bf16.msra.mxu0 0
  %8997 = vmatprep.subr.bf16.mxu0 0
  %8998 = vmatpush1.bf16.msra.mxu0 0
  %8999 = vmatprep.subr.bf16.mxu0 0
  %9000 = vmatpush1.bf16.msra.mxu0 0
  %9001 = vmatprep.subr.bf16.mxu0 0
  %9002 = vmatpush1.bf16.msra.mxu0 0
  %9003 = vmatprep.subr.bf16.mxu0 0
  %9004 = vmatpush1.bf16.msra.mxu0 0
  %9005 = vmatprep.subr.bf16.mxu0 0
  %9006 = vmatpush1.bf16.msra.mxu0 0
  %9007 = vmatprep.subr.bf16.mxu0 0
  %9008 = vmatpush1.bf16.msra.mxu0 0
  %9009 = vmatprep.subr.bf16.mxu0 0
  %9010 = vmatpush1.bf16.msra.mxu0 0
  %9011 = vmatprep.subr.bf16.mxu0 0
  %9012 = vmatpush1.bf16.msra.mxu0 0
  %9013 = vmatprep.subr.bf16.mxu0 0
  %9014 = vmatpush1.bf16.msra.mxu0 0
  %9015 = vmatprep.subr.bf16.mxu0 0
  %9016 = vmatpush1.bf16.msra.mxu0 0
  %9017 = vmatprep.mubr.bf16.mxu0 0
  %9018 = vmatmul.mubr.bf16.gmra.mrb[0].mxu0 %v8977
  %v9019 = vpop.f32.mrb[0].mxu0
  %v9020 = vadd.f32 0.0, %v9019
  %v9021 = vpop.f32.mrb[0].mxu0
  %v9022 = vpop.f32.mrb[0].mxu0
  %v9023 = vadd.f32 0.0, %v9022
  %v9024 = vpop.f32.mrb[0].mxu0
  %9025 = vmatprep.mubr.bf16.mxu0 0
  %9026 = vmatmul.mubr.bf16.gmra.mrb[0].mxu0 %v8980
  %v9027 = vpop.f32.mrb[0].mxu0
  %v9028 = vadd.f32 0.0, %v9027
  %v9029 = vpop.f32.mrb[0].mxu0
  %v9030 = vpop.f32.mrb[0].mxu0
  %v9031 = vpop.f32.mrb[0].mxu0
  %9032 = vdwg.mxu0
  %v9033 = vpack.c.bf16 %v9023, %v9020
  %v9034 = vpack.c.bf16 %v9028, %v9028
  %v9051 = vunpack.c.l.b16 %v8118
  %v9052 = vunpack.c.l.b16 %v8119
  %v9053 = vunpack.c.l.b16 %v8120
  %v9054 = vunpack.c.l.b16 %v8121
  %v9055 = vunpack.c.l.b16 %v8122
  %v9056 = vunpack.c.l.b16 %v8123
  %v9057 = vunpack.c.l.b16 %v8124
  %v9058 = vunpack.c.l.b16 %v8125
  %v9059 = vunpack.c.l.b16 %v8126
  %v9060 = vunpack.c.l.b16 %v8127
  %v9061 = vunpack.c.l.b16 %v8128
  %v9062 = vunpack.c.l.b16 %v8129
  %v9063 = vunpack.c.l.b16 %v8130
  %v9064 = vunpack.c.l.b16 %v8131
  %v9065 = vunpack.c.l.b16 %v8132
  %v9066 = vunpack.c.l.b16 %v8133
  %v9067 = vpack.c.b16 %v9052, %v9051
  %v9068 = vpack.c.b16 %v9054, %v9053
  %v9069 = vpack.c.b16 %v9056, %v9055
  %v9070 = vpack.c.b16 %v9058, %v9057
  %v9071 = vpack.c.b16 %v9060, %v9059
  %v9072 = vpack.c.b16 %v9062, %v9061
  %v9073 = vpack.c.b16 %v9064, %v9063
  %v9074 = vpack.c.b16 %v9066, %v9065
  %9083 = vmatprep.subr.bf16.mxu0 0
  %9084 = vmatpush1.bf16.msra.mxu0 %v9067
  %9085 = vmatprep.subr.bf16.mxu0 0
  %9086 = vmatpush1.bf16.msra.mxu0 %v9068
  %9087 = vmatprep.subr.bf16.mxu0 0
  %9088 = vmatpush1.bf16.msra.mxu0 %v9069
  %9089 = vmatprep.subr.bf16.mxu0 0
  %9090 = vmatpush1.bf16.msra.mxu0 %v9070
  %9091 = vmatprep.subr.bf16.mxu0 0
  %9092 = vmatpush1.bf16.msra.mxu0 %v9071
  %9093 = vmatprep.subr.bf16.mxu0 0
  %9094 = vmatpush1.bf16.msra.mxu0 %v9072
  %9095 = vmatprep.subr.bf16.mxu0 0
  %9096 = vmatpush1.bf16.msra.mxu0 %v9073
  %9097 = vmatprep.subr.bf16.mxu0 0
  %9098 = vmatpush1.bf16.msra.mxu0 %v9074
  %9099 = vmatprep.subr.bf16.mxu0 0
  %9100 = vmatpush1.bf16.msra.mxu0 0
  %9101 = vmatprep.subr.bf16.mxu0 0
  %9102 = vmatpush1.bf16.msra.mxu0 0
  %9103 = vmatprep.subr.bf16.mxu0 0
  %9104 = vmatpush1.bf16.msra.mxu0 0
  %9105 = vmatprep.subr.bf16.mxu0 0
  %9106 = vmatpush1.bf16.msra.mxu0 0
  %9107 = vmatprep.subr.bf16.mxu0 0
  %9108 = vmatpush1.bf16.msra.mxu0 0
  %9109 = vmatprep.subr.bf16.mxu0 0
  %9110 = vmatpush1.bf16.msra.mxu0 0
  %9111 = vmatprep.subr.bf16.mxu0 0
  %9112 = vmatpush1.bf16.msra.mxu0 0
  %9113 = vmatprep.subr.bf16.mxu0 0
  %9114 = vmatpush1.bf16.msra.mxu0 0
  %9115 = vmatprep.mubr.bf16.mxu0 0
  %9116 = vmatmul.mubr.bf16.gmra.mrb[0].mxu0 %v9033
  %v9117 = vpop.f32.mrb[0].mxu0
  %v9118 = vadd.f32 0.0, %v9117
  %v9119 = vpop.f32.mrb[0].mxu0
  %v9120 = vpop.f32.mrb[0].mxu0
  %v9121 = vadd.f32 0.0, %v9120
  %v9122 = vpop.f32.mrb[0].mxu0
  %9123 = vmatprep.mubr.bf16.mxu0 0
  %9124 = vmatmul.mubr.bf16.gmra.mrb[0].mxu0 %v9034
  %v9125 = vpop.f32.mrb[0].mxu0
  %v9126 = vadd.f32 0.0, %v9125
  %v9127 = vpop.f32.mrb[0].mxu0
  %v9128 = vpop.f32.mrb[0].mxu0
  %v9129 = vpop.f32.mrb[0].mxu0
  %9130 = vdwg.mxu0
  %v9131 = vadd.f32 %v8899, %v9118
  %v9132 = vadd.f32 %v8900, %v9121
  %v9133 = vadd.f32 %v8901, %v9126
  %9134 = vmatprep.subr.bf16.mxu0 0
  %9135 = vmatpush1.bf16.msra.mxu0 %v8037
  %9136 = vmatprep.subr.bf16.mxu0 0
  %9137 = vmatpush1.bf16.msra.mxu0 %v8038
  %9138 = vmatprep.subr.bf16.mxu0 0
  %9139 = vmatpush1.bf16.msra.mxu0 %v8039
  %9140 = vmatprep.subr.bf16.mxu0 0
  %9141 = vmatpush1.bf16.msra.mxu0 %v8040
  %9142 = vmatprep.subr.bf16.mxu0 0
  %9143 = vmatpush1.bf16.msra.mxu0 %v8041
  %9144 = vmatprep.subr.bf16.mxu0 0
  %9145 = vmatpush1.bf16.msra.mxu0 %v8042
  %9146 = vmatprep.subr.bf16.mxu0 0
  %9147 = vmatpush1.bf16.msra.mxu0 %v8043
  %9148 = vmatprep.subr.bf16.mxu0 0
  %9149 = vmatpush1.bf16.msra.mxu0 %v8044
  %9150 = vmatprep.subr.bf16.mxu0 0
  %9151 = vmatpush1.bf16.msra.mxu0 0
  %9152 = vmatprep.subr.bf16.mxu0 0
  %9153 = vmatpush1.bf16.msra.mxu0 0
  %9154 = vmatprep.subr.bf16.mxu0 0
  %9155 = vmatpush1.bf16.msra.mxu0 0
  %9156 = vmatprep.subr.bf16.mxu0 0
  %9157 = vmatpush1.bf16.msra.mxu0 0
  %9158 = vmatprep.subr.bf16.mxu0 0
  %9159 = vmatpush1.bf16.msra.mxu0 0
  %9160 = vmatprep.subr.bf16.mxu0 0
  %9161 = vmatpush1.bf16.msra.mxu0 0
  %9162 = vmatprep.subr.bf16.mxu0 0
  %9163 = vmatpush1.bf16.msra.mxu0 0
  %9164 = vmatprep.subr.bf16.mxu0 0
  %9165 = vmatpush1.bf16.msra.mxu0 0
  %9166 = vmatprep.mubr.bf16.mxu0 0
  %9167 = vmatmul.mubr.bf16.gmra.mrb[0].mxu0 %v6394
  %v9168 = vpop.f32.mrb[0].mxu0
  %v9169 = vadd.f32 0.0, %v9168
  %v9170 = vpop.f32.mrb[0].mxu0
  %v9171 = vpop.f32.mrb[0].mxu0
  %v9172 = vadd.f32 0.0, %v9171
  %v9173 = vpop.f32.mrb[0].mxu0
  %9174 = vmatprep.mubr.bf16.mxu0 0
  %9175 = vmatmul.mubr.bf16.gmra.mrb[0].mxu0 %v6402
  %v9176 = vpop.f32.mrb[0].mxu0
  %v9177 = vadd.f32 0.0, %v9176
  %v9178 = vpop.f32.mrb[0].mxu0
  %v9179 = vpop.f32.mrb[0].mxu0
  %v9180 = vpop.f32.mrb[0].mxu0
  %9181 = vdwg.mxu0
  %v9182 = vmul.f32 %v9169, 0.125
  %v9183 = vmul.f32 %v9172, 0.125
  %v9184 = vmul.f32 %v9177, 0.125
  %v9185 = vmul.f32 %v9182, 1.442695
  %v9186 = vpow.pop %v9185
  %v9187 = vmul.f32 %v9183, 1.442695
  %v9188 = vpow.pop %v9187
  %v9189 = vmul.f32 %v9184, 1.442695
  %v9190 = vpow.pop %v9189
  %v9191 = vsel %vm3809, %v9186, 0.0
  %9192 = vadd.xlane.f32.xlu0 %v9191
  %v9193 = vpop.xlane.xlu0 %9192
  %v9194 = vsel %vm3809, %v9188, 0.0
  %9195 = vadd.xlane.f32.xlu0 %v9194
  %v9196 = vpop.xlane.xlu0 %9195
  %v9197 = vsel %vm3816, %v9190, 0.0
  %9198 = vadd.xlane.f32.xlu0 %v9197
  %v9199 = vpop.xlane.xlu0 %9198
  %v9200 = vrcp.pop %v9193
  %v9201 = vmul.f32 %v9186, %v9200
  %v9202 = vrcp.pop %v9196
  %v9203 = vmul.f32 %v9188, %v9202
  %v9204 = vrcp.pop %v9199
  %v9205 = vmul.f32 %v9190, %v9204
  %v9206 = vpack.c.bf16 %v9203, %v9201
  %v9207 = vpack.c.bf16 %v9205, %v9205
  %v9209 = vsel %vm3809, %v9206, 0
  %v9212 = vsel %vm3809, %v9207, 0
  %v9215 = vand.u32 %v6815, %v3836
  %9217 = vmatprep.subr.bf16.mxu0 0
  %9218 = vmatpush1.bf16.msra.mxu0 %v6807
  %9219 = vmatprep.subr.bf16.mxu0 0
  %9220 = vmatpush1.bf16.msra.mxu0 %v9215
  %9221 = vmatprep.subr.bf16.mxu0 0
  %9222 = vmatpush1.bf16.msra.mxu0 0
  %9223 = vmatprep.subr.bf16.mxu0 0
  %9224 = vmatpush1.bf16.msra.mxu0 0
  %9225 = vmatprep.subr.bf16.mxu0 0
  %9226 = vmatpush1.bf16.msra.mxu0 0
  %9227 = vmatprep.subr.bf16.mxu0 0
  %9228 = vmatpush1.bf16.msra.mxu0 0
  %9229 = vmatprep.subr.bf16.mxu0 0
  %9230 = vmatpush1.bf16.msra.mxu0 0
  %9231 = vmatprep.subr.bf16.mxu0 0
  %9232 = vmatpush1.bf16.msra.mxu0 0
  %9233 = vmatprep.subr.bf16.mxu0 0
  %9234 = vmatpush1.bf16.msra.mxu0 0
  %9235 = vmatprep.subr.bf16.mxu0 0
  %9236 = vmatpush1.bf16.msra.mxu0 0
  %9237 = vmatprep.subr.bf16.mxu0 0
  %9238 = vmatpush1.bf16.msra.mxu0 0
  %9239 = vmatprep.subr.bf16.mxu0 0
  %9240 = vmatpush1.bf16.msra.mxu0 0
  %9241 = vmatprep.subr.bf16.mxu0 0
  %9242 = vmatpush1.bf16.msra.mxu0 0
  %9243 = vmatprep.subr.bf16.mxu0 0
  %9244 = vmatpush1.bf16.msra.mxu0 0
  %9245 = vmatprep.subr.bf16.mxu0 0
  %9246 = vmatpush1.bf16.msra.mxu0 0
  %9247 = vmatprep.subr.bf16.mxu0 0
  %9248 = vmatpush1.bf16.msra.mxu0 0
  %9249 = vmatprep.mubr.bf16.mxu0 0
  %9250 = vmatmul.mubr.bf16.gmra.mrb[0].mxu0 %v9209
  %v9251 = vpop.f32.mrb[0].mxu0
  %v9252 = vadd.f32 0.0, %v9251
  %v9253 = vpop.f32.mrb[0].mxu0
  %v9254 = vpop.f32.mrb[0].mxu0
  %v9255 = vadd.f32 0.0, %v9254
  %v9256 = vpop.f32.mrb[0].mxu0
  %9257 = vmatprep.mubr.bf16.mxu0 0
  %9258 = vmatmul.mubr.bf16.gmra.mrb[0].mxu0 %v9212
  %v9259 = vpop.f32.mrb[0].mxu0
  %v9260 = vadd.f32 0.0, %v9259
  %v9261 = vpop.f32.mrb[0].mxu0
  %v9262 = vpop.f32.mrb[0].mxu0
  %v9263 = vpop.f32.mrb[0].mxu0
  %9264 = vdwg.mxu0
  %v9265 = vpack.c.bf16 %v9255, %v9252
  %v9266 = vpack.c.bf16 %v9260, %v9260
  %v9283 = vunpack.c.l.b16 %v8134
  %v9284 = vunpack.c.l.b16 %v8135
  %v9285 = vunpack.c.l.b16 %v8136
  %v9286 = vunpack.c.l.b16 %v8137
  %v9287 = vunpack.c.l.b16 %v8138
  %v9288 = vunpack.c.l.b16 %v8139
  %v9289 = vunpack.c.l.b16 %v8140
  %v9290 = vunpack.c.l.b16 %v8141
  %v9291 = vunpack.c.l.b16 %v8142
  %v9292 = vunpack.c.l.b16 %v8143
  %v9293 = vunpack.c.l.b16 %v8144
  %v9294 = vunpack.c.l.b16 %v8145
  %v9295 = vunpack.c.l.b16 %v8146
  %v9296 = vunpack.c.l.b16 %v8147
  %v9297 = vunpack.c.l.b16 %v8148
  %v9298 = vunpack.c.l.b16 %v8149
  %v9299 = vpack.c.b16 %v9284, %v9283
  %v9300 = vpack.c.b16 %v9286, %v9285
  %v9301 = vpack.c.b16 %v9288, %v9287
  %v9302 = vpack.c.b16 %v9290, %v9289
  %v9303 = vpack.c.b16 %v9292, %v9291
  %v9304 = vpack.c.b16 %v9294, %v9293
  %v9305 = vpack.c.b16 %v9296, %v9295
  %v9306 = vpack.c.b16 %v9298, %v9297
  %9315 = vmatprep.subr.bf16.mxu0 0
  %9316 = vmatpush1.bf16.msra.mxu0 %v9299
  %9317 = vmatprep.subr.bf16.mxu0 0
  %9318 = vmatpush1.bf16.msra.mxu0 %v9300
  %9319 = vmatprep.subr.bf16.mxu0 0
  %9320 = vmatpush1.bf16.msra.mxu0 %v9301
  %9321 = vmatprep.subr.bf16.mxu0 0
  %9322 = vmatpush1.bf16.msra.mxu0 %v9302
  %9323 = vmatprep.subr.bf16.mxu0 0
  %9324 = vmatpush1.bf16.msra.mxu0 %v9303
  %9325 = vmatprep.subr.bf16.mxu0 0
  %9326 = vmatpush1.bf16.msra.mxu0 %v9304
  %9327 = vmatprep.subr.bf16.mxu0 0
  %9328 = vmatpush1.bf16.msra.mxu0 %v9305
  %9329 = vmatprep.subr.bf16.mxu0 0
  %9330 = vmatpush1.bf16.msra.mxu0 %v9306
  %9331 = vmatprep.subr.bf16.mxu0 0
  %9332 = vmatpush1.bf16.msra.mxu0 0
  %9333 = vmatprep.subr.bf16.mxu0 0
  %9334 = vmatpush1.bf16.msra.mxu0 0
  %9335 = vmatprep.subr.bf16.mxu0 0
  %9336 = vmatpush1.bf16.msra.mxu0 0
  %9337 = vmatprep.subr.bf16.mxu0 0
  %9338 = vmatpush1.bf16.msra.mxu0 0
  %9339 = vmatprep.subr.bf16.mxu0 0
  %9340 = vmatpush1.bf16.msra.mxu0 0
  %9341 = vmatprep.subr.bf16.mxu0 0
  %9342 = vmatpush1.bf16.msra.mxu0 0
  %9343 = vmatprep.subr.bf16.mxu0 0
  %9344 = vmatpush1.bf16.msra.mxu0 0
  %9345 = vmatprep.subr.bf16.mxu0 0
  %9346 = vmatpush1.bf16.msra.mxu0 0
  %9347 = vmatprep.mubr.bf16.mxu0 0
  %9348 = vmatmul.mubr.bf16.gmra.mrb[0].mxu0 %v9265
  %v9349 = vpop.f32.mrb[0].mxu0
  %v9350 = vadd.f32 0.0, %v9349
  %v9351 = vpop.f32.mrb[0].mxu0
  %v9352 = vpop.f32.mrb[0].mxu0
  %v9353 = vadd.f32 0.0, %v9352
  %v9354 = vpop.f32.mrb[0].mxu0
  %9355 = vmatprep.mubr.bf16.mxu0 0
  %9356 = vmatmul.mubr.bf16.gmra.mrb[0].mxu0 %v9266
  %v9357 = vpop.f32.mrb[0].mxu0
  %v9358 = vadd.f32 0.0, %v9357
  %v9359 = vpop.f32.mrb[0].mxu0
  %v9360 = vpop.f32.mrb[0].mxu0
  %v9361 = vpop.f32.mrb[0].mxu0
  %9362 = vdwg.mxu0
  %v9363 = vadd.f32 %v9131, %v9350
  %v9364 = vadd.f32 %v9132, %v9353
  %v9365 = vadd.f32 %v9133, %v9358
  %9366 = vmatprep.subr.bf16.mxu0 0
  %9367 = vmatpush1.bf16.msra.mxu0 %v8045
  %9368 = vmatprep.subr.bf16.mxu0 0
  %9369 = vmatpush1.bf16.msra.mxu0 %v8046
  %9370 = vmatprep.subr.bf16.mxu0 0
  %9371 = vmatpush1.bf16.msra.mxu0 %v8047
  %9372 = vmatprep.subr.bf16.mxu0 0
  %9373 = vmatpush1.bf16.msra.mxu0 %v8048
  %9374 = vmatprep.subr.bf16.mxu0 0
  %9375 = vmatpush1.bf16.msra.mxu0 %v8049
  %9376 = vmatprep.subr.bf16.mxu0 0
  %9377 = vmatpush1.bf16.msra.mxu0 %v8050
  %9378 = vmatprep.subr.bf16.mxu0 0
  %9379 = vmatpush1.bf16.msra.mxu0 %v8051
  %9380 = vmatprep.subr.bf16.mxu0 0
  %9381 = vmatpush1.bf16.msra.mxu0 %v8052
  %9382 = vmatprep.subr.bf16.mxu0 0
  %9383 = vmatpush1.bf16.msra.mxu0 0
  %9384 = vmatprep.subr.bf16.mxu0 0
  %9385 = vmatpush1.bf16.msra.mxu0 0
  %9386 = vmatprep.subr.bf16.mxu0 0
  %9387 = vmatpush1.bf16.msra.mxu0 0
  %9388 = vmatprep.subr.bf16.mxu0 0
  %9389 = vmatpush1.bf16.msra.mxu0 0
  %9390 = vmatprep.subr.bf16.mxu0 0
  %9391 = vmatpush1.bf16.msra.mxu0 0
  %9392 = vmatprep.subr.bf16.mxu0 0
  %9393 = vmatpush1.bf16.msra.mxu0 0
  %9394 = vmatprep.subr.bf16.mxu0 0
  %9395 = vmatpush1.bf16.msra.mxu0 0
  %9396 = vmatprep.subr.bf16.mxu0 0
  %9397 = vmatpush1.bf16.msra.mxu0 0
  %9398 = vmatprep.mubr.bf16.mxu0 0
  %9399 = vmatmul.mubr.bf16.gmra.mrb[0].mxu0 %v6395
  %v9400 = vpop.f32.mrb[0].mxu0
  %v9401 = vadd.f32 0.0, %v9400
  %v9402 = vpop.f32.mrb[0].mxu0
  %v9403 = vpop.f32.mrb[0].mxu0
  %v9404 = vadd.f32 0.0, %v9403
  %v9405 = vpop.f32.mrb[0].mxu0
  %9406 = vmatprep.mubr.bf16.mxu0 0
  %9407 = vmatmul.mubr.bf16.gmra.mrb[0].mxu0 %v6403
  %v9408 = vpop.f32.mrb[0].mxu0
  %v9409 = vadd.f32 0.0, %v9408
  %v9410 = vpop.f32.mrb[0].mxu0
  %v9411 = vpop.f32.mrb[0].mxu0
  %v9412 = vpop.f32.mrb[0].mxu0
  %9413 = vdwg.mxu0
  %v9414 = vmul.f32 %v9401, 0.125
  %v9415 = vmul.f32 %v9404, 0.125
  %v9416 = vmul.f32 %v9409, 0.125
  %v9417 = vmul.f32 %v9414, 1.442695
  %v9418 = vpow.pop %v9417
  %v9419 = vmul.f32 %v9415, 1.442695
  %v9420 = vpow.pop %v9419
  %v9421 = vmul.f32 %v9416, 1.442695
  %v9422 = vpow.pop %v9421
  %v9423 = vsel %vm3809, %v9418, 0.0
  %9424 = vadd.xlane.f32.xlu0 %v9423
  %v9425 = vpop.xlane.xlu0 %9424
  %v9426 = vsel %vm3809, %v9420, 0.0
  %9427 = vadd.xlane.f32.xlu0 %v9426
  %v9428 = vpop.xlane.xlu0 %9427
  %v9429 = vsel %vm3816, %v9422, 0.0
  %9430 = vadd.xlane.f32.xlu0 %v9429
  %v9431 = vpop.xlane.xlu0 %9430
  %v9432 = vrcp.pop %v9425
  %v9433 = vmul.f32 %v9418, %v9432
  %v9434 = vrcp.pop %v9428
  %v9435 = vmul.f32 %v9420, %v9434
  %v9436 = vrcp.pop %v9431
  %v9437 = vmul.f32 %v9422, %v9436
  %v9438 = vpack.c.bf16 %v9435, %v9433
  %v9439 = vpack.c.bf16 %v9437, %v9437
  %v9441 = vsel %vm3809, %v9438, 0
  %v9444 = vsel %vm3809, %v9439, 0
  %v9447 = vand.u32 %v6816, %v3836
  %9449 = vmatprep.subr.bf16.mxu0 0
  %9450 = vmatpush1.bf16.msra.mxu0 %v6808
  %9451 = vmatprep.subr.bf16.mxu0 0
  %9452 = vmatpush1.bf16.msra.mxu0 %v9447
  %9453 = vmatprep.subr.bf16.mxu0 0
  %9454 = vmatpush1.bf16.msra.mxu0 0
  %9455 = vmatprep.subr.bf16.mxu0 0
  %9456 = vmatpush1.bf16.msra.mxu0 0
  %9457 = vmatprep.subr.bf16.mxu0 0
  %9458 = vmatpush1.bf16.msra.mxu0 0
  %9459 = vmatprep.subr.bf16.mxu0 0
  %9460 = vmatpush1.bf16.msra.mxu0 0
  %9461 = vmatprep.subr.bf16.mxu0 0
  %9462 = vmatpush1.bf16.msra.mxu0 0
  %9463 = vmatprep.subr.bf16.mxu0 0
  %9464 = vmatpush1.bf16.msra.mxu0 0
  %9465 = vmatprep.subr.bf16.mxu0 0
  %9466 = vmatpush1.bf16.msra.mxu0 0
  %9467 = vmatprep.subr.bf16.mxu0 0
  %9468 = vmatpush1.bf16.msra.mxu0 0
  %9469 = vmatprep.subr.bf16.mxu0 0
  %9470 = vmatpush1.bf16.msra.mxu0 0
  %9471 = vmatprep.subr.bf16.mxu0 0
  %9472 = vmatpush1.bf16.msra.mxu0 0
  %9473 = vmatprep.subr.bf16.mxu0 0
  %9474 = vmatpush1.bf16.msra.mxu0 0
  %9475 = vmatprep.subr.bf16.mxu0 0
  %9476 = vmatpush1.bf16.msra.mxu0 0
  %9477 = vmatprep.subr.bf16.mxu0 0
  %9478 = vmatpush1.bf16.msra.mxu0 0
  %9479 = vmatprep.subr.bf16.mxu0 0
  %9480 = vmatpush1.bf16.msra.mxu0 0
  %9481 = vmatprep.mubr.bf16.mxu0 0
  %9482 = vmatmul.mubr.bf16.gmra.mrb[0].mxu0 %v9441
  %v9483 = vpop.f32.mrb[0].mxu0
  %v9484 = vadd.f32 0.0, %v9483
  %v9485 = vpop.f32.mrb[0].mxu0
  %v9486 = vpop.f32.mrb[0].mxu0
  %v9487 = vadd.f32 0.0, %v9486
  %v9488 = vpop.f32.mrb[0].mxu0
  %9489 = vmatprep.mubr.bf16.mxu0 0
  %9490 = vmatmul.mubr.bf16.gmra.mrb[0].mxu0 %v9444
  %v9491 = vpop.f32.mrb[0].mxu0
  %v9492 = vadd.f32 0.0, %v9491
  %v9493 = vpop.f32.mrb[0].mxu0
  %v9494 = vpop.f32.mrb[0].mxu0
  %v9495 = vpop.f32.mrb[0].mxu0
  %9496 = vdwg.mxu0
  %v9497 = vpack.c.bf16 %v9487, %v9484
  %v9498 = vpack.c.bf16 %v9492, %v9492
  %v9515 = vunpack.c.l.b16 %v8150
  %v9516 = vunpack.c.l.b16 %v8151
  %v9517 = vunpack.c.l.b16 %v8152
  %v9518 = vunpack.c.l.b16 %v8153
  %v9519 = vunpack.c.l.b16 %v8154
  %v9520 = vunpack.c.l.b16 %v8155
  %v9521 = vunpack.c.l.b16 %v8156
  %v9522 = vunpack.c.l.b16 %v8157
  %v9523 = vunpack.c.l.b16 %v8158
  %v9524 = vunpack.c.l.b16 %v8159
  %v9525 = vunpack.c.l.b16 %v8160
  %v9526 = vunpack.c.l.b16 %v8161
  %v9527 = vunpack.c.l.b16 %v8162
  %v9528 = vunpack.c.l.b16 %v8163
  %v9529 = vunpack.c.l.b16 %v8164
  %v9530 = vunpack.c.l.b16 %v8165
  %v9531 = vpack.c.b16 %v9516, %v9515
  %v9532 = vpack.c.b16 %v9518, %v9517
  %v9533 = vpack.c.b16 %v9520, %v9519
  %v9534 = vpack.c.b16 %v9522, %v9521
  %v9535 = vpack.c.b16 %v9524, %v9523
  %v9536 = vpack.c.b16 %v9526, %v9525
  %v9537 = vpack.c.b16 %v9528, %v9527
  %v9538 = vpack.c.b16 %v9530, %v9529
  %9547 = vmatprep.subr.bf16.mxu0 0
  %9548 = vmatpush1.bf16.msra.mxu0 %v9531
  %9549 = vmatprep.subr.bf16.mxu0 0
  %9550 = vmatpush1.bf16.msra.mxu0 %v9532
  %9551 = vmatprep.subr.bf16.mxu0 0
  %9552 = vmatpush1.bf16.msra.mxu0 %v9533
  %9553 = vmatprep.subr.bf16.mxu0 0
  %9554 = vmatpush1.bf16.msra.mxu0 %v9534
  %9555 = vmatprep.subr.bf16.mxu0 0
  %9556 = vmatpush1.bf16.msra.mxu0 %v9535
  %9557 = vmatprep.subr.bf16.mxu0 0
  %9558 = vmatpush1.bf16.msra.mxu0 %v9536
  %9559 = vmatprep.subr.bf16.mxu0 0
  %9560 = vmatpush1.bf16.msra.mxu0 %v9537
  %9561 = vmatprep.subr.bf16.mxu0 0
  %9562 = vmatpush1.bf16.msra.mxu0 %v9538
  %9563 = vmatprep.subr.bf16.mxu0 0
  %9564 = vmatpush1.bf16.msra.mxu0 0
  %9565 = vmatprep.subr.bf16.mxu0 0
  %9566 = vmatpush1.bf16.msra.mxu0 0
  %9567 = vmatprep.subr.bf16.mxu0 0
  %9568 = vmatpush1.bf16.msra.mxu0 0
  %9569 = vmatprep.subr.bf16.mxu0 0
  %9570 = vmatpush1.bf16.msra.mxu0 0
  %9571 = vmatprep.subr.bf16.mxu0 0
  %9572 = vmatpush1.bf16.msra.mxu0 0
  %9573 = vmatprep.subr.bf16.mxu0 0
  %9574 = vmatpush1.bf16.msra.mxu0 0
  %9575 = vmatprep.subr.bf16.mxu0 0
  %9576 = vmatpush1.bf16.msra.mxu0 0
  %9577 = vmatprep.subr.bf16.mxu0 0
  %9578 = vmatpush1.bf16.msra.mxu0 0
  %9579 = vmatprep.mubr.bf16.mxu0 0
  %9580 = vmatmul.mubr.bf16.gmra.mrb[0].mxu0 %v9497
  %v9581 = vpop.f32.mrb[0].mxu0
  %v9582 = vadd.f32 0.0, %v9581
  %v9583 = vpop.f32.mrb[0].mxu0
  %v9584 = vpop.f32.mrb[0].mxu0
  %v9585 = vadd.f32 0.0, %v9584
  %v9586 = vpop.f32.mrb[0].mxu0
  %9587 = vmatprep.mubr.bf16.mxu0 0
  %9588 = vmatmul.mubr.bf16.gmra.mrb[0].mxu0 %v9498
  %v9589 = vpop.f32.mrb[0].mxu0
  %v9590 = vadd.f32 0.0, %v9589
  %v9591 = vpop.f32.mrb[0].mxu0
  %v9592 = vpop.f32.mrb[0].mxu0
  %v9593 = vpop.f32.mrb[0].mxu0
  %9594 = vdwg.mxu0
  %v9595 = vadd.f32 %v9363, %v9582
  %v9596 = vadd.f32 %v9364, %v9585
  %v9597 = vadd.f32 %v9365, %v9590
  %9598 = vmatprep.subr.bf16.mxu0 0
  %9599 = vmatpush1.bf16.msra.mxu0 %v8053
  %9600 = vmatprep.subr.bf16.mxu0 0
  %9601 = vmatpush1.bf16.msra.mxu0 %v8054
  %9602 = vmatprep.subr.bf16.mxu0 0
  %9603 = vmatpush1.bf16.msra.mxu0 %v8055
  %9604 = vmatprep.subr.bf16.mxu0 0
  %9605 = vmatpush1.bf16.msra.mxu0 %v8056
  %9606 = vmatprep.subr.bf16.mxu0 0
  %9607 = vmatpush1.bf16.msra.mxu0 %v8057
  %9608 = vmatprep.subr.bf16.mxu0 0
  %9609 = vmatpush1.bf16.msra.mxu0 %v8058
  %9610 = vmatprep.subr.bf16.mxu0 0
  %9611 = vmatpush1.bf16.msra.mxu0 %v8059
  %9612 = vmatprep.subr.bf16.mxu0 0
  %9613 = vmatpush1.bf16.msra.mxu0 %v8060
  %9614 = vmatprep.subr.bf16.mxu0 0
  %9615 = vmatpush1.bf16.msra.mxu0 0
  %9616 = vmatprep.subr.bf16.mxu0 0
  %9617 = vmatpush1.bf16.msra.mxu0 0
  %9618 = vmatprep.subr.bf16.mxu0 0
  %9619 = vmatpush1.bf16.msra.mxu0 0
  %9620 = vmatprep.subr.bf16.mxu0 0
  %9621 = vmatpush1.bf16.msra.mxu0 0
  %9622 = vmatprep.subr.bf16.mxu0 0
  %9623 = vmatpush1.bf16.msra.mxu0 0
  %9624 = vmatprep.subr.bf16.mxu0 0
  %9625 = vmatpush1.bf16.msra.mxu0 0
  %9626 = vmatprep.subr.bf16.mxu0 0
  %9627 = vmatpush1.bf16.msra.mxu0 0
  %9628 = vmatprep.subr.bf16.mxu0 0
  %9629 = vmatpush1.bf16.msra.mxu0 0
  %9630 = vmatprep.mubr.bf16.mxu0 0
  %9631 = vmatmul.mubr.bf16.gmra.mrb[0].mxu0 %v6396
  %v9632 = vpop.f32.mrb[0].mxu0
  %v9633 = vadd.f32 0.0, %v9632
  %v9634 = vpop.f32.mrb[0].mxu0
  %v9635 = vpop.f32.mrb[0].mxu0
  %v9636 = vadd.f32 0.0, %v9635
  %v9637 = vpop.f32.mrb[0].mxu0
  %9638 = vmatprep.mubr.bf16.mxu0 0
  %9639 = vmatmul.mubr.bf16.gmra.mrb[0].mxu0 %v6404
  %v9640 = vpop.f32.mrb[0].mxu0
  %v9641 = vadd.f32 0.0, %v9640
  %v9642 = vpop.f32.mrb[0].mxu0
  %v9643 = vpop.f32.mrb[0].mxu0
  %v9644 = vpop.f32.mrb[0].mxu0
  %9645 = vdwg.mxu0
  %v9646 = vmul.f32 %v9633, 0.125
  %v9647 = vmul.f32 %v9636, 0.125
  %v9648 = vmul.f32 %v9641, 0.125
  %v9649 = vmul.f32 %v9646, 1.442695
  %v9650 = vpow.pop %v9649
  %v9651 = vmul.f32 %v9647, 1.442695
  %v9652 = vpow.pop %v9651
  %v9653 = vmul.f32 %v9648, 1.442695
  %v9654 = vpow.pop %v9653
  %v9655 = vsel %vm3809, %v9650, 0.0
  %9656 = vadd.xlane.f32.xlu0 %v9655
  %v9657 = vpop.xlane.xlu0 %9656
  %v9658 = vsel %vm3809, %v9652, 0.0
  %9659 = vadd.xlane.f32.xlu0 %v9658
  %v9660 = vpop.xlane.xlu0 %9659
  %v9661 = vsel %vm3816, %v9654, 0.0
  %9662 = vadd.xlane.f32.xlu0 %v9661
  %v9663 = vpop.xlane.xlu0 %9662
  %v9664 = vrcp.pop %v9657
  %v9665 = vmul.f32 %v9650, %v9664
  %v9666 = vrcp.pop %v9660
  %v9667 = vmul.f32 %v9652, %v9666
  %v9668 = vrcp.pop %v9663
  %v9669 = vmul.f32 %v9654, %v9668
  %v9670 = vpack.c.bf16 %v9667, %v9665
  %v9671 = vpack.c.bf16 %v9669, %v9669
  %v9673 = vsel %vm3809, %v9670, 0
  %v9676 = vsel %vm3809, %v9671, 0
  %v9679 = vand.u32 %v6817, %v3836
  %9681 = vmatprep.subr.bf16.mxu0 0
  %9682 = vmatpush1.bf16.msra.mxu0 %v6809
  %9683 = vmatprep.subr.bf16.mxu0 0
  %9684 = vmatpush1.bf16.msra.mxu0 %v9679
  %9685 = vmatprep.subr.bf16.mxu0 0
  %9686 = vmatpush1.bf16.msra.mxu0 0
  %9687 = vmatprep.subr.bf16.mxu0 0
  %9688 = vmatpush1.bf16.msra.mxu0 0
  %9689 = vmatprep.subr.bf16.mxu0 0
  %9690 = vmatpush1.bf16.msra.mxu0 0
  %9691 = vmatprep.subr.bf16.mxu0 0
  %9692 = vmatpush1.bf16.msra.mxu0 0
  %9693 = vmatprep.subr.bf16.mxu0 0
  %9694 = vmatpush1.bf16.msra.mxu0 0
  %9695 = vmatprep.subr.bf16.mxu0 0
  %9696 = vmatpush1.bf16.msra.mxu0 0
  %9697 = vmatprep.subr.bf16.mxu0 0
  %9698 = vmatpush1.bf16.msra.mxu0 0
  %9699 = vmatprep.subr.bf16.mxu0 0
  %9700 = vmatpush1.bf16.msra.mxu0 0
  %9701 = vmatprep.subr.bf16.mxu0 0
  %9702 = vmatpush1.bf16.msra.mxu0 0
  %9703 = vmatprep.subr.bf16.mxu0 0
  %9704 = vmatpush1.bf16.msra.mxu0 0
  %9705 = vmatprep.subr.bf16.mxu0 0
  %9706 = vmatpush1.bf16.msra.mxu0 0
  %9707 = vmatprep.subr.bf16.mxu0 0
  %9708 = vmatpush1.bf16.msra.mxu0 0
  %9709 = vmatprep.subr.bf16.mxu0 0
  %9710 = vmatpush1.bf16.msra.mxu0 0
  %9711 = vmatprep.subr.bf16.mxu0 0
  %9712 = vmatpush1.bf16.msra.mxu0 0
  %9713 = vmatprep.mubr.bf16.mxu0 0
  %9714 = vmatmul.mubr.bf16.gmra.mrb[0].mxu0 %v9673
  %v9715 = vpop.f32.mrb[0].mxu0
  %v9716 = vadd.f32 0.0, %v9715
  %v9717 = vpop.f32.mrb[0].mxu0
  %v9718 = vpop.f32.mrb[0].mxu0
  %v9719 = vadd.f32 0.0, %v9718
  %v9720 = vpop.f32.mrb[0].mxu0
  %9721 = vmatprep.mubr.bf16.mxu0 0
  %9722 = vmatmul.mubr.bf16.gmra.mrb[0].mxu0 %v9676
  %v9723 = vpop.f32.mrb[0].mxu0
  %v9724 = vadd.f32 0.0, %v9723
  %v9725 = vpop.f32.mrb[0].mxu0
  %v9726 = vpop.f32.mrb[0].mxu0
  %v9727 = vpop.f32.mrb[0].mxu0
  %9728 = vdwg.mxu0
  %v9729 = vpack.c.bf16 %v9719, %v9716
  %v9730 = vpack.c.bf16 %v9724, %v9724
  %v9747 = vunpack.c.l.b16 %v8166
  %v9748 = vunpack.c.l.b16 %v8167
  %v9749 = vunpack.c.l.b16 %v8168
  %v9750 = vunpack.c.l.b16 %v8169
  %v9751 = vunpack.c.l.b16 %v8170
  %v9752 = vunpack.c.l.b16 %v8171
  %v9753 = vunpack.c.l.b16 %v8172
  %v9754 = vunpack.c.l.b16 %v8173
  %v9755 = vunpack.c.l.b16 %v8174
  %v9756 = vunpack.c.l.b16 %v8175
  %v9757 = vunpack.c.l.b16 %v8176
  %v9758 = vunpack.c.l.b16 %v8177
  %v9759 = vunpack.c.l.b16 %v8178
  %v9760 = vunpack.c.l.b16 %v8179
  %v9761 = vunpack.c.l.b16 %v8180
  %v9762 = vunpack.c.l.b16 %v8181
  %v9763 = vpack.c.b16 %v9748, %v9747
  %v9764 = vpack.c.b16 %v9750, %v9749
  %v9765 = vpack.c.b16 %v9752, %v9751
  %v9766 = vpack.c.b16 %v9754, %v9753
  %v9767 = vpack.c.b16 %v9756, %v9755
  %v9768 = vpack.c.b16 %v9758, %v9757
  %v9769 = vpack.c.b16 %v9760, %v9759
  %v9770 = vpack.c.b16 %v9762, %v9761
  %9779 = vmatprep.subr.bf16.mxu0 0
  %9780 = vmatpush1.bf16.msra.mxu0 %v9763
  %9781 = vmatprep.subr.bf16.mxu0 0
  %9782 = vmatpush1.bf16.msra.mxu0 %v9764
  %9783 = vmatprep.subr.bf16.mxu0 0
  %9784 = vmatpush1.bf16.msra.mxu0 %v9765
  %9785 = vmatprep.subr.bf16.mxu0 0
  %9786 = vmatpush1.bf16.msra.mxu0 %v9766
  %9787 = vmatprep.subr.bf16.mxu0 0
  %9788 = vmatpush1.bf16.msra.mxu0 %v9767
  %9789 = vmatprep.subr.bf16.mxu0 0
  %9790 = vmatpush1.bf16.msra.mxu0 %v9768
  %9791 = vmatprep.subr.bf16.mxu0 0
  %9792 = vmatpush1.bf16.msra.mxu0 %v9769
  %9793 = vmatprep.subr.bf16.mxu0 0
  %9794 = vmatpush1.bf16.msra.mxu0 %v9770
  %9795 = vmatprep.subr.bf16.mxu0 0
  %9796 = vmatpush1.bf16.msra.mxu0 0
  %9797 = vmatprep.subr.bf16.mxu0 0
  %9798 = vmatpush1.bf16.msra.mxu0 0
  %9799 = vmatprep.subr.bf16.mxu0 0
  %9800 = vmatpush1.bf16.msra.mxu0 0
  %9801 = vmatprep.subr.bf16.mxu0 0
  %9802 = vmatpush1.bf16.msra.mxu0 0
  %9803 = vmatprep.subr.bf16.mxu0 0
  %9804 = vmatpush1.bf16.msra.mxu0 0
  %9805 = vmatprep.subr.bf16.mxu0 0
  %9806 = vmatpush1.bf16.msra.mxu0 0
  %9807 = vmatprep.subr.bf16.mxu0 0
  %9808 = vmatpush1.bf16.msra.mxu0 0
  %9809 = vmatprep.subr.bf16.mxu0 0
  %9810 = vmatpush1.bf16.msra.mxu0 0
  %9811 = vmatprep.mubr.bf16.mxu0 0
  %9812 = vmatmul.mubr.bf16.gmra.mrb[0].mxu0 %v9729
  %v9813 = vpop.f32.mrb[0].mxu0
  %v9814 = vadd.f32 0.0, %v9813
  %v9815 = vpop.f32.mrb[0].mxu0
  %v9816 = vpop.f32.mrb[0].mxu0
  %v9817 = vadd.f32 0.0, %v9816
  %v9818 = vpop.f32.mrb[0].mxu0
  %9819 = vmatprep.mubr.bf16.mxu0 0
  %9820 = vmatmul.mubr.bf16.gmra.mrb[0].mxu0 %v9730
  %v9821 = vpop.f32.mrb[0].mxu0
  %v9822 = vadd.f32 0.0, %v9821
  %v9823 = vpop.f32.mrb[0].mxu0
  %v9824 = vpop.f32.mrb[0].mxu0
  %v9825 = vpop.f32.mrb[0].mxu0
  %9826 = vdwg.mxu0
  %v9827 = vadd.f32 %v9595, %v9814
  %v9828 = vadd.f32 %v9596, %v9817
  %v9829 = vadd.f32 %v9597, %v9822
  %9830 = vmatprep.subr.bf16.mxu0 0
  %9831 = vmatpush1.bf16.msra.mxu0 %v8061
  %9832 = vmatprep.subr.bf16.mxu0 0
  %9833 = vmatpush1.bf16.msra.mxu0 %v8062
  %9834 = vmatprep.subr.bf16.mxu0 0
  %9835 = vmatpush1.bf16.msra.mxu0 %v8063
  %9836 = vmatprep.subr.bf16.mxu0 0
  %9837 = vmatpush1.bf16.msra.mxu0 %v8064
  %9838 = vmatprep.subr.bf16.mxu0 0
  %9839 = vmatpush1.bf16.msra.mxu0 %v8065
  %9840 = vmatprep.subr.bf16.mxu0 0
  %9841 = vmatpush1.bf16.msra.mxu0 %v8066
  %9842 = vmatprep.subr.bf16.mxu0 0
  %9843 = vmatpush1.bf16.msra.mxu0 %v8067
  %9844 = vmatprep.subr.bf16.mxu0 0
  %9845 = vmatpush1.bf16.msra.mxu0 %v8068
  %9846 = vmatprep.subr.bf16.mxu0 0
  %9847 = vmatpush1.bf16.msra.mxu0 0
  %9848 = vmatprep.subr.bf16.mxu0 0
  %9849 = vmatpush1.bf16.msra.mxu0 0
  %9850 = vmatprep.subr.bf16.mxu0 0
  %9851 = vmatpush1.bf16.msra.mxu0 0
  %9852 = vmatprep.subr.bf16.mxu0 0
  %9853 = vmatpush1.bf16.msra.mxu0 0
  %9854 = vmatprep.subr.bf16.mxu0 0
  %9855 = vmatpush1.bf16.msra.mxu0 0
  %9856 = vmatprep.subr.bf16.mxu0 0
  %9857 = vmatpush1.bf16.msra.mxu0 0
  %9858 = vmatprep.subr.bf16.mxu0 0
  %9859 = vmatpush1.bf16.msra.mxu0 0
  %9860 = vmatprep.subr.bf16.mxu0 0
  %9861 = vmatpush1.bf16.msra.mxu0 0
  %9862 = vmatprep.mubr.bf16.mxu0 0
  %9863 = vmatmul.mubr.bf16.gmra.mrb[0].mxu0 %v6397
  %v9864 = vpop.f32.mrb[0].mxu0
  %v9865 = vadd.f32 0.0, %v9864
  %v9866 = vpop.f32.mrb[0].mxu0
  %v9867 = vpop.f32.mrb[0].mxu0
  %v9868 = vadd.f32 0.0, %v9867
  %v9869 = vpop.f32.mrb[0].mxu0
  %9870 = vmatprep.mubr.bf16.mxu0 0
  %9871 = vmatmul.mubr.bf16.gmra.mrb[0].mxu0 %v6405
  %v9872 = vpop.f32.mrb[0].mxu0
  %v9873 = vadd.f32 0.0, %v9872
  %v9874 = vpop.f32.mrb[0].mxu0
  %v9875 = vpop.f32.mrb[0].mxu0
  %v9876 = vpop.f32.mrb[0].mxu0
  %9877 = vdwg.mxu0
  %v9878 = vmul.f32 %v9865, 0.125
  %v9879 = vmul.f32 %v9868, 0.125
  %v9880 = vmul.f32 %v9873, 0.125
  %v9881 = vmul.f32 %v9878, 1.442695
  %v9882 = vpow.pop %v9881
  %v9883 = vmul.f32 %v9879, 1.442695
  %v9884 = vpow.pop %v9883
  %v9885 = vmul.f32 %v9880, 1.442695
  %v9886 = vpow.pop %v9885
  %v9887 = vsel %vm3809, %v9882, 0.0
  %9888 = vadd.xlane.f32.xlu0 %v9887
  %v9889 = vpop.xlane.xlu0 %9888
  %v9890 = vsel %vm3809, %v9884, 0.0
  %9891 = vadd.xlane.f32.xlu0 %v9890
  %v9892 = vpop.xlane.xlu0 %9891
  %v9893 = vsel %vm3816, %v9886, 0.0
  %9894 = vadd.xlane.f32.xlu0 %v9893
  %v9895 = vpop.xlane.xlu0 %9894
  %v9896 = vrcp.pop %v9889
  %v9897 = vmul.f32 %v9882, %v9896
  %v9898 = vrcp.pop %v9892
  %v9899 = vmul.f32 %v9884, %v9898
  %v9900 = vrcp.pop %v9895
  %v9901 = vmul.f32 %v9886, %v9900
  %v9902 = vpack.c.bf16 %v9899, %v9897
  %v9903 = vpack.c.bf16 %v9901, %v9901
  %v9905 = vsel %vm3809, %v9902, 0
  %v9908 = vsel %vm3809, %v9903, 0
  %v9911 = vand.u32 %v6818, %v3836
  %9913 = vmatprep.subr.bf16.mxu0 0
  %9914 = vmatpush1.bf16.msra.mxu0 %v6810
  %9915 = vmatprep.subr.bf16.mxu0 0
  %9916 = vmatpush1.bf16.msra.mxu0 %v9911
  %9917 = vmatprep.subr.bf16.mxu0 0
  %9918 = vmatpush1.bf16.msra.mxu0 0
  %9919 = vmatprep.subr.bf16.mxu0 0
  %9920 = vmatpush1.bf16.msra.mxu0 0
  %9921 = vmatprep.subr.bf16.mxu0 0
  %9922 = vmatpush1.bf16.msra.mxu0 0
  %9923 = vmatprep.subr.bf16.mxu0 0
  %9924 = vmatpush1.bf16.msra.mxu0 0
  %9925 = vmatprep.subr.bf16.mxu0 0
  %9926 = vmatpush1.bf16.msra.mxu0 0
  %9927 = vmatprep.subr.bf16.mxu0 0
  %9928 = vmatpush1.bf16.msra.mxu0 0
  %9929 = vmatprep.subr.bf16.mxu0 0
  %9930 = vmatpush1.bf16.msra.mxu0 0
  %9931 = vmatprep.subr.bf16.mxu0 0
  %9932 = vmatpush1.bf16.msra.mxu0 0
  %9933 = vmatprep.subr.bf16.mxu0 0
  %9934 = vmatpush1.bf16.msra.mxu0 0
  %9935 = vmatprep.subr.bf16.mxu0 0
  %9936 = vmatpush1.bf16.msra.mxu0 0
  %9937 = vmatprep.subr.bf16.mxu0 0
  %9938 = vmatpush1.bf16.msra.mxu0 0
  %9939 = vmatprep.subr.bf16.mxu0 0
  %9940 = vmatpush1.bf16.msra.mxu0 0
  %9941 = vmatprep.subr.bf16.mxu0 0
  %9942 = vmatpush1.bf16.msra.mxu0 0
  %9943 = vmatprep.subr.bf16.mxu0 0
  %9944 = vmatpush1.bf16.msra.mxu0 0
  %9945 = vmatprep.mubr.bf16.mxu0 0
  %9946 = vmatmul.mubr.bf16.gmra.mrb[0].mxu0 %v9905
  %v9947 = vpop.f32.mrb[0].mxu0
  %v9948 = vadd.f32 0.0, %v9947
  %v9949 = vpop.f32.mrb[0].mxu0
  %v9950 = vpop.f32.mrb[0].mxu0
  %v9951 = vadd.f32 0.0, %v9950
  %v9952 = vpop.f32.mrb[0].mxu0
  %9953 = vmatprep.mubr.bf16.mxu0 0
  %9954 = vmatmul.mubr.bf16.gmra.mrb[0].mxu0 %v9908
  %v9955 = vpop.f32.mrb[0].mxu0
  %v9956 = vadd.f32 0.0, %v9955
  %v9957 = vpop.f32.mrb[0].mxu0
  %v9958 = vpop.f32.mrb[0].mxu0
  %v9959 = vpop.f32.mrb[0].mxu0
  %9960 = vdwg.mxu0
  %v9961 = vpack.c.bf16 %v9951, %v9948
  %v9962 = vpack.c.bf16 %v9956, %v9956
  %v9979 = vunpack.c.l.b16 %v8182
  %v9980 = vunpack.c.l.b16 %v8183
  %v9981 = vunpack.c.l.b16 %v8184
  %v9982 = vunpack.c.l.b16 %v8185
  %v9983 = vunpack.c.l.b16 %v8186
  %v9984 = vunpack.c.l.b16 %v8187
  %v9985 = vunpack.c.l.b16 %v8188
  %v9986 = vunpack.c.l.b16 %v8189
  %v9987 = vunpack.c.l.b16 %v8190
  %v9988 = vunpack.c.l.b16 %v8191
  %v9989 = vunpack.c.l.b16 %v8192
  %v9990 = vunpack.c.l.b16 %v8193
  %v9991 = vunpack.c.l.b16 %v8194
  %v9992 = vunpack.c.l.b16 %v8195
  %v9993 = vunpack.c.l.b16 %v8196
  %v9994 = vunpack.c.l.b16 %v8197
  %v9995 = vpack.c.b16 %v9980, %v9979
  %v9996 = vpack.c.b16 %v9982, %v9981
  %v9997 = vpack.c.b16 %v9984, %v9983
  %v9998 = vpack.c.b16 %v9986, %v9985
  %v9999 = vpack.c.b16 %v9988, %v9987
  %v10000 = vpack.c.b16 %v9990, %v9989
  %v10001 = vpack.c.b16 %v9992, %v9991
  %v10002 = vpack.c.b16 %v9994, %v9993
  %10011 = vmatprep.subr.bf16.mxu0 0
  %10012 = vmatpush1.bf16.msra.mxu0 %v9995
  %10013 = vmatprep.subr.bf16.mxu0 0
  %10014 = vmatpush1.bf16.msra.mxu0 %v9996
  %10015 = vmatprep.subr.bf16.mxu0 0
  %10016 = vmatpush1.bf16.msra.mxu0 %v9997
  %10017 = vmatprep.subr.bf16.mxu0 0
  %10018 = vmatpush1.bf16.msra.mxu0 %v9998
  %10019 = vmatprep.subr.bf16.mxu0 0
  %10020 = vmatpush1.bf16.msra.mxu0 %v9999
  %10021 = vmatprep.subr.bf16.mxu0 0
  %10022 = vmatpush1.bf16.msra.mxu0 %v10000
  %10023 = vmatprep.subr.bf16.mxu0 0
  %10024 = vmatpush1.bf16.msra.mxu0 %v10001
  %10025 = vmatprep.subr.bf16.mxu0 0
  %10026 = vmatpush1.bf16.msra.mxu0 %v10002
  %10027 = vmatprep.subr.bf16.mxu0 0
  %10028 = vmatpush1.bf16.msra.mxu0 0
  %10029 = vmatprep.subr.bf16.mxu0 0
  %10030 = vmatpush1.bf16.msra.mxu0 0
  %10031 = vmatprep.subr.bf16.mxu0 0
  %10032 = vmatpush1.bf16.msra.mxu0 0
  %10033 = vmatprep.subr.bf16.mxu0 0
  %10034 = vmatpush1.bf16.msra.mxu0 0
  %10035 = vmatprep.subr.bf16.mxu0 0
  %10036 = vmatpush1.bf16.msra.mxu0 0
  %10037 = vmatprep.subr.bf16.mxu0 0
  %10038 = vmatpush1.bf16.msra.mxu0 0
  %10039 = vmatprep.subr.bf16.mxu0 0
  %10040 = vmatpush1.bf16.msra.mxu0 0
  %10041 = vmatprep.subr.bf16.mxu0 0
  %10042 = vmatpush1.bf16.msra.mxu0 0
  %10043 = vmatprep.mubr.bf16.mxu0 0
  %10044 = vmatmul.mubr.bf16.gmra.mrb[0].mxu0 %v9961
  %v10045 = vpop.f32.mrb[0].mxu0
  %v10046 = vadd.f32 0.0, %v10045
  %v10047 = vpop.f32.mrb[0].mxu0
  %v10048 = vpop.f32.mrb[0].mxu0
  %v10049 = vadd.f32 0.0, %v10048
  %v10050 = vpop.f32.mrb[0].mxu0
  %10051 = vmatprep.mubr.bf16.mxu0 0
  %10052 = vmatmul.mubr.bf16.gmra.mrb[0].mxu0 %v9962
  %v10053 = vpop.f32.mrb[0].mxu0
  %v10054 = vadd.f32 0.0, %v10053
  %v10055 = vpop.f32.mrb[0].mxu0
  %v10056 = vpop.f32.mrb[0].mxu0
  %v10057 = vpop.f32.mrb[0].mxu0
  %10058 = vdwg.mxu0
  %v10059 = vadd.f32 %v9827, %v10046
  %v10060 = vadd.f32 %v9828, %v10049
  %v10061 = vadd.f32 %v9829, %v10054
  %v10062 = vadd.f32 %v5921, %v10059
  %v10063 = vadd.f32 %v5922, %v10060
  %v10064 = vadd.f32 %v5923, %v10061
  %s10065 = scalar_lea.vmem %s37, 1
  %v10066 = vld [vmem:[%s10065] sm:$0x1]
  %s10067 = scalar_lea.vmem %s39, 1
  %v10068 = vld [vmem:[%s10067] sm:$0x1]
  %v10069 = vsel %vm1026, %v10062, 0.0
  %10070 = vadd.xlane.f32.xlu0 %v10069
  %v10071 = vpop.xlane.xlu0 %10070
  %v10072 = vsel %vm1026, %v10063, 0.0
  %10073 = vadd.xlane.f32.xlu0 %v10072
  %v10074 = vpop.xlane.xlu0 %10073
  %v10075 = vsel %vm1483, %v10064, 0.0
  %10076 = vadd.xlane.f32.xlu0 %v10075
  %v10077 = vpop.xlane.xlu0 %10076
  %v10078 = vmul.f32 %v10071, %v1487
  %v10079 = vmul.f32 %v10074, %v1487
  %v10080 = vmul.f32 %v10077, %v1487
  %v10081 = vsub.f32 %v10062, %v10078
  %v10082 = vsub.f32 %v10063, %v10079
  %v10083 = vsub.f32 %v10064, %v10080
  %v10084 = vmul.f32 %v10081, %v10081
  %v10085 = vmul.f32 %v10082, %v10082
  %v10086 = vmul.f32 %v10083, %v10083
  %v10087 = vsel %vm1026, %v10084, 0.0
  %10088 = vadd.xlane.f32.xlu0 %v10087
  %v10089 = vpop.xlane.xlu0 %10088
  %v10090 = vsel %vm1026, %v10085, 0.0
  %10091 = vadd.xlane.f32.xlu0 %v10090
  %v10092 = vpop.xlane.xlu0 %10091
  %v10093 = vsel %vm1483, %v10086, 0.0
  %10094 = vadd.xlane.f32.xlu0 %v10093
  %v10095 = vpop.xlane.xlu0 %10094
  %v10096 = vmul.f32 %v10089, %v1487
  %v10097 = vmul.f32 %v10092, %v1487
  %v10098 = vmul.f32 %v10095, %v1487
  %v10099 = vadd.f32 %v10096, 1e-05
  %v10100 = vadd.f32 %v10097, 1e-05
  %v10101 = vadd.f32 %v10098, 1e-05
  %v10102 = vrsqrt.pop %v10099
  %v10103 = vrsqrt.pop %v10100
  %v10104 = vrsqrt.pop %v10101
  %v10105 = vmul.f32 %v10081, %v10102
  %v10106 = vmul.f32 %v10082, %v10103
  %v10107 = vmul.f32 %v10083, %v10104
  %v10109 = vlaneseq
  %v10110 = vshrl.u32 %v10109, 7
  %v10111 = vsub.s32 0, %v10110
  %v10112 = vrot.slane %v10066, %v10111
  %v10114 = vmul.f32 %v10105, %v10112
  %v10115 = vmul.f32 %v10106, %v10112
  %v10116 = vmul.f32 %v10107, %v10112
  %v10118 = vlaneseq
  %v10119 = vshrl.u32 %v10118, 7
  %v10120 = vsub.s32 0, %v10119
  %v10121 = vrot.slane %v10068, %v10120
  %v10123 = vadd.f32 %v10114, %v10121
  %v10124 = vadd.f32 %v10115, %v10121
  %v10125 = vadd.f32 %v10116, %v10121
  %v10126 = vpack.c.bf16 %v10124, %v10123
  %v10127 = vpack.c.bf16 %v10125, %v10125
  %s10128 = scalar_lea.vmem %s41, 32
  %v10129 = vld [vmem:[%s10128] sm:$0xf]
  %v10130 = vld [vmem:[%s10128 + $0x4] sm:$0xf]
  %v10131 = vld [vmem:[%s10128 + $0x8] sm:$0xf]
  %v10132 = vld [vmem:[%s10128 + $0xc] sm:$0xf]
  %v10133 = vld [vmem:[%s10128 + $0x10] sm:$0xf]
  %v10134 = vld [vmem:[%s10128 + $0x14] sm:$0xf]
  %v10135 = vld [vmem:[%s10128 + $0x18] sm:$0xf]
  %v10136 = vld [vmem:[%s10128 + $0x1c] sm:$0xf]
  %s10137 = scalar_lea.vmem %s43, 1
  %v10138 = vld [vmem:[%s10137] sm:$0x1]
  %v10140 = vlaneseq
  %v10141 = vshrl.u32 %v10140, 7
  %v10142 = vsub.s32 0, %v10141
  %v10143 = vrot.slane %v10138, %v10142
  %v10153 = vunpack.c.l.b16 %v10129
  %v10154 = vunpack.c.l.b16 %v10130
  %v10155 = vunpack.c.l.b16 %v10131
  %v10156 = vunpack.c.l.b16 %v10132
  %v10157 = vunpack.c.l.b16 %v10133
  %v10158 = vunpack.c.l.b16 %v10134
  %v10159 = vunpack.c.l.b16 %v10135
  %v10160 = vunpack.c.l.b16 %v10136
  %v10161 = vpack.c.b16 %v10154, %v10153
  %v10162 = vpack.c.b16 %v10156, %v10155
  %v10163 = vpack.c.b16 %v10158, %v10157
  %v10164 = vpack.c.b16 %v10160, %v10159
  %v10170 = vsel %vm1026, %v10126, 0
  %v10173 = vsel %vm1026, %v10127, 0
  %10175 = vmatprep.subr.bf16.mxu0 0
  %10176 = vmatpush1.bf16.msra.mxu0 %v10161
  %10177 = vmatprep.subr.bf16.mxu0 0
  %10178 = vmatpush1.bf16.msra.mxu0 %v10162
  %10179 = vmatprep.subr.bf16.mxu0 0
  %10180 = vmatpush1.bf16.msra.mxu0 %v10163
  %10181 = vmatprep.subr.bf16.mxu0 0
  %10182 = vmatpush1.bf16.msra.mxu0 %v10164
  %10183 = vmatprep.subr.bf16.mxu0 0
  %10184 = vmatpush1.bf16.msra.mxu0 0
  %10185 = vmatprep.subr.bf16.mxu0 0
  %10186 = vmatpush1.bf16.msra.mxu0 0
  %10187 = vmatprep.subr.bf16.mxu0 0
  %10188 = vmatpush1.bf16.msra.mxu0 0
  %10189 = vmatprep.subr.bf16.mxu0 0
  %10190 = vmatpush1.bf16.msra.mxu0 0
  %10191 = vmatprep.subr.bf16.mxu0 0
  %10192 = vmatpush1.bf16.msra.mxu0 0
  %10193 = vmatprep.subr.bf16.mxu0 0
  %10194 = vmatpush1.bf16.msra.mxu0 0
  %10195 = vmatprep.subr.bf16.mxu0 0
  %10196 = vmatpush1.bf16.msra.mxu0 0
  %10197 = vmatprep.subr.bf16.mxu0 0
  %10198 = vmatpush1.bf16.msra.mxu0 0
  %10199 = vmatprep.subr.bf16.mxu0 0
  %10200 = vmatpush1.bf16.msra.mxu0 0
  %10201 = vmatprep.subr.bf16.mxu0 0
  %10202 = vmatpush1.bf16.msra.mxu0 0
  %10203 = vmatprep.subr.bf16.mxu0 0
  %10204 = vmatpush1.bf16.msra.mxu0 0
  %10205 = vmatprep.subr.bf16.mxu0 0
  %10206 = vmatpush1.bf16.msra.mxu0 0
  %10207 = vmatprep.mubr.bf16.mxu0 0
  %10208 = vmatmul.mubr.bf16.gmra.mrb[0].mxu0 %v10170
  %v10209 = vpop.f32.mrb[0].mxu0
  %v10210 = vadd.f32 %v10143, %v10209
  %v10211 = vpop.f32.mrb[0].mxu0
  %v10212 = vpop.f32.mrb[0].mxu0
  %v10213 = vadd.f32 %v10143, %v10212
  %v10214 = vpop.f32.mrb[0].mxu0
  %10215 = vmatprep.mubr.bf16.mxu0 0
  %10216 = vmatmul.mubr.bf16.gmra.mrb[0].mxu0 %v10173
  %v10217 = vpop.f32.mrb[0].mxu0
  %v10218 = vadd.f32 %v10143, %v10217
  %v10219 = vpop.f32.mrb[0].mxu0
  %v10220 = vpop.f32.mrb[0].mxu0
  %v10221 = vpop.f32.mrb[0].mxu0
  %10222 = vdwg.mxu0
  %v10223 = vmul.f32 %v10210, %v10210
  %v10224 = vmul.f32 %v10213, %v10213
  %v10225 = vmul.f32 %v10218, %v10218
  %v10226 = vmul.f32 %v10210, %v10223
  %v10227 = vmul.f32 %v10213, %v10224
  %v10228 = vmul.f32 %v10218, %v10225
  %v10229 = vmul.f32 %v10226, 0.044715
  %v10230 = vmul.f32 %v10227, 0.044715
  %v10231 = vmul.f32 %v10228, 0.044715
  %v10232 = vadd.f32 %v10210, %v10229
  %v10233 = vadd.f32 %v10213, %v10230
  %v10234 = vadd.f32 %v10218, %v10231
  %v10235 = vmul.f32 %v10232, 0.7978846
  %v10236 = vmul.f32 %v10233, 0.7978846
  %v10237 = vmul.f32 %v10234, 0.7978846
  %v10238 = vtanh.pop %v10235
  %v10239 = vtanh.pop %v10236
  %v10240 = vtanh.pop %v10237
  %v10241 = vadd.f32 %v10238, 1.0
  %v10242 = vadd.f32 %v10239, 1.0
  %v10243 = vadd.f32 %v10240, 1.0
  %v10244 = vmul.f32 %v10241, 0.5
  %v10245 = vmul.f32 %v10242, 0.5
  %v10246 = vmul.f32 %v10243, 0.5
  %v10247 = vmul.f32 %v10210, %v10244
  %v10248 = vmul.f32 %v10213, %v10245
  %v10249 = vmul.f32 %v10218, %v10246
  %v10250 = vpack.c.bf16 %v10248, %v10247
  %v10251 = vpack.c.bf16 %v10249, %v10249
  %s10252 = scalar_lea.vmem %s45, 64
  %v10253 = vld [vmem:[%s10252] sm:$0xf]
  %v10254 = vld [vmem:[%s10252 + $0x4] sm:$0xf]
  %v10255 = vld [vmem:[%s10252 + $0x8] sm:$0xf]
  %v10256 = vld [vmem:[%s10252 + $0xc] sm:$0xf]
  %v10257 = vld [vmem:[%s10252 + $0x10] sm:$0xf]
  %v10258 = vld [vmem:[%s10252 + $0x14] sm:$0xf]
  %v10259 = vld [vmem:[%s10252 + $0x18] sm:$0xf]
  %v10260 = vld [vmem:[%s10252 + $0x1c] sm:$0xf]
  %v10261 = vld [vmem:[%s10252 + $0x20] sm:$0xf]
  %v10262 = vld [vmem:[%s10252 + $0x24] sm:$0xf]
  %v10263 = vld [vmem:[%s10252 + $0x28] sm:$0xf]
  %v10264 = vld [vmem:[%s10252 + $0x2c] sm:$0xf]
  %v10265 = vld [vmem:[%s10252 + $0x30] sm:$0xf]
  %v10266 = vld [vmem:[%s10252 + $0x34] sm:$0xf]
  %v10267 = vld [vmem:[%s10252 + $0x38] sm:$0xf]
  %v10268 = vld [vmem:[%s10252 + $0x3c] sm:$0xf]
  %v10285 = vunpack.c.l.b16 %v10253
  %v10286 = vunpack.c.l.b16 %v10254
  %v10287 = vunpack.c.l.b16 %v10255
  %v10288 = vunpack.c.l.b16 %v10256
  %v10289 = vunpack.c.l.b16 %v10257
  %v10290 = vunpack.c.l.b16 %v10258
  %v10291 = vunpack.c.l.b16 %v10259
  %v10292 = vunpack.c.l.b16 %v10260
  %v10293 = vunpack.c.l.b16 %v10261
  %v10294 = vunpack.c.l.b16 %v10262
  %v10295 = vunpack.c.l.b16 %v10263
  %v10296 = vunpack.c.l.b16 %v10264
  %v10297 = vunpack.c.l.b16 %v10265
  %v10298 = vunpack.c.l.b16 %v10266
  %v10299 = vunpack.c.l.b16 %v10267
  %v10300 = vunpack.c.l.b16 %v10268
  %v10301 = vpack.c.b16 %v10286, %v10285
  %v10302 = vpack.c.b16 %v10288, %v10287
  %v10303 = vpack.c.b16 %v10290, %v10289
  %v10304 = vpack.c.b16 %v10292, %v10291
  %v10305 = vpack.c.b16 %v10294, %v10293
  %v10306 = vpack.c.b16 %v10296, %v10295
  %v10307 = vpack.c.b16 %v10298, %v10297
  %v10308 = vpack.c.b16 %v10300, %v10299
  %10317 = vmatprep.subr.bf16.mxu0 0
  %10318 = vmatpush1.bf16.msra.mxu0 %v10301
  %10319 = vmatprep.subr.bf16.mxu0 0
  %10320 = vmatpush1.bf16.msra.mxu0 %v10302
  %10321 = vmatprep.subr.bf16.mxu0 0
  %10322 = vmatpush1.bf16.msra.mxu0 %v10303
  %10323 = vmatprep.subr.bf16.mxu0 0
  %10324 = vmatpush1.bf16.msra.mxu0 %v10304
  %10325 = vmatprep.subr.bf16.mxu0 0
  %10326 = vmatpush1.bf16.msra.mxu0 %v10305
  %10327 = vmatprep.subr.bf16.mxu0 0
  %10328 = vmatpush1.bf16.msra.mxu0 %v10306
  %10329 = vmatprep.subr.bf16.mxu0 0
  %10330 = vmatpush1.bf16.msra.mxu0 %v10307
  %10331 = vmatprep.subr.bf16.mxu0 0
  %10332 = vmatpush1.bf16.msra.mxu0 %v10308
  %10333 = vmatprep.subr.bf16.mxu0 0
  %10334 = vmatpush1.bf16.msra.mxu0 0
  %10335 = vmatprep.subr.bf16.mxu0 0
  %10336 = vmatpush1.bf16.msra.mxu0 0
  %10337 = vmatprep.subr.bf16.mxu0 0
  %10338 = vmatpush1.bf16.msra.mxu0 0
  %10339 = vmatprep.subr.bf16.mxu0 0
  %10340 = vmatpush1.bf16.msra.mxu0 0
  %10341 = vmatprep.subr.bf16.mxu0 0
  %10342 = vmatpush1.bf16.msra.mxu0 0
  %10343 = vmatprep.subr.bf16.mxu0 0
  %10344 = vmatpush1.bf16.msra.mxu0 0
  %10345 = vmatprep.subr.bf16.mxu0 0
  %10346 = vmatpush1.bf16.msra.mxu0 0
  %10347 = vmatprep.subr.bf16.mxu0 0
  %10348 = vmatpush1.bf16.msra.mxu0 0
  %10349 = vmatprep.mubr.bf16.mxu0 0
  %10350 = vmatmul.mubr.bf16.gmra.mrb[0].mxu0 %v10250
  %v10351 = vpop.f32.mrb[0].mxu0
  %v10352 = vadd.f32 0.0, %v10351
  %v10353 = vpop.f32.mrb[0].mxu0
  %v10354 = vpop.f32.mrb[0].mxu0
  %v10355 = vpop.f32.mrb[0].mxu0
  %10356 = vmatprep.mubr.bf16.mxu0 0
  %10357 = vmatmul.mubr.bf16.gmra.mrb[0].mxu0 %v10251
  %v10358 = vpop.f32.mrb[0].mxu0
  %v10359 = vpop.f32.mrb[0].mxu0
  %v10360 = vpop.f32.mrb[0].mxu0
  %v10361 = vpop.f32.mrb[0].mxu0
  %10362 = vdwg.mxu0
  %v10363 = vadd.f32 %v10062, %v10352
  %s10364 = scalar_lea.vmem %s47, 1
  %v10365 = vld [vmem:[%s10364] sm:$0x1]
  %v10367 = vlaneseq
  %v10368 = vshrl.u32 %v10367, 7
  %v10369 = vsub.s32 0, %v10368
  %v10370 = vrot.slane %v10365, %v10369
  %v10372 = vadd.f32 %v10363, %v10370
  %v10373 = vld [vmem:[%s49] sm:$0x1]
  %v10374 = vld [vmem:[%s51] sm:$0x1]
  %v10375 = vsel %vm1483, %v10372, 0.0
  %10376 = vadd.xlane.f32.xlu0 %v10375
  %v10377 = vpop.xlane.xlu0 %10376
  %v10378 = vmul.f32 %v10377, %v1487
  %v10379 = vsub.f32 %v10372, %v10378
  %v10380 = vmul.f32 %v10379, %v10379
  %v10381 = vsel %vm1483, %v10380, 0.0
  %10382 = vadd.xlane.f32.xlu0 %v10381
  %v10383 = vpop.xlane.xlu0 %10382
  %v10384 = vmul.f32 %v10383, %v1487
  %v10385 = vadd.f32 %v10384, 1e-05
  %v10386 = vrsqrt.pop %v10385
  %v10387 = vmul.f32 %v10379, %v10386
  %v10388 = vmul.f32 %v10387, %v10373
  %v10389 = vadd.f32 %v10388, %v10374
  %v10390 = vpack.c.bf16 %v10389, %v10389
  %v10391 = vld [vmem:[%s53] sm:$0xf]
  %v10392 = vld [vmem:[%s53 + $0x4] sm:$0xf]
  %v10393 = vld [vmem:[%s53 + $0x8] sm:$0xf]
  %v10394 = vld [vmem:[%s53 + $0xc] sm:$0xf]
  %v10395 = vld [vmem:[%s53 + $0x10] sm:$0xf]
  %v10396 = vld [vmem:[%s53 + $0x14] sm:$0xf]
  %v10397 = vld [vmem:[%s53 + $0x18] sm:$0xf]
  %v10398 = vld [vmem:[%s53 + $0x1c] sm:$0xf]
  %v10399 = vld [vmem:[%s55] sm:$0x1]
  %v10408 = vunpack.c.l.b16 %v10391
  %v10409 = vunpack.c.l.b16 %v10392
  %v10410 = vunpack.c.l.b16 %v10393
  %v10411 = vunpack.c.l.b16 %v10394
  %v10412 = vunpack.c.l.b16 %v10395
  %v10413 = vunpack.c.l.b16 %v10396
  %v10414 = vunpack.c.l.b16 %v10397
  %v10415 = vunpack.c.l.b16 %v10398
  %v10416 = vpack.c.b16 %v10409, %v10408
  %v10417 = vpack.c.b16 %v10411, %v10410
  %v10418 = vpack.c.b16 %v10413, %v10412
  %v10419 = vpack.c.b16 %v10415, %v10414
  %v10425 = vsel %vm1026, %v10390, 0
  %10427 = vmatprep.subr.bf16.mxu0 0
  %10428 = vmatpush1.bf16.msra.mxu0 %v10416
  %10429 = vmatprep.subr.bf16.mxu0 0
  %10430 = vmatpush1.bf16.msra.mxu0 %v10417
  %10431 = vmatprep.subr.bf16.mxu0 0
  %10432 = vmatpush1.bf16.msra.mxu0 %v10418
  %10433 = vmatprep.subr.bf16.mxu0 0
  %10434 = vmatpush1.bf16.msra.mxu0 %v10419
  %10435 = vmatprep.subr.bf16.mxu0 0
  %10436 = vmatpush1.bf16.msra.mxu0 0
  %10437 = vmatprep.subr.bf16.mxu0 0
  %10438 = vmatpush1.bf16.msra.mxu0 0
  %10439 = vmatprep.subr.bf16.mxu0 0
  %10440 = vmatpush1.bf16.msra.mxu0 0
  %10441 = vmatprep.subr.bf16.mxu0 0
  %10442 = vmatpush1.bf16.msra.mxu0 0
  %10443 = vmatprep.subr.bf16.mxu0 0
  %10444 = vmatpush1.bf16.msra.mxu0 0
  %10445 = vmatprep.subr.bf16.mxu0 0
  %10446 = vmatpush1.bf16.msra.mxu0 0
  %10447 = vmatprep.subr.bf16.mxu0 0
  %10448 = vmatpush1.bf16.msra.mxu0 0
  %10449 = vmatprep.subr.bf16.mxu0 0
  %10450 = vmatpush1.bf16.msra.mxu0 0
  %10451 = vmatprep.subr.bf16.mxu0 0
  %10452 = vmatpush1.bf16.msra.mxu0 0
  %10453 = vmatprep.subr.bf16.mxu0 0
  %10454 = vmatpush1.bf16.msra.mxu0 0
  %10455 = vmatprep.subr.bf16.mxu0 0
  %10456 = vmatpush1.bf16.msra.mxu0 0
  %10457 = vmatprep.subr.bf16.mxu0 0
  %10458 = vmatpush1.bf16.msra.mxu0 0
  %10459 = vmatprep.mubr.bf16.mxu0 0
  %10460 = vmatmul.mubr.bf16.gmra.mrb[0].mxu0 %v10425
  %v10461 = vpop.f32.mrb[0].mxu0
  %v10462 = vadd.f32 %v10399, %v10461
  %v10463 = vpop.f32.mrb[0].mxu0
  %v10464 = vpop.f32.mrb[0].mxu0
  %v10465 = vpop.f32.mrb[0].mxu0
  %10466 = vdwg.mxu0
  %10468 = vrot.lane.b32.xlu0 %v10462, 64
  %v10469 = vpop.permute.xlu0 %10468
  %v10471 = vsel %vm1026, %v10462, %v10469
  %v10472 = vlaneseq
  %v10473 = vshrl.u32 %v10472, 7
  %v10474 = vsub.s32 0, %v10473
  %v10475 = vrot.slane %v10471, %v10474
  %v10476 = vlaneseq
  %v10477 = vshrl.u32 %v10476, 7
  %v10478 = vsub.s32 0, %v10477
  %v10479 = vrot.slane %v10462, %v10478
  %v10480 = vld [vmem:[%s57] sm:$0xff]
  %v10481 = vld [vmem:[%s57 + $0x8] sm:$0xff]
  %v10482 = vld [vmem:[%s57 + $0x10] sm:$0xf]
  %v10485 = vcombine.high %v10480, %v10480
  %v10486 = vcombine.high %v10481, %v10481
  %v10489 = vmul.f32 %v10475, %v10480
  %v10490 = vmul.f32 %v10475, %v10485
  %v10491 = vmul.f32 %v10475, %v10481
  %v10492 = vmul.f32 %v10475, %v10486
  %v10493 = vmul.f32 %v10479, %v10482
  %v10494 = vpack.c.bf16 %v10489, %v10489
  %v10495 = vpack.c.bf16 %v10490, %v10490
  %v10496 = vpack.c.bf16 %v10491, %v10491
  %v10497 = vpack.c.bf16 %v10492, %v10492
  %v10498 = vpack.c.bf16 %v10493, %v10493
  %v10499 = vld [vmem:[%s59] sm:$0xff]
  %v10500 = vld [vmem:[%s59 + $0x8] sm:$0xff]
  %v10501 = vld [vmem:[%s59 + $0x10] sm:$0xff]
  %v10502 = vld [vmem:[%s59 + $0x18] sm:$0xff]
  %v10503 = vld [vmem:[%s59 + $0x20] sm:$0xff]
  %v10504 = vld [vmem:[%s59 + $0x28] sm:$0xff]
  %v10505 = vld [vmem:[%s59 + $0x30] sm:$0xff]
  %v10506 = vld [vmem:[%s59 + $0x38] sm:$0xff]
  %v10507 = vld [vmem:[%s59 + $0x40] sm:$0xff]
  %v10508 = vld [vmem:[%s59 + $0x48] sm:$0xff]
  %v10509 = vld [vmem:[%s59 + $0x50] sm:$0xff]
  %v10510 = vld [vmem:[%s59 + $0x58] sm:$0xff]
  %v10511 = vld [vmem:[%s59 + $0x60] sm:$0xff]
  %v10512 = vld [vmem:[%s59 + $0x68] sm:$0xff]
  %v10513 = vld [vmem:[%s59 + $0x70] sm:$0xff]
  %v10514 = vld [vmem:[%s59 + $0x78] sm:$0xff]
  %v10515 = vld [vmem:[%s59 + $0x80] sm:$0xff]
  %v10516 = vld [vmem:[%s59 + $0x88] sm:$0xff]
  %v10517 = vld [vmem:[%s59 + $0x90] sm:$0xff]
  %v10518 = vld [vmem:[%s59 + $0x98] sm:$0xff]
  %v10519 = vld [vmem:[%s59 + $0xa0] sm:$0xff]
  %v10520 = vld [vmem:[%s59 + $0xa8] sm:$0xff]
  %v10521 = vld [vmem:[%s59 + $0xb0] sm:$0xff]
  %v10522 = vld [vmem:[%s59 + $0xb8] sm:$0xff]
  %v10523 = vld [vmem:[%s59 + $0xc0] sm:$0xff]
  %v10524 = vld [vmem:[%s59 + $0xc8] sm:$0xff]
  %v10525 = vld [vmem:[%s59 + $0xd0] sm:$0xff]
  %v10526 = vld [vmem:[%s59 + $0xd8] sm:$0xff]
  %v10527 = vld [vmem:[%s59 + $0xe0] sm:$0xff]
  %v10528 = vld [vmem:[%s59 + $0xe8] sm:$0xff]
  %v10529 = vld [vmem:[%s59 + $0xf0] sm:$0xff]
  %v10530 = vld [vmem:[%s59 + $0xf8] sm:$0xff]
  %v10531 = vld [vmem:[%s59 + $0x100] sm:$0xff]
  %v10532 = vld [vmem:[%s59 + $0x108] sm:$0xff]
  %v10533 = vld [vmem:[%s59 + $0x110] sm:$0xff]
  %v10534 = vld [vmem:[%s59 + $0x118] sm:$0xff]
  %v10535 = vld [vmem:[%s59 + $0x120] sm:$0xff]
  %v10536 = vld [vmem:[%s59 + $0x128] sm:$0xff]
  %v10537 = vld [vmem:[%s59 + $0x130] sm:$0xff]
  %v10538 = vld [vmem:[%s59 + $0x138] sm:$0xff]
  %v10539 = vld [vmem:[%s59 + $0x140] sm:$0xff]
  %v10540 = vld [vmem:[%s59 + $0x148] sm:$0xff]
  %v10541 = vld [vmem:[%s59 + $0x150] sm:$0xff]
  %v10542 = vld [vmem:[%s59 + $0x158] sm:$0xff]
  %v10543 = vld [vmem:[%s59 + $0x160] sm:$0xff]
  %v10544 = vld [vmem:[%s59 + $0x168] sm:$0xff]
  %v10545 = vld [vmem:[%s59 + $0x170] sm:$0xff]
  %v10546 = vld [vmem:[%s59 + $0x178] sm:$0xff]
  %v10547 = vld [vmem:[%s59 + $0x180] sm:$0xff]
  %v10548 = vld [vmem:[%s59 + $0x188] sm:$0xff]
  %v10549 = vld [vmem:[%s59 + $0x190] sm:$0xff]
  %v10550 = vld [vmem:[%s59 + $0x198] sm:$0xff]
  %v10551 = vld [vmem:[%s59 + $0x1a0] sm:$0xff]
  %v10552 = vld [vmem:[%s59 + $0x1a8] sm:$0xff]
  %v10553 = vld [vmem:[%s59 + $0x1b0] sm:$0xff]
  %v10554 = vld [vmem:[%s59 + $0x1b8] sm:$0xff]
  %v10555 = vld [vmem:[%s59 + $0x1c0] sm:$0xff]
  %v10556 = vld [vmem:[%s59 + $0x1c8] sm:$0xff]
  %v10557 = vld [vmem:[%s59 + $0x1d0] sm:$0xff]
  %v10558 = vld [vmem:[%s59 + $0x1d8] sm:$0xff]
  %v10559 = vld [vmem:[%s59 + $0x1e0] sm:$0xff]
  %v10560 = vld [vmem:[%s59 + $0x1e8] sm:$0xff]
  %v10561 = vld [vmem:[%s59 + $0x1f0] sm:$0xff]
  %v10562 = vld [vmem:[%s59 + $0x1f8] sm:$0xff]
  %v10563 = vld [vmem:[%s59 + $0x200] sm:$0xff]
  %v10564 = vld [vmem:[%s59 + $0x208] sm:$0xff]
  %v10565 = vld [vmem:[%s59 + $0x210] sm:$0xff]
  %v10566 = vld [vmem:[%s59 + $0x218] sm:$0xff]
  %v10567 = vld [vmem:[%s59 + $0x220] sm:$0xff]
  %v10568 = vld [vmem:[%s59 + $0x228] sm:$0xff]
  %v10569 = vld [vmem:[%s59 + $0x230] sm:$0xff]
  %v10570 = vld [vmem:[%s59 + $0x238] sm:$0xff]
  %v10571 = vld [vmem:[%s61] sm:$0xff]
  %v10644 = vunpack.c.l.b16 %v10499
  %v10645 = vunpack.c.h.b16 %v10499
  %v10646 = vunpack.c.l.b16 %v10500
  %v10647 = vunpack.c.h.b16 %v10500
  %v10648 = vunpack.c.l.b16 %v10501
  %v10649 = vunpack.c.h.b16 %v10501
  %v10650 = vunpack.c.l.b16 %v10502
  %v10651 = vunpack.c.h.b16 %v10502
  %v10652 = vunpack.c.l.b16 %v10503
  %v10653 = vunpack.c.h.b16 %v10503
  %v10654 = vunpack.c.l.b16 %v10504
  %v10655 = vunpack.c.h.b16 %v10504
  %v10656 = vunpack.c.l.b16 %v10505
  %v10657 = vunpack.c.h.b16 %v10505
  %v10658 = vunpack.c.l.b16 %v10506
  %v10659 = vunpack.c.h.b16 %v10506
  %v10660 = vunpack.c.l.b16 %v10507
  %v10661 = vunpack.c.h.b16 %v10507
  %v10662 = vunpack.c.l.b16 %v10508
  %v10663 = vunpack.c.h.b16 %v10508
  %v10664 = vunpack.c.l.b16 %v10509
  %v10665 = vunpack.c.h.b16 %v10509
  %v10666 = vunpack.c.l.b16 %v10510
  %v10667 = vunpack.c.h.b16 %v10510
  %v10668 = vunpack.c.l.b16 %v10511
  %v10669 = vunpack.c.h.b16 %v10511
  %v10670 = vunpack.c.l.b16 %v10512
  %v10671 = vunpack.c.h.b16 %v10512
  %v10672 = vunpack.c.l.b16 %v10513
  %v10673 = vunpack.c.h.b16 %v10513
  %v10674 = vunpack.c.l.b16 %v10514
  %v10675 = vunpack.c.h.b16 %v10514
  %v10676 = vunpack.c.l.b16 %v10515
  %v10677 = vunpack.c.h.b16 %v10515
  %v10678 = vunpack.c.l.b16 %v10516
  %v10679 = vunpack.c.h.b16 %v10516
  %v10680 = vunpack.c.l.b16 %v10517
  %v10681 = vunpack.c.h.b16 %v10517
  %v10682 = vunpack.c.l.b16 %v10518
  %v10683 = vunpack.c.h.b16 %v10518
  %v10684 = vunpack.c.l.b16 %v10519
  %v10685 = vunpack.c.h.b16 %v10519
  %v10686 = vunpack.c.l.b16 %v10520
  %v10687 = vunpack.c.h.b16 %v10520
  %v10688 = vunpack.c.l.b16 %v10521
  %v10689 = vunpack.c.h.b16 %v10521
  %v10690 = vunpack.c.l.b16 %v10522
  %v10691 = vunpack.c.h.b16 %v10522
  %v10692 = vunpack.c.l.b16 %v10523
  %v10693 = vunpack.c.h.b16 %v10523
  %v10694 = vunpack.c.l.b16 %v10524
  %v10695 = vunpack.c.h.b16 %v10524
  %v10696 = vunpack.c.l.b16 %v10525
  %v10697 = vunpack.c.h.b16 %v10525
  %v10698 = vunpack.c.l.b16 %v10526
  %v10699 = vunpack.c.h.b16 %v10526
  %v10700 = vunpack.c.l.b16 %v10527
  %v10701 = vunpack.c.h.b16 %v10527
  %v10702 = vunpack.c.l.b16 %v10528
  %v10703 = vunpack.c.h.b16 %v10528
  %v10704 = vunpack.c.l.b16 %v10529
  %v10705 = vunpack.c.h.b16 %v10529
  %v10706 = vunpack.c.l.b16 %v10530
  %v10707 = vunpack.c.h.b16 %v10530
  %v10708 = vunpack.c.l.b16 %v10531
  %v10709 = vunpack.c.h.b16 %v10531
  %v10710 = vunpack.c.l.b16 %v10532
  %v10711 = vunpack.c.h.b16 %v10532
  %v10712 = vunpack.c.l.b16 %v10533
  %v10713 = vunpack.c.h.b16 %v10533
  %v10714 = vunpack.c.l.b16 %v10534
  %v10715 = vunpack.c.h.b16 %v10534
  %v10716 = vunpack.c.l.b16 %v10535
  %v10717 = vunpack.c.h.b16 %v10535
  %v10718 = vunpack.c.l.b16 %v10536
  %v10719 = vunpack.c.h.b16 %v10536
  %v10720 = vunpack.c.l.b16 %v10537
  %v10721 = vunpack.c.h.b16 %v10537
  %v10722 = vunpack.c.l.b16 %v10538
  %v10723 = vunpack.c.h.b16 %v10538
  %v10724 = vunpack.c.l.b16 %v10539
  %v10725 = vunpack.c.h.b16 %v10539
  %v10726 = vunpack.c.l.b16 %v10540
  %v10727 = vunpack.c.h.b16 %v10540
  %v10728 = vunpack.c.l.b16 %v10541
  %v10729 = vunpack.c.h.b16 %v10541
  %v10730 = vunpack.c.l.b16 %v10542
  %v10731 = vunpack.c.h.b16 %v10542
  %v10732 = vunpack.c.l.b16 %v10543
  %v10733 = vunpack.c.h.b16 %v10543
  %v10734 = vunpack.c.l.b16 %v10544
  %v10735 = vunpack.c.h.b16 %v10544
  %v10736 = vunpack.c.l.b16 %v10545
  %v10737 = vunpack.c.h.b16 %v10545
  %v10738 = vunpack.c.l.b16 %v10546
  %v10739 = vunpack.c.h.b16 %v10546
  %v10740 = vunpack.c.l.b16 %v10547
  %v10741 = vunpack.c.h.b16 %v10547
  %v10742 = vunpack.c.l.b16 %v10548
  %v10743 = vunpack.c.h.b16 %v10548
  %v10744 = vunpack.c.l.b16 %v10549
  %v10745 = vunpack.c.h.b16 %v10549
  %v10746 = vunpack.c.l.b16 %v10550
  %v10747 = vunpack.c.h.b16 %v10550
  %v10748 = vunpack.c.l.b16 %v10551
  %v10749 = vunpack.c.h.b16 %v10551
  %v10750 = vunpack.c.l.b16 %v10552
  %v10751 = vunpack.c.h.b16 %v10552
  %v10752 = vunpack.c.l.b16 %v10553
  %v10753 = vunpack.c.h.b16 %v10553
  %v10754 = vunpack.c.l.b16 %v10554
  %v10755 = vunpack.c.h.b16 %v10554
  %v10756 = vunpack.c.l.b16 %v10555
  %v10757 = vunpack.c.h.b16 %v10555
  %v10758 = vunpack.c.l.b16 %v10556
  %v10759 = vunpack.c.h.b16 %v10556
  %v10760 = vunpack.c.l.b16 %v10557
  %v10761 = vunpack.c.h.b16 %v10557
  %v10762 = vunpack.c.l.b16 %v10558
  %v10763 = vunpack.c.h.b16 %v10558
  %v10764 = vunpack.c.l.b16 %v10559
  %v10765 = vunpack.c.h.b16 %v10559
  %v10766 = vunpack.c.l.b16 %v10560
  %v10767 = vunpack.c.h.b16 %v10560
  %v10768 = vunpack.c.l.b16 %v10561
  %v10769 = vunpack.c.h.b16 %v10561
  %v10770 = vunpack.c.l.b16 %v10562
  %v10771 = vunpack.c.h.b16 %v10562
  %v10772 = vunpack.c.l.b16 %v10563
  %v10773 = vunpack.c.h.b16 %v10563
  %v10774 = vunpack.c.l.b16 %v10564
  %v10775 = vunpack.c.h.b16 %v10564
  %v10776 = vunpack.c.l.b16 %v10565
  %v10777 = vunpack.c.h.b16 %v10565
  %v10778 = vunpack.c.l.b16 %v10566
  %v10779 = vunpack.c.h.b16 %v10566
  %v10780 = vunpack.c.l.b16 %v10567
  %v10781 = vunpack.c.h.b16 %v10567
  %v10782 = vunpack.c.l.b16 %v10568
  %v10783 = vunpack.c.h.b16 %v10568
  %v10784 = vunpack.c.l.b16 %v10569
  %v10785 = vunpack.c.h.b16 %v10569
  %v10786 = vunpack.c.l.b16 %v10570
  %v10787 = vunpack.c.h.b16 %v10570
  %v10788 = vpack.c.b16 %v10646, %v10644
  %v10789 = vpack.c.b16 %v10647, %v10645
  %v10790 = vpack.c.b16 %v10650, %v10648
  %v10791 = vpack.c.b16 %v10651, %v10649
  %v10792 = vpack.c.b16 %v10654, %v10652
  %v10793 = vpack.c.b16 %v10655, %v10653
  %v10794 = vpack.c.b16 %v10658, %v10656
  %v10795 = vpack.c.b16 %v10659, %v10657
  %v10796 = vpack.c.b16 %v10662, %v10660
  %v10797 = vpack.c.b16 %v10663, %v10661
  %v10798 = vpack.c.b16 %v10666, %v10664
  %v10799 = vpack.c.b16 %v10667, %v10665
  %v10800 = vpack.c.b16 %v10670, %v10668
  %v10801 = vpack.c.b16 %v10671, %v10669
  %v10802 = vpack.c.b16 %v10674, %v10672
  %v10803 = vpack.c.b16 %v10675, %v10673
  %v10804 = vpack.c.b16 %v10678, %v10676
  %v10805 = vpack.c.b16 %v10679, %v10677
  %v10806 = vpack.c.b16 %v10682, %v10680
  %v10807 = vpack.c.b16 %v10683, %v10681
  %v10808 = vpack.c.b16 %v10686, %v10684
  %v10809 = vpack.c.b16 %v10687, %v10685
  %v10810 = vpack.c.b16 %v10690, %v10688
  %v10811 = vpack.c.b16 %v10691, %v10689
  %v10812 = vpack.c.b16 %v10694, %v10692
  %v10813 = vpack.c.b16 %v10695, %v10693
  %v10814 = vpack.c.b16 %v10698, %v10696
  %v10815 = vpack.c.b16 %v10699, %v10697
  %v10816 = vpack.c.b16 %v10702, %v10700
  %v10817 = vpack.c.b16 %v10703, %v10701
  %v10818 = vpack.c.b16 %v10706, %v10704
  %v10819 = vpack.c.b16 %v10707, %v10705
  %v10820 = vpack.c.b16 %v10710, %v10708
  %v10821 = vpack.c.b16 %v10711, %v10709
  %v10822 = vpack.c.b16 %v10714, %v10712
  %v10823 = vpack.c.b16 %v10715, %v10713
  %v10824 = vpack.c.b16 %v10718, %v10716
  %v10825 = vpack.c.b16 %v10719, %v10717
  %v10826 = vpack.c.b16 %v10722, %v10720
  %v10827 = vpack.c.b16 %v10723, %v10721
  %v10828 = vpack.c.b16 %v10726, %v10724
  %v10829 = vpack.c.b16 %v10727, %v10725
  %v10830 = vpack.c.b16 %v10730, %v10728
  %v10831 = vpack.c.b16 %v10731, %v10729
  %v10832 = vpack.c.b16 %v10734, %v10732
  %v10833 = vpack.c.b16 %v10735, %v10733
  %v10834 = vpack.c.b16 %v10738, %v10736
  %v10835 = vpack.c.b16 %v10739, %v10737
  %v10836 = vpack.c.b16 %v10742, %v10740
  %v10837 = vpack.c.b16 %v10743, %v10741
  %v10838 = vpack.c.b16 %v10746, %v10744
  %v10839 = vpack.c.b16 %v10747, %v10745
  %v10840 = vpack.c.b16 %v10750, %v10748
  %v10841 = vpack.c.b16 %v10751, %v10749
  %v10842 = vpack.c.b16 %v10754, %v10752
  %v10843 = vpack.c.b16 %v10755, %v10753
  %v10844 = vpack.c.b16 %v10758, %v10756
  %v10845 = vpack.c.b16 %v10759, %v10757
  %v10846 = vpack.c.b16 %v10762, %v10760
  %v10847 = vpack.c.b16 %v10763, %v10761
  %v10848 = vpack.c.b16 %v10766, %v10764
  %v10849 = vpack.c.b16 %v10767, %v10765
  %v10850 = vpack.c.b16 %v10770, %v10768
  %v10851 = vpack.c.b16 %v10771, %v10769
  %v10852 = vpack.c.b16 %v10774, %v10772
  %v10853 = vpack.c.b16 %v10775, %v10773
  %v10854 = vpack.c.b16 %v10778, %v10776
  %v10855 = vpack.c.b16 %v10779, %v10777
  %v10856 = vpack.c.b16 %v10782, %v10780
  %v10857 = vpack.c.b16 %v10783, %v10781
  %v10858 = vpack.c.b16 %v10786, %v10784
  %v10859 = vpack.c.b16 %v10787, %v10785
  %v10933 = vcombine.high %v10571, %v10571
  %v10936 = vsel %vm1026, %v10498, 0
  %10938 = vmatprep.subr.bf16.mxu0 %v10789
  %10939 = vmatpush1.bf16.msra.mxu0 %v10788
  %10940 = vmatprep.subr.bf16.mxu0 %v10791
  %10941 = vmatpush1.bf16.msra.mxu0 %v10790
  %10942 = vmatprep.subr.bf16.mxu0 %v10793
  %10943 = vmatpush1.bf16.msra.mxu0 %v10792
  %10944 = vmatprep.subr.bf16.mxu0 %v10795
  %10945 = vmatpush1.bf16.msra.mxu0 %v10794
  %10946 = vmatprep.subr.bf16.mxu0 %v10797
  %10947 = vmatpush1.bf16.msra.mxu0 %v10796
  %10948 = vmatprep.subr.bf16.mxu0 %v10799
  %10949 = vmatpush1.bf16.msra.mxu0 %v10798
  %10950 = vmatprep.subr.bf16.mxu0 %v10801
  %10951 = vmatpush1.bf16.msra.mxu0 %v10800
  %10952 = vmatprep.subr.bf16.mxu0 %v10803
  %10953 = vmatpush1.bf16.msra.mxu0 %v10802
  %10954 = vmatprep.subr.bf16.mxu0 %v10805
  %10955 = vmatpush1.bf16.msra.mxu0 %v10804
  %10956 = vmatprep.subr.bf16.mxu0 %v10807
  %10957 = vmatpush1.bf16.msra.mxu0 %v10806
  %10958 = vmatprep.subr.bf16.mxu0 %v10809
  %10959 = vmatpush1.bf16.msra.mxu0 %v10808
  %10960 = vmatprep.subr.bf16.mxu0 %v10811
  %10961 = vmatpush1.bf16.msra.mxu0 %v10810
  %10962 = vmatprep.subr.bf16.mxu0 %v10813
  %10963 = vmatpush1.bf16.msra.mxu0 %v10812
  %10964 = vmatprep.subr.bf16.mxu0 %v10815
  %10965 = vmatpush1.bf16.msra.mxu0 %v10814
  %10966 = vmatprep.subr.bf16.mxu0 %v10817
  %10967 = vmatpush1.bf16.msra.mxu0 %v10816
  %10968 = vmatprep.subr.bf16.mxu0 %v10819
  %10969 = vmatpush1.bf16.msra.mxu0 %v10818
  %10970 = vmatprep.mubr.bf16.mxu0 %v10495
  %10971 = vmatmul.mubr.bf16.gmra.mrb[0].mxu0 %v10494
  %v10972 = vpop.f32.mrb[0].mxu0
  %v10973 = vadd.f32 %v10571, %v10972
  %v10974 = vpop.f32.mrb[0].mxu0
  %v10975 = vadd.f32 %v10933, %v10974
  %v10976 = vpop.f32.mrb[0].mxu0
  %v10977 = vpop.f32.mrb[0].mxu0
  %10978 = vdwg.mxu0
  %10979 = vmatprep.subr.bf16.mxu0 %v10821
  %10980 = vmatpush1.bf16.msra.mxu0 %v10820
  %10981 = vmatprep.subr.bf16.mxu0 %v10823
  %10982 = vmatpush1.bf16.msra.mxu0 %v10822
  %10983 = vmatprep.subr.bf16.mxu0 %v10825
  %10984 = vmatpush1.bf16.msra.mxu0 %v10824
  %10985 = vmatprep.subr.bf16.mxu0 %v10827
  %10986 = vmatpush1.bf16.msra.mxu0 %v10826
  %10987 = vmatprep.subr.bf16.mxu0 %v10829
  %10988 = vmatpush1.bf16.msra.mxu0 %v10828
  %10989 = vmatprep.subr.bf16.mxu0 %v10831
  %10990 = vmatpush1.bf16.msra.mxu0 %v10830
  %10991 = vmatprep.subr.bf16.mxu0 %v10833
  %10992 = vmatpush1.bf16.msra.mxu0 %v10832
  %10993 = vmatprep.subr.bf16.mxu0 %v10835
  %10994 = vmatpush1.bf16.msra.mxu0 %v10834
  %10995 = vmatprep.subr.bf16.mxu0 %v10837
  %10996 = vmatpush1.bf16.msra.mxu0 %v10836
  %10997 = vmatprep.subr.bf16.mxu0 %v10839
  %10998 = vmatpush1.bf16.msra.mxu0 %v10838
  %10999 = vmatprep.subr.bf16.mxu0 %v10841
  %11000 = vmatpush1.bf16.msra.mxu0 %v10840
  %11001 = vmatprep.subr.bf16.mxu0 %v10843
  %11002 = vmatpush1.bf16.msra.mxu0 %v10842
  %11003 = vmatprep.subr.bf16.mxu0 %v10845
  %11004 = vmatpush1.bf16.msra.mxu0 %v10844
  %11005 = vmatprep.subr.bf16.mxu0 %v10847
  %11006 = vmatpush1.bf16.msra.mxu0 %v10846
  %11007 = vmatprep.subr.bf16.mxu0 %v10849
  %11008 = vmatpush1.bf16.msra.mxu0 %v10848
  %11009 = vmatprep.subr.bf16.mxu0 %v10851
  %11010 = vmatpush1.bf16.msra.mxu0 %v10850
  %11011 = vmatprep.mubr.bf16.mxu0 %v10497
  %11012 = vmatmul.mubr.bf16.gmra.mrb[0].mxu0 %v10496
  %v11013 = vpop.f32.mrb[0].mxu0
  %v11014 = vadd.f32 %v10973, %v11013
  %v11015 = vpop.f32.mrb[0].mxu0
  %v11016 = vadd.f32 %v10975, %v11015
  %v11017 = vpop.f32.mrb[0].mxu0
  %v11018 = vpop.f32.mrb[0].mxu0
  %11019 = vdwg.mxu0
  %11020 = vmatprep.subr.bf16.mxu0 %v10853
  %11021 = vmatpush1.bf16.msra.mxu0 %v10852
  %11022 = vmatprep.subr.bf16.mxu0 %v10855
  %11023 = vmatpush1.bf16.msra.mxu0 %v10854
  %11024 = vmatprep.subr.bf16.mxu0 %v10857
  %11025 = vmatpush1.bf16.msra.mxu0 %v10856
  %11026 = vmatprep.subr.bf16.mxu0 %v10859
  %11027 = vmatpush1.bf16.msra.mxu0 %v10858
  %11028 = vmatprep.subr.bf16.mxu0 0
  %11029 = vmatpush1.bf16.msra.mxu0 0
  %11030 = vmatprep.subr.bf16.mxu0 0
  %11031 = vmatpush1.bf16.msra.mxu0 0
  %11032 = vmatprep.subr.bf16.mxu0 0
  %11033 = vmatpush1.bf16.msra.mxu0 0
  %11034 = vmatprep.subr.bf16.mxu0 0
  %11035 = vmatpush1.bf16.msra.mxu0 0
  %11036 = vmatprep.subr.bf16.mxu0 0
  %11037 = vmatpush1.bf16.msra.mxu0 0
  %11038 = vmatprep.subr.bf16.mxu0 0
  %11039 = vmatpush1.bf16.msra.mxu0 0
  %11040 = vmatprep.subr.bf16.mxu0 0
  %11041 = vmatpush1.bf16.msra.mxu0 0
  %11042 = vmatprep.subr.bf16.mxu0 0
  %11043 = vmatpush1.bf16.msra.mxu0 0
  %11044 = vmatprep.subr.bf16.mxu0 0
  %11045 = vmatpush1.bf16.msra.mxu0 0
  %11046 = vmatprep.subr.bf16.mxu0 0
  %11047 = vmatpush1.bf16.msra.mxu0 0
  %11048 = vmatprep.subr.bf16.mxu0 0
  %11049 = vmatpush1.bf16.msra.mxu0 0
  %11050 = vmatprep.subr.bf16.mxu0 0
  %11051 = vmatpush1.bf16.msra.mxu0 0
  %11052 = vmatprep.mubr.bf16.mxu0 0
  %11053 = vmatmul.mubr.bf16.gmra.mrb[0].mxu0 %v10936
  %v11054 = vpop.f32.mrb[0].mxu0
  %v11055 = vadd.f32 %v11014, %v11054
  %v11056 = vpop.f32.mrb[0].mxu0
  %v11057 = vadd.f32 %v11016, %v11056
  %v11058 = vpop.f32.mrb[0].mxu0
  %v11059 = vpop.f32.mrb[0].mxu0
  %11060 = vdwg.mxu0
  %vm11061 = vcmask 1043456
  %v11062 = vsel %vm11061, %v11055, -inf
  %v11063 = vrot.slane %v11062, 4
  %v11064 = vmax.f32 %v11062, %v11063
  %v11065 = vrot.slane %v11064, 2
  %v11066 = vmax.f32 %v11064, %v11065
  %v11067 = vrot.slane %v11066, 1
  %v11068 = vmax.f32 %v11066, %v11067
  %v11069 = vsel %vm11061, %v11057, -inf
  %v11070 = vrot.slane %v11069, 4
  %v11071 = vmax.f32 %v11069, %v11070
  %v11072 = vrot.slane %v11071, 2
  %v11073 = vmax.f32 %v11071, %v11072
  %v11074 = vrot.slane %v11073, 1
  %v11075 = vmax.f32 %v11073, %v11074
  %v11076 = vsub.f32 %v11055, %v11068
  %v11077 = vsub.f32 %v11057, %v11075
  %v11078 = vmul.f32 %v11076, 1.442695
  %v11079 = vpow.pop %v11078
  %v11080 = vmul.f32 %v11077, 1.442695
  %v11081 = vpow.pop %v11080
  %v11082 = vsel %vm11061, %v11079, 0.0
  %v11083 = vrot.slane %v11082, 4
  %v11084 = vadd.f32 %v11082, %v11083
  %v11085 = vrot.slane %v11084, 2
  %v11086 = vadd.f32 %v11084, %v11085
  %v11087 = vrot.slane %v11086, 1
  %v11088 = vadd.f32 %v11086, %v11087
  %v11089 = vsel %vm11061, %v11081, 0.0
  %v11090 = vrot.slane %v11089, 4
  %v11091 = vadd.f32 %v11089, %v11090
  %v11092 = vrot.slane %v11091, 2
  %v11093 = vadd.f32 %v11091, %v11092
  %v11094 = vrot.slane %v11093, 1
  %v11095 = vadd.f32 %v11093, %v11094
  %v11096 = vrcp.pop %v11088
  %v11097 = vmul.f32 %v11079, %v11096
  %v11098 = vrcp.pop %v11095
  %v11099 = vmul.f32 %v11081, %v11098
  %v11100 = vld [vmem:[%s63] sm:$0xff]
  %v11101 = vld [vmem:[%s63 + $0x8] sm:$0xff]
  %vm11102 = vcmask 31744
  %v11104 = vsel %vm11102, %v11100, 0
  %v11107 = vsel %vm11102, %v11101, 0
  %v11110 = vsel %vm11061, %v11097, 0
  %v11113 = vsel %vm11061, %v11099, 0
  %11115 = vmatprep.subr.mxu0 %v11113
  %11116 = vmatpush1.msra.mxu0 %v11110
  %11117 = vmatprep.subr.mxu0 0.0
  %11118 = vmatpush1.msra.mxu0 0.0
  %11119 = vmatprep.subr.mxu0 0.0
  %11120 = vmatpush1.msra.mxu0 0.0
  %11121 = vmatprep.subr.mxu0 0.0
  %11122 = vmatpush1.msra.mxu0 0.0
  %11123 = vmatprep.subr.mxu0 0.0
  %11124 = vmatpush1.msra.mxu0 0.0
  %11125 = vmatprep.subr.mxu0 0.0
  %11126 = vmatpush1.msra.mxu0 0.0
  %11127 = vmatprep.subr.mxu0 0.0
  %11128 = vmatpush1.msra.mxu0 0.0
  %11129 = vmatprep.subr.mxu0 0.0
  %11130 = vmatpush1.msra.mxu0 0.0
  %11131 = vmatprep.subr.mxu0 0.0
  %11132 = vmatpush1.msra.mxu0 0.0
  %11133 = vmatprep.subr.mxu0 0.0
  %11134 = vmatpush1.msra.mxu0 0.0
  %11135 = vmatprep.subr.mxu0 0.0
  %11136 = vmatpush1.msra.mxu0 0.0
  %11137 = vmatprep.subr.mxu0 0.0
  %11138 = vmatpush1.msra.mxu0 0.0
  %11139 = vmatprep.subr.mxu0 0.0
  %11140 = vmatpush1.msra.mxu0 0.0
  %11141 = vmatprep.subr.mxu0 0.0
  %11142 = vmatpush1.msra.mxu0 0.0
  %11143 = vmatprep.subr.mxu0 0.0
  %11144 = vmatpush1.msra.mxu0 0.0
  %11145 = vmatprep.subr.mxu0 0.0
  %11146 = vmatpush1.msra.mxu0 0.0
  %11147 = vmatprep.subr.mxu0 0.0
  %11148 = vmatpush1.msra.mxu0 0.0
  %11149 = vmatprep.subr.mxu0 0.0
  %11150 = vmatpush1.msra.mxu0 0.0
  %11151 = vmatprep.subr.mxu0 0.0
  %11152 = vmatpush1.msra.mxu0 0.0
  %11153 = vmatprep.subr.mxu0 0.0
  %11154 = vmatpush1.msra.mxu0 0.0
  %11155 = vmatprep.subr.mxu0 0.0
  %11156 = vmatpush1.msra.mxu0 0.0
  %11157 = vmatprep.subr.mxu0 0.0
  %11158 = vmatpush1.msra.mxu0 0.0
  %11159 = vmatprep.subr.mxu0 0.0
  %11160 = vmatpush1.msra.mxu0 0.0
  %11161 = vmatprep.subr.mxu0 0.0
  %11162 = vmatpush1.msra.mxu0 0.0
  %11163 = vmatprep.subr.mxu0 0.0
  %11164 = vmatpush1.msra.mxu0 0.0
  %11165 = vmatprep.subr.mxu0 0.0
  %11166 = vmatpush1.msra.mxu0 0.0
  %11167 = vmatprep.subr.mxu0 0.0
  %11168 = vmatpush1.msra.mxu0 0.0
  %11169 = vmatprep.subr.mxu0 0.0
  %11170 = vmatpush1.msra.mxu0 0.0
  %11171 = vmatprep.subr.mxu0 0.0
  %11172 = vmatpush1.msra.mxu0 0.0
  %11173 = vmatprep.subr.mxu0 0.0
  %11174 = vmatpush1.msra.mxu0 0.0
  %11175 = vmatprep.subr.mxu0 0.0
  %11176 = vmatpush1.msra.mxu0 0.0
  %11177 = vmatprep.subr.mxu0 0.0
  %11178 = vmatpush1.msra.mxu0 0.0
  %11179 = vmatprep.mubr.f32.mxu0 0.0
  %11180 = vmatmul.mubr.f32.gmra.mrb[0].mxu0 %v11104
  %v11181 = vpop.f32.mrb[0].mxu0
  %v11182 = vadd.f32 0.0, %v11181
  %v11183 = vpop.f32.mrb[0].mxu0
  %v11184 = vadd.f32 0.0, %v11183
  %11185 = vmatprep.mubr.f32.mxu0 0.0
  %11186 = vmatmul.mubr.f32.gmra.mrb[0].mxu0 %v11107
  %v11187 = vpop.f32.mrb[0].mxu0
  %v11188 = vadd.f32 0.0, %v11187
  %v11189 = vpop.f32.mrb[0].mxu0
  %v11190 = vadd.f32 0.0, %v11189
  %11191 = vdwg.mxu0
  %v11192 = vmax.f32 %v11182, 0.0
  %v11193 = vmax.f32 %v11184, 0.0
  %v11194 = vmax.f32 %v11188, 0.0
  %v11195 = vmax.f32 %v11190, 0.0
  %11196 = vst [vmem:[%s65] sm:$0xff] %v11192
  %11197 = vst [vmem:[%s65 + $0x8] sm:$0xff] %v11193
  %11198 = vst [vmem:[%s65 + $0x10] sm:$0xff] %v11194
  %11199 = vst [vmem:[%s65 + $0x18] sm:$0xff] %v11195
  // Predicated region
  $region130: #{autoencoder_forward.1} parent=0 // pred_check
    _
  $region131: #{autoencoder_forward.1} parent=0 // pred_check_branch
    %11201 = sbr.rel (0) target = $region133
  $region132: #{autoencoder_forward.1} parent=0 // pred_region
    _
  $region133: #{autoencoder_forward.1} parent=0 // pred_fallthru
    _
  // Predicated region
  $region134: #{autoencoder_forward.1} parent=0 // pred_check
    _
  $region135: #{autoencoder_forward.1} parent=0 // pred_check_branch
    %11203 = sbr.rel (0) target = $region137
  $region136: #{autoencoder_forward.1} parent=0 // pred_region
    _
  $region137: #{autoencoder_forward.1} parent=0 // pred_fallthru
    _

</llo_original>
